<compile_context>
chip_gen: v7x
topology: tpu7x:2x2x1
jax: 0.10.0
libtpu: 0.0.40
codegen_flags: <defaults>
</compile_context>

<pallas_src>
import math
from functools import partial

import jax
import jax.numpy as jnp
from jax import lax
from jax.experimental import pallas as pl
from jax.experimental.pallas import tpu as pltpu

# ---- synthetic configuration (small, consistent with the module) --------------------------
B, L, LC, D, H, DFF, N_LAYERS = 2, 8, 16, 32, 4, 64, 2
DH = D // H
EPS = 1e-5

# rows of the packed LN/bias tensor `lnb` (N_LAYERS + 1, 16, D):
#  layers 0..N_LAYERS-1:  0: self LN gamma  1: self LN beta
#                         2: cross LN gamma 3: cross LN beta
#                         4: ff LN gamma    5: ff LN beta
#                         6: self-attn output bias   7: cross-attn output bias
#                         8: ff second bias          9..15: padding
#  slab N_LAYERS:         0: final LN gamma 1: final LN beta


# ---- in-kernel helpers ---------------------------------------------------------------------
def _layer_norm(x, gamma, beta):
    mu = jnp.mean(x, axis=-1, keepdims=True)
    var = jnp.mean((x - mu) ** 2, axis=-1, keepdims=True)
    return (x - mu) * lax.rsqrt(var + EPS) * gamma + beta


def _mha(q, k, v, need_probs):
    """Multi-head attention for a single batch element.

    q: (Lq, D) f32 (scale already folded into the Q projection), k/v: (Lk, D) f32.
    Returns (concat-of-heads (Lq, D) f32, [per-head probs (Lq, Lk) f32] if need_probs else []).
    """
    qb = q.astype(jnp.bfloat16)
    kb = k.astype(jnp.bfloat16)
    vb = v.astype(jnp.bfloat16)
    heads, probs = [], []
    for h in range(H):                                   # static loop, H = 4
        sl = slice(h * DH, (h + 1) * DH)
        # A @ B^T via dot_general (contract dim 1 of both) -> no explicit transpose
        s = lax.dot_general(qb[:, sl], kb[:, sl], (((1,), (1,)), ((), ())),
                            preferred_element_type=jnp.float32)       # (Lq, Lk) f32
        s = s - jnp.max(s, axis=-1, keepdims=True)
        e = jnp.exp(s)
        denom = jnp.sum(e, axis=-1, keepdims=True)
        if need_probs:
            p = e / denom                                # exact: probs are returned to the caller
        else:
            p = e * pl.reciprocal(denom, approx=True)    # internal only -> EUP approx reciprocal
        heads.append(jnp.dot(p.astype(jnp.bfloat16), vb[:, sl],
                             preferred_element_type=jnp.float32))     # (Lq, DH)
        if need_probs:
            probs.append(p)
    return jnp.concatenate(heads, axis=-1), probs        # (Lq, D)


# ---- fused kernel: embed-add + all layers + final norm, activation resident in VMEM ---------
def decoder_kernel(vt_ref, sp_ref, cross_ref,
                   lnb_ref, bqkv_ref, bff1_ref,
                   wqkv_s_ref, wq_c_ref, wkv_c_ref, wo_ref, wff1_ref, wff2_ref,
                   *out_refs, bb: int, with_attn: bool):
    o_ref = out_refs[0]
    attn_ref = out_refs[1] if with_attn else None

    # emb_dropout p=0.0 -> identity; embed add fused into the same kernel
    x = (vt_ref[...].astype(jnp.float32) + sp_ref[...].astype(jnp.float32)).reshape(bb * L, D)
    cross_bf = cross_ref[...].reshape(bb * LC, D).astype(jnp.bfloat16)

    attn_slabs = [[] for _ in range(bb)]                 # per batch elem: per-layer (L, H*LC)

    for l in range(N_LAYERS):                            # static layer loop (N_LAYERS = 2)
        lnp = lnb_ref[l]                                 # (16, D) f32
        bqkv = bqkv_ref[l]                               # (2, 3D) f32
        wo_l = wo_ref[l]                                 # (2, D, D) bf16: [self, cross]

        # ---- pre-norm global self-attention (fused QKV dot) ----
        xn = _layer_norm(x, lnp[0:1], lnp[1:2])
        qkv = jnp.dot(xn.astype(jnp.bfloat16), wqkv_s_ref[l],
                      preferred_element_type=jnp.float32) + bqkv[0:1]   # (bb*L, 3D)
        q, k, v = qkv[:, 0:D], qkv[:, D:2 * D], qkv[:, 2 * D:3 * D]
        per_b = []
        for i in range(bb):                              # static, bb <= 2
            rows = slice(i * L, (i + 1) * L)
            hcat, _ = _mha(q[rows], k[rows], v[rows], need_probs=False)
            per_b.append(hcat)
        heads_all = jnp.concatenate(per_b, axis=0)       # (bb*L, D)
        sa = jnp.dot(heads_all.astype(jnp.bfloat16), wo_l[0],
                     preferred_element_type=jnp.float32) + lnp[6:7]
        x = x + sa                                       # dropout_attn_out p=0 -> identity

        # ---- pre-norm global cross-attention over the encoder memory (fused KV dot) ----
        xn = _layer_norm(x, lnp[2:3], lnp[3:4])
        qc = jnp.dot(xn.astype(jnp.bfloat16), wq_c_ref[l],
                     preferred_element_type=jnp.float32) + bqkv[1:2, 0:D]      # (bb*L, D)
        kv = jnp.dot(cross_bf, wkv_c_ref[l],
                     preferred_element_type=jnp.float32) + bqkv[1:2, D:3 * D]  # (bb*LC, 2D)
        kc, vc = kv[:, 0:D], kv[:, D:2 * D]
        per_b = []
        for i in range(bb):
            rq = slice(i * L, (i + 1) * L)
            rk = slice(i * LC, (i + 1) * LC)
            hcat, probs = _mha(qc[rq], kc[rk], vc[rk], need_probs=with_attn)
            per_b.append(hcat)
            if with_attn:
                attn_slabs[i].append(jnp.concatenate(probs, axis=-1))    # (L, H*LC)
        heads_all = jnp.concatenate(per_b, axis=0)
        ca = jnp.dot(heads_all.astype(jnp.bfloat16), wo_l[1],
                     preferred_element_type=jnp.float32) + lnp[7:8]
        x = x + ca

        # ---- pre-norm pointwise feed-forward (Conv1d k=1 == per-token linear) ----
        xn = _layer_norm(x, lnp[4:5], lnp[5:6])
        h1 = jnp.dot(xn.astype(jnp.bfloat16), wff1_ref[l],
                     preferred_element_type=jnp.float32) + bff1_ref[l]
        h1 = jnp.maximum(h1, 0.0)                        # ReLU
        ff = jnp.dot(h1.astype(jnp.bfloat16), wff2_ref[l],
                     preferred_element_type=jnp.float32) + lnp[8:9]
        x = x + ff                                       # dropout_ff p=0 -> identity

    # final norm_layer (params packed into the last slab of lnb)
    fin = lnb_ref[N_LAYERS]
    o_ref[...] = _layer_norm(x, fin[0:1], fin[1:2]).reshape(bb, L, D).astype(o_ref.dtype)

    if with_attn:
        # lane-dense packed output: (bb, L, N_LAYERS*H*LC) -> unmasked full-width stores
        packed = jnp.stack(
            [jnp.concatenate(attn_slabs[i], axis=-1) for i in range(bb)], axis=0)
        attn_ref[...] = packed.astype(attn_ref.dtype)


# ---- wrapper --------------------------------------------------------------------------------
def _rep_spec(p):
    # whole (replicated) parameter block, constant over the batch grid axis
    return pl.BlockSpec(p.shape, lambda b, n=p.ndim: (0,) * n)


def _default_block_batch(batch):
    # v7x has 2 TensorCores/chip -> split the batch over the grid; v5e/v6e are single-TC,
    # so folding the whole batch into one grid step avoids per-step overhead.
    try:
        kind = jax.devices()[0].device_kind.lower()
    except Exception:
        kind = ""
    if ("v7" in kind or "7x" in kind) and batch % 2 == 0:
        return batch // 2
    return batch


def decoder_forward(val_time_emb, space_emb, cross, packed_params,
                    self_mask_seq=None, cross_mask_seq=None, output_cross_attn=False,
                    block_batch=None):
    # TODO(synk): masks not supported in-kernel; the module's default call passes None.
    assert self_mask_seq is None and cross_mask_seq is None

    (lnb, bqkv, bff1, wqkv_s, wq_c, wkv_c, wo, wff1, wff2) = packed_params

    bb = _default_block_batch(B) if block_batch is None else block_batch
    assert B % bb == 0
    grid = (B // bb,)

    seq_spec = pl.BlockSpec((bb, L, D), lambda b: (b, 0, 0))
    cross_spec = pl.BlockSpec((bb, LC, D), lambda b: (b, 0, 0))
    in_specs = [seq_spec, seq_spec, cross_spec,
                _rep_spec(lnb), _rep_spec(bqkv), _rep_spec(bff1),
                _rep_spec(wqkv_s), _rep_spec(wq_c), _rep_spec(wkv_c),
                _rep_spec(wo), _rep_spec(wff1), _rep_spec(wff2)]

    x_shape = jax.ShapeDtypeStruct((B, L, D), val_time_emb.dtype)
    x_spec = pl.BlockSpec((bb, L, D), lambda b: (b, 0, 0))

    if output_cross_attn:
        lane = N_LAYERS * H * LC                       # 128 at these sizes -> lane-dense stores
        attn_shape = jax.ShapeDtypeStruct((B, L, lane), jnp.float32)
        attn_spec = pl.BlockSpec((bb, L, lane), lambda b: (b, 0, 0))
        out_shape = (x_shape, attn_shape)
        out_specs = (x_spec, attn_spec)
    else:
        out_shape = x_shape
        out_specs = x_spec

    call = pl.pallas_call(
        partial(decoder_kernel, bb=bb, with_attn=output_cross_attn),
        grid=grid,
        in_specs=in_specs,
        out_specs=out_specs,
        out_shape=out_shape,
        compiler_params=pltpu.CompilerParams(dimension_semantics=("parallel",)),
    )
    outs = call(val_time_emb, space_emb, cross,
                lnb, bqkv, bff1, wqkv_s, wq_c, wkv_c, wo, wff1, wff2)

    if output_cross_attn:
        x_out, attn_packed = outs
        # (B, L, N_LAYERS*H*LC) -> (B, N_LAYERS, H, L, LC)
        attn = attn_packed.reshape(B, L, N_LAYERS, H, LC).transpose(0, 2, 3, 1, 4)
        attns = [attn[:, i] for i in range(N_LAYERS)]
    else:
        x_out = outs
        attns = [None] * N_LAYERS
    return x_out, attns


# ---- one-time parameter packing (fold softmax scale, fuse QKV/KV, stack layers, bf16 weights) -
def pack_params(raw):
    (ln_g, ln_b, w_s, b_s, w_c, b_c, wff1, bff1, wff2, bff2, fg, fb) = raw
    scale = 1.0 / math.sqrt(DH)

    lnb = jnp.zeros((N_LAYERS + 1, 16, D), jnp.float32)
    lnb = lnb.at[:N_LAYERS, 0].set(ln_g[:, 0]).at[:N_LAYERS, 1].set(ln_b[:, 0])
    lnb = lnb.at[:N_LAYERS, 2].set(ln_g[:, 1]).at[:N_LAYERS, 3].set(ln_b[:, 1])
    lnb = lnb.at[:N_LAYERS, 4].set(ln_g[:, 2]).at[:N_LAYERS, 5].set(ln_b[:, 2])
    lnb = lnb.at[:N_LAYERS, 6].set(b_s[:, 3])          # self-attn output bias
    lnb = lnb.at[:N_LAYERS, 7].set(b_c[:, 3])          # cross-attn output bias
    lnb = lnb.at[:N_LAYERS, 8].set(bff2)               # ff second bias
    lnb = lnb.at[N_LAYERS, 0].set(fg).at[N_LAYERS, 1].set(fb)

    wqkv_s = jnp.concatenate([w_s[:, 0] * scale, w_s[:, 1], w_s[:, 2]], axis=-1)   # (NL, D, 3D)
    bqkv = jnp.stack([
        jnp.concatenate([b_s[:, 0] * scale, b_s[:, 1], b_s[:, 2]], axis=-1),
        jnp.concatenate([b_c[:, 0] * scale, b_c[:, 1], b_c[:, 2]], axis=-1),
    ], axis=1)                                                                      # (NL, 2, 3D)
    wq_c = w_c[:, 0] * scale                                                        # (NL, D, D)
    wkv_c = jnp.concatenate([w_c[:, 1], w_c[:, 2]], axis=-1)                        # (NL, D, 2D)
    wo = jnp.stack([w_s[:, 3], w_c[:, 3]], axis=1)                                  # (NL, 2, D, D)
    bff1_p = bff1.reshape(N_LAYERS, 1, DFF)

    bf = jnp.bfloat16
    return (lnb, bqkv, bff1_p,
            wqkv_s.astype(bf), wq_c.astype(bf), wkv_c.astype(bf),
            wo.astype(bf), wff1.astype(bf), wff2.astype(bf))


# ---- pure-JAX f32 reference (for correctness check) ------------------------------------------
def _ref_ln(x, g, b):
    mu = jnp.mean(x, axis=-1, keepdims=True)
    var = jnp.mean((x - mu) ** 2, axis=-1, keepdims=True)
    return (x - mu) * lax.rsqrt(var + EPS) * g + b


def _ref_mha(q, k, v):
    Bq, Lq, _ = q.shape
    Lk = k.shape[1]
    qh = q.reshape(Bq, Lq, H, DH).transpose(0, 2, 1, 3)
    kh = k.reshape(Bq, Lk, H, DH).transpose(0, 2, 1, 3)
    vh = v.reshape(Bq, Lk, H, DH).transpose(0, 2, 1, 3)
    s = jnp.einsum("bhld,bhmd->bhlm", qh, kh) / math.sqrt(DH)
    p = jax.nn.softmax(s, axis=-1)
    o = jnp.einsum("bhlm,bhmd->bhld", p, vh).transpose(0, 2, 1, 3).reshape(Bq, Lq, D)
    return o, p


def decoder_forward_ref(vt, sp, cross, raw):
    (ln_g, ln_b, w_s, b_s, w_c, b_c, wff1, bff1, wff2, bff2, fg, fb) = raw
    x = vt + sp
    attns = []
    for l in range(N_LAYERS):
        # self-attention
        xn = _ref_ln(x, ln_g[l, 0], ln_b[l, 0])
        q = xn @ w_s[l, 0] + b_s[l, 0]
        k = xn @ w_s[l, 1] + b_s[l, 1]
        v = xn @ w_s[l, 2] + b_s[l, 2]
        o, _ = _ref_mha(q, k, v)
        x = x + (o @ w_s[l, 3] + b_s[l, 3])
        # cross-attention
        xn = _ref_ln(x, ln_g[l, 1], ln_b[l, 1])
        qc = xn @ w_c[l, 0] + b_c[l, 0]
        kc = cross @ w_c[l, 1] + b_c[l, 1]
        vc = cross @ w_c[l, 2] + b_c[l, 2]
        oc, p = _ref_mha(qc, kc, vc)
        x = x + (oc @ w_c[l, 3] + b_c[l, 3])
        attns.append(p)
        # feed-forward
        xn = _ref_ln(x, ln_g[l, 2], ln_b[l, 2])
        x = x + (jnp.maximum(xn @ wff1[l] + bff1[l], 0.0) @ wff2[l] + bff2[l])
    return _ref_ln(x, fg, fb), attns


# ---- deterministic parameter construction -----------------------------------------------------
def make_params(key):
    ks = jax.random.split(key, 12)
    ln_g = 1.0 + 0.05 * jax.random.normal(ks[0], (N_LAYERS, 3, D), jnp.float32)
    ln_b = 0.02 * jax.random.normal(ks[1], (N_LAYERS, 3, D), jnp.float32)
    w_s = 0.08 * jax.random.normal(ks[2], (N_LAYERS, 4, D, D), jnp.float32)
    b_s = 0.02 * jax.random.normal(ks[3], (N_LAYERS, 4, D), jnp.float32)
    w_c = 0.08 * jax.random.normal(ks[4], (N_LAYERS, 4, D, D), jnp.float32)
    b_c = 0.02 * jax.random.normal(ks[5], (N_LAYERS, 4, D), jnp.float32)
    wff1 = 0.08 * jax.random.normal(ks[6], (N_LAYERS, D, DFF), jnp.float32)
    bff1 = 0.02 * jax.random.normal(ks[7], (N_LAYERS, DFF), jnp.float32)
    wff2 = 0.08 * jax.random.normal(ks[8], (N_LAYERS, DFF, D), jnp.float32)
    bff2 = 0.02 * jax.random.normal(ks[9], (N_LAYERS, D), jnp.float32)
    fg = 1.0 + 0.05 * jax.random.normal(ks[10], (D,), jnp.float32)
    fb = 0.02 * jax.random.normal(ks[11], (D,), jnp.float32)
    return (ln_g, ln_b, w_s, b_s, w_c, b_c, wff1, bff1, wff2, bff2, fg, fb)


if __name__ == "__main__":
    key = jax.random.PRNGKey(0)
    k_vt, k_sp, k_cr, k_par = jax.random.split(key, 4)
    val_time_emb = jax.random.normal(k_vt, (B, L, D), jnp.float32)
    space_emb = jax.random.normal(k_sp, (B, L, D), jnp.float32)
    cross = jax.random.normal(k_cr, (B, LC, D), jnp.float32)

    raw = make_params(k_par)
    packed = pack_params(raw)
    ref_out, ref_attns = decoder_forward_ref(val_time_emb, space_emb, cross, raw)

    # Tolerances account for bf16 matmul operands (f32 accumulation) in the kernel.
    TOL = 3e-2

    # with cross-attention maps returned (output_cross_attn=True path)
    out, attns = decoder_forward(val_time_emb, space_emb, cross, packed,
                                 output_cross_attn=True)
    out = jax.block_until_ready(out)
    assert out.shape == (B, L, D) and out.dtype == jnp.float32
    err = float(jnp.max(jnp.abs(out - ref_out)))
    assert err < TOL, f"max abs err = {err}"
    assert len(attns) == N_LAYERS and attns[0].shape == (B, H, L, LC)
    assert float(jnp.max(jnp.abs(jnp.sum(attns[0], axis=-1) - 1.0))) < 1e-3
    attn_err = float(jnp.max(jnp.abs(attns[-1] - ref_attns[-1])))
    assert attn_err < TOL, f"attn max abs err = {attn_err}"

    # default path (no attention maps)
    out2, attns2 = decoder_forward(val_time_emb, space_emb, cross, packed,
                                   output_cross_attn=False)
    out2 = jax.block_until_ready(out2)
    assert float(jnp.max(jnp.abs(out2 - ref_out))) < TOL
    assert attns2 == [None] * N_LAYERS

    print("KERNEL_OK")
</pallas_src>

<mosaic_0001>
module attributes {stable_mosaic.version = 11 : i64} {
  func.func @decoder_kernel(%arg0: i32, %arg1: memref<2x8x32xf32, #tpu.memory_space<vmem>>, %arg2: memref<2x8x32xf32, #tpu.memory_space<vmem>>, %arg3: memref<2x16x32xf32, #tpu.memory_space<vmem>>, %arg4: memref<3x16x32xf32, #tpu.memory_space<vmem>>, %arg5: memref<2x2x96xf32, #tpu.memory_space<vmem>>, %arg6: memref<2x1x64xf32, #tpu.memory_space<vmem>>, %arg7: memref<2x32x96xbf16, #tpu.memory_space<vmem>>, %arg8: memref<2x32x32xbf16, #tpu.memory_space<vmem>>, %arg9: memref<2x32x64xbf16, #tpu.memory_space<vmem>>, %arg10: memref<2x2x32x32xbf16, #tpu.memory_space<vmem>>, %arg11: memref<2x32x64xbf16, #tpu.memory_space<vmem>>, %arg12: memref<2x64x32xbf16, #tpu.memory_space<vmem>>, %arg13: memref<2x8x32xf32, #tpu.memory_space<vmem>>, %arg14: memref<2x8x128xf32, #tpu.memory_space<vmem>>) attributes {dimension_semantics = [#tpu.dimension_semantics<parallel>], iteration_bounds = array<i64: 1>, scalar_prefetch = 0 : i64, scratch_operands = 0 : i64, tpu.core_type = #tpu.core_type<tc>, window_params = [{transform_indices = @transform_0, window_bounds = array<i64: 2, 8, 32>}, {transform_indices = @transform_1, window_bounds = array<i64: 2, 8, 32>}, {transform_indices = @transform_2, window_bounds = array<i64: 2, 16, 32>}, {pipeline_mode = #tpu.pipeline_mode<synchronous>, transform_indices = @transform_3, window_bounds = array<i64: 3, 16, 32>}, {pipeline_mode = #tpu.pipeline_mode<synchronous>, transform_indices = @transform_4, window_bounds = array<i64: 2, 2, 96>}, {pipeline_mode = #tpu.pipeline_mode<synchronous>, transform_indices = @transform_5, window_bounds = array<i64: 2, 1, 64>}, {pipeline_mode = #tpu.pipeline_mode<synchronous>, transform_indices = @transform_6, window_bounds = array<i64: 2, 32, 96>}, {pipeline_mode = #tpu.pipeline_mode<synchronous>, transform_indices = @transform_7, window_bounds = array<i64: 2, 32, 32>}, {pipeline_mode = #tpu.pipeline_mode<synchronous>, transform_indices = @transform_8, window_bounds = array<i64: 2, 32, 64>}, {pipeline_mode = #tpu.pipeline_mode<synchronous>, transform_indices = @transform_9, window_bounds = array<i64: 2, 2, 32, 32>}, {pipeline_mode = #tpu.pipeline_mode<synchronous>, transform_indices = @transform_10, window_bounds = array<i64: 2, 32, 64>}, {pipeline_mode = #tpu.pipeline_mode<synchronous>, transform_indices = @transform_11, window_bounds = array<i64: 2, 64, 32>}, {transform_indices = @transform_12, window_bounds = array<i64: 2, 8, 32>}, {transform_indices = @transform_13, window_bounds = array<i64: 2, 8, 128>}]} {
    %c0 = arith.constant 0 : index
    %c0_0 = arith.constant 0 : index
    %c0_1 = arith.constant 0 : index
    %0 = vector.load %arg1[%c0, %c0_0, %c0_1] : memref<2x8x32xf32, #tpu.memory_space<vmem>>, vector<2x8x32xf32>
    %c0_2 = arith.constant 0 : index
    %c0_3 = arith.constant 0 : index
    %c0_4 = arith.constant 0 : index
    %1 = vector.load %arg2[%c0_2, %c0_3, %c0_4] : memref<2x8x32xf32, #tpu.memory_space<vmem>>, vector<2x8x32xf32>
    %2 = arith.addf %0, %1 : vector<2x8x32xf32>
    %3 = vector.shape_cast %2 : vector<2x8x32xf32> to vector<16x32xf32>
    %c0_5 = arith.constant 0 : index
    %c0_6 = arith.constant 0 : index
    %c0_7 = arith.constant 0 : index
    %4 = vector.load %arg3[%c0_5, %c0_6, %c0_7] : memref<2x16x32xf32, #tpu.memory_space<vmem>>, vector<2x16x32xf32>
    %5 = vector.shape_cast %4 : vector<2x16x32xf32> to vector<32x32xf32>
    %6 = arith.truncf %5 : vector<32x32xf32> to vector<32x32xbf16>
    %c0_8 = arith.constant 0 : index
    %c0_9 = arith.constant 0 : index
    %c0_10 = arith.constant 0 : index
    %7 = vector.load %arg4[%c0_8, %c0_9, %c0_10] : memref<3x16x32xf32, #tpu.memory_space<vmem>>, vector<1x16x32xf32>
    %8 = vector.shape_cast %7 : vector<1x16x32xf32> to vector<16x32xf32>
    %c0_11 = arith.constant 0 : index
    %c0_12 = arith.constant 0 : index
    %c0_13 = arith.constant 0 : index
    %9 = vector.load %arg5[%c0_11, %c0_12, %c0_13] : memref<2x2x96xf32, #tpu.memory_space<vmem>>, vector<1x2x96xf32>
    %10 = vector.shape_cast %9 : vector<1x2x96xf32> to vector<2x96xf32>
    %c0_14 = arith.constant 0 : index
    %c0_15 = arith.constant 0 : index
    %c0_16 = arith.constant 0 : index
    %c0_17 = arith.constant 0 : index
    %11 = vector.load %arg10[%c0_14, %c0_15, %c0_16, %c0_17] : memref<2x2x32x32xbf16, #tpu.memory_space<vmem>>, vector<1x2x32x32xbf16>
    %12 = vector.shape_cast %11 : vector<1x2x32x32xbf16> to vector<2x32x32xbf16>
    %13 = vector.extract_strided_slice %8 {offsets = [0, 0], sizes = [1, 32], strides = [1, 1]} : vector<16x32xf32> to vector<1x32xf32>
    %14 = vector.extract_strided_slice %8 {offsets = [1, 0], sizes = [1, 32], strides = [1, 1]} : vector<16x32xf32> to vector<1x32xf32>
    %cst = arith.constant dense<0.000000e+00> : vector<16xf32>
    %15 = vector.multi_reduction <add>, %3, %cst [1] : vector<16x32xf32> to vector<16xf32>
    %16 = vector.shape_cast %15 : vector<16xf32> to vector<16x1xf32>
    %cst_18 = arith.constant 3.200000e+01 : f32
    %17 = vector.broadcast %cst_18 : f32 to vector<16x1xf32>
    %18 = arith.divf %16, %17 : vector<16x1xf32>
    %19 = vector.broadcast %18 : vector<16x1xf32> to vector<16x32xf32>
    %20 = arith.subf %3, %19 : vector<16x32xf32>
    %21 = arith.mulf %20, %20 : vector<16x32xf32>
    %cst_19 = arith.constant dense<0.000000e+00> : vector<16xf32>
    %22 = vector.multi_reduction <add>, %21, %cst_19 [1] : vector<16x32xf32> to vector<16xf32>
    %23 = vector.shape_cast %22 : vector<16xf32> to vector<16x1xf32>
    %cst_20 = arith.constant 3.200000e+01 : f32
    %24 = vector.broadcast %cst_20 : f32 to vector<16x1xf32>
    %25 = arith.divf %23, %24 : vector<16x1xf32>
    %26 = vector.broadcast %18 : vector<16x1xf32> to vector<16x32xf32>
    %27 = arith.subf %3, %26 : vector<16x32xf32>
    %cst_21 = arith.constant 9.99999974E-6 : f32
    %28 = vector.broadcast %cst_21 : f32 to vector<16x1xf32>
    %29 = arith.addf %25, %28 : vector<16x1xf32>
    %30 = math.rsqrt %29 : vector<16x1xf32>
    %31 = vector.broadcast %30 : vector<16x1xf32> to vector<16x32xf32>
    %32 = arith.mulf %27, %31 : vector<16x32xf32>
    %33 = vector.broadcast %13 : vector<1x32xf32> to vector<16x32xf32>
    %34 = arith.mulf %32, %33 : vector<16x32xf32>
    %35 = vector.broadcast %14 : vector<1x32xf32> to vector<16x32xf32>
    %36 = arith.addf %34, %35 : vector<16x32xf32>
    %37 = arith.truncf %36 : vector<16x32xf32> to vector<16x32xbf16>
    %c0_22 = arith.constant 0 : index
    %c0_23 = arith.constant 0 : index
    %c0_24 = arith.constant 0 : index
    %38 = vector.load %arg7[%c0_22, %c0_23, %c0_24] : memref<2x32x96xbf16, #tpu.memory_space<vmem>>, vector<1x32x96xbf16>
    %39 = vector.shape_cast %38 : vector<1x32x96xbf16> to vector<32x96xbf16>
    %cst_25 = arith.constant dense<0.000000e+00> : vector<16x96xf32>
    %40 = tpu.matmul %37, %39, %cst_25 {dimension_numbers = #tpu.dot_dimension_numbers<[1], [0], [0], [1], [0, 0, 1, 1], [], []>} : vector<16x32xbf16>, vector<32x96xbf16>, vector<16x96xf32> -> vector<16x96xf32>
    %41 = vector.extract_strided_slice %10 {offsets = [0, 0], sizes = [1, 96], strides = [1, 1]} : vector<2x96xf32> to vector<1x96xf32>
    %42 = vector.broadcast %41 : vector<1x96xf32> to vector<16x96xf32>
    %43 = arith.addf %40, %42 : vector<16x96xf32>
    %44 = vector.extract_strided_slice %43 {offsets = [0, 0], sizes = [16, 32], strides = [1, 1]} : vector<16x96xf32> to vector<16x32xf32>
    %45 = vector.extract_strided_slice %43 {offsets = [0, 32], sizes = [16, 32], strides = [1, 1]} : vector<16x96xf32> to vector<16x32xf32>
    %46 = vector.extract_strided_slice %43 {offsets = [0, 64], sizes = [16, 32], strides = [1, 1]} : vector<16x96xf32> to vector<16x32xf32>
    %47 = vector.extract_strided_slice %44 {offsets = [0, 0], sizes = [8, 32], strides = [1, 1]} : vector<16x32xf32> to vector<8x32xf32>
    %48 = vector.extract_strided_slice %45 {offsets = [0, 0], sizes = [8, 32], strides = [1, 1]} : vector<16x32xf32> to vector<8x32xf32>
    %49 = vector.extract_strided_slice %46 {offsets = [0, 0], sizes = [8, 32], strides = [1, 1]} : vector<16x32xf32> to vector<8x32xf32>
    %50 = arith.truncf %47 : vector<8x32xf32> to vector<8x32xbf16>
    %51 = arith.truncf %48 : vector<8x32xf32> to vector<8x32xbf16>
    %52 = arith.truncf %49 : vector<8x32xf32> to vector<8x32xbf16>
    %53 = vector.extract_strided_slice %50 {offsets = [0, 0], sizes = [8, 8], strides = [1, 1]} : vector<8x32xbf16> to vector<8x8xbf16>
    %54 = vector.extract_strided_slice %51 {offsets = [0, 0], sizes = [8, 8], strides = [1, 1]} : vector<8x32xbf16> to vector<8x8xbf16>
    %cst_26 = arith.constant dense<0.000000e+00> : vector<8x8xf32>
    %55 = tpu.matmul %53, %54, %cst_26 {dimension_numbers = #tpu.dot_dimension_numbers<[1], [1], [0], [0], [0, 0, 1, 0], [], []>} : vector<8x8xbf16>, vector<8x8xbf16>, vector<8x8xf32> -> vector<8x8xf32>
    %cst_27 = arith.constant dense<0xFF800000> : vector<8xf32>
    %56 = vector.multi_reduction <maximumf>, %55, %cst_27 [1] : vector<8x8xf32> to vector<8xf32>
    %57 = vector.shape_cast %56 : vector<8xf32> to vector<8x1xf32>
    %58 = vector.broadcast %57 : vector<8x1xf32> to vector<8x8xf32>
    %59 = arith.subf %55, %58 : vector<8x8xf32>
    %60 = math.exp %59 : vector<8x8xf32>
    %cst_28 = arith.constant dense<0.000000e+00> : vector<8xf32>
    %61 = vector.multi_reduction <add>, %60, %cst_28 [1] : vector<8x8xf32> to vector<8xf32>
    %62 = vector.shape_cast %61 : vector<8xf32> to vector<8x1xf32>
    %63 = tpu.reciprocal %62 {approx = true} : vector<8x1xf32> -> vector<8x1xf32>
    %64 = vector.broadcast %63 : vector<8x1xf32> to vector<8x8xf32>
    %65 = arith.mulf %60, %64 : vector<8x8xf32>
    %66 = arith.truncf %65 : vector<8x8xf32> to vector<8x8xbf16>
    %67 = vector.extract_strided_slice %52 {offsets = [0, 0], sizes = [8, 8], strides = [1, 1]} : vector<8x32xbf16> to vector<8x8xbf16>
    %cst_29 = arith.constant dense<0.000000e+00> : vector<8x8xf32>
    %68 = tpu.matmul %66, %67, %cst_29 {dimension_numbers = #tpu.dot_dimension_numbers<[1], [0], [0], [1], [0, 0, 1, 1], [], []>} : vector<8x8xbf16>, vector<8x8xbf16>, vector<8x8xf32> -> vector<8x8xf32>
    %69 = vector.extract_strided_slice %50 {offsets = [0, 8], sizes = [8, 8], strides = [1, 1]} : vector<8x32xbf16> to vector<8x8xbf16>
    %70 = vector.extract_strided_slice %51 {offsets = [0, 8], sizes = [8, 8], strides = [1, 1]} : vector<8x32xbf16> to vector<8x8xbf16>
    %cst_30 = arith.constant dense<0.000000e+00> : vector<8x8xf32>
    %71 = tpu.matmul %69, %70, %cst_30 {dimension_numbers = #tpu.dot_dimension_numbers<[1], [1], [0], [0], [0, 0, 1, 0], [], []>} : vector<8x8xbf16>, vector<8x8xbf16>, vector<8x8xf32> -> vector<8x8xf32>
    %cst_31 = arith.constant dense<0xFF800000> : vector<8xf32>
    %72 = vector.multi_reduction <maximumf>, %71, %cst_31 [1] : vector<8x8xf32> to vector<8xf32>
    %73 = vector.shape_cast %72 : vector<8xf32> to vector<8x1xf32>
    %74 = vector.broadcast %73 : vector<8x1xf32> to vector<8x8xf32>
    %75 = arith.subf %71, %74 : vector<8x8xf32>
    %76 = math.exp %75 : vector<8x8xf32>
    %cst_32 = arith.constant dense<0.000000e+00> : vector<8xf32>
    %77 = vector.multi_reduction <add>, %76, %cst_32 [1] : vector<8x8xf32> to vector<8xf32>
    %78 = vector.shape_cast %77 : vector<8xf32> to vector<8x1xf32>
    %79 = tpu.reciprocal %78 {approx = true} : vector<8x1xf32> -> vector<8x1xf32>
    %80 = vector.broadcast %79 : vector<8x1xf32> to vector<8x8xf32>
    %81 = arith.mulf %76, %80 : vector<8x8xf32>
    %82 = arith.truncf %81 : vector<8x8xf32> to vector<8x8xbf16>
    %83 = vector.extract_strided_slice %52 {offsets = [0, 8], sizes = [8, 8], strides = [1, 1]} : vector<8x32xbf16> to vector<8x8xbf16>
    %cst_33 = arith.constant dense<0.000000e+00> : vector<8x8xf32>
    %84 = tpu.matmul %82, %83, %cst_33 {dimension_numbers = #tpu.dot_dimension_numbers<[1], [0], [0], [1], [0, 0, 1, 1], [], []>} : vector<8x8xbf16>, vector<8x8xbf16>, vector<8x8xf32> -> vector<8x8xf32>
    %85 = vector.extract_strided_slice %50 {offsets = [0, 16], sizes = [8, 8], strides = [1, 1]} : vector<8x32xbf16> to vector<8x8xbf16>
    %86 = vector.extract_strided_slice %51 {offsets = [0, 16], sizes = [8, 8], strides = [1, 1]} : vector<8x32xbf16> to vector<8x8xbf16>
    %cst_34 = arith.constant dense<0.000000e+00> : vector<8x8xf32>
    %87 = tpu.matmul %85, %86, %cst_34 {dimension_numbers = #tpu.dot_dimension_numbers<[1], [1], [0], [0], [0, 0, 1, 0], [], []>} : vector<8x8xbf16>, vector<8x8xbf16>, vector<8x8xf32> -> vector<8x8xf32>
    %cst_35 = arith.constant dense<0xFF800000> : vector<8xf32>
    %88 = vector.multi_reduction <maximumf>, %87, %cst_35 [1] : vector<8x8xf32> to vector<8xf32>
    %89 = vector.shape_cast %88 : vector<8xf32> to vector<8x1xf32>
    %90 = vector.broadcast %89 : vector<8x1xf32> to vector<8x8xf32>
    %91 = arith.subf %87, %90 : vector<8x8xf32>
    %92 = math.exp %91 : vector<8x8xf32>
    %cst_36 = arith.constant dense<0.000000e+00> : vector<8xf32>
    %93 = vector.multi_reduction <add>, %92, %cst_36 [1] : vector<8x8xf32> to vector<8xf32>
    %94 = vector.shape_cast %93 : vector<8xf32> to vector<8x1xf32>
    %95 = tpu.reciprocal %94 {approx = true} : vector<8x1xf32> -> vector<8x1xf32>
    %96 = vector.broadcast %95 : vector<8x1xf32> to vector<8x8xf32>
    %97 = arith.mulf %92, %96 : vector<8x8xf32>
    %98 = arith.truncf %97 : vector<8x8xf32> to vector<8x8xbf16>
    %99 = vector.extract_strided_slice %52 {offsets = [0, 16], sizes = [8, 8], strides = [1, 1]} : vector<8x32xbf16> to vector<8x8xbf16>
    %cst_37 = arith.constant dense<0.000000e+00> : vector<8x8xf32>
    %100 = tpu.matmul %98, %99, %cst_37 {dimension_numbers = #tpu.dot_dimension_numbers<[1], [0], [0], [1], [0, 0, 1, 1], [], []>} : vector<8x8xbf16>, vector<8x8xbf16>, vector<8x8xf32> -> vector<8x8xf32>
    %101 = vector.extract_strided_slice %50 {offsets = [0, 24], sizes = [8, 8], strides = [1, 1]} : vector<8x32xbf16> to vector<8x8xbf16>
    %102 = vector.extract_strided_slice %51 {offsets = [0, 24], sizes = [8, 8], strides = [1, 1]} : vector<8x32xbf16> to vector<8x8xbf16>
    %cst_38 = arith.constant dense<0.000000e+00> : vector<8x8xf32>
    %103 = tpu.matmul %101, %102, %cst_38 {dimension_numbers = #tpu.dot_dimension_numbers<[1], [1], [0], [0], [0, 0, 1, 0], [], []>} : vector<8x8xbf16>, vector<8x8xbf16>, vector<8x8xf32> -> vector<8x8xf32>
    %cst_39 = arith.constant dense<0xFF800000> : vector<8xf32>
    %104 = vector.multi_reduction <maximumf>, %103, %cst_39 [1] : vector<8x8xf32> to vector<8xf32>
    %105 = vector.shape_cast %104 : vector<8xf32> to vector<8x1xf32>
    %106 = vector.broadcast %105 : vector<8x1xf32> to vector<8x8xf32>
    %107 = arith.subf %103, %106 : vector<8x8xf32>
    %108 = math.exp %107 : vector<8x8xf32>
    %cst_40 = arith.constant dense<0.000000e+00> : vector<8xf32>
    %109 = vector.multi_reduction <add>, %108, %cst_40 [1] : vector<8x8xf32> to vector<8xf32>
    %110 = vector.shape_cast %109 : vector<8xf32> to vector<8x1xf32>
    %111 = tpu.reciprocal %110 {approx = true} : vector<8x1xf32> -> vector<8x1xf32>
    %112 = vector.broadcast %111 : vector<8x1xf32> to vector<8x8xf32>
    %113 = arith.mulf %108, %112 : vector<8x8xf32>
    %114 = arith.truncf %113 : vector<8x8xf32> to vector<8x8xbf16>
    %115 = vector.extract_strided_slice %52 {offsets = [0, 24], sizes = [8, 8], strides = [1, 1]} : vector<8x32xbf16> to vector<8x8xbf16>
    %cst_41 = arith.constant dense<0.000000e+00> : vector<8x8xf32>
    %116 = tpu.matmul %114, %115, %cst_41 {dimension_numbers = #tpu.dot_dimension_numbers<[1], [0], [0], [1], [0, 0, 1, 1], [], []>} : vector<8x8xbf16>, vector<8x8xbf16>, vector<8x8xf32> -> vector<8x8xf32>
    %117 = tpu.concatenate %68, %84, %100, %116 in 1 : vector<8x8xf32>, vector<8x8xf32>, vector<8x8xf32>, vector<8x8xf32> -> vector<8x32xf32>
    %118 = vector.extract_strided_slice %44 {offsets = [8, 0], sizes = [8, 32], strides = [1, 1]} : vector<16x32xf32> to vector<8x32xf32>
    %119 = vector.extract_strided_slice %45 {offsets = [8, 0], sizes = [8, 32], strides = [1, 1]} : vector<16x32xf32> to vector<8x32xf32>
    %120 = vector.extract_strided_slice %46 {offsets = [8, 0], sizes = [8, 32], strides = [1, 1]} : vector<16x32xf32> to vector<8x32xf32>
    %121 = arith.truncf %118 : vector<8x32xf32> to vector<8x32xbf16>
    %122 = arith.truncf %119 : vector<8x32xf32> to vector<8x32xbf16>
    %123 = arith.truncf %120 : vector<8x32xf32> to vector<8x32xbf16>
    %124 = vector.extract_strided_slice %121 {offsets = [0, 0], sizes = [8, 8], strides = [1, 1]} : vector<8x32xbf16> to vector<8x8xbf16>
    %125 = vector.extract_strided_slice %122 {offsets = [0, 0], sizes = [8, 8], strides = [1, 1]} : vector<8x32xbf16> to vector<8x8xbf16>
    %cst_42 = arith.constant dense<0.000000e+00> : vector<8x8xf32>
    %126 = tpu.matmul %124, %125, %cst_42 {dimension_numbers = #tpu.dot_dimension_numbers<[1], [1], [0], [0], [0, 0, 1, 0], [], []>} : vector<8x8xbf16>, vector<8x8xbf16>, vector<8x8xf32> -> vector<8x8xf32>
    %cst_43 = arith.constant dense<0xFF800000> : vector<8xf32>
    %127 = vector.multi_reduction <maximumf>, %126, %cst_43 [1] : vector<8x8xf32> to vector<8xf32>
    %128 = vector.shape_cast %127 : vector<8xf32> to vector<8x1xf32>
    %129 = vector.broadcast %128 : vector<8x1xf32> to vector<8x8xf32>
    %130 = arith.subf %126, %129 : vector<8x8xf32>
    %131 = math.exp %130 : vector<8x8xf32>
    %cst_44 = arith.constant dense<0.000000e+00> : vector<8xf32>
    %132 = vector.multi_reduction <add>, %131, %cst_44 [1] : vector<8x8xf32> to vector<8xf32>
    %133 = vector.shape_cast %132 : vector<8xf32> to vector<8x1xf32>
    %134 = tpu.reciprocal %133 {approx = true} : vector<8x1xf32> -> vector<8x1xf32>
    %135 = vector.broadcast %134 : vector<8x1xf32> to vector<8x8xf32>
    %136 = arith.mulf %131, %135 : vector<8x8xf32>
    %137 = arith.truncf %136 : vector<8x8xf32> to vector<8x8xbf16>
    %138 = vector.extract_strided_slice %123 {offsets = [0, 0], sizes = [8, 8], strides = [1, 1]} : vector<8x32xbf16> to vector<8x8xbf16>
    %cst_45 = arith.constant dense<0.000000e+00> : vector<8x8xf32>
    %139 = tpu.matmul %137, %138, %cst_45 {dimension_numbers = #tpu.dot_dimension_numbers<[1], [0], [0], [1], [0, 0, 1, 1], [], []>} : vector<8x8xbf16>, vector<8x8xbf16>, vector<8x8xf32> -> vector<8x8xf32>
    %140 = vector.extract_strided_slice %121 {offsets = [0, 8], sizes = [8, 8], strides = [1, 1]} : vector<8x32xbf16> to vector<8x8xbf16>
    %141 = vector.extract_strided_slice %122 {offsets = [0, 8], sizes = [8, 8], strides = [1, 1]} : vector<8x32xbf16> to vector<8x8xbf16>
    %cst_46 = arith.constant dense<0.000000e+00> : vector<8x8xf32>
    %142 = tpu.matmul %140, %141, %cst_46 {dimension_numbers = #tpu.dot_dimension_numbers<[1], [1], [0], [0], [0, 0, 1, 0], [], []>} : vector<8x8xbf16>, vector<8x8xbf16>, vector<8x8xf32> -> vector<8x8xf32>
    %cst_47 = arith.constant dense<0xFF800000> : vector<8xf32>
    %143 = vector.multi_reduction <maximumf>, %142, %cst_47 [1] : vector<8x8xf32> to vector<8xf32>
    %144 = vector.shape_cast %143 : vector<8xf32> to vector<8x1xf32>
    %145 = vector.broadcast %144 : vector<8x1xf32> to vector<8x8xf32>
    %146 = arith.subf %142, %145 : vector<8x8xf32>
    %147 = math.exp %146 : vector<8x8xf32>
    %cst_48 = arith.constant dense<0.000000e+00> : vector<8xf32>
    %148 = vector.multi_reduction <add>, %147, %cst_48 [1] : vector<8x8xf32> to vector<8xf32>
    %149 = vector.shape_cast %148 : vector<8xf32> to vector<8x1xf32>
    %150 = tpu.reciprocal %149 {approx = true} : vector<8x1xf32> -> vector<8x1xf32>
    %151 = vector.broadcast %150 : vector<8x1xf32> to vector<8x8xf32>
    %152 = arith.mulf %147, %151 : vector<8x8xf32>
    %153 = arith.truncf %152 : vector<8x8xf32> to vector<8x8xbf16>
    %154 = vector.extract_strided_slice %123 {offsets = [0, 8], sizes = [8, 8], strides = [1, 1]} : vector<8x32xbf16> to vector<8x8xbf16>
    %cst_49 = arith.constant dense<0.000000e+00> : vector<8x8xf32>
    %155 = tpu.matmul %153, %154, %cst_49 {dimension_numbers = #tpu.dot_dimension_numbers<[1], [0], [0], [1], [0, 0, 1, 1], [], []>} : vector<8x8xbf16>, vector<8x8xbf16>, vector<8x8xf32> -> vector<8x8xf32>
    %156 = vector.extract_strided_slice %121 {offsets = [0, 16], sizes = [8, 8], strides = [1, 1]} : vector<8x32xbf16> to vector<8x8xbf16>
    %157 = vector.extract_strided_slice %122 {offsets = [0, 16], sizes = [8, 8], strides = [1, 1]} : vector<8x32xbf16> to vector<8x8xbf16>
    %cst_50 = arith.constant dense<0.000000e+00> : vector<8x8xf32>
    %158 = tpu.matmul %156, %157, %cst_50 {dimension_numbers = #tpu.dot_dimension_numbers<[1], [1], [0], [0], [0, 0, 1, 0], [], []>} : vector<8x8xbf16>, vector<8x8xbf16>, vector<8x8xf32> -> vector<8x8xf32>
    %cst_51 = arith.constant dense<0xFF800000> : vector<8xf32>
    %159 = vector.multi_reduction <maximumf>, %158, %cst_51 [1] : vector<8x8xf32> to vector<8xf32>
    %160 = vector.shape_cast %159 : vector<8xf32> to vector<8x1xf32>
    %161 = vector.broadcast %160 : vector<8x1xf32> to vector<8x8xf32>
    %162 = arith.subf %158, %161 : vector<8x8xf32>
    %163 = math.exp %162 : vector<8x8xf32>
    %cst_52 = arith.constant dense<0.000000e+00> : vector<8xf32>
    %164 = vector.multi_reduction <add>, %163, %cst_52 [1] : vector<8x8xf32> to vector<8xf32>
    %165 = vector.shape_cast %164 : vector<8xf32> to vector<8x1xf32>
    %166 = tpu.reciprocal %165 {approx = true} : vector<8x1xf32> -> vector<8x1xf32>
    %167 = vector.broadcast %166 : vector<8x1xf32> to vector<8x8xf32>
    %168 = arith.mulf %163, %167 : vector<8x8xf32>
    %169 = arith.truncf %168 : vector<8x8xf32> to vector<8x8xbf16>
    %170 = vector.extract_strided_slice %123 {offsets = [0, 16], sizes = [8, 8], strides = [1, 1]} : vector<8x32xbf16> to vector<8x8xbf16>
    %cst_53 = arith.constant dense<0.000000e+00> : vector<8x8xf32>
    %171 = tpu.matmul %169, %170, %cst_53 {dimension_numbers = #tpu.dot_dimension_numbers<[1], [0], [0], [1], [0, 0, 1, 1], [], []>} : vector<8x8xbf16>, vector<8x8xbf16>, vector<8x8xf32> -> vector<8x8xf32>
    %172 = vector.extract_strided_slice %121 {offsets = [0, 24], sizes = [8, 8], strides = [1, 1]} : vector<8x32xbf16> to vector<8x8xbf16>
    %173 = vector.extract_strided_slice %122 {offsets = [0, 24], sizes = [8, 8], strides = [1, 1]} : vector<8x32xbf16> to vector<8x8xbf16>
    %cst_54 = arith.constant dense<0.000000e+00> : vector<8x8xf32>
    %174 = tpu.matmul %172, %173, %cst_54 {dimension_numbers = #tpu.dot_dimension_numbers<[1], [1], [0], [0], [0, 0, 1, 0], [], []>} : vector<8x8xbf16>, vector<8x8xbf16>, vector<8x8xf32> -> vector<8x8xf32>
    %cst_55 = arith.constant dense<0xFF800000> : vector<8xf32>
    %175 = vector.multi_reduction <maximumf>, %174, %cst_55 [1] : vector<8x8xf32> to vector<8xf32>
    %176 = vector.shape_cast %175 : vector<8xf32> to vector<8x1xf32>
    %177 = vector.broadcast %176 : vector<8x1xf32> to vector<8x8xf32>
    %178 = arith.subf %174, %177 : vector<8x8xf32>
    %179 = math.exp %178 : vector<8x8xf32>
    %cst_56 = arith.constant dense<0.000000e+00> : vector<8xf32>
    %180 = vector.multi_reduction <add>, %179, %cst_56 [1] : vector<8x8xf32> to vector<8xf32>
    %181 = vector.shape_cast %180 : vector<8xf32> to vector<8x1xf32>
    %182 = tpu.reciprocal %181 {approx = true} : vector<8x1xf32> -> vector<8x1xf32>
    %183 = vector.broadcast %182 : vector<8x1xf32> to vector<8x8xf32>
    %184 = arith.mulf %179, %183 : vector<8x8xf32>
    %185 = arith.truncf %184 : vector<8x8xf32> to vector<8x8xbf16>
    %186 = vector.extract_strided_slice %123 {offsets = [0, 24], sizes = [8, 8], strides = [1, 1]} : vector<8x32xbf16> to vector<8x8xbf16>
    %cst_57 = arith.constant dense<0.000000e+00> : vector<8x8xf32>
    %187 = tpu.matmul %185, %186, %cst_57 {dimension_numbers = #tpu.dot_dimension_numbers<[1], [0], [0], [1], [0, 0, 1, 1], [], []>} : vector<8x8xbf16>, vector<8x8xbf16>, vector<8x8xf32> -> vector<8x8xf32>
    %188 = tpu.concatenate %139, %155, %171, %187 in 1 : vector<8x8xf32>, vector<8x8xf32>, vector<8x8xf32>, vector<8x8xf32> -> vector<8x32xf32>
    %189 = tpu.concatenate %117, %188 in 0 : vector<8x32xf32>, vector<8x32xf32> -> vector<16x32xf32>
    %190 = arith.truncf %189 : vector<16x32xf32> to vector<16x32xbf16>
    %191 = vector.extract_strided_slice %12 {offsets = [0, 0, 0], sizes = [1, 32, 32], strides = [1, 1, 1]} : vector<2x32x32xbf16> to vector<1x32x32xbf16>
    %192 = vector.shape_cast %191 : vector<1x32x32xbf16> to vector<32x32xbf16>
    %cst_58 = arith.constant dense<0.000000e+00> : vector<16x32xf32>
    %193 = tpu.matmul %190, %192, %cst_58 {dimension_numbers = #tpu.dot_dimension_numbers<[1], [0], [0], [1], [0, 0, 1, 1], [], []>} : vector<16x32xbf16>, vector<32x32xbf16>, vector<16x32xf32> -> vector<16x32xf32>
    %194 = vector.extract_strided_slice %8 {offsets = [6, 0], sizes = [1, 32], strides = [1, 1]} : vector<16x32xf32> to vector<1x32xf32>
    %195 = vector.broadcast %194 : vector<1x32xf32> to vector<16x32xf32>
    %196 = arith.addf %193, %195 : vector<16x32xf32>
    %197 = arith.addf %3, %196 : vector<16x32xf32>
    %198 = vector.extract_strided_slice %8 {offsets = [2, 0], sizes = [1, 32], strides = [1, 1]} : vector<16x32xf32> to vector<1x32xf32>
    %199 = vector.extract_strided_slice %8 {offsets = [3, 0], sizes = [1, 32], strides = [1, 1]} : vector<16x32xf32> to vector<1x32xf32>
    %cst_59 = arith.constant dense<0.000000e+00> : vector<16xf32>
    %200 = vector.multi_reduction <add>, %197, %cst_59 [1] : vector<16x32xf32> to vector<16xf32>
    %201 = vector.shape_cast %200 : vector<16xf32> to vector<16x1xf32>
    %cst_60 = arith.constant 3.200000e+01 : f32
    %202 = vector.broadcast %cst_60 : f32 to vector<16x1xf32>
    %203 = arith.divf %201, %202 : vector<16x1xf32>
    %204 = vector.broadcast %203 : vector<16x1xf32> to vector<16x32xf32>
    %205 = arith.subf %197, %204 : vector<16x32xf32>
    %206 = arith.mulf %205, %205 : vector<16x32xf32>
    %cst_61 = arith.constant dense<0.000000e+00> : vector<16xf32>
    %207 = vector.multi_reduction <add>, %206, %cst_61 [1] : vector<16x32xf32> to vector<16xf32>
    %208 = vector.shape_cast %207 : vector<16xf32> to vector<16x1xf32>
    %cst_62 = arith.constant 3.200000e+01 : f32
    %209 = vector.broadcast %cst_62 : f32 to vector<16x1xf32>
    %210 = arith.divf %208, %209 : vector<16x1xf32>
    %211 = vector.broadcast %203 : vector<16x1xf32> to vector<16x32xf32>
    %212 = arith.subf %197, %211 : vector<16x32xf32>
    %cst_63 = arith.constant 9.99999974E-6 : f32
    %213 = vector.broadcast %cst_63 : f32 to vector<16x1xf32>
    %214 = arith.addf %210, %213 : vector<16x1xf32>
    %215 = math.rsqrt %214 : vector<16x1xf32>
    %216 = vector.broadcast %215 : vector<16x1xf32> to vector<16x32xf32>
    %217 = arith.mulf %212, %216 : vector<16x32xf32>
    %218 = vector.broadcast %198 : vector<1x32xf32> to vector<16x32xf32>
    %219 = arith.mulf %217, %218 : vector<16x32xf32>
    %220 = vector.broadcast %199 : vector<1x32xf32> to vector<16x32xf32>
    %221 = arith.addf %219, %220 : vector<16x32xf32>
    %222 = arith.truncf %221 : vector<16x32xf32> to vector<16x32xbf16>
    %c0_64 = arith.constant 0 : index
    %c0_65 = arith.constant 0 : index
    %c0_66 = arith.constant 0 : index
    %223 = vector.load %arg8[%c0_64, %c0_65, %c0_66] : memref<2x32x32xbf16, #tpu.memory_space<vmem>>, vector<1x32x32xbf16>
    %224 = vector.shape_cast %223 : vector<1x32x32xbf16> to vector<32x32xbf16>
    %cst_67 = arith.constant dense<0.000000e+00> : vector<16x32xf32>
    %225 = tpu.matmul %222, %224, %cst_67 {dimension_numbers = #tpu.dot_dimension_numbers<[1], [0], [0], [1], [0, 0, 1, 1], [], []>} : vector<16x32xbf16>, vector<32x32xbf16>, vector<16x32xf32> -> vector<16x32xf32>
    %226 = vector.extract_strided_slice %10 {offsets = [1, 0], sizes = [1, 32], strides = [1, 1]} : vector<2x96xf32> to vector<1x32xf32>
    %227 = vector.broadcast %226 : vector<1x32xf32> to vector<16x32xf32>
    %228 = arith.addf %225, %227 : vector<16x32xf32>
    %c0_68 = arith.constant 0 : index
    %c0_69 = arith.constant 0 : index
    %c0_70 = arith.constant 0 : index
    %229 = vector.load %arg9[%c0_68, %c0_69, %c0_70] : memref<2x32x64xbf16, #tpu.memory_space<vmem>>, vector<1x32x64xbf16>
    %230 = vector.shape_cast %229 : vector<1x32x64xbf16> to vector<32x64xbf16>
    %cst_71 = arith.constant dense<0.000000e+00> : vector<32x64xf32>
    %231 = tpu.matmul %6, %230, %cst_71 {dimension_numbers = #tpu.dot_dimension_numbers<[1], [0], [0], [1], [0, 0, 1, 1], [], []>} : vector<32x32xbf16>, vector<32x64xbf16>, vector<32x64xf32> -> vector<32x64xf32>
    %232 = vector.extract_strided_slice %10 {offsets = [1, 32], sizes = [1, 64], strides = [1, 1]} : vector<2x96xf32> to vector<1x64xf32>
    %233 = vector.broadcast %232 : vector<1x64xf32> to vector<32x64xf32>
    %234 = arith.addf %231, %233 : vector<32x64xf32>
    %235 = vector.extract_strided_slice %234 {offsets = [0, 0], sizes = [32, 32], strides = [1, 1]} : vector<32x64xf32> to vector<32x32xf32>
    %236 = vector.extract_strided_slice %234 {offsets = [0, 32], sizes = [32, 32], strides = [1, 1]} : vector<32x64xf32> to vector<32x32xf32>
    %237 = vector.extract_strided_slice %228 {offsets = [0, 0], sizes = [8, 32], strides = [1, 1]} : vector<16x32xf32> to vector<8x32xf32>
    %238 = vector.extract_strided_slice %235 {offsets = [0, 0], sizes = [16, 32], strides = [1, 1]} : vector<32x32xf32> to vector<16x32xf32>
    %239 = vector.extract_strided_slice %236 {offsets = [0, 0], sizes = [16, 32], strides = [1, 1]} : vector<32x32xf32> to vector<16x32xf32>
    %240 = arith.truncf %237 : vector<8x32xf32> to vector<8x32xbf16>
    %241 = arith.truncf %238 : vector<16x32xf32> to vector<16x32xbf16>
    %242 = arith.truncf %239 : vector<16x32xf32> to vector<16x32xbf16>
    %243 = vector.extract_strided_slice %240 {offsets = [0, 0], sizes = [8, 8], strides = [1, 1]} : vector<8x32xbf16> to vector<8x8xbf16>
    %244 = vector.extract_strided_slice %241 {offsets = [0, 0], sizes = [16, 8], strides = [1, 1]} : vector<16x32xbf16> to vector<16x8xbf16>
    %cst_72 = arith.constant dense<0.000000e+00> : vector<8x16xf32>
    %245 = tpu.matmul %243, %244, %cst_72 {dimension_numbers = #tpu.dot_dimension_numbers<[1], [1], [0], [0], [0, 0, 1, 0], [], []>} : vector<8x8xbf16>, vector<16x8xbf16>, vector<8x16xf32> -> vector<8x16xf32>
    %cst_73 = arith.constant dense<0xFF800000> : vector<8xf32>
    %246 = vector.multi_reduction <maximumf>, %245, %cst_73 [1] : vector<8x16xf32> to vector<8xf32>
    %247 = vector.shape_cast %246 : vector<8xf32> to vector<8x1xf32>
    %248 = vector.broadcast %247 : vector<8x1xf32> to vector<8x16xf32>
    %249 = arith.subf %245, %248 : vector<8x16xf32>
    %250 = math.exp %249 : vector<8x16xf32>
    %cst_74 = arith.constant dense<0.000000e+00> : vector<8xf32>
    %251 = vector.multi_reduction <add>, %250, %cst_74 [1] : vector<8x16xf32> to vector<8xf32>
    %252 = vector.shape_cast %251 : vector<8xf32> to vector<8x1xf32>
    %253 = vector.broadcast %252 : vector<8x1xf32> to vector<8x16xf32>
    %254 = arith.divf %250, %253 : vector<8x16xf32>
    %255 = arith.truncf %254 : vector<8x16xf32> to vector<8x16xbf16>
    %256 = vector.extract_strided_slice %242 {offsets = [0, 0], sizes = [16, 8], strides = [1, 1]} : vector<16x32xbf16> to vector<16x8xbf16>
    %cst_75 = arith.constant dense<0.000000e+00> : vector<8x8xf32>
    %257 = tpu.matmul %255, %256, %cst_75 {dimension_numbers = #tpu.dot_dimension_numbers<[1], [0], [0], [1], [0, 0, 1, 1], [], []>} : vector<8x16xbf16>, vector<16x8xbf16>, vector<8x8xf32> -> vector<8x8xf32>
    %258 = vector.extract_strided_slice %240 {offsets = [0, 8], sizes = [8, 8], strides = [1, 1]} : vector<8x32xbf16> to vector<8x8xbf16>
    %259 = vector.extract_strided_slice %241 {offsets = [0, 8], sizes = [16, 8], strides = [1, 1]} : vector<16x32xbf16> to vector<16x8xbf16>
    %cst_76 = arith.constant dense<0.000000e+00> : vector<8x16xf32>
    %260 = tpu.matmul %258, %259, %cst_76 {dimension_numbers = #tpu.dot_dimension_numbers<[1], [1], [0], [0], [0, 0, 1, 0], [], []>} : vector<8x8xbf16>, vector<16x8xbf16>, vector<8x16xf32> -> vector<8x16xf32>
    %cst_77 = arith.constant dense<0xFF800000> : vector<8xf32>
    %261 = vector.multi_reduction <maximumf>, %260, %cst_77 [1] : vector<8x16xf32> to vector<8xf32>
    %262 = vector.shape_cast %261 : vector<8xf32> to vector<8x1xf32>
    %263 = vector.broadcast %262 : vector<8x1xf32> to vector<8x16xf32>
    %264 = arith.subf %260, %263 : vector<8x16xf32>
    %265 = math.exp %264 : vector<8x16xf32>
    %cst_78 = arith.constant dense<0.000000e+00> : vector<8xf32>
    %266 = vector.multi_reduction <add>, %265, %cst_78 [1] : vector<8x16xf32> to vector<8xf32>
    %267 = vector.shape_cast %266 : vector<8xf32> to vector<8x1xf32>
    %268 = vector.broadcast %267 : vector<8x1xf32> to vector<8x16xf32>
    %269 = arith.divf %265, %268 : vector<8x16xf32>
    %270 = arith.truncf %269 : vector<8x16xf32> to vector<8x16xbf16>
    %271 = vector.extract_strided_slice %242 {offsets = [0, 8], sizes = [16, 8], strides = [1, 1]} : vector<16x32xbf16> to vector<16x8xbf16>
    %cst_79 = arith.constant dense<0.000000e+00> : vector<8x8xf32>
    %272 = tpu.matmul %270, %271, %cst_79 {dimension_numbers = #tpu.dot_dimension_numbers<[1], [0], [0], [1], [0, 0, 1, 1], [], []>} : vector<8x16xbf16>, vector<16x8xbf16>, vector<8x8xf32> -> vector<8x8xf32>
    %273 = vector.extract_strided_slice %240 {offsets = [0, 16], sizes = [8, 8], strides = [1, 1]} : vector<8x32xbf16> to vector<8x8xbf16>
    %274 = vector.extract_strided_slice %241 {offsets = [0, 16], sizes = [16, 8], strides = [1, 1]} : vector<16x32xbf16> to vector<16x8xbf16>
    %cst_80 = arith.constant dense<0.000000e+00> : vector<8x16xf32>
    %275 = tpu.matmul %273, %274, %cst_80 {dimension_numbers = #tpu.dot_dimension_numbers<[1], [1], [0], [0], [0, 0, 1, 0], [], []>} : vector<8x8xbf16>, vector<16x8xbf16>, vector<8x16xf32> -> vector<8x16xf32>
    %cst_81 = arith.constant dense<0xFF800000> : vector<8xf32>
    %276 = vector.multi_reduction <maximumf>, %275, %cst_81 [1] : vector<8x16xf32> to vector<8xf32>
    %277 = vector.shape_cast %276 : vector<8xf32> to vector<8x1xf32>
    %278 = vector.broadcast %277 : vector<8x1xf32> to vector<8x16xf32>
    %279 = arith.subf %275, %278 : vector<8x16xf32>
    %280 = math.exp %279 : vector<8x16xf32>
    %cst_82 = arith.constant dense<0.000000e+00> : vector<8xf32>
    %281 = vector.multi_reduction <add>, %280, %cst_82 [1] : vector<8x16xf32> to vector<8xf32>
    %282 = vector.shape_cast %281 : vector<8xf32> to vector<8x1xf32>
    %283 = vector.broadcast %282 : vector<8x1xf32> to vector<8x16xf32>
    %284 = arith.divf %280, %283 : vector<8x16xf32>
    %285 = arith.truncf %284 : vector<8x16xf32> to vector<8x16xbf16>
    %286 = vector.extract_strided_slice %242 {offsets = [0, 16], sizes = [16, 8], strides = [1, 1]} : vector<16x32xbf16> to vector<16x8xbf16>
    %cst_83 = arith.constant dense<0.000000e+00> : vector<8x8xf32>
    %287 = tpu.matmul %285, %286, %cst_83 {dimension_numbers = #tpu.dot_dimension_numbers<[1], [0], [0], [1], [0, 0, 1, 1], [], []>} : vector<8x16xbf16>, vector<16x8xbf16>, vector<8x8xf32> -> vector<8x8xf32>
    %288 = vector.extract_strided_slice %240 {offsets = [0, 24], sizes = [8, 8], strides = [1, 1]} : vector<8x32xbf16> to vector<8x8xbf16>
    %289 = vector.extract_strided_slice %241 {offsets = [0, 24], sizes = [16, 8], strides = [1, 1]} : vector<16x32xbf16> to vector<16x8xbf16>
    %cst_84 = arith.constant dense<0.000000e+00> : vector<8x16xf32>
    %290 = tpu.matmul %288, %289, %cst_84 {dimension_numbers = #tpu.dot_dimension_numbers<[1], [1], [0], [0], [0, 0, 1, 0], [], []>} : vector<8x8xbf16>, vector<16x8xbf16>, vector<8x16xf32> -> vector<8x16xf32>
    %cst_85 = arith.constant dense<0xFF800000> : vector<8xf32>
    %291 = vector.multi_reduction <maximumf>, %290, %cst_85 [1] : vector<8x16xf32> to vector<8xf32>
    %292 = vector.shape_cast %291 : vector<8xf32> to vector<8x1xf32>
    %293 = vector.broadcast %292 : vector<8x1xf32> to vector<8x16xf32>
    %294 = arith.subf %290, %293 : vector<8x16xf32>
    %295 = math.exp %294 : vector<8x16xf32>
    %cst_86 = arith.constant dense<0.000000e+00> : vector<8xf32>
    %296 = vector.multi_reduction <add>, %295, %cst_86 [1] : vector<8x16xf32> to vector<8xf32>
    %297 = vector.shape_cast %296 : vector<8xf32> to vector<8x1xf32>
    %298 = vector.broadcast %297 : vector<8x1xf32> to vector<8x16xf32>
    %299 = arith.divf %295, %298 : vector<8x16xf32>
    %300 = arith.truncf %299 : vector<8x16xf32> to vector<8x16xbf16>
    %301 = vector.extract_strided_slice %242 {offsets = [0, 24], sizes = [16, 8], strides = [1, 1]} : vector<16x32xbf16> to vector<16x8xbf16>
    %cst_87 = arith.constant dense<0.000000e+00> : vector<8x8xf32>
    %302 = tpu.matmul %300, %301, %cst_87 {dimension_numbers = #tpu.dot_dimension_numbers<[1], [0], [0], [1], [0, 0, 1, 1], [], []>} : vector<8x16xbf16>, vector<16x8xbf16>, vector<8x8xf32> -> vector<8x8xf32>
    %303 = tpu.concatenate %257, %272, %287, %302 in 1 : vector<8x8xf32>, vector<8x8xf32>, vector<8x8xf32>, vector<8x8xf32> -> vector<8x32xf32>
    %304 = tpu.concatenate %254, %269, %284, %299 in 1 : vector<8x16xf32>, vector<8x16xf32>, vector<8x16xf32>, vector<8x16xf32> -> vector<8x64xf32>
    %305 = vector.extract_strided_slice %228 {offsets = [8, 0], sizes = [8, 32], strides = [1, 1]} : vector<16x32xf32> to vector<8x32xf32>
    %306 = vector.extract_strided_slice %235 {offsets = [16, 0], sizes = [16, 32], strides = [1, 1]} : vector<32x32xf32> to vector<16x32xf32>
    %307 = vector.extract_strided_slice %236 {offsets = [16, 0], sizes = [16, 32], strides = [1, 1]} : vector<32x32xf32> to vector<16x32xf32>
    %308 = arith.truncf %305 : vector<8x32xf32> to vector<8x32xbf16>
    %309 = arith.truncf %306 : vector<16x32xf32> to vector<16x32xbf16>
    %310 = arith.truncf %307 : vector<16x32xf32> to vector<16x32xbf16>
    %311 = vector.extract_strided_slice %308 {offsets = [0, 0], sizes = [8, 8], strides = [1, 1]} : vector<8x32xbf16> to vector<8x8xbf16>
    %312 = vector.extract_strided_slice %309 {offsets = [0, 0], sizes = [16, 8], strides = [1, 1]} : vector<16x32xbf16> to vector<16x8xbf16>
    %cst_88 = arith.constant dense<0.000000e+00> : vector<8x16xf32>
    %313 = tpu.matmul %311, %312, %cst_88 {dimension_numbers = #tpu.dot_dimension_numbers<[1], [1], [0], [0], [0, 0, 1, 0], [], []>} : vector<8x8xbf16>, vector<16x8xbf16>, vector<8x16xf32> -> vector<8x16xf32>
    %cst_89 = arith.constant dense<0xFF800000> : vector<8xf32>
    %314 = vector.multi_reduction <maximumf>, %313, %cst_89 [1] : vector<8x16xf32> to vector<8xf32>
    %315 = vector.shape_cast %314 : vector<8xf32> to vector<8x1xf32>
    %316 = vector.broadcast %315 : vector<8x1xf32> to vector<8x16xf32>
    %317 = arith.subf %313, %316 : vector<8x16xf32>
    %318 = math.exp %317 : vector<8x16xf32>
    %cst_90 = arith.constant dense<0.000000e+00> : vector<8xf32>
    %319 = vector.multi_reduction <add>, %318, %cst_90 [1] : vector<8x16xf32> to vector<8xf32>
    %320 = vector.shape_cast %319 : vector<8xf32> to vector<8x1xf32>
    %321 = vector.broadcast %320 : vector<8x1xf32> to vector<8x16xf32>
    %322 = arith.divf %318, %321 : vector<8x16xf32>
    %323 = arith.truncf %322 : vector<8x16xf32> to vector<8x16xbf16>
    %324 = vector.extract_strided_slice %310 {offsets = [0, 0], sizes = [16, 8], strides = [1, 1]} : vector<16x32xbf16> to vector<16x8xbf16>
    %cst_91 = arith.constant dense<0.000000e+00> : vector<8x8xf32>
    %325 = tpu.matmul %323, %324, %cst_91 {dimension_numbers = #tpu.dot_dimension_numbers<[1], [0], [0], [1], [0, 0, 1, 1], [], []>} : vector<8x16xbf16>, vector<16x8xbf16>, vector<8x8xf32> -> vector<8x8xf32>
    %326 = vector.extract_strided_slice %308 {offsets = [0, 8], sizes = [8, 8], strides = [1, 1]} : vector<8x32xbf16> to vector<8x8xbf16>
    %327 = vector.extract_strided_slice %309 {offsets = [0, 8], sizes = [16, 8], strides = [1, 1]} : vector<16x32xbf16> to vector<16x8xbf16>
    %cst_92 = arith.constant dense<0.000000e+00> : vector<8x16xf32>
    %328 = tpu.matmul %326, %327, %cst_92 {dimension_numbers = #tpu.dot_dimension_numbers<[1], [1], [0], [0], [0, 0, 1, 0], [], []>} : vector<8x8xbf16>, vector<16x8xbf16>, vector<8x16xf32> -> vector<8x16xf32>
    %cst_93 = arith.constant dense<0xFF800000> : vector<8xf32>
    %329 = vector.multi_reduction <maximumf>, %328, %cst_93 [1] : vector<8x16xf32> to vector<8xf32>
    %330 = vector.shape_cast %329 : vector<8xf32> to vector<8x1xf32>
    %331 = vector.broadcast %330 : vector<8x1xf32> to vector<8x16xf32>
    %332 = arith.subf %328, %331 : vector<8x16xf32>
    %333 = math.exp %332 : vector<8x16xf32>
    %cst_94 = arith.constant dense<0.000000e+00> : vector<8xf32>
    %334 = vector.multi_reduction <add>, %333, %cst_94 [1] : vector<8x16xf32> to vector<8xf32>
    %335 = vector.shape_cast %334 : vector<8xf32> to vector<8x1xf32>
    %336 = vector.broadcast %335 : vector<8x1xf32> to vector<8x16xf32>
    %337 = arith.divf %333, %336 : vector<8x16xf32>
    %338 = arith.truncf %337 : vector<8x16xf32> to vector<8x16xbf16>
    %339 = vector.extract_strided_slice %310 {offsets = [0, 8], sizes = [16, 8], strides = [1, 1]} : vector<16x32xbf16> to vector<16x8xbf16>
    %cst_95 = arith.constant dense<0.000000e+00> : vector<8x8xf32>
    %340 = tpu.matmul %338, %339, %cst_95 {dimension_numbers = #tpu.dot_dimension_numbers<[1], [0], [0], [1], [0, 0, 1, 1], [], []>} : vector<8x16xbf16>, vector<16x8xbf16>, vector<8x8xf32> -> vector<8x8xf32>
    %341 = vector.extract_strided_slice %308 {offsets = [0, 16], sizes = [8, 8], strides = [1, 1]} : vector<8x32xbf16> to vector<8x8xbf16>
    %342 = vector.extract_strided_slice %309 {offsets = [0, 16], sizes = [16, 8], strides = [1, 1]} : vector<16x32xbf16> to vector<16x8xbf16>
    %cst_96 = arith.constant dense<0.000000e+00> : vector<8x16xf32>
    %343 = tpu.matmul %341, %342, %cst_96 {dimension_numbers = #tpu.dot_dimension_numbers<[1], [1], [0], [0], [0, 0, 1, 0], [], []>} : vector<8x8xbf16>, vector<16x8xbf16>, vector<8x16xf32> -> vector<8x16xf32>
    %cst_97 = arith.constant dense<0xFF800000> : vector<8xf32>
    %344 = vector.multi_reduction <maximumf>, %343, %cst_97 [1] : vector<8x16xf32> to vector<8xf32>
    %345 = vector.shape_cast %344 : vector<8xf32> to vector<8x1xf32>
    %346 = vector.broadcast %345 : vector<8x1xf32> to vector<8x16xf32>
    %347 = arith.subf %343, %346 : vector<8x16xf32>
    %348 = math.exp %347 : vector<8x16xf32>
    %cst_98 = arith.constant dense<0.000000e+00> : vector<8xf32>
    %349 = vector.multi_reduction <add>, %348, %cst_98 [1] : vector<8x16xf32> to vector<8xf32>
    %350 = vector.shape_cast %349 : vector<8xf32> to vector<8x1xf32>
    %351 = vector.broadcast %350 : vector<8x1xf32> to vector<8x16xf32>
    %352 = arith.divf %348, %351 : vector<8x16xf32>
    %353 = arith.truncf %352 : vector<8x16xf32> to vector<8x16xbf16>
    %354 = vector.extract_strided_slice %310 {offsets = [0, 16], sizes = [16, 8], strides = [1, 1]} : vector<16x32xbf16> to vector<16x8xbf16>
    %cst_99 = arith.constant dense<0.000000e+00> : vector<8x8xf32>
    %355 = tpu.matmul %353, %354, %cst_99 {dimension_numbers = #tpu.dot_dimension_numbers<[1], [0], [0], [1], [0, 0, 1, 1], [], []>} : vector<8x16xbf16>, vector<16x8xbf16>, vector<8x8xf32> -> vector<8x8xf32>
    %356 = vector.extract_strided_slice %308 {offsets = [0, 24], sizes = [8, 8], strides = [1, 1]} : vector<8x32xbf16> to vector<8x8xbf16>
    %357 = vector.extract_strided_slice %309 {offsets = [0, 24], sizes = [16, 8], strides = [1, 1]} : vector<16x32xbf16> to vector<16x8xbf16>
    %cst_100 = arith.constant dense<0.000000e+00> : vector<8x16xf32>
    %358 = tpu.matmul %356, %357, %cst_100 {dimension_numbers = #tpu.dot_dimension_numbers<[1], [1], [0], [0], [0, 0, 1, 0], [], []>} : vector<8x8xbf16>, vector<16x8xbf16>, vector<8x16xf32> -> vector<8x16xf32>
    %cst_101 = arith.constant dense<0xFF800000> : vector<8xf32>
    %359 = vector.multi_reduction <maximumf>, %358, %cst_101 [1] : vector<8x16xf32> to vector<8xf32>
    %360 = vector.shape_cast %359 : vector<8xf32> to vector<8x1xf32>
    %361 = vector.broadcast %360 : vector<8x1xf32> to vector<8x16xf32>
    %362 = arith.subf %358, %361 : vector<8x16xf32>
    %363 = math.exp %362 : vector<8x16xf32>
    %cst_102 = arith.constant dense<0.000000e+00> : vector<8xf32>
    %364 = vector.multi_reduction <add>, %363, %cst_102 [1] : vector<8x16xf32> to vector<8xf32>
    %365 = vector.shape_cast %364 : vector<8xf32> to vector<8x1xf32>
    %366 = vector.broadcast %365 : vector<8x1xf32> to vector<8x16xf32>
    %367 = arith.divf %363, %366 : vector<8x16xf32>
    %368 = arith.truncf %367 : vector<8x16xf32> to vector<8x16xbf16>
    %369 = vector.extract_strided_slice %310 {offsets = [0, 24], sizes = [16, 8], strides = [1, 1]} : vector<16x32xbf16> to vector<16x8xbf16>
    %cst_103 = arith.constant dense<0.000000e+00> : vector<8x8xf32>
    %370 = tpu.matmul %368, %369, %cst_103 {dimension_numbers = #tpu.dot_dimension_numbers<[1], [0], [0], [1], [0, 0, 1, 1], [], []>} : vector<8x16xbf16>, vector<16x8xbf16>, vector<8x8xf32> -> vector<8x8xf32>
    %371 = tpu.concatenate %325, %340, %355, %370 in 1 : vector<8x8xf32>, vector<8x8xf32>, vector<8x8xf32>, vector<8x8xf32> -> vector<8x32xf32>
    %372 = tpu.concatenate %322, %337, %352, %367 in 1 : vector<8x16xf32>, vector<8x16xf32>, vector<8x16xf32>, vector<8x16xf32> -> vector<8x64xf32>
    %373 = tpu.concatenate %303, %371 in 0 : vector<8x32xf32>, vector<8x32xf32> -> vector<16x32xf32>
    %374 = arith.truncf %373 : vector<16x32xf32> to vector<16x32xbf16>
    %375 = vector.extract_strided_slice %12 {offsets = [1, 0, 0], sizes = [1, 32, 32], strides = [1, 1, 1]} : vector<2x32x32xbf16> to vector<1x32x32xbf16>
    %376 = vector.shape_cast %375 : vector<1x32x32xbf16> to vector<32x32xbf16>
    %cst_104 = arith.constant dense<0.000000e+00> : vector<16x32xf32>
    %377 = tpu.matmul %374, %376, %cst_104 {dimension_numbers = #tpu.dot_dimension_numbers<[1], [0], [0], [1], [0, 0, 1, 1], [], []>} : vector<16x32xbf16>, vector<32x32xbf16>, vector<16x32xf32> -> vector<16x32xf32>
    %378 = vector.extract_strided_slice %8 {offsets = [7, 0], sizes = [1, 32], strides = [1, 1]} : vector<16x32xf32> to vector<1x32xf32>
    %379 = vector.broadcast %378 : vector<1x32xf32> to vector<16x32xf32>
    %380 = arith.addf %377, %379 : vector<16x32xf32>
    %381 = arith.addf %197, %380 : vector<16x32xf32>
    %382 = vector.extract_strided_slice %8 {offsets = [4, 0], sizes = [1, 32], strides = [1, 1]} : vector<16x32xf32> to vector<1x32xf32>
    %383 = vector.extract_strided_slice %8 {offsets = [5, 0], sizes = [1, 32], strides = [1, 1]} : vector<16x32xf32> to vector<1x32xf32>
    %cst_105 = arith.constant dense<0.000000e+00> : vector<16xf32>
    %384 = vector.multi_reduction <add>, %381, %cst_105 [1] : vector<16x32xf32> to vector<16xf32>
    %385 = vector.shape_cast %384 : vector<16xf32> to vector<16x1xf32>
    %cst_106 = arith.constant 3.200000e+01 : f32
    %386 = vector.broadcast %cst_106 : f32 to vector<16x1xf32>
    %387 = arith.divf %385, %386 : vector<16x1xf32>
    %388 = vector.broadcast %387 : vector<16x1xf32> to vector<16x32xf32>
    %389 = arith.subf %381, %388 : vector<16x32xf32>
    %390 = arith.mulf %389, %389 : vector<16x32xf32>
    %cst_107 = arith.constant dense<0.000000e+00> : vector<16xf32>
    %391 = vector.multi_reduction <add>, %390, %cst_107 [1] : vector<16x32xf32> to vector<16xf32>
    %392 = vector.shape_cast %391 : vector<16xf32> to vector<16x1xf32>
    %cst_108 = arith.constant 3.200000e+01 : f32
    %393 = vector.broadcast %cst_108 : f32 to vector<16x1xf32>
    %394 = arith.divf %392, %393 : vector<16x1xf32>
    %395 = vector.broadcast %387 : vector<16x1xf32> to vector<16x32xf32>
    %396 = arith.subf %381, %395 : vector<16x32xf32>
    %cst_109 = arith.constant 9.99999974E-6 : f32
    %397 = vector.broadcast %cst_109 : f32 to vector<16x1xf32>
    %398 = arith.addf %394, %397 : vector<16x1xf32>
    %399 = math.rsqrt %398 : vector<16x1xf32>
    %400 = vector.broadcast %399 : vector<16x1xf32> to vector<16x32xf32>
    %401 = arith.mulf %396, %400 : vector<16x32xf32>
    %402 = vector.broadcast %382 : vector<1x32xf32> to vector<16x32xf32>
    %403 = arith.mulf %401, %402 : vector<16x32xf32>
    %404 = vector.broadcast %383 : vector<1x32xf32> to vector<16x32xf32>
    %405 = arith.addf %403, %404 : vector<16x32xf32>
    %406 = arith.truncf %405 : vector<16x32xf32> to vector<16x32xbf16>
    %c0_110 = arith.constant 0 : index
    %c0_111 = arith.constant 0 : index
    %c0_112 = arith.constant 0 : index
    %407 = vector.load %arg11[%c0_110, %c0_111, %c0_112] : memref<2x32x64xbf16, #tpu.memory_space<vmem>>, vector<1x32x64xbf16>
    %408 = vector.shape_cast %407 : vector<1x32x64xbf16> to vector<32x64xbf16>
    %cst_113 = arith.constant dense<0.000000e+00> : vector<16x64xf32>
    %409 = tpu.matmul %406, %408, %cst_113 {dimension_numbers = #tpu.dot_dimension_numbers<[1], [0], [0], [1], [0, 0, 1, 1], [], []>} : vector<16x32xbf16>, vector<32x64xbf16>, vector<16x64xf32> -> vector<16x64xf32>
    %c0_114 = arith.constant 0 : index
    %c0_115 = arith.constant 0 : index
    %c0_116 = arith.constant 0 : index
    %410 = vector.load %arg6[%c0_114, %c0_115, %c0_116] : memref<2x1x64xf32, #tpu.memory_space<vmem>>, vector<1x1x64xf32>
    %411 = vector.shape_cast %410 : vector<1x1x64xf32> to vector<1x64xf32>
    %412 = vector.broadcast %411 : vector<1x64xf32> to vector<16x64xf32>
    %413 = arith.addf %409, %412 : vector<16x64xf32>
    %cst_117 = arith.constant 0.000000e+00 : f32
    %414 = vector.broadcast %cst_117 : f32 to vector<16x64xf32>
    %415 = arith.maximumf %413, %414 : vector<16x64xf32>
    %416 = arith.truncf %415 : vector<16x64xf32> to vector<16x64xbf16>
    %c0_118 = arith.constant 0 : index
    %c0_119 = arith.constant 0 : index
    %c0_120 = arith.constant 0 : index
    %417 = vector.load %arg12[%c0_118, %c0_119, %c0_120] : memref<2x64x32xbf16, #tpu.memory_space<vmem>>, vector<1x64x32xbf16>
    %418 = vector.shape_cast %417 : vector<1x64x32xbf16> to vector<64x32xbf16>
    %cst_121 = arith.constant dense<0.000000e+00> : vector<16x32xf32>
    %419 = tpu.matmul %416, %418, %cst_121 {dimension_numbers = #tpu.dot_dimension_numbers<[1], [0], [0], [1], [0, 0, 1, 1], [], []>} : vector<16x64xbf16>, vector<64x32xbf16>, vector<16x32xf32> -> vector<16x32xf32>
    %420 = vector.extract_strided_slice %8 {offsets = [8, 0], sizes = [1, 32], strides = [1, 1]} : vector<16x32xf32> to vector<1x32xf32>
    %421 = vector.broadcast %420 : vector<1x32xf32> to vector<16x32xf32>
    %422 = arith.addf %419, %421 : vector<16x32xf32>
    %423 = arith.addf %381, %422 : vector<16x32xf32>
    %c1 = arith.constant 1 : index
    %c0_122 = arith.constant 0 : index
    %c0_123 = arith.constant 0 : index
    %424 = vector.load %arg4[%c1, %c0_122, %c0_123] : memref<3x16x32xf32, #tpu.memory_space<vmem>>, vector<1x16x32xf32>
    %425 = vector.shape_cast %424 : vector<1x16x32xf32> to vector<16x32xf32>
    %c1_124 = arith.constant 1 : index
    %c0_125 = arith.constant 0 : index
    %c0_126 = arith.constant 0 : index
    %426 = vector.load %arg5[%c1_124, %c0_125, %c0_126] : memref<2x2x96xf32, #tpu.memory_space<vmem>>, vector<1x2x96xf32>
    %427 = vector.shape_cast %426 : vector<1x2x96xf32> to vector<2x96xf32>
    %c1_127 = arith.constant 1 : index
    %c0_128 = arith.constant 0 : index
    %c0_129 = arith.constant 0 : index
    %c0_130 = arith.constant 0 : index
    %428 = vector.load %arg10[%c1_127, %c0_128, %c0_129, %c0_130] : memref<2x2x32x32xbf16, #tpu.memory_space<vmem>>, vector<1x2x32x32xbf16>
    %429 = vector.shape_cast %428 : vector<1x2x32x32xbf16> to vector<2x32x32xbf16>
    %430 = vector.extract_strided_slice %425 {offsets = [0, 0], sizes = [1, 32], strides = [1, 1]} : vector<16x32xf32> to vector<1x32xf32>
    %431 = vector.extract_strided_slice %425 {offsets = [1, 0], sizes = [1, 32], strides = [1, 1]} : vector<16x32xf32> to vector<1x32xf32>
    %cst_131 = arith.constant dense<0.000000e+00> : vector<16xf32>
    %432 = vector.multi_reduction <add>, %423, %cst_131 [1] : vector<16x32xf32> to vector<16xf32>
    %433 = vector.shape_cast %432 : vector<16xf32> to vector<16x1xf32>
    %cst_132 = arith.constant 3.200000e+01 : f32
    %434 = vector.broadcast %cst_132 : f32 to vector<16x1xf32>
    %435 = arith.divf %433, %434 : vector<16x1xf32>
    %436 = vector.broadcast %435 : vector<16x1xf32> to vector<16x32xf32>
    %437 = arith.subf %423, %436 : vector<16x32xf32>
    %438 = arith.mulf %437, %437 : vector<16x32xf32>
    %cst_133 = arith.constant dense<0.000000e+00> : vector<16xf32>
    %439 = vector.multi_reduction <add>, %438, %cst_133 [1] : vector<16x32xf32> to vector<16xf32>
    %440 = vector.shape_cast %439 : vector<16xf32> to vector<16x1xf32>
    %cst_134 = arith.constant 3.200000e+01 : f32
    %441 = vector.broadcast %cst_134 : f32 to vector<16x1xf32>
    %442 = arith.divf %440, %441 : vector<16x1xf32>
    %443 = vector.broadcast %435 : vector<16x1xf32> to vector<16x32xf32>
    %444 = arith.subf %423, %443 : vector<16x32xf32>
    %cst_135 = arith.constant 9.99999974E-6 : f32
    %445 = vector.broadcast %cst_135 : f32 to vector<16x1xf32>
    %446 = arith.addf %442, %445 : vector<16x1xf32>
    %447 = math.rsqrt %446 : vector<16x1xf32>
    %448 = vector.broadcast %447 : vector<16x1xf32> to vector<16x32xf32>
    %449 = arith.mulf %444, %448 : vector<16x32xf32>
    %450 = vector.broadcast %430 : vector<1x32xf32> to vector<16x32xf32>
    %451 = arith.mulf %449, %450 : vector<16x32xf32>
    %452 = vector.broadcast %431 : vector<1x32xf32> to vector<16x32xf32>
    %453 = arith.addf %451, %452 : vector<16x32xf32>
    %454 = arith.truncf %453 : vector<16x32xf32> to vector<16x32xbf16>
    %c1_136 = arith.constant 1 : index
    %c0_137 = arith.constant 0 : index
    %c0_138 = arith.constant 0 : index
    %455 = vector.load %arg7[%c1_136, %c0_137, %c0_138] : memref<2x32x96xbf16, #tpu.memory_space<vmem>>, vector<1x32x96xbf16>
    %456 = vector.shape_cast %455 : vector<1x32x96xbf16> to vector<32x96xbf16>
    %cst_139 = arith.constant dense<0.000000e+00> : vector<16x96xf32>
    %457 = tpu.matmul %454, %456, %cst_139 {dimension_numbers = #tpu.dot_dimension_numbers<[1], [0], [0], [1], [0, 0, 1, 1], [], []>} : vector<16x32xbf16>, vector<32x96xbf16>, vector<16x96xf32> -> vector<16x96xf32>
    %458 = vector.extract_strided_slice %427 {offsets = [0, 0], sizes = [1, 96], strides = [1, 1]} : vector<2x96xf32> to vector<1x96xf32>
    %459 = vector.broadcast %458 : vector<1x96xf32> to vector<16x96xf32>
    %460 = arith.addf %457, %459 : vector<16x96xf32>
    %461 = vector.extract_strided_slice %460 {offsets = [0, 0], sizes = [16, 32], strides = [1, 1]} : vector<16x96xf32> to vector<16x32xf32>
    %462 = vector.extract_strided_slice %460 {offsets = [0, 32], sizes = [16, 32], strides = [1, 1]} : vector<16x96xf32> to vector<16x32xf32>
    %463 = vector.extract_strided_slice %460 {offsets = [0, 64], sizes = [16, 32], strides = [1, 1]} : vector<16x96xf32> to vector<16x32xf32>
    %464 = vector.extract_strided_slice %461 {offsets = [0, 0], sizes = [8, 32], strides = [1, 1]} : vector<16x32xf32> to vector<8x32xf32>
    %465 = vector.extract_strided_slice %462 {offsets = [0, 0], sizes = [8, 32], strides = [1, 1]} : vector<16x32xf32> to vector<8x32xf32>
    %466 = vector.extract_strided_slice %463 {offsets = [0, 0], sizes = [8, 32], strides = [1, 1]} : vector<16x32xf32> to vector<8x32xf32>
    %467 = arith.truncf %464 : vector<8x32xf32> to vector<8x32xbf16>
    %468 = arith.truncf %465 : vector<8x32xf32> to vector<8x32xbf16>
    %469 = arith.truncf %466 : vector<8x32xf32> to vector<8x32xbf16>
    %470 = vector.extract_strided_slice %467 {offsets = [0, 0], sizes = [8, 8], strides = [1, 1]} : vector<8x32xbf16> to vector<8x8xbf16>
    %471 = vector.extract_strided_slice %468 {offsets = [0, 0], sizes = [8, 8], strides = [1, 1]} : vector<8x32xbf16> to vector<8x8xbf16>
    %cst_140 = arith.constant dense<0.000000e+00> : vector<8x8xf32>
    %472 = tpu.matmul %470, %471, %cst_140 {dimension_numbers = #tpu.dot_dimension_numbers<[1], [1], [0], [0], [0, 0, 1, 0], [], []>} : vector<8x8xbf16>, vector<8x8xbf16>, vector<8x8xf32> -> vector<8x8xf32>
    %cst_141 = arith.constant dense<0xFF800000> : vector<8xf32>
    %473 = vector.multi_reduction <maximumf>, %472, %cst_141 [1] : vector<8x8xf32> to vector<8xf32>
    %474 = vector.shape_cast %473 : vector<8xf32> to vector<8x1xf32>
    %475 = vector.broadcast %474 : vector<8x1xf32> to vector<8x8xf32>
    %476 = arith.subf %472, %475 : vector<8x8xf32>
    %477 = math.exp %476 : vector<8x8xf32>
    %cst_142 = arith.constant dense<0.000000e+00> : vector<8xf32>
    %478 = vector.multi_reduction <add>, %477, %cst_142 [1] : vector<8x8xf32> to vector<8xf32>
    %479 = vector.shape_cast %478 : vector<8xf32> to vector<8x1xf32>
    %480 = tpu.reciprocal %479 {approx = true} : vector<8x1xf32> -> vector<8x1xf32>
    %481 = vector.broadcast %480 : vector<8x1xf32> to vector<8x8xf32>
    %482 = arith.mulf %477, %481 : vector<8x8xf32>
    %483 = arith.truncf %482 : vector<8x8xf32> to vector<8x8xbf16>
    %484 = vector.extract_strided_slice %469 {offsets = [0, 0], sizes = [8, 8], strides = [1, 1]} : vector<8x32xbf16> to vector<8x8xbf16>
    %cst_143 = arith.constant dense<0.000000e+00> : vector<8x8xf32>
    %485 = tpu.matmul %483, %484, %cst_143 {dimension_numbers = #tpu.dot_dimension_numbers<[1], [0], [0], [1], [0, 0, 1, 1], [], []>} : vector<8x8xbf16>, vector<8x8xbf16>, vector<8x8xf32> -> vector<8x8xf32>
    %486 = vector.extract_strided_slice %467 {offsets = [0, 8], sizes = [8, 8], strides = [1, 1]} : vector<8x32xbf16> to vector<8x8xbf16>
    %487 = vector.extract_strided_slice %468 {offsets = [0, 8], sizes = [8, 8], strides = [1, 1]} : vector<8x32xbf16> to vector<8x8xbf16>
    %cst_144 = arith.constant dense<0.000000e+00> : vector<8x8xf32>
    %488 = tpu.matmul %486, %487, %cst_144 {dimension_numbers = #tpu.dot_dimension_numbers<[1], [1], [0], [0], [0, 0, 1, 0], [], []>} : vector<8x8xbf16>, vector<8x8xbf16>, vector<8x8xf32> -> vector<8x8xf32>
    %cst_145 = arith.constant dense<0xFF800000> : vector<8xf32>
    %489 = vector.multi_reduction <maximumf>, %488, %cst_145 [1] : vector<8x8xf32> to vector<8xf32>
    %490 = vector.shape_cast %489 : vector<8xf32> to vector<8x1xf32>
    %491 = vector.broadcast %490 : vector<8x1xf32> to vector<8x8xf32>
    %492 = arith.subf %488, %491 : vector<8x8xf32>
    %493 = math.exp %492 : vector<8x8xf32>
    %cst_146 = arith.constant dense<0.000000e+00> : vector<8xf32>
    %494 = vector.multi_reduction <add>, %493, %cst_146 [1] : vector<8x8xf32> to vector<8xf32>
    %495 = vector.shape_cast %494 : vector<8xf32> to vector<8x1xf32>
    %496 = tpu.reciprocal %495 {approx = true} : vector<8x1xf32> -> vector<8x1xf32>
    %497 = vector.broadcast %496 : vector<8x1xf32> to vector<8x8xf32>
    %498 = arith.mulf %493, %497 : vector<8x8xf32>
    %499 = arith.truncf %498 : vector<8x8xf32> to vector<8x8xbf16>
    %500 = vector.extract_strided_slice %469 {offsets = [0, 8], sizes = [8, 8], strides = [1, 1]} : vector<8x32xbf16> to vector<8x8xbf16>
    %cst_147 = arith.constant dense<0.000000e+00> : vector<8x8xf32>
    %501 = tpu.matmul %499, %500, %cst_147 {dimension_numbers = #tpu.dot_dimension_numbers<[1], [0], [0], [1], [0, 0, 1, 1], [], []>} : vector<8x8xbf16>, vector<8x8xbf16>, vector<8x8xf32> -> vector<8x8xf32>
    %502 = vector.extract_strided_slice %467 {offsets = [0, 16], sizes = [8, 8], strides = [1, 1]} : vector<8x32xbf16> to vector<8x8xbf16>
    %503 = vector.extract_strided_slice %468 {offsets = [0, 16], sizes = [8, 8], strides = [1, 1]} : vector<8x32xbf16> to vector<8x8xbf16>
    %cst_148 = arith.constant dense<0.000000e+00> : vector<8x8xf32>
    %504 = tpu.matmul %502, %503, %cst_148 {dimension_numbers = #tpu.dot_dimension_numbers<[1], [1], [0], [0], [0, 0, 1, 0], [], []>} : vector<8x8xbf16>, vector<8x8xbf16>, vector<8x8xf32> -> vector<8x8xf32>
    %cst_149 = arith.constant dense<0xFF800000> : vector<8xf32>
    %505 = vector.multi_reduction <maximumf>, %504, %cst_149 [1] : vector<8x8xf32> to vector<8xf32>
    %506 = vector.shape_cast %505 : vector<8xf32> to vector<8x1xf32>
    %507 = vector.broadcast %506 : vector<8x1xf32> to vector<8x8xf32>
    %508 = arith.subf %504, %507 : vector<8x8xf32>
    %509 = math.exp %508 : vector<8x8xf32>
    %cst_150 = arith.constant dense<0.000000e+00> : vector<8xf32>
    %510 = vector.multi_reduction <add>, %509, %cst_150 [1] : vector<8x8xf32> to vector<8xf32>
    %511 = vector.shape_cast %510 : vector<8xf32> to vector<8x1xf32>
    %512 = tpu.reciprocal %511 {approx = true} : vector<8x1xf32> -> vector<8x1xf32>
    %513 = vector.broadcast %512 : vector<8x1xf32> to vector<8x8xf32>
    %514 = arith.mulf %509, %513 : vector<8x8xf32>
    %515 = arith.truncf %514 : vector<8x8xf32> to vector<8x8xbf16>
    %516 = vector.extract_strided_slice %469 {offsets = [0, 16], sizes = [8, 8], strides = [1, 1]} : vector<8x32xbf16> to vector<8x8xbf16>
    %cst_151 = arith.constant dense<0.000000e+00> : vector<8x8xf32>
    %517 = tpu.matmul %515, %516, %cst_151 {dimension_numbers = #tpu.dot_dimension_numbers<[1], [0], [0], [1], [0, 0, 1, 1], [], []>} : vector<8x8xbf16>, vector<8x8xbf16>, vector<8x8xf32> -> vector<8x8xf32>
    %518 = vector.extract_strided_slice %467 {offsets = [0, 24], sizes = [8, 8], strides = [1, 1]} : vector<8x32xbf16> to vector<8x8xbf16>
    %519 = vector.extract_strided_slice %468 {offsets = [0, 24], sizes = [8, 8], strides = [1, 1]} : vector<8x32xbf16> to vector<8x8xbf16>
    %cst_152 = arith.constant dense<0.000000e+00> : vector<8x8xf32>
    %520 = tpu.matmul %518, %519, %cst_152 {dimension_numbers = #tpu.dot_dimension_numbers<[1], [1], [0], [0], [0, 0, 1, 0], [], []>} : vector<8x8xbf16>, vector<8x8xbf16>, vector<8x8xf32> -> vector<8x8xf32>
    %cst_153 = arith.constant dense<0xFF800000> : vector<8xf32>
    %521 = vector.multi_reduction <maximumf>, %520, %cst_153 [1] : vector<8x8xf32> to vector<8xf32>
    %522 = vector.shape_cast %521 : vector<8xf32> to vector<8x1xf32>
    %523 = vector.broadcast %522 : vector<8x1xf32> to vector<8x8xf32>
    %524 = arith.subf %520, %523 : vector<8x8xf32>
    %525 = math.exp %524 : vector<8x8xf32>
    %cst_154 = arith.constant dense<0.000000e+00> : vector<8xf32>
    %526 = vector.multi_reduction <add>, %525, %cst_154 [1] : vector<8x8xf32> to vector<8xf32>
    %527 = vector.shape_cast %526 : vector<8xf32> to vector<8x1xf32>
    %528 = tpu.reciprocal %527 {approx = true} : vector<8x1xf32> -> vector<8x1xf32>
    %529 = vector.broadcast %528 : vector<8x1xf32> to vector<8x8xf32>
    %530 = arith.mulf %525, %529 : vector<8x8xf32>
    %531 = arith.truncf %530 : vector<8x8xf32> to vector<8x8xbf16>
    %532 = vector.extract_strided_slice %469 {offsets = [0, 24], sizes = [8, 8], strides = [1, 1]} : vector<8x32xbf16> to vector<8x8xbf16>
    %cst_155 = arith.constant dense<0.000000e+00> : vector<8x8xf32>
    %533 = tpu.matmul %531, %532, %cst_155 {dimension_numbers = #tpu.dot_dimension_numbers<[1], [0], [0], [1], [0, 0, 1, 1], [], []>} : vector<8x8xbf16>, vector<8x8xbf16>, vector<8x8xf32> -> vector<8x8xf32>
    %534 = tpu.concatenate %485, %501, %517, %533 in 1 : vector<8x8xf32>, vector<8x8xf32>, vector<8x8xf32>, vector<8x8xf32> -> vector<8x32xf32>
    %535 = vector.extract_strided_slice %461 {offsets = [8, 0], sizes = [8, 32], strides = [1, 1]} : vector<16x32xf32> to vector<8x32xf32>
    %536 = vector.extract_strided_slice %462 {offsets = [8, 0], sizes = [8, 32], strides = [1, 1]} : vector<16x32xf32> to vector<8x32xf32>
    %537 = vector.extract_strided_slice %463 {offsets = [8, 0], sizes = [8, 32], strides = [1, 1]} : vector<16x32xf32> to vector<8x32xf32>
    %538 = arith.truncf %535 : vector<8x32xf32> to vector<8x32xbf16>
    %539 = arith.truncf %536 : vector<8x32xf32> to vector<8x32xbf16>
    %540 = arith.truncf %537 : vector<8x32xf32> to vector<8x32xbf16>
    %541 = vector.extract_strided_slice %538 {offsets = [0, 0], sizes = [8, 8], strides = [1, 1]} : vector<8x32xbf16> to vector<8x8xbf16>
    %542 = vector.extract_strided_slice %539 {offsets = [0, 0], sizes = [8, 8], strides = [1, 1]} : vector<8x32xbf16> to vector<8x8xbf16>
    %cst_156 = arith.constant dense<0.000000e+00> : vector<8x8xf32>
    %543 = tpu.matmul %541, %542, %cst_156 {dimension_numbers = #tpu.dot_dimension_numbers<[1], [1], [0], [0], [0, 0, 1, 0], [], []>} : vector<8x8xbf16>, vector<8x8xbf16>, vector<8x8xf32> -> vector<8x8xf32>
    %cst_157 = arith.constant dense<0xFF800000> : vector<8xf32>
    %544 = vector.multi_reduction <maximumf>, %543, %cst_157 [1] : vector<8x8xf32> to vector<8xf32>
    %545 = vector.shape_cast %544 : vector<8xf32> to vector<8x1xf32>
    %546 = vector.broadcast %545 : vector<8x1xf32> to vector<8x8xf32>
    %547 = arith.subf %543, %546 : vector<8x8xf32>
    %548 = math.exp %547 : vector<8x8xf32>
    %cst_158 = arith.constant dense<0.000000e+00> : vector<8xf32>
    %549 = vector.multi_reduction <add>, %548, %cst_158 [1] : vector<8x8xf32> to vector<8xf32>
    %550 = vector.shape_cast %549 : vector<8xf32> to vector<8x1xf32>
    %551 = tpu.reciprocal %550 {approx = true} : vector<8x1xf32> -> vector<8x1xf32>
    %552 = vector.broadcast %551 : vector<8x1xf32> to vector<8x8xf32>
    %553 = arith.mulf %548, %552 : vector<8x8xf32>
    %554 = arith.truncf %553 : vector<8x8xf32> to vector<8x8xbf16>
    %555 = vector.extract_strided_slice %540 {offsets = [0, 0], sizes = [8, 8], strides = [1, 1]} : vector<8x32xbf16> to vector<8x8xbf16>
    %cst_159 = arith.constant dense<0.000000e+00> : vector<8x8xf32>
    %556 = tpu.matmul %554, %555, %cst_159 {dimension_numbers = #tpu.dot_dimension_numbers<[1], [0], [0], [1], [0, 0, 1, 1], [], []>} : vector<8x8xbf16>, vector<8x8xbf16>, vector<8x8xf32> -> vector<8x8xf32>
    %557 = vector.extract_strided_slice %538 {offsets = [0, 8], sizes = [8, 8], strides = [1, 1]} : vector<8x32xbf16> to vector<8x8xbf16>
    %558 = vector.extract_strided_slice %539 {offsets = [0, 8], sizes = [8, 8], strides = [1, 1]} : vector<8x32xbf16> to vector<8x8xbf16>
    %cst_160 = arith.constant dense<0.000000e+00> : vector<8x8xf32>
    %559 = tpu.matmul %557, %558, %cst_160 {dimension_numbers = #tpu.dot_dimension_numbers<[1], [1], [0], [0], [0, 0, 1, 0], [], []>} : vector<8x8xbf16>, vector<8x8xbf16>, vector<8x8xf32> -> vector<8x8xf32>
    %cst_161 = arith.constant dense<0xFF800000> : vector<8xf32>
    %560 = vector.multi_reduction <maximumf>, %559, %cst_161 [1] : vector<8x8xf32> to vector<8xf32>
    %561 = vector.shape_cast %560 : vector<8xf32> to vector<8x1xf32>
    %562 = vector.broadcast %561 : vector<8x1xf32> to vector<8x8xf32>
    %563 = arith.subf %559, %562 : vector<8x8xf32>
    %564 = math.exp %563 : vector<8x8xf32>
    %cst_162 = arith.constant dense<0.000000e+00> : vector<8xf32>
    %565 = vector.multi_reduction <add>, %564, %cst_162 [1] : vector<8x8xf32> to vector<8xf32>
    %566 = vector.shape_cast %565 : vector<8xf32> to vector<8x1xf32>
    %567 = tpu.reciprocal %566 {approx = true} : vector<8x1xf32> -> vector<8x1xf32>
    %568 = vector.broadcast %567 : vector<8x1xf32> to vector<8x8xf32>
    %569 = arith.mulf %564, %568 : vector<8x8xf32>
    %570 = arith.truncf %569 : vector<8x8xf32> to vector<8x8xbf16>
    %571 = vector.extract_strided_slice %540 {offsets = [0, 8], sizes = [8, 8], strides = [1, 1]} : vector<8x32xbf16> to vector<8x8xbf16>
    %cst_163 = arith.constant dense<0.000000e+00> : vector<8x8xf32>
    %572 = tpu.matmul %570, %571, %cst_163 {dimension_numbers = #tpu.dot_dimension_numbers<[1], [0], [0], [1], [0, 0, 1, 1], [], []>} : vector<8x8xbf16>, vector<8x8xbf16>, vector<8x8xf32> -> vector<8x8xf32>
    %573 = vector.extract_strided_slice %538 {offsets = [0, 16], sizes = [8, 8], strides = [1, 1]} : vector<8x32xbf16> to vector<8x8xbf16>
    %574 = vector.extract_strided_slice %539 {offsets = [0, 16], sizes = [8, 8], strides = [1, 1]} : vector<8x32xbf16> to vector<8x8xbf16>
    %cst_164 = arith.constant dense<0.000000e+00> : vector<8x8xf32>
    %575 = tpu.matmul %573, %574, %cst_164 {dimension_numbers = #tpu.dot_dimension_numbers<[1], [1], [0], [0], [0, 0, 1, 0], [], []>} : vector<8x8xbf16>, vector<8x8xbf16>, vector<8x8xf32> -> vector<8x8xf32>
    %cst_165 = arith.constant dense<0xFF800000> : vector<8xf32>
    %576 = vector.multi_reduction <maximumf>, %575, %cst_165 [1] : vector<8x8xf32> to vector<8xf32>
    %577 = vector.shape_cast %576 : vector<8xf32> to vector<8x1xf32>
    %578 = vector.broadcast %577 : vector<8x1xf32> to vector<8x8xf32>
    %579 = arith.subf %575, %578 : vector<8x8xf32>
    %580 = math.exp %579 : vector<8x8xf32>
    %cst_166 = arith.constant dense<0.000000e+00> : vector<8xf32>
    %581 = vector.multi_reduction <add>, %580, %cst_166 [1] : vector<8x8xf32> to vector<8xf32>
    %582 = vector.shape_cast %581 : vector<8xf32> to vector<8x1xf32>
    %583 = tpu.reciprocal %582 {approx = true} : vector<8x1xf32> -> vector<8x1xf32>
    %584 = vector.broadcast %583 : vector<8x1xf32> to vector<8x8xf32>
    %585 = arith.mulf %580, %584 : vector<8x8xf32>
    %586 = arith.truncf %585 : vector<8x8xf32> to vector<8x8xbf16>
    %587 = vector.extract_strided_slice %540 {offsets = [0, 16], sizes = [8, 8], strides = [1, 1]} : vector<8x32xbf16> to vector<8x8xbf16>
    %cst_167 = arith.constant dense<0.000000e+00> : vector<8x8xf32>
    %588 = tpu.matmul %586, %587, %cst_167 {dimension_numbers = #tpu.dot_dimension_numbers<[1], [0], [0], [1], [0, 0, 1, 1], [], []>} : vector<8x8xbf16>, vector<8x8xbf16>, vector<8x8xf32> -> vector<8x8xf32>
    %589 = vector.extract_strided_slice %538 {offsets = [0, 24], sizes = [8, 8], strides = [1, 1]} : vector<8x32xbf16> to vector<8x8xbf16>
    %590 = vector.extract_strided_slice %539 {offsets = [0, 24], sizes = [8, 8], strides = [1, 1]} : vector<8x32xbf16> to vector<8x8xbf16>
    %cst_168 = arith.constant dense<0.000000e+00> : vector<8x8xf32>
    %591 = tpu.matmul %589, %590, %cst_168 {dimension_numbers = #tpu.dot_dimension_numbers<[1], [1], [0], [0], [0, 0, 1, 0], [], []>} : vector<8x8xbf16>, vector<8x8xbf16>, vector<8x8xf32> -> vector<8x8xf32>
    %cst_169 = arith.constant dense<0xFF800000> : vector<8xf32>
    %592 = vector.multi_reduction <maximumf>, %591, %cst_169 [1] : vector<8x8xf32> to vector<8xf32>
    %593 = vector.shape_cast %592 : vector<8xf32> to vector<8x1xf32>
    %594 = vector.broadcast %593 : vector<8x1xf32> to vector<8x8xf32>
    %595 = arith.subf %591, %594 : vector<8x8xf32>
    %596 = math.exp %595 : vector<8x8xf32>
    %cst_170 = arith.constant dense<0.000000e+00> : vector<8xf32>
    %597 = vector.multi_reduction <add>, %596, %cst_170 [1] : vector<8x8xf32> to vector<8xf32>
    %598 = vector.shape_cast %597 : vector<8xf32> to vector<8x1xf32>
    %599 = tpu.reciprocal %598 {approx = true} : vector<8x1xf32> -> vector<8x1xf32>
    %600 = vector.broadcast %599 : vector<8x1xf32> to vector<8x8xf32>
    %601 = arith.mulf %596, %600 : vector<8x8xf32>
    %602 = arith.truncf %601 : vector<8x8xf32> to vector<8x8xbf16>
    %603 = vector.extract_strided_slice %540 {offsets = [0, 24], sizes = [8, 8], strides = [1, 1]} : vector<8x32xbf16> to vector<8x8xbf16>
    %cst_171 = arith.constant dense<0.000000e+00> : vector<8x8xf32>
    %604 = tpu.matmul %602, %603, %cst_171 {dimension_numbers = #tpu.dot_dimension_numbers<[1], [0], [0], [1], [0, 0, 1, 1], [], []>} : vector<8x8xbf16>, vector<8x8xbf16>, vector<8x8xf32> -> vector<8x8xf32>
    %605 = tpu.concatenate %556, %572, %588, %604 in 1 : vector<8x8xf32>, vector<8x8xf32>, vector<8x8xf32>, vector<8x8xf32> -> vector<8x32xf32>
    %606 = tpu.concatenate %534, %605 in 0 : vector<8x32xf32>, vector<8x32xf32> -> vector<16x32xf32>
    %607 = arith.truncf %606 : vector<16x32xf32> to vector<16x32xbf16>
    %608 = vector.extract_strided_slice %429 {offsets = [0, 0, 0], sizes = [1, 32, 32], strides = [1, 1, 1]} : vector<2x32x32xbf16> to vector<1x32x32xbf16>
    %609 = vector.shape_cast %608 : vector<1x32x32xbf16> to vector<32x32xbf16>
    %cst_172 = arith.constant dense<0.000000e+00> : vector<16x32xf32>
    %610 = tpu.matmul %607, %609, %cst_172 {dimension_numbers = #tpu.dot_dimension_numbers<[1], [0], [0], [1], [0, 0, 1, 1], [], []>} : vector<16x32xbf16>, vector<32x32xbf16>, vector<16x32xf32> -> vector<16x32xf32>
    %611 = vector.extract_strided_slice %425 {offsets = [6, 0], sizes = [1, 32], strides = [1, 1]} : vector<16x32xf32> to vector<1x32xf32>
    %612 = vector.broadcast %611 : vector<1x32xf32> to vector<16x32xf32>
    %613 = arith.addf %610, %612 : vector<16x32xf32>
    %614 = arith.addf %423, %613 : vector<16x32xf32>
    %615 = vector.extract_strided_slice %425 {offsets = [2, 0], sizes = [1, 32], strides = [1, 1]} : vector<16x32xf32> to vector<1x32xf32>
    %616 = vector.extract_strided_slice %425 {offsets = [3, 0], sizes = [1, 32], strides = [1, 1]} : vector<16x32xf32> to vector<1x32xf32>
    %cst_173 = arith.constant dense<0.000000e+00> : vector<16xf32>
    %617 = vector.multi_reduction <add>, %614, %cst_173 [1] : vector<16x32xf32> to vector<16xf32>
    %618 = vector.shape_cast %617 : vector<16xf32> to vector<16x1xf32>
    %cst_174 = arith.constant 3.200000e+01 : f32
    %619 = vector.broadcast %cst_174 : f32 to vector<16x1xf32>
    %620 = arith.divf %618, %619 : vector<16x1xf32>
    %621 = vector.broadcast %620 : vector<16x1xf32> to vector<16x32xf32>
    %622 = arith.subf %614, %621 : vector<16x32xf32>
    %623 = arith.mulf %622, %622 : vector<16x32xf32>
    %cst_175 = arith.constant dense<0.000000e+00> : vector<16xf32>
    %624 = vector.multi_reduction <add>, %623, %cst_175 [1] : vector<16x32xf32> to vector<16xf32>
    %625 = vector.shape_cast %624 : vector<16xf32> to vector<16x1xf32>
    %cst_176 = arith.constant 3.200000e+01 : f32
    %626 = vector.broadcast %cst_176 : f32 to vector<16x1xf32>
    %627 = arith.divf %625, %626 : vector<16x1xf32>
    %628 = vector.broadcast %620 : vector<16x1xf32> to vector<16x32xf32>
    %629 = arith.subf %614, %628 : vector<16x32xf32>
    %cst_177 = arith.constant 9.99999974E-6 : f32
    %630 = vector.broadcast %cst_177 : f32 to vector<16x1xf32>
    %631 = arith.addf %627, %630 : vector<16x1xf32>
    %632 = math.rsqrt %631 : vector<16x1xf32>
    %633 = vector.broadcast %632 : vector<16x1xf32> to vector<16x32xf32>
    %634 = arith.mulf %629, %633 : vector<16x32xf32>
    %635 = vector.broadcast %615 : vector<1x32xf32> to vector<16x32xf32>
    %636 = arith.mulf %634, %635 : vector<16x32xf32>
    %637 = vector.broadcast %616 : vector<1x32xf32> to vector<16x32xf32>
    %638 = arith.addf %636, %637 : vector<16x32xf32>
    %639 = arith.truncf %638 : vector<16x32xf32> to vector<16x32xbf16>
    %c1_178 = arith.constant 1 : index
    %c0_179 = arith.constant 0 : index
    %c0_180 = arith.constant 0 : index
    %640 = vector.load %arg8[%c1_178, %c0_179, %c0_180] : memref<2x32x32xbf16, #tpu.memory_space<vmem>>, vector<1x32x32xbf16>
    %641 = vector.shape_cast %640 : vector<1x32x32xbf16> to vector<32x32xbf16>
    %cst_181 = arith.constant dense<0.000000e+00> : vector<16x32xf32>
    %642 = tpu.matmul %639, %641, %cst_181 {dimension_numbers = #tpu.dot_dimension_numbers<[1], [0], [0], [1], [0, 0, 1, 1], [], []>} : vector<16x32xbf16>, vector<32x32xbf16>, vector<16x32xf32> -> vector<16x32xf32>
    %643 = vector.extract_strided_slice %427 {offsets = [1, 0], sizes = [1, 32], strides = [1, 1]} : vector<2x96xf32> to vector<1x32xf32>
    %644 = vector.broadcast %643 : vector<1x32xf32> to vector<16x32xf32>
    %645 = arith.addf %642, %644 : vector<16x32xf32>
    %c1_182 = arith.constant 1 : index
    %c0_183 = arith.constant 0 : index
    %c0_184 = arith.constant 0 : index
    %646 = vector.load %arg9[%c1_182, %c0_183, %c0_184] : memref<2x32x64xbf16, #tpu.memory_space<vmem>>, vector<1x32x64xbf16>
    %647 = vector.shape_cast %646 : vector<1x32x64xbf16> to vector<32x64xbf16>
    %cst_185 = arith.constant dense<0.000000e+00> : vector<32x64xf32>
    %648 = tpu.matmul %6, %647, %cst_185 {dimension_numbers = #tpu.dot_dimension_numbers<[1], [0], [0], [1], [0, 0, 1, 1], [], []>} : vector<32x32xbf16>, vector<32x64xbf16>, vector<32x64xf32> -> vector<32x64xf32>
    %649 = vector.extract_strided_slice %427 {offsets = [1, 32], sizes = [1, 64], strides = [1, 1]} : vector<2x96xf32> to vector<1x64xf32>
    %650 = vector.broadcast %649 : vector<1x64xf32> to vector<32x64xf32>
    %651 = arith.addf %648, %650 : vector<32x64xf32>
    %652 = vector.extract_strided_slice %651 {offsets = [0, 0], sizes = [32, 32], strides = [1, 1]} : vector<32x64xf32> to vector<32x32xf32>
    %653 = vector.extract_strided_slice %651 {offsets = [0, 32], sizes = [32, 32], strides = [1, 1]} : vector<32x64xf32> to vector<32x32xf32>
    %654 = vector.extract_strided_slice %645 {offsets = [0, 0], sizes = [8, 32], strides = [1, 1]} : vector<16x32xf32> to vector<8x32xf32>
    %655 = vector.extract_strided_slice %652 {offsets = [0, 0], sizes = [16, 32], strides = [1, 1]} : vector<32x32xf32> to vector<16x32xf32>
    %656 = vector.extract_strided_slice %653 {offsets = [0, 0], sizes = [16, 32], strides = [1, 1]} : vector<32x32xf32> to vector<16x32xf32>
    %657 = arith.truncf %654 : vector<8x32xf32> to vector<8x32xbf16>
    %658 = arith.truncf %655 : vector<16x32xf32> to vector<16x32xbf16>
    %659 = arith.truncf %656 : vector<16x32xf32> to vector<16x32xbf16>
    %660 = vector.extract_strided_slice %657 {offsets = [0, 0], sizes = [8, 8], strides = [1, 1]} : vector<8x32xbf16> to vector<8x8xbf16>
    %661 = vector.extract_strided_slice %658 {offsets = [0, 0], sizes = [16, 8], strides = [1, 1]} : vector<16x32xbf16> to vector<16x8xbf16>
    %cst_186 = arith.constant dense<0.000000e+00> : vector<8x16xf32>
    %662 = tpu.matmul %660, %661, %cst_186 {dimension_numbers = #tpu.dot_dimension_numbers<[1], [1], [0], [0], [0, 0, 1, 0], [], []>} : vector<8x8xbf16>, vector<16x8xbf16>, vector<8x16xf32> -> vector<8x16xf32>
    %cst_187 = arith.constant dense<0xFF800000> : vector<8xf32>
    %663 = vector.multi_reduction <maximumf>, %662, %cst_187 [1] : vector<8x16xf32> to vector<8xf32>
    %664 = vector.shape_cast %663 : vector<8xf32> to vector<8x1xf32>
    %665 = vector.broadcast %664 : vector<8x1xf32> to vector<8x16xf32>
    %666 = arith.subf %662, %665 : vector<8x16xf32>
    %667 = math.exp %666 : vector<8x16xf32>
    %cst_188 = arith.constant dense<0.000000e+00> : vector<8xf32>
    %668 = vector.multi_reduction <add>, %667, %cst_188 [1] : vector<8x16xf32> to vector<8xf32>
    %669 = vector.shape_cast %668 : vector<8xf32> to vector<8x1xf32>
    %670 = vector.broadcast %669 : vector<8x1xf32> to vector<8x16xf32>
    %671 = arith.divf %667, %670 : vector<8x16xf32>
    %672 = arith.truncf %671 : vector<8x16xf32> to vector<8x16xbf16>
    %673 = vector.extract_strided_slice %659 {offsets = [0, 0], sizes = [16, 8], strides = [1, 1]} : vector<16x32xbf16> to vector<16x8xbf16>
    %cst_189 = arith.constant dense<0.000000e+00> : vector<8x8xf32>
    %674 = tpu.matmul %672, %673, %cst_189 {dimension_numbers = #tpu.dot_dimension_numbers<[1], [0], [0], [1], [0, 0, 1, 1], [], []>} : vector<8x16xbf16>, vector<16x8xbf16>, vector<8x8xf32> -> vector<8x8xf32>
    %675 = vector.extract_strided_slice %657 {offsets = [0, 8], sizes = [8, 8], strides = [1, 1]} : vector<8x32xbf16> to vector<8x8xbf16>
    %676 = vector.extract_strided_slice %658 {offsets = [0, 8], sizes = [16, 8], strides = [1, 1]} : vector<16x32xbf16> to vector<16x8xbf16>
    %cst_190 = arith.constant dense<0.000000e+00> : vector<8x16xf32>
    %677 = tpu.matmul %675, %676, %cst_190 {dimension_numbers = #tpu.dot_dimension_numbers<[1], [1], [0], [0], [0, 0, 1, 0], [], []>} : vector<8x8xbf16>, vector<16x8xbf16>, vector<8x16xf32> -> vector<8x16xf32>
    %cst_191 = arith.constant dense<0xFF800000> : vector<8xf32>
    %678 = vector.multi_reduction <maximumf>, %677, %cst_191 [1] : vector<8x16xf32> to vector<8xf32>
    %679 = vector.shape_cast %678 : vector<8xf32> to vector<8x1xf32>
    %680 = vector.broadcast %679 : vector<8x1xf32> to vector<8x16xf32>
    %681 = arith.subf %677, %680 : vector<8x16xf32>
    %682 = math.exp %681 : vector<8x16xf32>
    %cst_192 = arith.constant dense<0.000000e+00> : vector<8xf32>
    %683 = vector.multi_reduction <add>, %682, %cst_192 [1] : vector<8x16xf32> to vector<8xf32>
    %684 = vector.shape_cast %683 : vector<8xf32> to vector<8x1xf32>
    %685 = vector.broadcast %684 : vector<8x1xf32> to vector<8x16xf32>
    %686 = arith.divf %682, %685 : vector<8x16xf32>
    %687 = arith.truncf %686 : vector<8x16xf32> to vector<8x16xbf16>
    %688 = vector.extract_strided_slice %659 {offsets = [0, 8], sizes = [16, 8], strides = [1, 1]} : vector<16x32xbf16> to vector<16x8xbf16>
    %cst_193 = arith.constant dense<0.000000e+00> : vector<8x8xf32>
    %689 = tpu.matmul %687, %688, %cst_193 {dimension_numbers = #tpu.dot_dimension_numbers<[1], [0], [0], [1], [0, 0, 1, 1], [], []>} : vector<8x16xbf16>, vector<16x8xbf16>, vector<8x8xf32> -> vector<8x8xf32>
    %690 = vector.extract_strided_slice %657 {offsets = [0, 16], sizes = [8, 8], strides = [1, 1]} : vector<8x32xbf16> to vector<8x8xbf16>
    %691 = vector.extract_strided_slice %658 {offsets = [0, 16], sizes = [16, 8], strides = [1, 1]} : vector<16x32xbf16> to vector<16x8xbf16>
    %cst_194 = arith.constant dense<0.000000e+00> : vector<8x16xf32>
    %692 = tpu.matmul %690, %691, %cst_194 {dimension_numbers = #tpu.dot_dimension_numbers<[1], [1], [0], [0], [0, 0, 1, 0], [], []>} : vector<8x8xbf16>, vector<16x8xbf16>, vector<8x16xf32> -> vector<8x16xf32>
    %cst_195 = arith.constant dense<0xFF800000> : vector<8xf32>
    %693 = vector.multi_reduction <maximumf>, %692, %cst_195 [1] : vector<8x16xf32> to vector<8xf32>
    %694 = vector.shape_cast %693 : vector<8xf32> to vector<8x1xf32>
    %695 = vector.broadcast %694 : vector<8x1xf32> to vector<8x16xf32>
    %696 = arith.subf %692, %695 : vector<8x16xf32>
    %697 = math.exp %696 : vector<8x16xf32>
    %cst_196 = arith.constant dense<0.000000e+00> : vector<8xf32>
    %698 = vector.multi_reduction <add>, %697, %cst_196 [1] : vector<8x16xf32> to vector<8xf32>
    %699 = vector.shape_cast %698 : vector<8xf32> to vector<8x1xf32>
    %700 = vector.broadcast %699 : vector<8x1xf32> to vector<8x16xf32>
    %701 = arith.divf %697, %700 : vector<8x16xf32>
    %702 = arith.truncf %701 : vector<8x16xf32> to vector<8x16xbf16>
    %703 = vector.extract_strided_slice %659 {offsets = [0, 16], sizes = [16, 8], strides = [1, 1]} : vector<16x32xbf16> to vector<16x8xbf16>
    %cst_197 = arith.constant dense<0.000000e+00> : vector<8x8xf32>
    %704 = tpu.matmul %702, %703, %cst_197 {dimension_numbers = #tpu.dot_dimension_numbers<[1], [0], [0], [1], [0, 0, 1, 1], [], []>} : vector<8x16xbf16>, vector<16x8xbf16>, vector<8x8xf32> -> vector<8x8xf32>
    %705 = vector.extract_strided_slice %657 {offsets = [0, 24], sizes = [8, 8], strides = [1, 1]} : vector<8x32xbf16> to vector<8x8xbf16>
    %706 = vector.extract_strided_slice %658 {offsets = [0, 24], sizes = [16, 8], strides = [1, 1]} : vector<16x32xbf16> to vector<16x8xbf16>
    %cst_198 = arith.constant dense<0.000000e+00> : vector<8x16xf32>
    %707 = tpu.matmul %705, %706, %cst_198 {dimension_numbers = #tpu.dot_dimension_numbers<[1], [1], [0], [0], [0, 0, 1, 0], [], []>} : vector<8x8xbf16>, vector<16x8xbf16>, vector<8x16xf32> -> vector<8x16xf32>
    %cst_199 = arith.constant dense<0xFF800000> : vector<8xf32>
    %708 = vector.multi_reduction <maximumf>, %707, %cst_199 [1] : vector<8x16xf32> to vector<8xf32>
    %709 = vector.shape_cast %708 : vector<8xf32> to vector<8x1xf32>
    %710 = vector.broadcast %709 : vector<8x1xf32> to vector<8x16xf32>
    %711 = arith.subf %707, %710 : vector<8x16xf32>
    %712 = math.exp %711 : vector<8x16xf32>
    %cst_200 = arith.constant dense<0.000000e+00> : vector<8xf32>
    %713 = vector.multi_reduction <add>, %712, %cst_200 [1] : vector<8x16xf32> to vector<8xf32>
    %714 = vector.shape_cast %713 : vector<8xf32> to vector<8x1xf32>
    %715 = vector.broadcast %714 : vector<8x1xf32> to vector<8x16xf32>
    %716 = arith.divf %712, %715 : vector<8x16xf32>
    %717 = arith.truncf %716 : vector<8x16xf32> to vector<8x16xbf16>
    %718 = vector.extract_strided_slice %659 {offsets = [0, 24], sizes = [16, 8], strides = [1, 1]} : vector<16x32xbf16> to vector<16x8xbf16>
    %cst_201 = arith.constant dense<0.000000e+00> : vector<8x8xf32>
    %719 = tpu.matmul %717, %718, %cst_201 {dimension_numbers = #tpu.dot_dimension_numbers<[1], [0], [0], [1], [0, 0, 1, 1], [], []>} : vector<8x16xbf16>, vector<16x8xbf16>, vector<8x8xf32> -> vector<8x8xf32>
    %720 = tpu.concatenate %674, %689, %704, %719 in 1 : vector<8x8xf32>, vector<8x8xf32>, vector<8x8xf32>, vector<8x8xf32> -> vector<8x32xf32>
    %721 = tpu.concatenate %671, %686, %701, %716 in 1 : vector<8x16xf32>, vector<8x16xf32>, vector<8x16xf32>, vector<8x16xf32> -> vector<8x64xf32>
    %722 = vector.extract_strided_slice %645 {offsets = [8, 0], sizes = [8, 32], strides = [1, 1]} : vector<16x32xf32> to vector<8x32xf32>
    %723 = vector.extract_strided_slice %652 {offsets = [16, 0], sizes = [16, 32], strides = [1, 1]} : vector<32x32xf32> to vector<16x32xf32>
    %724 = vector.extract_strided_slice %653 {offsets = [16, 0], sizes = [16, 32], strides = [1, 1]} : vector<32x32xf32> to vector<16x32xf32>
    %725 = arith.truncf %722 : vector<8x32xf32> to vector<8x32xbf16>
    %726 = arith.truncf %723 : vector<16x32xf32> to vector<16x32xbf16>
    %727 = arith.truncf %724 : vector<16x32xf32> to vector<16x32xbf16>
    %728 = vector.extract_strided_slice %725 {offsets = [0, 0], sizes = [8, 8], strides = [1, 1]} : vector<8x32xbf16> to vector<8x8xbf16>
    %729 = vector.extract_strided_slice %726 {offsets = [0, 0], sizes = [16, 8], strides = [1, 1]} : vector<16x32xbf16> to vector<16x8xbf16>
    %cst_202 = arith.constant dense<0.000000e+00> : vector<8x16xf32>
    %730 = tpu.matmul %728, %729, %cst_202 {dimension_numbers = #tpu.dot_dimension_numbers<[1], [1], [0], [0], [0, 0, 1, 0], [], []>} : vector<8x8xbf16>, vector<16x8xbf16>, vector<8x16xf32> -> vector<8x16xf32>
    %cst_203 = arith.constant dense<0xFF800000> : vector<8xf32>
    %731 = vector.multi_reduction <maximumf>, %730, %cst_203 [1] : vector<8x16xf32> to vector<8xf32>
    %732 = vector.shape_cast %731 : vector<8xf32> to vector<8x1xf32>
    %733 = vector.broadcast %732 : vector<8x1xf32> to vector<8x16xf32>
    %734 = arith.subf %730, %733 : vector<8x16xf32>
    %735 = math.exp %734 : vector<8x16xf32>
    %cst_204 = arith.constant dense<0.000000e+00> : vector<8xf32>
    %736 = vector.multi_reduction <add>, %735, %cst_204 [1] : vector<8x16xf32> to vector<8xf32>
    %737 = vector.shape_cast %736 : vector<8xf32> to vector<8x1xf32>
    %738 = vector.broadcast %737 : vector<8x1xf32> to vector<8x16xf32>
    %739 = arith.divf %735, %738 : vector<8x16xf32>
    %740 = arith.truncf %739 : vector<8x16xf32> to vector<8x16xbf16>
    %741 = vector.extract_strided_slice %727 {offsets = [0, 0], sizes = [16, 8], strides = [1, 1]} : vector<16x32xbf16> to vector<16x8xbf16>
    %cst_205 = arith.constant dense<0.000000e+00> : vector<8x8xf32>
    %742 = tpu.matmul %740, %741, %cst_205 {dimension_numbers = #tpu.dot_dimension_numbers<[1], [0], [0], [1], [0, 0, 1, 1], [], []>} : vector<8x16xbf16>, vector<16x8xbf16>, vector<8x8xf32> -> vector<8x8xf32>
    %743 = vector.extract_strided_slice %725 {offsets = [0, 8], sizes = [8, 8], strides = [1, 1]} : vector<8x32xbf16> to vector<8x8xbf16>
    %744 = vector.extract_strided_slice %726 {offsets = [0, 8], sizes = [16, 8], strides = [1, 1]} : vector<16x32xbf16> to vector<16x8xbf16>
    %cst_206 = arith.constant dense<0.000000e+00> : vector<8x16xf32>
    %745 = tpu.matmul %743, %744, %cst_206 {dimension_numbers = #tpu.dot_dimension_numbers<[1], [1], [0], [0], [0, 0, 1, 0], [], []>} : vector<8x8xbf16>, vector<16x8xbf16>, vector<8x16xf32> -> vector<8x16xf32>
    %cst_207 = arith.constant dense<0xFF800000> : vector<8xf32>
    %746 = vector.multi_reduction <maximumf>, %745, %cst_207 [1] : vector<8x16xf32> to vector<8xf32>
    %747 = vector.shape_cast %746 : vector<8xf32> to vector<8x1xf32>
    %748 = vector.broadcast %747 : vector<8x1xf32> to vector<8x16xf32>
    %749 = arith.subf %745, %748 : vector<8x16xf32>
    %750 = math.exp %749 : vector<8x16xf32>
    %cst_208 = arith.constant dense<0.000000e+00> : vector<8xf32>
    %751 = vector.multi_reduction <add>, %750, %cst_208 [1] : vector<8x16xf32> to vector<8xf32>
    %752 = vector.shape_cast %751 : vector<8xf32> to vector<8x1xf32>
    %753 = vector.broadcast %752 : vector<8x1xf32> to vector<8x16xf32>
    %754 = arith.divf %750, %753 : vector<8x16xf32>
    %755 = arith.truncf %754 : vector<8x16xf32> to vector<8x16xbf16>
    %756 = vector.extract_strided_slice %727 {offsets = [0, 8], sizes = [16, 8], strides = [1, 1]} : vector<16x32xbf16> to vector<16x8xbf16>
    %cst_209 = arith.constant dense<0.000000e+00> : vector<8x8xf32>
    %757 = tpu.matmul %755, %756, %cst_209 {dimension_numbers = #tpu.dot_dimension_numbers<[1], [0], [0], [1], [0, 0, 1, 1], [], []>} : vector<8x16xbf16>, vector<16x8xbf16>, vector<8x8xf32> -> vector<8x8xf32>
    %758 = vector.extract_strided_slice %725 {offsets = [0, 16], sizes = [8, 8], strides = [1, 1]} : vector<8x32xbf16> to vector<8x8xbf16>
    %759 = vector.extract_strided_slice %726 {offsets = [0, 16], sizes = [16, 8], strides = [1, 1]} : vector<16x32xbf16> to vector<16x8xbf16>
    %cst_210 = arith.constant dense<0.000000e+00> : vector<8x16xf32>
    %760 = tpu.matmul %758, %759, %cst_210 {dimension_numbers = #tpu.dot_dimension_numbers<[1], [1], [0], [0], [0, 0, 1, 0], [], []>} : vector<8x8xbf16>, vector<16x8xbf16>, vector<8x16xf32> -> vector<8x16xf32>
    %cst_211 = arith.constant dense<0xFF800000> : vector<8xf32>
    %761 = vector.multi_reduction <maximumf>, %760, %cst_211 [1] : vector<8x16xf32> to vector<8xf32>
    %762 = vector.shape_cast %761 : vector<8xf32> to vector<8x1xf32>
    %763 = vector.broadcast %762 : vector<8x1xf32> to vector<8x16xf32>
    %764 = arith.subf %760, %763 : vector<8x16xf32>
    %765 = math.exp %764 : vector<8x16xf32>
    %cst_212 = arith.constant dense<0.000000e+00> : vector<8xf32>
    %766 = vector.multi_reduction <add>, %765, %cst_212 [1] : vector<8x16xf32> to vector<8xf32>
    %767 = vector.shape_cast %766 : vector<8xf32> to vector<8x1xf32>
    %768 = vector.broadcast %767 : vector<8x1xf32> to vector<8x16xf32>
    %769 = arith.divf %765, %768 : vector<8x16xf32>
    %770 = arith.truncf %769 : vector<8x16xf32> to vector<8x16xbf16>
    %771 = vector.extract_strided_slice %727 {offsets = [0, 16], sizes = [16, 8], strides = [1, 1]} : vector<16x32xbf16> to vector<16x8xbf16>
    %cst_213 = arith.constant dense<0.000000e+00> : vector<8x8xf32>
    %772 = tpu.matmul %770, %771, %cst_213 {dimension_numbers = #tpu.dot_dimension_numbers<[1], [0], [0], [1], [0, 0, 1, 1], [], []>} : vector<8x16xbf16>, vector<16x8xbf16>, vector<8x8xf32> -> vector<8x8xf32>
    %773 = vector.extract_strided_slice %725 {offsets = [0, 24], sizes = [8, 8], strides = [1, 1]} : vector<8x32xbf16> to vector<8x8xbf16>
    %774 = vector.extract_strided_slice %726 {offsets = [0, 24], sizes = [16, 8], strides = [1, 1]} : vector<16x32xbf16> to vector<16x8xbf16>
    %cst_214 = arith.constant dense<0.000000e+00> : vector<8x16xf32>
    %775 = tpu.matmul %773, %774, %cst_214 {dimension_numbers = #tpu.dot_dimension_numbers<[1], [1], [0], [0], [0, 0, 1, 0], [], []>} : vector<8x8xbf16>, vector<16x8xbf16>, vector<8x16xf32> -> vector<8x16xf32>
    %cst_215 = arith.constant dense<0xFF800000> : vector<8xf32>
    %776 = vector.multi_reduction <maximumf>, %775, %cst_215 [1] : vector<8x16xf32> to vector<8xf32>
    %777 = vector.shape_cast %776 : vector<8xf32> to vector<8x1xf32>
    %778 = vector.broadcast %777 : vector<8x1xf32> to vector<8x16xf32>
    %779 = arith.subf %775, %778 : vector<8x16xf32>
    %780 = math.exp %779 : vector<8x16xf32>
    %cst_216 = arith.constant dense<0.000000e+00> : vector<8xf32>
    %781 = vector.multi_reduction <add>, %780, %cst_216 [1] : vector<8x16xf32> to vector<8xf32>
    %782 = vector.shape_cast %781 : vector<8xf32> to vector<8x1xf32>
    %783 = vector.broadcast %782 : vector<8x1xf32> to vector<8x16xf32>
    %784 = arith.divf %780, %783 : vector<8x16xf32>
    %785 = arith.truncf %784 : vector<8x16xf32> to vector<8x16xbf16>
    %786 = vector.extract_strided_slice %727 {offsets = [0, 24], sizes = [16, 8], strides = [1, 1]} : vector<16x32xbf16> to vector<16x8xbf16>
    %cst_217 = arith.constant dense<0.000000e+00> : vector<8x8xf32>
    %787 = tpu.matmul %785, %786, %cst_217 {dimension_numbers = #tpu.dot_dimension_numbers<[1], [0], [0], [1], [0, 0, 1, 1], [], []>} : vector<8x16xbf16>, vector<16x8xbf16>, vector<8x8xf32> -> vector<8x8xf32>
    %788 = tpu.concatenate %742, %757, %772, %787 in 1 : vector<8x8xf32>, vector<8x8xf32>, vector<8x8xf32>, vector<8x8xf32> -> vector<8x32xf32>
    %789 = tpu.concatenate %739, %754, %769, %784 in 1 : vector<8x16xf32>, vector<8x16xf32>, vector<8x16xf32>, vector<8x16xf32> -> vector<8x64xf32>
    %790 = tpu.concatenate %720, %788 in 0 : vector<8x32xf32>, vector<8x32xf32> -> vector<16x32xf32>
    %791 = arith.truncf %790 : vector<16x32xf32> to vector<16x32xbf16>
    %792 = vector.extract_strided_slice %429 {offsets = [1, 0, 0], sizes = [1, 32, 32], strides = [1, 1, 1]} : vector<2x32x32xbf16> to vector<1x32x32xbf16>
    %793 = vector.shape_cast %792 : vector<1x32x32xbf16> to vector<32x32xbf16>
    %cst_218 = arith.constant dense<0.000000e+00> : vector<16x32xf32>
    %794 = tpu.matmul %791, %793, %cst_218 {dimension_numbers = #tpu.dot_dimension_numbers<[1], [0], [0], [1], [0, 0, 1, 1], [], []>} : vector<16x32xbf16>, vector<32x32xbf16>, vector<16x32xf32> -> vector<16x32xf32>
    %795 = vector.extract_strided_slice %425 {offsets = [7, 0], sizes = [1, 32], strides = [1, 1]} : vector<16x32xf32> to vector<1x32xf32>
    %796 = vector.broadcast %795 : vector<1x32xf32> to vector<16x32xf32>
    %797 = arith.addf %794, %796 : vector<16x32xf32>
    %798 = arith.addf %614, %797 : vector<16x32xf32>
    %799 = vector.extract_strided_slice %425 {offsets = [4, 0], sizes = [1, 32], strides = [1, 1]} : vector<16x32xf32> to vector<1x32xf32>
    %800 = vector.extract_strided_slice %425 {offsets = [5, 0], sizes = [1, 32], strides = [1, 1]} : vector<16x32xf32> to vector<1x32xf32>
    %cst_219 = arith.constant dense<0.000000e+00> : vector<16xf32>
    %801 = vector.multi_reduction <add>, %798, %cst_219 [1] : vector<16x32xf32> to vector<16xf32>
    %802 = vector.shape_cast %801 : vector<16xf32> to vector<16x1xf32>
    %cst_220 = arith.constant 3.200000e+01 : f32
    %803 = vector.broadcast %cst_220 : f32 to vector<16x1xf32>
    %804 = arith.divf %802, %803 : vector<16x1xf32>
    %805 = vector.broadcast %804 : vector<16x1xf32> to vector<16x32xf32>
    %806 = arith.subf %798, %805 : vector<16x32xf32>
    %807 = arith.mulf %806, %806 : vector<16x32xf32>
    %cst_221 = arith.constant dense<0.000000e+00> : vector<16xf32>
    %808 = vector.multi_reduction <add>, %807, %cst_221 [1] : vector<16x32xf32> to vector<16xf32>
    %809 = vector.shape_cast %808 : vector<16xf32> to vector<16x1xf32>
    %cst_222 = arith.constant 3.200000e+01 : f32
    %810 = vector.broadcast %cst_222 : f32 to vector<16x1xf32>
    %811 = arith.divf %809, %810 : vector<16x1xf32>
    %812 = vector.broadcast %804 : vector<16x1xf32> to vector<16x32xf32>
    %813 = arith.subf %798, %812 : vector<16x32xf32>
    %cst_223 = arith.constant 9.99999974E-6 : f32
    %814 = vector.broadcast %cst_223 : f32 to vector<16x1xf32>
    %815 = arith.addf %811, %814 : vector<16x1xf32>
    %816 = math.rsqrt %815 : vector<16x1xf32>
    %817 = vector.broadcast %816 : vector<16x1xf32> to vector<16x32xf32>
    %818 = arith.mulf %813, %817 : vector<16x32xf32>
    %819 = vector.broadcast %799 : vector<1x32xf32> to vector<16x32xf32>
    %820 = arith.mulf %818, %819 : vector<16x32xf32>
    %821 = vector.broadcast %800 : vector<1x32xf32> to vector<16x32xf32>
    %822 = arith.addf %820, %821 : vector<16x32xf32>
    %823 = arith.truncf %822 : vector<16x32xf32> to vector<16x32xbf16>
    %c1_224 = arith.constant 1 : index
    %c0_225 = arith.constant 0 : index
    %c0_226 = arith.constant 0 : index
    %824 = vector.load %arg11[%c1_224, %c0_225, %c0_226] : memref<2x32x64xbf16, #tpu.memory_space<vmem>>, vector<1x32x64xbf16>
    %825 = vector.shape_cast %824 : vector<1x32x64xbf16> to vector<32x64xbf16>
    %cst_227 = arith.constant dense<0.000000e+00> : vector<16x64xf32>
    %826 = tpu.matmul %823, %825, %cst_227 {dimension_numbers = #tpu.dot_dimension_numbers<[1], [0], [0], [1], [0, 0, 1, 1], [], []>} : vector<16x32xbf16>, vector<32x64xbf16>, vector<16x64xf32> -> vector<16x64xf32>
    %c1_228 = arith.constant 1 : index
    %c0_229 = arith.constant 0 : index
    %c0_230 = arith.constant 0 : index
    %827 = vector.load %arg6[%c1_228, %c0_229, %c0_230] : memref<2x1x64xf32, #tpu.memory_space<vmem>>, vector<1x1x64xf32>
    %828 = vector.shape_cast %827 : vector<1x1x64xf32> to vector<1x64xf32>
    %829 = vector.broadcast %828 : vector<1x64xf32> to vector<16x64xf32>
    %830 = arith.addf %826, %829 : vector<16x64xf32>
    %cst_231 = arith.constant 0.000000e+00 : f32
    %831 = vector.broadcast %cst_231 : f32 to vector<16x64xf32>
    %832 = arith.maximumf %830, %831 : vector<16x64xf32>
    %833 = arith.truncf %832 : vector<16x64xf32> to vector<16x64xbf16>
    %c1_232 = arith.constant 1 : index
    %c0_233 = arith.constant 0 : index
    %c0_234 = arith.constant 0 : index
    %834 = vector.load %arg12[%c1_232, %c0_233, %c0_234] : memref<2x64x32xbf16, #tpu.memory_space<vmem>>, vector<1x64x32xbf16>
    %835 = vector.shape_cast %834 : vector<1x64x32xbf16> to vector<64x32xbf16>
    %cst_235 = arith.constant dense<0.000000e+00> : vector<16x32xf32>
    %836 = tpu.matmul %833, %835, %cst_235 {dimension_numbers = #tpu.dot_dimension_numbers<[1], [0], [0], [1], [0, 0, 1, 1], [], []>} : vector<16x64xbf16>, vector<64x32xbf16>, vector<16x32xf32> -> vector<16x32xf32>
    %837 = vector.extract_strided_slice %425 {offsets = [8, 0], sizes = [1, 32], strides = [1, 1]} : vector<16x32xf32> to vector<1x32xf32>
    %838 = vector.broadcast %837 : vector<1x32xf32> to vector<16x32xf32>
    %839 = arith.addf %836, %838 : vector<16x32xf32>
    %840 = arith.addf %798, %839 : vector<16x32xf32>
    %c2 = arith.constant 2 : index
    %c0_236 = arith.constant 0 : index
    %c0_237 = arith.constant 0 : index
    %841 = vector.load %arg4[%c2, %c0_236, %c0_237] : memref<3x16x32xf32, #tpu.memory_space<vmem>>, vector<1x16x32xf32>
    %842 = vector.shape_cast %841 : vector<1x16x32xf32> to vector<16x32xf32>
    %843 = vector.extract_strided_slice %842 {offsets = [0, 0], sizes = [1, 32], strides = [1, 1]} : vector<16x32xf32> to vector<1x32xf32>
    %844 = vector.extract_strided_slice %842 {offsets = [1, 0], sizes = [1, 32], strides = [1, 1]} : vector<16x32xf32> to vector<1x32xf32>
    %cst_238 = arith.constant dense<0.000000e+00> : vector<16xf32>
    %845 = vector.multi_reduction <add>, %840, %cst_238 [1] : vector<16x32xf32> to vector<16xf32>
    %846 = vector.shape_cast %845 : vector<16xf32> to vector<16x1xf32>
    %cst_239 = arith.constant 3.200000e+01 : f32
    %847 = vector.broadcast %cst_239 : f32 to vector<16x1xf32>
    %848 = arith.divf %846, %847 : vector<16x1xf32>
    %849 = vector.broadcast %848 : vector<16x1xf32> to vector<16x32xf32>
    %850 = arith.subf %840, %849 : vector<16x32xf32>
    %851 = arith.mulf %850, %850 : vector<16x32xf32>
    %cst_240 = arith.constant dense<0.000000e+00> : vector<16xf32>
    %852 = vector.multi_reduction <add>, %851, %cst_240 [1] : vector<16x32xf32> to vector<16xf32>
    %853 = vector.shape_cast %852 : vector<16xf32> to vector<16x1xf32>
    %cst_241 = arith.constant 3.200000e+01 : f32
    %854 = vector.broadcast %cst_241 : f32 to vector<16x1xf32>
    %855 = arith.divf %853, %854 : vector<16x1xf32>
    %856 = vector.broadcast %848 : vector<16x1xf32> to vector<16x32xf32>
    %857 = arith.subf %840, %856 : vector<16x32xf32>
    %cst_242 = arith.constant 9.99999974E-6 : f32
    %858 = vector.broadcast %cst_242 : f32 to vector<16x1xf32>
    %859 = arith.addf %855, %858 : vector<16x1xf32>
    %860 = math.rsqrt %859 : vector<16x1xf32>
    %861 = vector.broadcast %860 : vector<16x1xf32> to vector<16x32xf32>
    %862 = arith.mulf %857, %861 : vector<16x32xf32>
    %863 = vector.broadcast %843 : vector<1x32xf32> to vector<16x32xf32>
    %864 = arith.mulf %862, %863 : vector<16x32xf32>
    %865 = vector.broadcast %844 : vector<1x32xf32> to vector<16x32xf32>
    %866 = arith.addf %864, %865 : vector<16x32xf32>
    %867 = vector.shape_cast %866 : vector<16x32xf32> to vector<2x8x32xf32>
    %c0_243 = arith.constant 0 : index
    %c0_244 = arith.constant 0 : index
    %c0_245 = arith.constant 0 : index
    %868 = vector.load %arg13[%c0_243, %c0_244, %c0_245] : memref<2x8x32xf32, #tpu.memory_space<vmem>>, vector<2x8x32xf32>
    tpu.vector_store %arg13[%c0_243, %c0_244, %c0_245], %867 {strides = array<i32>} : memref<2x8x32xf32, #tpu.memory_space<vmem>>, vector<2x8x32xf32>,
    %869 = tpu.concatenate %304, %721 in 1 : vector<8x64xf32>, vector<8x64xf32> -> vector<8x128xf32>
    %870 = tpu.concatenate %372, %789 in 1 : vector<8x64xf32>, vector<8x64xf32> -> vector<8x128xf32>
    %871 = vector.shape_cast %869 : vector<8x128xf32> to vector<1x8x128xf32>
    %872 = vector.shape_cast %870 : vector<8x128xf32> to vector<1x8x128xf32>
    %873 = tpu.concatenate %871, %872 in 0 : vector<1x8x128xf32>, vector<1x8x128xf32> -> vector<2x8x128xf32>
    %c0_246 = arith.constant 0 : index
    %c0_247 = arith.constant 0 : index
    %c0_248 = arith.constant 0 : index
    %874 = vector.load %arg14[%c0_246, %c0_247, %c0_248] : memref<2x8x128xf32, #tpu.memory_space<vmem>>, vector<2x8x128xf32>
    tpu.vector_store %arg14[%c0_246, %c0_247, %c0_248], %873 {strides = array<i32>} : memref<2x8x128xf32, #tpu.memory_space<vmem>>, vector<2x8x128xf32>,
    return
  }
  func.func @transform_0(%arg0: i32) -> (i32, i32, i32) {
    %c0_i32 = arith.constant 0 : i32
    %c0_i32_0 = arith.constant 0 : i32
    %c0_i32_1 = arith.constant 0 : i32
    return %arg0, %c0_i32, %c0_i32_0 : i32, i32, i32
  }
  func.func @transform_1(%arg0: i32) -> (i32, i32, i32) {
    %c0_i32 = arith.constant 0 : i32
    %c0_i32_0 = arith.constant 0 : i32
    %c0_i32_1 = arith.constant 0 : i32
    return %arg0, %c0_i32, %c0_i32_0 : i32, i32, i32
  }
  func.func @transform_2(%arg0: i32) -> (i32, i32, i32) {
    %c0_i32 = arith.constant 0 : i32
    %c0_i32_0 = arith.constant 0 : i32
    %c0_i32_1 = arith.constant 0 : i32
    return %arg0, %c0_i32, %c0_i32_0 : i32, i32, i32
  }
  func.func @transform_3(%arg0: i32) -> (i32, i32, i32) {
    %c0_i32 = arith.constant 0 : i32
    %c0_i32_0 = arith.constant 0 : i32
    %c0_i32_1 = arith.constant 0 : i32
    %c0_i32_2 = arith.constant 0 : i32
    return %c0_i32, %c0_i32_0, %c0_i32_1 : i32, i32, i32
  }
  func.func @transform_4(%arg0: i32) -> (i32, i32, i32) {
    %c0_i32 = arith.constant 0 : i32
    %c0_i32_0 = arith.constant 0 : i32
    %c0_i32_1 = arith.constant 0 : i32
    %c0_i32_2 = arith.constant 0 : i32
    return %c0_i32, %c0_i32_0, %c0_i32_1 : i32, i32, i32
  }
  func.func @transform_5(%arg0: i32) -> (i32, i32, i32) {
    %c0_i32 = arith.constant 0 : i32
    %c0_i32_0 = arith.constant 0 : i32
    %c0_i32_1 = arith.constant 0 : i32
    %c0_i32_2 = arith.constant 0 : i32
    return %c0_i32, %c0_i32_0, %c0_i32_1 : i32, i32, i32
  }
  func.func @transform_6(%arg0: i32) -> (i32, i32, i32) {
    %c0_i32 = arith.constant 0 : i32
    %c0_i32_0 = arith.constant 0 : i32
    %c0_i32_1 = arith.constant 0 : i32
    %c0_i32_2 = arith.constant 0 : i32
    return %c0_i32, %c0_i32_0, %c0_i32_1 : i32, i32, i32
  }
  func.func @transform_7(%arg0: i32) -> (i32, i32, i32) {
    %c0_i32 = arith.constant 0 : i32
    %c0_i32_0 = arith.constant 0 : i32
    %c0_i32_1 = arith.constant 0 : i32
    %c0_i32_2 = arith.constant 0 : i32
    return %c0_i32, %c0_i32_0, %c0_i32_1 : i32, i32, i32
  }
  func.func @transform_8(%arg0: i32) -> (i32, i32, i32) {
    %c0_i32 = arith.constant 0 : i32
    %c0_i32_0 = arith.constant 0 : i32
    %c0_i32_1 = arith.constant 0 : i32
    %c0_i32_2 = arith.constant 0 : i32
    return %c0_i32, %c0_i32_0, %c0_i32_1 : i32, i32, i32
  }
  func.func @transform_9(%arg0: i32) -> (i32, i32, i32, i32) {
    %c0_i32 = arith.constant 0 : i32
    %c0_i32_0 = arith.constant 0 : i32
    %c0_i32_1 = arith.constant 0 : i32
    %c0_i32_2 = arith.constant 0 : i32
    %c0_i32_3 = arith.constant 0 : i32
    return %c0_i32, %c0_i32_0, %c0_i32_1, %c0_i32_2 : i32, i32, i32, i32
  }
  func.func @transform_10(%arg0: i32) -> (i32, i32, i32) {
    %c0_i32 = arith.constant 0 : i32
    %c0_i32_0 = arith.constant 0 : i32
    %c0_i32_1 = arith.constant 0 : i32
    %c0_i32_2 = arith.constant 0 : i32
    return %c0_i32, %c0_i32_0, %c0_i32_1 : i32, i32, i32
  }
  func.func @transform_11(%arg0: i32) -> (i32, i32, i32) {
    %c0_i32 = arith.constant 0 : i32
    %c0_i32_0 = arith.constant 0 : i32
    %c0_i32_1 = arith.constant 0 : i32
    %c0_i32_2 = arith.constant 0 : i32
    return %c0_i32, %c0_i32_0, %c0_i32_1 : i32, i32, i32
  }
  func.func @transform_12(%arg0: i32) -> (i32, i32, i32) {
    %c0_i32 = arith.constant 0 : i32
    %c0_i32_0 = arith.constant 0 : i32
    %c0_i32_1 = arith.constant 0 : i32
    return %arg0, %c0_i32, %c0_i32_0 : i32, i32, i32
  }
  func.func @transform_13(%arg0: i32) -> (i32, i32, i32) {
    %c0_i32 = arith.constant 0 : i32
    %c0_i32_0 = arith.constant 0 : i32
    %c0_i32_1 = arith.constant 0 : i32
    return %arg0, %c0_i32, %c0_i32_0 : i32, i32, i32
  }
}

</mosaic_0001>

<llo_original>
// kernel: tpu_custom_call.1
$region0: #{tpu_custom_call.1}
  #allocation0 [shape = 'u32[]', space=smem, size = 0x4, offset = 0x4, fixed_abs, tag = 'smem constant byte address 0x4 - core index']
  #allocation1 [shape = 'u32[144,128]{1,0:T(1,128)}', space=vmem, size = 0x12000, scoped, tag = 'internal scratch']
  %s0 = inlined_call_operand.hbm [shape: f32[2,8,32], index: 0, kind: input, shape index: {}]
  %s1 = inlined_call_operand.hbm [shape: f32[2,8,32], index: 1, kind: input, shape index: {}]
  %s2 = inlined_call_operand.hbm [shape: f32[2,16,32], index: 2, kind: input, shape index: {}]
  %s3 = inlined_call_operand.vmem [shape: f32[3,16,32], index: 3, kind: input, shape index: {}]
  %s4 = inlined_call_operand.vmem [shape: f32[2,2,96], index: 4, kind: input, shape index: {}]
  %s5 = inlined_call_operand.vmem [shape: f32[2,1,64], index: 5, kind: input, shape index: {}]
  %s6 = inlined_call_operand.hbm [shape: bf16[2,32,96], index: 6, kind: input, shape index: {}]
  %s7 = inlined_call_operand.hbm [shape: bf16[2,32,32], index: 7, kind: input, shape index: {}]
  %s8 = inlined_call_operand.hbm [shape: bf16[2,32,64], index: 8, kind: input, shape index: {}]
  %s9 = inlined_call_operand.vmem [shape: bf16[2,2,32,32], index: 9, kind: input, shape index: {}]
  %s10 = inlined_call_operand.hbm [shape: bf16[2,32,64], index: 10, kind: input, shape index: {}]
  %s11 = inlined_call_operand.vmem [shape: bf16[2,64,32], index: 11, kind: input, shape index: {}]
  %s12 = inlined_call_operand.hbm [shape: f32[2,8,32], index: 12, kind: output, shape index: {0}]
  %s13 = inlined_call_operand.hbm [shape: f32[2,8,128], index: 13, kind: output, shape index: {1}]
  %14 = xla_tuple %s12, %s13
  %s15 = sld [smem:[#allocation0]]
  $region94: #{tpu_custom_call.1} parent=0
    _
  %s17 = ssub.s32 1, %s15
  %s18 = scalar_select 0, %s17, %s15
  $region1: #{tpu_custom_call.1} parent=0
    #allocation2 [shape = 'u8[8192]{0}', space=vmem, size = 0x2000, scoped, tag = 'input window, operand 0, single buffered']
    #allocation3 [shape = 's32[1]{0}', space=sflag, size = 0x4, scoped, tag = 'scoped memory for tpu_custom_call.1']
    #allocation4 [shape = 's32[1]{0}', space=sflag, size = 0x4, scoped, tag = 'scoped memory for tpu_custom_call.1']
    #allocation5 [shape = 'u8[8192]{0}', space=vmem, size = 0x2000, scoped, tag = 'input window, operand 1, single buffered']
    #allocation6 [shape = 's32[1]{0}', space=sflag, size = 0x4, scoped, tag = 'scoped memory for tpu_custom_call.1']
    #allocation7 [shape = 'u8[16384]{0}', space=vmem, size = 0x4000, scoped, tag = 'input window, operand 2, single buffered']
    #allocation8 [shape = 'u8[16384]{0}', space=vmem, size = 0x4000, scoped, tag = 'input window, operand 6, single buffered']
    #allocation9 [shape = 's32[1]{0}', space=sflag, size = 0x4, scoped, tag = 'scoped memory for tpu_custom_call.1']
    #allocation10 [shape = 'u8[16384]{0}', space=vmem, size = 0x4000, scoped, tag = 'input window, operand 7, single buffered']
    #allocation11 [shape = 'u8[16384]{0}', space=vmem, size = 0x4000, scoped, tag = 'input window, operand 8, single buffered']
    #allocation12 [shape = 's32[1]{0}', space=sflag, size = 0x4, scoped, tag = 'scoped memory for tpu_custom_call.1']
    #allocation13 [shape = 'u8[16384]{0}', space=vmem, size = 0x4000, scoped, tag = 'input window, operand 10, single buffered']
    #allocation14 [shape = 'u8[8192]{0}', space=vmem, size = 0x2000, scoped, tag = 'output window, operand 0, single buffered']
    #allocation15 [shape = 'u8[8192]{0}', space=vmem, size = 0x2000, scoped, tag = 'output window, operand 1, single buffered']
    #allocation16 [shape = 's32[1]{0}', space=sflag, size = 0x4, scoped, tag = 'scoped memory for tpu_custom_call.1']
    %19 = vsyncpa [#allocation3], 0
    %20 = vsyncpa [#allocation6], 0
    %21 = vsyncpa [#allocation9], 0
    %22 = vsyncpa [#allocation12], 0
    %23 = vsyncpa [#allocation4], 0
    %24 = vsyncpa [#allocation16], 0
    // Predicated region
    $region2: #{tpu_custom_call.1} parent=1 // pred_check
      _
    $region3: #{tpu_custom_call.1} parent=1 // pred_check_branch
      %26 = sbr.rel (0) target = $region5
    $region4: #{tpu_custom_call.1} parent=1 // pred_region
      %s28 = ssub.s32 256, 256
      %29 = vsyncadd [#allocation3], %s28
      %s30 = sshll.u32 [#allocation2], 4
      %s31 = int_to_ptr.vmem [resolvable:$true] %s30
      %36 = dma.hbm_to_vmem [thread:$0]  %s0, 256, %s31, [#allocation3], 128, 128, 8
    $region5: #{tpu_custom_call.1} parent=1 // pred_fallthru
      _
    // Predicated region
    $region6: #{tpu_custom_call.1} parent=1 // pred_check
      _
    $region7: #{tpu_custom_call.1} parent=1 // pred_check_branch
      %38 = sbr.rel (0) target = $region9
    $region8: #{tpu_custom_call.1} parent=1 // pred_region
      %s40 = ssub.s32 256, 256
      %41 = vsyncadd [#allocation6], %s40
      %s42 = sshll.u32 [#allocation5], 4
      %s43 = int_to_ptr.vmem [resolvable:$true] %s42
      %48 = dma.hbm_to_vmem [thread:$0]  %s1, 256, %s43, [#allocation6], 128, 128, 8
    $region9: #{tpu_custom_call.1} parent=1 // pred_fallthru
      _
    // Predicated region
    $region10: #{tpu_custom_call.1} parent=1 // pred_check
      _
    $region11: #{tpu_custom_call.1} parent=1 // pred_check_branch
      %50 = sbr.rel (0) target = $region13
    $region12: #{tpu_custom_call.1} parent=1 // pred_region
      %s52 = ssub.s32 512, 512
      %53 = vsyncadd [#allocation6], %s52
      %s54 = sshll.u32 [#allocation7], 4
      %s55 = int_to_ptr.vmem [resolvable:$true] %s54
      %60 = dma.hbm_to_vmem [thread:$0]  %s2, 512, %s55, [#allocation6], 128, 128, 8
    $region13: #{tpu_custom_call.1} parent=1 // pred_fallthru
      _
    // Predicated region
    $region14: #{tpu_custom_call.1} parent=1 // pred_check
      _
    $region15: #{tpu_custom_call.1} parent=1 // pred_check_branch
      %62 = sbr.rel (0) target = $region17
    $region16: #{tpu_custom_call.1} parent=1 // pred_region
      _
    $region17: #{tpu_custom_call.1} parent=1 // pred_fallthru
      _
    // Predicated region
    $region18: #{tpu_custom_call.1} parent=1 // pred_check
      _
    $region19: #{tpu_custom_call.1} parent=1 // pred_check_branch
      %64 = sbr.rel (0) target = $region21
    $region20: #{tpu_custom_call.1} parent=1 // pred_region
      _
    $region21: #{tpu_custom_call.1} parent=1 // pred_fallthru
      _
    // Predicated region
    $region22: #{tpu_custom_call.1} parent=1 // pred_check
      _
    $region23: #{tpu_custom_call.1} parent=1 // pred_check_branch
      %66 = sbr.rel (0) target = $region25
    $region24: #{tpu_custom_call.1} parent=1 // pred_region
      _
    $region25: #{tpu_custom_call.1} parent=1 // pred_fallthru
      _
    // Predicated region
    $region26: #{tpu_custom_call.1} parent=1 // pred_check
      _
    $region27: #{tpu_custom_call.1} parent=1 // pred_check_branch
      %68 = sbr.rel (0) target = $region29
    $region28: #{tpu_custom_call.1} parent=1 // pred_region
      %s70 = ssub.s32 512, 512
      %71 = vsyncadd [#allocation9], %s70
      %s72 = sshll.u32 [#allocation8], 4
      %s73 = int_to_ptr.vmem [resolvable:$true] %s72
      %78 = dma.hbm_to_vmem [thread:$0]  %s6, 512, %s73, [#allocation9], 64, 64, 4
    $region29: #{tpu_custom_call.1} parent=1 // pred_fallthru
      _
    // Predicated region
    $region30: #{tpu_custom_call.1} parent=1 // pred_check
      _
    $region31: #{tpu_custom_call.1} parent=1 // pred_check_branch
      %80 = sbr.rel (0) target = $region33
    $region32: #{tpu_custom_call.1} parent=1 // pred_region
      %s82 = ssub.s32 512, 512
      %83 = vsyncadd [#allocation9], %s82
      %s84 = sshll.u32 [#allocation10], 4
      %s85 = int_to_ptr.vmem [resolvable:$true] %s84
      %90 = dma.hbm_to_vmem [thread:$0]  %s7, 512, %s85, [#allocation9], 64, 64, 4
    $region33: #{tpu_custom_call.1} parent=1 // pred_fallthru
      _
    // Predicated region
    $region34: #{tpu_custom_call.1} parent=1 // pred_check
      _
    $region35: #{tpu_custom_call.1} parent=1 // pred_check_branch
      %92 = sbr.rel (0) target = $region37
    $region36: #{tpu_custom_call.1} parent=1 // pred_region
      %s94 = ssub.s32 512, 512
      %95 = vsyncadd [#allocation12], %s94
      %s96 = sshll.u32 [#allocation11], 4
      %s97 = int_to_ptr.vmem [resolvable:$true] %s96
      %102 = dma.hbm_to_vmem [thread:$0]  %s8, 512, %s97, [#allocation12], 64, 64, 4
    $region37: #{tpu_custom_call.1} parent=1 // pred_fallthru
      _
    // Predicated region
    $region38: #{tpu_custom_call.1} parent=1 // pred_check
      _
    $region39: #{tpu_custom_call.1} parent=1 // pred_check_branch
      %104 = sbr.rel (0) target = $region41
    $region40: #{tpu_custom_call.1} parent=1 // pred_region
      _
    $region41: #{tpu_custom_call.1} parent=1 // pred_fallthru
      _
    // Predicated region
    $region42: #{tpu_custom_call.1} parent=1 // pred_check
      _
    $region43: #{tpu_custom_call.1} parent=1 // pred_check_branch
      %106 = sbr.rel (0) target = $region45
    $region44: #{tpu_custom_call.1} parent=1 // pred_region
      %s108 = ssub.s32 512, 512
      %109 = vsyncadd [#allocation12], %s108
      %s110 = sshll.u32 [#allocation13], 4
      %s111 = int_to_ptr.vmem [resolvable:$true] %s110
      %116 = dma.hbm_to_vmem [thread:$0]  %s10, 512, %s111, [#allocation12], 64, 64, 4
    $region45: #{tpu_custom_call.1} parent=1 // pred_fallthru
      _
    // Predicated region
    $region46: #{tpu_custom_call.1} parent=1 // pred_check
      _
    $region47: #{tpu_custom_call.1} parent=1 // pred_check_branch
      %118 = sbr.rel (0) target = $region49
    $region48: #{tpu_custom_call.1} parent=1 // pred_region
      _
    $region49: #{tpu_custom_call.1} parent=1 // pred_fallthru
      _
    // Predicated region
    $region50: #{tpu_custom_call.1} parent=1 // pred_check
      _
    $region51: #{tpu_custom_call.1} parent=1 // pred_check_branch
      %120 = sbr.rel (0) target = $region53
    $region52: #{tpu_custom_call.1} parent=1 // pred_region
      %121 = dma.done [#allocation3], 256
    $region53: #{tpu_custom_call.1} parent=1 // pred_fallthru
      _
    // Predicated region
    $region54: #{tpu_custom_call.1} parent=1 // pred_check
      _
    $region55: #{tpu_custom_call.1} parent=1 // pred_check_branch
      %123 = sbr.rel (0) target = $region57
    $region56: #{tpu_custom_call.1} parent=1 // pred_region
      %124 = dma.done [#allocation6], 256
    $region57: #{tpu_custom_call.1} parent=1 // pred_fallthru
      _
    // Predicated region
    $region58: #{tpu_custom_call.1} parent=1 // pred_check
      _
    $region59: #{tpu_custom_call.1} parent=1 // pred_check_branch
      %126 = sbr.rel (0) target = $region61
    $region60: #{tpu_custom_call.1} parent=1 // pred_region
      %127 = dma.done [#allocation6], 512
    $region61: #{tpu_custom_call.1} parent=1 // pred_fallthru
      _
    // Predicated region
    $region62: #{tpu_custom_call.1} parent=1 // pred_check
      _
    $region63: #{tpu_custom_call.1} parent=1 // pred_check_branch
      %129 = sbr.rel (0) target = $region65
    $region64: #{tpu_custom_call.1} parent=1 // pred_region
      %130 = dma.done [#allocation9], 512
    $region65: #{tpu_custom_call.1} parent=1 // pred_fallthru
      _
    // Predicated region
    $region66: #{tpu_custom_call.1} parent=1 // pred_check
      _
    $region67: #{tpu_custom_call.1} parent=1 // pred_check_branch
      %132 = sbr.rel (0) target = $region69
    $region68: #{tpu_custom_call.1} parent=1 // pred_region
      %133 = dma.done [#allocation9], 512
    $region69: #{tpu_custom_call.1} parent=1 // pred_fallthru
      _
    // Predicated region
    $region70: #{tpu_custom_call.1} parent=1 // pred_check
      _
    $region71: #{tpu_custom_call.1} parent=1 // pred_check_branch
      %135 = sbr.rel (0) target = $region73
    $region72: #{tpu_custom_call.1} parent=1 // pred_region
      %136 = dma.done [#allocation12], 512
    $region73: #{tpu_custom_call.1} parent=1 // pred_fallthru
      _
    // Predicated region
    $region74: #{tpu_custom_call.1} parent=1 // pred_check
      _
    $region75: #{tpu_custom_call.1} parent=1 // pred_check_branch
      %138 = sbr.rel (0) target = $region77
    $region76: #{tpu_custom_call.1} parent=1 // pred_region
      %139 = dma.done [#allocation12], 512
    $region77: #{tpu_custom_call.1} parent=1 // pred_fallthru
      _
    %v141 = vld [vmem:[#allocation2] sm:$0xff]
    %v142 = vld [vmem:[#allocation2 + $0x8] sm:$0xff]
    %v143 = vld [vmem:[#allocation5] sm:$0xff]
    %v144 = vld [vmem:[#allocation5 + $0x8] sm:$0xff]
    %v145 = vadd.f32 %v141, %v143
    %v146 = vadd.f32 %v142, %v144
    %v147 = vld [vmem:[#allocation7] sm:$0xff]
    %v148 = vld [vmem:[#allocation7 + $0x8] sm:$0xff]
    %v149 = vld [vmem:[#allocation7 + $0x10] sm:$0xff]
    %v150 = vld [vmem:[#allocation7 + $0x18] sm:$0xff]
    %v151 = vpack.c.bf16 %v148, %v147
    %v152 = vpack.c.bf16 %v150, %v149
    %v153 = vld [vmem:[%s3] sm:$0xff]
    %v154 = vld [vmem:[%s3 + $0x8] sm:$0xff]
    %v155 = vld [vmem:[%s4] sm:$0x3]
    %v156 = vld [vmem:[%s9] sm:$0xf]
    %v157 = vld [vmem:[%s9 + $0x4] sm:$0xf]
    %v158 = vld [vmem:[%s9 + $0x8] sm:$0xf]
    %v159 = vld [vmem:[%s9 + $0xc] sm:$0xf]
    %v160 = vld [vmem:[%s9 + $0x10] sm:$0xf]
    %v161 = vld [vmem:[%s9 + $0x14] sm:$0xf]
    %v162 = vld [vmem:[%s9 + $0x18] sm:$0xf]
    %v163 = vld [vmem:[%s9 + $0x1c] sm:$0xf]
    %vm164 = vcmask 261120
    %v165 = vsel %vm164, %v145, 0.0
    %166 = vadd.xlane.f32.xlu0 %v165
    %v167 = vpop.xlane.xlu0 %166
    %v168 = vsel %vm164, %v146, 0.0
    %169 = vadd.xlane.f32.xlu0 %v168
    %v170 = vpop.xlane.xlu0 %169
    %v171 = vrcp.pop 32.0
    %v172 = vmul.f32 %v167, %v171
    %v173 = vmul.f32 %v170, %v171
    %v174 = vsub.f32 %v145, %v172
    %v175 = vsub.f32 %v146, %v173
    %v176 = vmul.f32 %v174, %v174
    %v177 = vmul.f32 %v175, %v175
    %v178 = vsel %vm164, %v176, 0.0
    %179 = vadd.xlane.f32.xlu0 %v178
    %v180 = vpop.xlane.xlu0 %179
    %v181 = vsel %vm164, %v177, 0.0
    %182 = vadd.xlane.f32.xlu0 %v181
    %v183 = vpop.xlane.xlu0 %182
    %v184 = vmul.f32 %v180, %v171
    %v185 = vmul.f32 %v183, %v171
    %v186 = vadd.f32 %v184, 1e-05
    %v187 = vadd.f32 %v185, 1e-05
    %v188 = vrsqrt.pop %v186
    %v189 = vrsqrt.pop %v187
    %v190 = vmul.f32 %v174, %v188
    %v191 = vmul.f32 %v175, %v189
    %v192 = vlaneseq
    %v193 = vshrl.u32 %v192, 7
    %v194 = vsub.s32 0, %v193
    %v195 = vrot.slane %v153, %v194
    %v196 = vmul.f32 %v190, %v195
    %v197 = vmul.f32 %v191, %v195
    %v198 = vlaneseq
    %v199 = vshrl.u32 %v198, 7
    %v200 = vsub.s32 1, %v199
    %v201 = vrot.slane %v153, %v200
    %v202 = vadd.f32 %v196, %v201
    %v203 = vadd.f32 %v197, %v201
    %v204 = vpack.c.bf16 %v203, %v202
    %v205 = vld [vmem:[#allocation8] sm:$0xf]
    %v206 = vld [vmem:[#allocation8 + $0x4] sm:$0xf]
    %v207 = vld [vmem:[#allocation8 + $0x8] sm:$0xf]
    %v208 = vld [vmem:[#allocation8 + $0xc] sm:$0xf]
    %v209 = vlaneseq
    %v210 = vshrl.u32 %v209, 7
    %v211 = vsub.s32 0, %v210
    %v212 = vrot.slane %v155, %v211
    %v217 = vunpack.c.l.b16 %v205
    %v218 = vunpack.c.l.b16 %v206
    %v219 = vunpack.c.l.b16 %v207
    %v220 = vunpack.c.l.b16 %v208
    %v221 = vpack.c.b16 %v218, %v217
    %v222 = vpack.c.b16 %v220, %v219
    %v226 = vsel %vm164, %v204, 0
    %228 = vmatprep.subr.bf16.mxu0 0
    %229 = vmatpush1.bf16.msra.mxu0 %v221
    %230 = vmatprep.subr.bf16.mxu0 0
    %231 = vmatpush1.bf16.msra.mxu0 %v222
    %232 = vmatprep.subr.bf16.mxu0 0
    %233 = vmatpush1.bf16.msra.mxu0 0
    %234 = vmatprep.subr.bf16.mxu0 0
    %235 = vmatpush1.bf16.msra.mxu0 0
    %236 = vmatprep.subr.bf16.mxu0 0
    %237 = vmatpush1.bf16.msra.mxu0 0
    %238 = vmatprep.subr.bf16.mxu0 0
    %239 = vmatpush1.bf16.msra.mxu0 0
    %240 = vmatprep.subr.bf16.mxu0 0
    %241 = vmatpush1.bf16.msra.mxu0 0
    %242 = vmatprep.subr.bf16.mxu0 0
    %243 = vmatpush1.bf16.msra.mxu0 0
    %244 = vmatprep.subr.bf16.mxu0 0
    %245 = vmatpush1.bf16.msra.mxu0 0
    %246 = vmatprep.subr.bf16.mxu0 0
    %247 = vmatpush1.bf16.msra.mxu0 0
    %248 = vmatprep.subr.bf16.mxu0 0
    %249 = vmatpush1.bf16.msra.mxu0 0
    %250 = vmatprep.subr.bf16.mxu0 0
    %251 = vmatpush1.bf16.msra.mxu0 0
    %252 = vmatprep.subr.bf16.mxu0 0
    %253 = vmatpush1.bf16.msra.mxu0 0
    %254 = vmatprep.subr.bf16.mxu0 0
    %255 = vmatpush1.bf16.msra.mxu0 0
    %256 = vmatprep.subr.bf16.mxu0 0
    %257 = vmatpush1.bf16.msra.mxu0 0
    %258 = vmatprep.subr.bf16.mxu0 0
    %259 = vmatpush1.bf16.msra.mxu0 0
    %260 = vmatprep.mubr.bf16.mxu0 0
    %261 = vmatmul.mubr.bf16.gmra.mrb[0].mxu0 %v226
    %v262 = vpop.f32.mrb[0].mxu0
    %v263 = vadd.f32 %v212, %v262
    %v264 = vpop.f32.mrb[0].mxu0
    %v265 = vpop.f32.mrb[0].mxu0
    %v266 = vadd.f32 %v212, %v265
    %v267 = vpop.f32.mrb[0].mxu0
    %268 = vdwg.mxu0
    %v269 = vpack.c.bf16 %v263, %v263
    %271 = vrot.lane.b32.xlu0 %v269, 96
    %v272 = vpop.permute.xlu0 %271
    %vm273 = vcmask 64512
    %v275 = vsel %vm273, %v269, 0
    %v278 = vsel %vm273, %v272, 0
    %280 = vmatprep.subr.bf16.mxu0 0
    %281 = vmatpush1.bf16.xpose.msra.mxu0 %v278
    %282 = vmatprep.subr.bf16.mxu0 0
    %283 = vmatpush1.bf16.xpose.msra.mxu0 0
    %284 = vmatprep.subr.bf16.mxu0 0
    %285 = vmatpush1.bf16.xpose.msra.mxu0 0
    %286 = vmatprep.subr.bf16.mxu0 0
    %287 = vmatpush1.bf16.xpose.msra.mxu0 0
    %288 = vmatprep.subr.bf16.mxu0 0
    %289 = vmatpush1.bf16.xpose.msra.mxu0 0
    %290 = vmatprep.subr.bf16.mxu0 0
    %291 = vmatpush1.bf16.xpose.msra.mxu0 0
    %292 = vmatprep.subr.bf16.mxu0 0
    %293 = vmatpush1.bf16.xpose.msra.mxu0 0
    %294 = vmatprep.subr.bf16.mxu0 0
    %295 = vmatpush1.bf16.xpose.msra.mxu0 0
    %296 = vmatprep.subr.bf16.mxu0 0
    %297 = vmatpush1.bf16.xpose.msra.mxu0 0
    %298 = vmatprep.subr.bf16.mxu0 0
    %299 = vmatpush1.bf16.xpose.msra.mxu0 0
    %300 = vmatprep.subr.bf16.mxu0 0
    %301 = vmatpush1.bf16.xpose.msra.mxu0 0
    %302 = vmatprep.subr.bf16.mxu0 0
    %303 = vmatpush1.bf16.xpose.msra.mxu0 0
    %304 = vmatprep.subr.bf16.mxu0 0
    %305 = vmatpush1.bf16.xpose.msra.mxu0 0
    %306 = vmatprep.subr.bf16.mxu0 0
    %307 = vmatpush1.bf16.xpose.msra.mxu0 0
    %308 = vmatprep.subr.bf16.mxu0 0
    %309 = vmatpush1.bf16.xpose.msra.mxu0 0
    %310 = vmatprep.subr.bf16.mxu0 0
    %311 = vmatpush1.bf16.xpose.msra.mxu0 0
    %312 = vmatprep.mubr.bf16.mxu0 0
    %313 = vmatmul.mubr.bf16.gmra.mrb[0].mxu0 %v275
    %v314 = vpop.f32.mrb[0].mxu0
    %v315 = vadd.f32 0.0, %v314
    %v316 = vpop.f32.mrb[0].mxu0
    %v317 = vpop.f32.mrb[0].mxu0
    %v318 = vpop.f32.mrb[0].mxu0
    %319 = vdwg.mxu0
    %v320 = vsel %vm273, %v315, -inf
    %321 = vmax.xlane.f32.xlu0 %v320
    %v322 = vpop.xlane.xlu0 %321
    %v323 = vsub.f32 %v315, %v322
    %v324 = vmul.f32 %v323, 1.442695
    %v325 = vpow.pop %v324
    %v326 = vsel %vm273, %v325, 0.0
    %327 = vadd.xlane.f32.xlu0 %v326
    %v328 = vpop.xlane.xlu0 %327
    %v329 = vrcp.pop %v328
    %v330 = vmul.f32 %v325, %v329
    %v331 = vpack.c.bf16 %v330, %v330
    %332 = vrot.lane.b32.xlu0 %v269, 64
    %v333 = vpop.permute.xlu0 %332
    %v335 = vsel %vm273, %v331, 0
    %vm337 = vcmask 1043456
    %v339 = vsel %vm337, %v333, 0
    %341 = vmatprep.subr.bf16.mxu0 0
    %342 = vmatpush1.bf16.msra.mxu0 %v339
    %343 = vmatprep.subr.bf16.mxu0 0
    %344 = vmatpush1.bf16.msra.mxu0 0
    %345 = vmatprep.subr.bf16.mxu0 0
    %346 = vmatpush1.bf16.msra.mxu0 0
    %347 = vmatprep.subr.bf16.mxu0 0
    %348 = vmatpush1.bf16.msra.mxu0 0
    %349 = vmatprep.subr.bf16.mxu0 0
    %350 = vmatpush1.bf16.msra.mxu0 0
    %351 = vmatprep.subr.bf16.mxu0 0
    %352 = vmatpush1.bf16.msra.mxu0 0
    %353 = vmatprep.subr.bf16.mxu0 0
    %354 = vmatpush1.bf16.msra.mxu0 0
    %355 = vmatprep.subr.bf16.mxu0 0
    %356 = vmatpush1.bf16.msra.mxu0 0
    %357 = vmatprep.subr.bf16.mxu0 0
    %358 = vmatpush1.bf16.msra.mxu0 0
    %359 = vmatprep.subr.bf16.mxu0 0
    %360 = vmatpush1.bf16.msra.mxu0 0
    %361 = vmatprep.subr.bf16.mxu0 0
    %362 = vmatpush1.bf16.msra.mxu0 0
    %363 = vmatprep.subr.bf16.mxu0 0
    %364 = vmatpush1.bf16.msra.mxu0 0
    %365 = vmatprep.subr.bf16.mxu0 0
    %366 = vmatpush1.bf16.msra.mxu0 0
    %367 = vmatprep.subr.bf16.mxu0 0
    %368 = vmatpush1.bf16.msra.mxu0 0
    %369 = vmatprep.subr.bf16.mxu0 0
    %370 = vmatpush1.bf16.msra.mxu0 0
    %371 = vmatprep.subr.bf16.mxu0 0
    %372 = vmatpush1.bf16.msra.mxu0 0
    %373 = vmatprep.mubr.bf16.mxu0 0
    %374 = vmatmul.mubr.bf16.gmra.mrb[0].mxu0 %v335
    %v375 = vpop.f32.mrb[0].mxu0
    %v376 = vadd.f32 0.0, %v375
    %v377 = vpop.f32.mrb[0].mxu0
    %v378 = vpop.f32.mrb[0].mxu0
    %v379 = vpop.f32.mrb[0].mxu0
    %380 = vdwg.mxu0
    %381 = vrot.lane.b32.xlu0 %v269, 120
    %v382 = vpop.permute.xlu0 %381
    %383 = vrot.lane.b32.xlu0 %v269, 88
    %v384 = vpop.permute.xlu0 %383
    %v386 = vsel %vm273, %v382, 0
    %v389 = vsel %vm273, %v384, 0
    %391 = vmatprep.subr.bf16.mxu0 0
    %392 = vmatpush1.bf16.xpose.msra.mxu0 %v389
    %393 = vmatprep.subr.bf16.mxu0 0
    %394 = vmatpush1.bf16.xpose.msra.mxu0 0
    %395 = vmatprep.subr.bf16.mxu0 0
    %396 = vmatpush1.bf16.xpose.msra.mxu0 0
    %397 = vmatprep.subr.bf16.mxu0 0
    %398 = vmatpush1.bf16.xpose.msra.mxu0 0
    %399 = vmatprep.subr.bf16.mxu0 0
    %400 = vmatpush1.bf16.xpose.msra.mxu0 0
    %401 = vmatprep.subr.bf16.mxu0 0
    %402 = vmatpush1.bf16.xpose.msra.mxu0 0
    %403 = vmatprep.subr.bf16.mxu0 0
    %404 = vmatpush1.bf16.xpose.msra.mxu0 0
    %405 = vmatprep.subr.bf16.mxu0 0
    %406 = vmatpush1.bf16.xpose.msra.mxu0 0
    %407 = vmatprep.subr.bf16.mxu0 0
    %408 = vmatpush1.bf16.xpose.msra.mxu0 0
    %409 = vmatprep.subr.bf16.mxu0 0
    %410 = vmatpush1.bf16.xpose.msra.mxu0 0
    %411 = vmatprep.subr.bf16.mxu0 0
    %412 = vmatpush1.bf16.xpose.msra.mxu0 0
    %413 = vmatprep.subr.bf16.mxu0 0
    %414 = vmatpush1.bf16.xpose.msra.mxu0 0
    %415 = vmatprep.subr.bf16.mxu0 0
    %416 = vmatpush1.bf16.xpose.msra.mxu0 0
    %417 = vmatprep.subr.bf16.mxu0 0
    %418 = vmatpush1.bf16.xpose.msra.mxu0 0
    %419 = vmatprep.subr.bf16.mxu0 0
    %420 = vmatpush1.bf16.xpose.msra.mxu0 0
    %421 = vmatprep.subr.bf16.mxu0 0
    %422 = vmatpush1.bf16.xpose.msra.mxu0 0
    %423 = vmatprep.mubr.bf16.mxu0 0
    %424 = vmatmul.mubr.bf16.gmra.mrb[0].mxu0 %v386
    %v425 = vpop.f32.mrb[0].mxu0
    %v426 = vadd.f32 0.0, %v425
    %v427 = vpop.f32.mrb[0].mxu0
    %v428 = vpop.f32.mrb[0].mxu0
    %v429 = vpop.f32.mrb[0].mxu0
    %430 = vdwg.mxu0
    %v431 = vsel %vm273, %v426, -inf
    %432 = vmax.xlane.f32.xlu0 %v431
    %v433 = vpop.xlane.xlu0 %432
    %v434 = vsub.f32 %v426, %v433
    %v435 = vmul.f32 %v434, 1.442695
    %v436 = vpow.pop %v435
    %v437 = vsel %vm273, %v436, 0.0
    %438 = vadd.xlane.f32.xlu0 %v437
    %v439 = vpop.xlane.xlu0 %438
    %v440 = vrcp.pop %v439
    %v441 = vmul.f32 %v436, %v440
    %v442 = vpack.c.bf16 %v441, %v441
    %443 = vrot.lane.b32.xlu0 %v269, 56
    %v444 = vpop.permute.xlu0 %443
    %v446 = vsel %vm273, %v442, 0
    %v449 = vsel %vm337, %v444, 0
    %451 = vmatprep.subr.bf16.mxu0 0
    %452 = vmatpush1.bf16.msra.mxu0 %v449
    %453 = vmatprep.subr.bf16.mxu0 0
    %454 = vmatpush1.bf16.msra.mxu0 0
    %455 = vmatprep.subr.bf16.mxu0 0
    %456 = vmatpush1.bf16.msra.mxu0 0
    %457 = vmatprep.subr.bf16.mxu0 0
    %458 = vmatpush1.bf16.msra.mxu0 0
    %459 = vmatprep.subr.bf16.mxu0 0
    %460 = vmatpush1.bf16.msra.mxu0 0
    %461 = vmatprep.subr.bf16.mxu0 0
    %462 = vmatpush1.bf16.msra.mxu0 0
    %463 = vmatprep.subr.bf16.mxu0 0
    %464 = vmatpush1.bf16.msra.mxu0 0
    %465 = vmatprep.subr.bf16.mxu0 0
    %466 = vmatpush1.bf16.msra.mxu0 0
    %467 = vmatprep.subr.bf16.mxu0 0
    %468 = vmatpush1.bf16.msra.mxu0 0
    %469 = vmatprep.subr.bf16.mxu0 0
    %470 = vmatpush1.bf16.msra.mxu0 0
    %471 = vmatprep.subr.bf16.mxu0 0
    %472 = vmatpush1.bf16.msra.mxu0 0
    %473 = vmatprep.subr.bf16.mxu0 0
    %474 = vmatpush1.bf16.msra.mxu0 0
    %475 = vmatprep.subr.bf16.mxu0 0
    %476 = vmatpush1.bf16.msra.mxu0 0
    %477 = vmatprep.subr.bf16.mxu0 0
    %478 = vmatpush1.bf16.msra.mxu0 0
    %479 = vmatprep.subr.bf16.mxu0 0
    %480 = vmatpush1.bf16.msra.mxu0 0
    %481 = vmatprep.subr.bf16.mxu0 0
    %482 = vmatpush1.bf16.msra.mxu0 0
    %483 = vmatprep.mubr.bf16.mxu0 0
    %484 = vmatmul.mubr.bf16.gmra.mrb[0].mxu0 %v446
    %v485 = vpop.f32.mrb[0].mxu0
    %v486 = vadd.f32 0.0, %v485
    %v487 = vpop.f32.mrb[0].mxu0
    %v488 = vpop.f32.mrb[0].mxu0
    %v489 = vpop.f32.mrb[0].mxu0
    %490 = vdwg.mxu0
    %491 = vrot.lane.b32.xlu0 %v269, 112
    %v492 = vpop.permute.xlu0 %491
    %493 = vrot.lane.b32.xlu0 %v269, 80
    %v494 = vpop.permute.xlu0 %493
    %v496 = vsel %vm273, %v492, 0
    %v499 = vsel %vm273, %v494, 0
    %501 = vmatprep.subr.bf16.mxu0 0
    %502 = vmatpush1.bf16.xpose.msra.mxu0 %v499
    %503 = vmatprep.subr.bf16.mxu0 0
    %504 = vmatpush1.bf16.xpose.msra.mxu0 0
    %505 = vmatprep.subr.bf16.mxu0 0
    %506 = vmatpush1.bf16.xpose.msra.mxu0 0
    %507 = vmatprep.subr.bf16.mxu0 0
    %508 = vmatpush1.bf16.xpose.msra.mxu0 0
    %509 = vmatprep.subr.bf16.mxu0 0
    %510 = vmatpush1.bf16.xpose.msra.mxu0 0
    %511 = vmatprep.subr.bf16.mxu0 0
    %512 = vmatpush1.bf16.xpose.msra.mxu0 0
    %513 = vmatprep.subr.bf16.mxu0 0
    %514 = vmatpush1.bf16.xpose.msra.mxu0 0
    %515 = vmatprep.subr.bf16.mxu0 0
    %516 = vmatpush1.bf16.xpose.msra.mxu0 0
    %517 = vmatprep.subr.bf16.mxu0 0
    %518 = vmatpush1.bf16.xpose.msra.mxu0 0
    %519 = vmatprep.subr.bf16.mxu0 0
    %520 = vmatpush1.bf16.xpose.msra.mxu0 0
    %521 = vmatprep.subr.bf16.mxu0 0
    %522 = vmatpush1.bf16.xpose.msra.mxu0 0
    %523 = vmatprep.subr.bf16.mxu0 0
    %524 = vmatpush1.bf16.xpose.msra.mxu0 0
    %525 = vmatprep.subr.bf16.mxu0 0
    %526 = vmatpush1.bf16.xpose.msra.mxu0 0
    %527 = vmatprep.subr.bf16.mxu0 0
    %528 = vmatpush1.bf16.xpose.msra.mxu0 0
    %529 = vmatprep.subr.bf16.mxu0 0
    %530 = vmatpush1.bf16.xpose.msra.mxu0 0
    %531 = vmatprep.subr.bf16.mxu0 0
    %532 = vmatpush1.bf16.xpose.msra.mxu0 0
    %533 = vmatprep.mubr.bf16.mxu0 0
    %534 = vmatmul.mubr.bf16.gmra.mrb[0].mxu0 %v496
    %v535 = vpop.f32.mrb[0].mxu0
    %v536 = vadd.f32 0.0, %v535
    %v537 = vpop.f32.mrb[0].mxu0
    %v538 = vpop.f32.mrb[0].mxu0
    %v539 = vpop.f32.mrb[0].mxu0
    %540 = vdwg.mxu0
    %v541 = vsel %vm273, %v536, -inf
    %542 = vmax.xlane.f32.xlu0 %v541
    %v543 = vpop.xlane.xlu0 %542
    %v544 = vsub.f32 %v536, %v543
    %v545 = vmul.f32 %v544, 1.442695
    %v546 = vpow.pop %v545
    %v547 = vsel %vm273, %v546, 0.0
    %548 = vadd.xlane.f32.xlu0 %v547
    %v549 = vpop.xlane.xlu0 %548
    %v550 = vrcp.pop %v549
    %v551 = vmul.f32 %v546, %v550
    %v552 = vpack.c.bf16 %v551, %v551
    %553 = vrot.lane.b32.xlu0 %v269, 48
    %v554 = vpop.permute.xlu0 %553
    %v556 = vsel %vm273, %v552, 0
    %v559 = vsel %vm337, %v554, 0
    %561 = vmatprep.subr.bf16.mxu0 0
    %562 = vmatpush1.bf16.msra.mxu0 %v559
    %563 = vmatprep.subr.bf16.mxu0 0
    %564 = vmatpush1.bf16.msra.mxu0 0
    %565 = vmatprep.subr.bf16.mxu0 0
    %566 = vmatpush1.bf16.msra.mxu0 0
    %567 = vmatprep.subr.bf16.mxu0 0
    %568 = vmatpush1.bf16.msra.mxu0 0
    %569 = vmatprep.subr.bf16.mxu0 0
    %570 = vmatpush1.bf16.msra.mxu0 0
    %571 = vmatprep.subr.bf16.mxu0 0
    %572 = vmatpush1.bf16.msra.mxu0 0
    %573 = vmatprep.subr.bf16.mxu0 0
    %574 = vmatpush1.bf16.msra.mxu0 0
    %575 = vmatprep.subr.bf16.mxu0 0
    %576 = vmatpush1.bf16.msra.mxu0 0
    %577 = vmatprep.subr.bf16.mxu0 0
    %578 = vmatpush1.bf16.msra.mxu0 0
    %579 = vmatprep.subr.bf16.mxu0 0
    %580 = vmatpush1.bf16.msra.mxu0 0
    %581 = vmatprep.subr.bf16.mxu0 0
    %582 = vmatpush1.bf16.msra.mxu0 0
    %583 = vmatprep.subr.bf16.mxu0 0
    %584 = vmatpush1.bf16.msra.mxu0 0
    %585 = vmatprep.subr.bf16.mxu0 0
    %586 = vmatpush1.bf16.msra.mxu0 0
    %587 = vmatprep.subr.bf16.mxu0 0
    %588 = vmatpush1.bf16.msra.mxu0 0
    %589 = vmatprep.subr.bf16.mxu0 0
    %590 = vmatpush1.bf16.msra.mxu0 0
    %591 = vmatprep.subr.bf16.mxu0 0
    %592 = vmatpush1.bf16.msra.mxu0 0
    %593 = vmatprep.mubr.bf16.mxu0 0
    %594 = vmatmul.mubr.bf16.gmra.mrb[0].mxu0 %v556
    %v595 = vpop.f32.mrb[0].mxu0
    %v596 = vadd.f32 0.0, %v595
    %v597 = vpop.f32.mrb[0].mxu0
    %v598 = vpop.f32.mrb[0].mxu0
    %v599 = vpop.f32.mrb[0].mxu0
    %600 = vdwg.mxu0
    %601 = vrot.lane.b32.xlu0 %v269, 104
    %v602 = vpop.permute.xlu0 %601
    %603 = vrot.lane.b32.xlu0 %v269, 72
    %v604 = vpop.permute.xlu0 %603
    %v606 = vsel %vm273, %v602, 0
    %v609 = vsel %vm273, %v604, 0
    %611 = vmatprep.subr.bf16.mxu0 0
    %612 = vmatpush1.bf16.xpose.msra.mxu0 %v609
    %613 = vmatprep.subr.bf16.mxu0 0
    %614 = vmatpush1.bf16.xpose.msra.mxu0 0
    %615 = vmatprep.subr.bf16.mxu0 0
    %616 = vmatpush1.bf16.xpose.msra.mxu0 0
    %617 = vmatprep.subr.bf16.mxu0 0
    %618 = vmatpush1.bf16.xpose.msra.mxu0 0
    %619 = vmatprep.subr.bf16.mxu0 0
    %620 = vmatpush1.bf16.xpose.msra.mxu0 0
    %621 = vmatprep.subr.bf16.mxu0 0
    %622 = vmatpush1.bf16.xpose.msra.mxu0 0
    %623 = vmatprep.subr.bf16.mxu0 0
    %624 = vmatpush1.bf16.xpose.msra.mxu0 0
    %625 = vmatprep.subr.bf16.mxu0 0
    %626 = vmatpush1.bf16.xpose.msra.mxu0 0
    %627 = vmatprep.subr.bf16.mxu0 0
    %628 = vmatpush1.bf16.xpose.msra.mxu0 0
    %629 = vmatprep.subr.bf16.mxu0 0
    %630 = vmatpush1.bf16.xpose.msra.mxu0 0
    %631 = vmatprep.subr.bf16.mxu0 0
    %632 = vmatpush1.bf16.xpose.msra.mxu0 0
    %633 = vmatprep.subr.bf16.mxu0 0
    %634 = vmatpush1.bf16.xpose.msra.mxu0 0
    %635 = vmatprep.subr.bf16.mxu0 0
    %636 = vmatpush1.bf16.xpose.msra.mxu0 0
    %637 = vmatprep.subr.bf16.mxu0 0
    %638 = vmatpush1.bf16.xpose.msra.mxu0 0
    %639 = vmatprep.subr.bf16.mxu0 0
    %640 = vmatpush1.bf16.xpose.msra.mxu0 0
    %641 = vmatprep.subr.bf16.mxu0 0
    %642 = vmatpush1.bf16.xpose.msra.mxu0 0
    %643 = vmatprep.mubr.bf16.mxu0 0
    %644 = vmatmul.mubr.bf16.gmra.mrb[0].mxu0 %v606
    %v645 = vpop.f32.mrb[0].mxu0
    %v646 = vadd.f32 0.0, %v645
    %v647 = vpop.f32.mrb[0].mxu0
    %v648 = vpop.f32.mrb[0].mxu0
    %v649 = vpop.f32.mrb[0].mxu0
    %650 = vdwg.mxu0
    %v651 = vsel %vm273, %v646, -inf
    %652 = vmax.xlane.f32.xlu0 %v651
    %v653 = vpop.xlane.xlu0 %652
    %v654 = vsub.f32 %v646, %v653
    %v655 = vmul.f32 %v654, 1.442695
    %v656 = vpow.pop %v655
    %v657 = vsel %vm273, %v656, 0.0
    %658 = vadd.xlane.f32.xlu0 %v657
    %v659 = vpop.xlane.xlu0 %658
    %v660 = vrcp.pop %v659
    %v661 = vmul.f32 %v656, %v660
    %v662 = vpack.c.bf16 %v661, %v661
    %663 = vrot.lane.b32.xlu0 %v269, 40
    %v664 = vpop.permute.xlu0 %663
    %v666 = vsel %vm273, %v662, 0
    %v669 = vsel %vm337, %v664, 0
    %671 = vmatprep.subr.bf16.mxu0 0
    %672 = vmatpush1.bf16.msra.mxu0 %v669
    %673 = vmatprep.subr.bf16.mxu0 0
    %674 = vmatpush1.bf16.msra.mxu0 0
    %675 = vmatprep.subr.bf16.mxu0 0
    %676 = vmatpush1.bf16.msra.mxu0 0
    %677 = vmatprep.subr.bf16.mxu0 0
    %678 = vmatpush1.bf16.msra.mxu0 0
    %679 = vmatprep.subr.bf16.mxu0 0
    %680 = vmatpush1.bf16.msra.mxu0 0
    %681 = vmatprep.subr.bf16.mxu0 0
    %682 = vmatpush1.bf16.msra.mxu0 0
    %683 = vmatprep.subr.bf16.mxu0 0
    %684 = vmatpush1.bf16.msra.mxu0 0
    %685 = vmatprep.subr.bf16.mxu0 0
    %686 = vmatpush1.bf16.msra.mxu0 0
    %687 = vmatprep.subr.bf16.mxu0 0
    %688 = vmatpush1.bf16.msra.mxu0 0
    %689 = vmatprep.subr.bf16.mxu0 0
    %690 = vmatpush1.bf16.msra.mxu0 0
    %691 = vmatprep.subr.bf16.mxu0 0
    %692 = vmatpush1.bf16.msra.mxu0 0
    %693 = vmatprep.subr.bf16.mxu0 0
    %694 = vmatpush1.bf16.msra.mxu0 0
    %695 = vmatprep.subr.bf16.mxu0 0
    %696 = vmatpush1.bf16.msra.mxu0 0
    %697 = vmatprep.subr.bf16.mxu0 0
    %698 = vmatpush1.bf16.msra.mxu0 0
    %699 = vmatprep.subr.bf16.mxu0 0
    %700 = vmatpush1.bf16.msra.mxu0 0
    %701 = vmatprep.subr.bf16.mxu0 0
    %702 = vmatpush1.bf16.msra.mxu0 0
    %703 = vmatprep.mubr.bf16.mxu0 0
    %704 = vmatmul.mubr.bf16.gmra.mrb[0].mxu0 %v666
    %v705 = vpop.f32.mrb[0].mxu0
    %v706 = vadd.f32 0.0, %v705
    %v707 = vpop.f32.mrb[0].mxu0
    %v708 = vpop.f32.mrb[0].mxu0
    %v709 = vpop.f32.mrb[0].mxu0
    %710 = vdwg.mxu0
    %712 = vrot.lane.b32.xlu0 %v486, 8
    %v713 = vpop.permute.xlu0 %712
    %716 = vrot.lane.b32.xlu0 %v596, 16
    %v717 = vpop.permute.xlu0 %716
    %720 = vrot.lane.b32.xlu0 %v706, 24
    %v721 = vpop.permute.xlu0 %720
    %v723 = vsel %vm273, %v376, %v713
    %vm724 = vcmask 130048
    %v725 = vsel %vm724, %v723, %v717
    %vm726 = vcmask 195584
    %v727 = vsel %vm726, %v725, %v721
    %v728 = vpack.c.bf16 %v266, %v266
    %730 = vrot.lane.b32.xlu0 %v728, 96
    %v731 = vpop.permute.xlu0 %730
    %v733 = vsel %vm273, %v728, 0
    %v736 = vsel %vm273, %v731, 0
    %738 = vmatprep.subr.bf16.mxu0 0
    %739 = vmatpush1.bf16.xpose.msra.mxu0 %v736
    %740 = vmatprep.subr.bf16.mxu0 0
    %741 = vmatpush1.bf16.xpose.msra.mxu0 0
    %742 = vmatprep.subr.bf16.mxu0 0
    %743 = vmatpush1.bf16.xpose.msra.mxu0 0
    %744 = vmatprep.subr.bf16.mxu0 0
    %745 = vmatpush1.bf16.xpose.msra.mxu0 0
    %746 = vmatprep.subr.bf16.mxu0 0
    %747 = vmatpush1.bf16.xpose.msra.mxu0 0
    %748 = vmatprep.subr.bf16.mxu0 0
    %749 = vmatpush1.bf16.xpose.msra.mxu0 0
    %750 = vmatprep.subr.bf16.mxu0 0
    %751 = vmatpush1.bf16.xpose.msra.mxu0 0
    %752 = vmatprep.subr.bf16.mxu0 0
    %753 = vmatpush1.bf16.xpose.msra.mxu0 0
    %754 = vmatprep.subr.bf16.mxu0 0
    %755 = vmatpush1.bf16.xpose.msra.mxu0 0
    %756 = vmatprep.subr.bf16.mxu0 0
    %757 = vmatpush1.bf16.xpose.msra.mxu0 0
    %758 = vmatprep.subr.bf16.mxu0 0
    %759 = vmatpush1.bf16.xpose.msra.mxu0 0
    %760 = vmatprep.subr.bf16.mxu0 0
    %761 = vmatpush1.bf16.xpose.msra.mxu0 0
    %762 = vmatprep.subr.bf16.mxu0 0
    %763 = vmatpush1.bf16.xpose.msra.mxu0 0
    %764 = vmatprep.subr.bf16.mxu0 0
    %765 = vmatpush1.bf16.xpose.msra.mxu0 0
    %766 = vmatprep.subr.bf16.mxu0 0
    %767 = vmatpush1.bf16.xpose.msra.mxu0 0
    %768 = vmatprep.subr.bf16.mxu0 0
    %769 = vmatpush1.bf16.xpose.msra.mxu0 0
    %770 = vmatprep.mubr.bf16.mxu0 0
    %771 = vmatmul.mubr.bf16.gmra.mrb[0].mxu0 %v733
    %v772 = vpop.f32.mrb[0].mxu0
    %v773 = vadd.f32 0.0, %v772
    %v774 = vpop.f32.mrb[0].mxu0
    %v775 = vpop.f32.mrb[0].mxu0
    %v776 = vpop.f32.mrb[0].mxu0
    %777 = vdwg.mxu0
    %v778 = vsel %vm273, %v773, -inf
    %779 = vmax.xlane.f32.xlu0 %v778
    %v780 = vpop.xlane.xlu0 %779
    %v781 = vsub.f32 %v773, %v780
    %v782 = vmul.f32 %v781, 1.442695
    %v783 = vpow.pop %v782
    %v784 = vsel %vm273, %v783, 0.0
    %785 = vadd.xlane.f32.xlu0 %v784
    %v786 = vpop.xlane.xlu0 %785
    %v787 = vrcp.pop %v786
    %v788 = vmul.f32 %v783, %v787
    %v789 = vpack.c.bf16 %v788, %v788
    %790 = vrot.lane.b32.xlu0 %v728, 64
    %v791 = vpop.permute.xlu0 %790
    %v793 = vsel %vm273, %v789, 0
    %v796 = vsel %vm337, %v791, 0
    %798 = vmatprep.subr.bf16.mxu0 0
    %799 = vmatpush1.bf16.msra.mxu0 %v796
    %800 = vmatprep.subr.bf16.mxu0 0
    %801 = vmatpush1.bf16.msra.mxu0 0
    %802 = vmatprep.subr.bf16.mxu0 0
    %803 = vmatpush1.bf16.msra.mxu0 0
    %804 = vmatprep.subr.bf16.mxu0 0
    %805 = vmatpush1.bf16.msra.mxu0 0
    %806 = vmatprep.subr.bf16.mxu0 0
    %807 = vmatpush1.bf16.msra.mxu0 0
    %808 = vmatprep.subr.bf16.mxu0 0
    %809 = vmatpush1.bf16.msra.mxu0 0
    %810 = vmatprep.subr.bf16.mxu0 0
    %811 = vmatpush1.bf16.msra.mxu0 0
    %812 = vmatprep.subr.bf16.mxu0 0
    %813 = vmatpush1.bf16.msra.mxu0 0
    %814 = vmatprep.subr.bf16.mxu0 0
    %815 = vmatpush1.bf16.msra.mxu0 0
    %816 = vmatprep.subr.bf16.mxu0 0
    %817 = vmatpush1.bf16.msra.mxu0 0
    %818 = vmatprep.subr.bf16.mxu0 0
    %819 = vmatpush1.bf16.msra.mxu0 0
    %820 = vmatprep.subr.bf16.mxu0 0
    %821 = vmatpush1.bf16.msra.mxu0 0
    %822 = vmatprep.subr.bf16.mxu0 0
    %823 = vmatpush1.bf16.msra.mxu0 0
    %824 = vmatprep.subr.bf16.mxu0 0
    %825 = vmatpush1.bf16.msra.mxu0 0
    %826 = vmatprep.subr.bf16.mxu0 0
    %827 = vmatpush1.bf16.msra.mxu0 0
    %828 = vmatprep.subr.bf16.mxu0 0
    %829 = vmatpush1.bf16.msra.mxu0 0
    %830 = vmatprep.mubr.bf16.mxu0 0
    %831 = vmatmul.mubr.bf16.gmra.mrb[0].mxu0 %v793
    %v832 = vpop.f32.mrb[0].mxu0
    %v833 = vadd.f32 0.0, %v832
    %v834 = vpop.f32.mrb[0].mxu0
    %v835 = vpop.f32.mrb[0].mxu0
    %v836 = vpop.f32.mrb[0].mxu0
    %837 = vdwg.mxu0
    %838 = vrot.lane.b32.xlu0 %v728, 120
    %v839 = vpop.permute.xlu0 %838
    %840 = vrot.lane.b32.xlu0 %v728, 88
    %v841 = vpop.permute.xlu0 %840
    %v843 = vsel %vm273, %v839, 0
    %v846 = vsel %vm273, %v841, 0
    %848 = vmatprep.subr.bf16.mxu0 0
    %849 = vmatpush1.bf16.xpose.msra.mxu0 %v846
    %850 = vmatprep.subr.bf16.mxu0 0
    %851 = vmatpush1.bf16.xpose.msra.mxu0 0
    %852 = vmatprep.subr.bf16.mxu0 0
    %853 = vmatpush1.bf16.xpose.msra.mxu0 0
    %854 = vmatprep.subr.bf16.mxu0 0
    %855 = vmatpush1.bf16.xpose.msra.mxu0 0
    %856 = vmatprep.subr.bf16.mxu0 0
    %857 = vmatpush1.bf16.xpose.msra.mxu0 0
    %858 = vmatprep.subr.bf16.mxu0 0
    %859 = vmatpush1.bf16.xpose.msra.mxu0 0
    %860 = vmatprep.subr.bf16.mxu0 0
    %861 = vmatpush1.bf16.xpose.msra.mxu0 0
    %862 = vmatprep.subr.bf16.mxu0 0
    %863 = vmatpush1.bf16.xpose.msra.mxu0 0
    %864 = vmatprep.subr.bf16.mxu0 0
    %865 = vmatpush1.bf16.xpose.msra.mxu0 0
    %866 = vmatprep.subr.bf16.mxu0 0
    %867 = vmatpush1.bf16.xpose.msra.mxu0 0
    %868 = vmatprep.subr.bf16.mxu0 0
    %869 = vmatpush1.bf16.xpose.msra.mxu0 0
    %870 = vmatprep.subr.bf16.mxu0 0
    %871 = vmatpush1.bf16.xpose.msra.mxu0 0
    %872 = vmatprep.subr.bf16.mxu0 0
    %873 = vmatpush1.bf16.xpose.msra.mxu0 0
    %874 = vmatprep.subr.bf16.mxu0 0
    %875 = vmatpush1.bf16.xpose.msra.mxu0 0
    %876 = vmatprep.subr.bf16.mxu0 0
    %877 = vmatpush1.bf16.xpose.msra.mxu0 0
    %878 = vmatprep.subr.bf16.mxu0 0
    %879 = vmatpush1.bf16.xpose.msra.mxu0 0
    %880 = vmatprep.mubr.bf16.mxu0 0
    %881 = vmatmul.mubr.bf16.gmra.mrb[0].mxu0 %v843
    %v882 = vpop.f32.mrb[0].mxu0
    %v883 = vadd.f32 0.0, %v882
    %v884 = vpop.f32.mrb[0].mxu0
    %v885 = vpop.f32.mrb[0].mxu0
    %v886 = vpop.f32.mrb[0].mxu0
    %887 = vdwg.mxu0
    %v888 = vsel %vm273, %v883, -inf
    %889 = vmax.xlane.f32.xlu0 %v888
    %v890 = vpop.xlane.xlu0 %889
    %v891 = vsub.f32 %v883, %v890
    %v892 = vmul.f32 %v891, 1.442695
    %v893 = vpow.pop %v892
    %v894 = vsel %vm273, %v893, 0.0
    %895 = vadd.xlane.f32.xlu0 %v894
    %v896 = vpop.xlane.xlu0 %895
    %v897 = vrcp.pop %v896
    %v898 = vmul.f32 %v893, %v897
    %v899 = vpack.c.bf16 %v898, %v898
    %900 = vrot.lane.b32.xlu0 %v728, 56
    %v901 = vpop.permute.xlu0 %900
    %v903 = vsel %vm273, %v899, 0
    %v906 = vsel %vm337, %v901, 0
    %908 = vmatprep.subr.bf16.mxu0 0
    %909 = vmatpush1.bf16.msra.mxu0 %v906
    %910 = vmatprep.subr.bf16.mxu0 0
    %911 = vmatpush1.bf16.msra.mxu0 0
    %912 = vmatprep.subr.bf16.mxu0 0
    %913 = vmatpush1.bf16.msra.mxu0 0
    %914 = vmatprep.subr.bf16.mxu0 0
    %915 = vmatpush1.bf16.msra.mxu0 0
    %916 = vmatprep.subr.bf16.mxu0 0
    %917 = vmatpush1.bf16.msra.mxu0 0
    %918 = vmatprep.subr.bf16.mxu0 0
    %919 = vmatpush1.bf16.msra.mxu0 0
    %920 = vmatprep.subr.bf16.mxu0 0
    %921 = vmatpush1.bf16.msra.mxu0 0
    %922 = vmatprep.subr.bf16.mxu0 0
    %923 = vmatpush1.bf16.msra.mxu0 0
    %924 = vmatprep.subr.bf16.mxu0 0
    %925 = vmatpush1.bf16.msra.mxu0 0
    %926 = vmatprep.subr.bf16.mxu0 0
    %927 = vmatpush1.bf16.msra.mxu0 0
    %928 = vmatprep.subr.bf16.mxu0 0
    %929 = vmatpush1.bf16.msra.mxu0 0
    %930 = vmatprep.subr.bf16.mxu0 0
    %931 = vmatpush1.bf16.msra.mxu0 0
    %932 = vmatprep.subr.bf16.mxu0 0
    %933 = vmatpush1.bf16.msra.mxu0 0
    %934 = vmatprep.subr.bf16.mxu0 0
    %935 = vmatpush1.bf16.msra.mxu0 0
    %936 = vmatprep.subr.bf16.mxu0 0
    %937 = vmatpush1.bf16.msra.mxu0 0
    %938 = vmatprep.subr.bf16.mxu0 0
    %939 = vmatpush1.bf16.msra.mxu0 0
    %940 = vmatprep.mubr.bf16.mxu0 0
    %941 = vmatmul.mubr.bf16.gmra.mrb[0].mxu0 %v903
    %v942 = vpop.f32.mrb[0].mxu0
    %v943 = vadd.f32 0.0, %v942
    %v944 = vpop.f32.mrb[0].mxu0
    %v945 = vpop.f32.mrb[0].mxu0
    %v946 = vpop.f32.mrb[0].mxu0
    %947 = vdwg.mxu0
    %948 = vrot.lane.b32.xlu0 %v728, 112
    %v949 = vpop.permute.xlu0 %948
    %950 = vrot.lane.b32.xlu0 %v728, 80
    %v951 = vpop.permute.xlu0 %950
    %v953 = vsel %vm273, %v949, 0
    %v956 = vsel %vm273, %v951, 0
    %958 = vmatprep.subr.bf16.mxu0 0
    %959 = vmatpush1.bf16.xpose.msra.mxu0 %v956
    %960 = vmatprep.subr.bf16.mxu0 0
    %961 = vmatpush1.bf16.xpose.msra.mxu0 0
    %962 = vmatprep.subr.bf16.mxu0 0
    %963 = vmatpush1.bf16.xpose.msra.mxu0 0
    %964 = vmatprep.subr.bf16.mxu0 0
    %965 = vmatpush1.bf16.xpose.msra.mxu0 0
    %966 = vmatprep.subr.bf16.mxu0 0
    %967 = vmatpush1.bf16.xpose.msra.mxu0 0
    %968 = vmatprep.subr.bf16.mxu0 0
    %969 = vmatpush1.bf16.xpose.msra.mxu0 0
    %970 = vmatprep.subr.bf16.mxu0 0
    %971 = vmatpush1.bf16.xpose.msra.mxu0 0
    %972 = vmatprep.subr.bf16.mxu0 0
    %973 = vmatpush1.bf16.xpose.msra.mxu0 0
    %974 = vmatprep.subr.bf16.mxu0 0
    %975 = vmatpush1.bf16.xpose.msra.mxu0 0
    %976 = vmatprep.subr.bf16.mxu0 0
    %977 = vmatpush1.bf16.xpose.msra.mxu0 0
    %978 = vmatprep.subr.bf16.mxu0 0
    %979 = vmatpush1.bf16.xpose.msra.mxu0 0
    %980 = vmatprep.subr.bf16.mxu0 0
    %981 = vmatpush1.bf16.xpose.msra.mxu0 0
    %982 = vmatprep.subr.bf16.mxu0 0
    %983 = vmatpush1.bf16.xpose.msra.mxu0 0
    %984 = vmatprep.subr.bf16.mxu0 0
    %985 = vmatpush1.bf16.xpose.msra.mxu0 0
    %986 = vmatprep.subr.bf16.mxu0 0
    %987 = vmatpush1.bf16.xpose.msra.mxu0 0
    %988 = vmatprep.subr.bf16.mxu0 0
    %989 = vmatpush1.bf16.xpose.msra.mxu0 0
    %990 = vmatprep.mubr.bf16.mxu0 0
    %991 = vmatmul.mubr.bf16.gmra.mrb[0].mxu0 %v953
    %v992 = vpop.f32.mrb[0].mxu0
    %v993 = vadd.f32 0.0, %v992
    %v994 = vpop.f32.mrb[0].mxu0
    %v995 = vpop.f32.mrb[0].mxu0
    %v996 = vpop.f32.mrb[0].mxu0
    %997 = vdwg.mxu0
    %v998 = vsel %vm273, %v993, -inf
    %999 = vmax.xlane.f32.xlu0 %v998
    %v1000 = vpop.xlane.xlu0 %999
    %v1001 = vsub.f32 %v993, %v1000
    %v1002 = vmul.f32 %v1001, 1.442695
    %v1003 = vpow.pop %v1002
    %v1004 = vsel %vm273, %v1003, 0.0
    %1005 = vadd.xlane.f32.xlu0 %v1004
    %v1006 = vpop.xlane.xlu0 %1005
    %v1007 = vrcp.pop %v1006
    %v1008 = vmul.f32 %v1003, %v1007
    %v1009 = vpack.c.bf16 %v1008, %v1008
    %1010 = vrot.lane.b32.xlu0 %v728, 48
    %v1011 = vpop.permute.xlu0 %1010
    %v1013 = vsel %vm273, %v1009, 0
    %v1016 = vsel %vm337, %v1011, 0
    %1018 = vmatprep.subr.bf16.mxu0 0
    %1019 = vmatpush1.bf16.msra.mxu0 %v1016
    %1020 = vmatprep.subr.bf16.mxu0 0
    %1021 = vmatpush1.bf16.msra.mxu0 0
    %1022 = vmatprep.subr.bf16.mxu0 0
    %1023 = vmatpush1.bf16.msra.mxu0 0
    %1024 = vmatprep.subr.bf16.mxu0 0
    %1025 = vmatpush1.bf16.msra.mxu0 0
    %1026 = vmatprep.subr.bf16.mxu0 0
    %1027 = vmatpush1.bf16.msra.mxu0 0
    %1028 = vmatprep.subr.bf16.mxu0 0
    %1029 = vmatpush1.bf16.msra.mxu0 0
    %1030 = vmatprep.subr.bf16.mxu0 0
    %1031 = vmatpush1.bf16.msra.mxu0 0
    %1032 = vmatprep.subr.bf16.mxu0 0
    %1033 = vmatpush1.bf16.msra.mxu0 0
    %1034 = vmatprep.subr.bf16.mxu0 0
    %1035 = vmatpush1.bf16.msra.mxu0 0
    %1036 = vmatprep.subr.bf16.mxu0 0
    %1037 = vmatpush1.bf16.msra.mxu0 0
    %1038 = vmatprep.subr.bf16.mxu0 0
    %1039 = vmatpush1.bf16.msra.mxu0 0
    %1040 = vmatprep.subr.bf16.mxu0 0
    %1041 = vmatpush1.bf16.msra.mxu0 0
    %1042 = vmatprep.subr.bf16.mxu0 0
    %1043 = vmatpush1.bf16.msra.mxu0 0
    %1044 = vmatprep.subr.bf16.mxu0 0
    %1045 = vmatpush1.bf16.msra.mxu0 0
    %1046 = vmatprep.subr.bf16.mxu0 0
    %1047 = vmatpush1.bf16.msra.mxu0 0
    %1048 = vmatprep.subr.bf16.mxu0 0
    %1049 = vmatpush1.bf16.msra.mxu0 0
    %1050 = vmatprep.mubr.bf16.mxu0 0
    %1051 = vmatmul.mubr.bf16.gmra.mrb[0].mxu0 %v1013
    %v1052 = vpop.f32.mrb[0].mxu0
    %v1053 = vadd.f32 0.0, %v1052
    %v1054 = vpop.f32.mrb[0].mxu0
    %v1055 = vpop.f32.mrb[0].mxu0
    %v1056 = vpop.f32.mrb[0].mxu0
    %1057 = vdwg.mxu0
    %1058 = vrot.lane.b32.xlu0 %v728, 104
    %v1059 = vpop.permute.xlu0 %1058
    %1060 = vrot.lane.b32.xlu0 %v728, 72
    %v1061 = vpop.permute.xlu0 %1060
    %v1063 = vsel %vm273, %v1059, 0
    %v1066 = vsel %vm273, %v1061, 0
    %1068 = vmatprep.subr.bf16.mxu0 0
    %1069 = vmatpush1.bf16.xpose.msra.mxu0 %v1066
    %1070 = vmatprep.subr.bf16.mxu0 0
    %1071 = vmatpush1.bf16.xpose.msra.mxu0 0
    %1072 = vmatprep.subr.bf16.mxu0 0
    %1073 = vmatpush1.bf16.xpose.msra.mxu0 0
    %1074 = vmatprep.subr.bf16.mxu0 0
    %1075 = vmatpush1.bf16.xpose.msra.mxu0 0
    %1076 = vmatprep.subr.bf16.mxu0 0
    %1077 = vmatpush1.bf16.xpose.msra.mxu0 0
    %1078 = vmatprep.subr.bf16.mxu0 0
    %1079 = vmatpush1.bf16.xpose.msra.mxu0 0
    %1080 = vmatprep.subr.bf16.mxu0 0
    %1081 = vmatpush1.bf16.xpose.msra.mxu0 0
    %1082 = vmatprep.subr.bf16.mxu0 0
    %1083 = vmatpush1.bf16.xpose.msra.mxu0 0
    %1084 = vmatprep.subr.bf16.mxu0 0
    %1085 = vmatpush1.bf16.xpose.msra.mxu0 0
    %1086 = vmatprep.subr.bf16.mxu0 0
    %1087 = vmatpush1.bf16.xpose.msra.mxu0 0
    %1088 = vmatprep.subr.bf16.mxu0 0
    %1089 = vmatpush1.bf16.xpose.msra.mxu0 0
    %1090 = vmatprep.subr.bf16.mxu0 0
    %1091 = vmatpush1.bf16.xpose.msra.mxu0 0
    %1092 = vmatprep.subr.bf16.mxu0 0
    %1093 = vmatpush1.bf16.xpose.msra.mxu0 0
    %1094 = vmatprep.subr.bf16.mxu0 0
    %1095 = vmatpush1.bf16.xpose.msra.mxu0 0
    %1096 = vmatprep.subr.bf16.mxu0 0
    %1097 = vmatpush1.bf16.xpose.msra.mxu0 0
    %1098 = vmatprep.subr.bf16.mxu0 0
    %1099 = vmatpush1.bf16.xpose.msra.mxu0 0
    %1100 = vmatprep.mubr.bf16.mxu0 0
    %1101 = vmatmul.mubr.bf16.gmra.mrb[0].mxu0 %v1063
    %v1102 = vpop.f32.mrb[0].mxu0
    %v1103 = vadd.f32 0.0, %v1102
    %v1104 = vpop.f32.mrb[0].mxu0
    %v1105 = vpop.f32.mrb[0].mxu0
    %v1106 = vpop.f32.mrb[0].mxu0
    %1107 = vdwg.mxu0
    %v1108 = vsel %vm273, %v1103, -inf
    %1109 = vmax.xlane.f32.xlu0 %v1108
    %v1110 = vpop.xlane.xlu0 %1109
    %v1111 = vsub.f32 %v1103, %v1110
    %v1112 = vmul.f32 %v1111, 1.442695
    %v1113 = vpow.pop %v1112
    %v1114 = vsel %vm273, %v1113, 0.0
    %1115 = vadd.xlane.f32.xlu0 %v1114
    %v1116 = vpop.xlane.xlu0 %1115
    %v1117 = vrcp.pop %v1116
    %v1118 = vmul.f32 %v1113, %v1117
    %v1119 = vpack.c.bf16 %v1118, %v1118
    %1120 = vrot.lane.b32.xlu0 %v728, 40
    %v1121 = vpop.permute.xlu0 %1120
    %v1123 = vsel %vm273, %v1119, 0
    %v1126 = vsel %vm337, %v1121, 0
    %1128 = vmatprep.subr.bf16.mxu0 0
    %1129 = vmatpush1.bf16.msra.mxu0 %v1126
    %1130 = vmatprep.subr.bf16.mxu0 0
    %1131 = vmatpush1.bf16.msra.mxu0 0
    %1132 = vmatprep.subr.bf16.mxu0 0
    %1133 = vmatpush1.bf16.msra.mxu0 0
    %1134 = vmatprep.subr.bf16.mxu0 0
    %1135 = vmatpush1.bf16.msra.mxu0 0
    %1136 = vmatprep.subr.bf16.mxu0 0
    %1137 = vmatpush1.bf16.msra.mxu0 0
    %1138 = vmatprep.subr.bf16.mxu0 0
    %1139 = vmatpush1.bf16.msra.mxu0 0
    %1140 = vmatprep.subr.bf16.mxu0 0
    %1141 = vmatpush1.bf16.msra.mxu0 0
    %1142 = vmatprep.subr.bf16.mxu0 0
    %1143 = vmatpush1.bf16.msra.mxu0 0
    %1144 = vmatprep.subr.bf16.mxu0 0
    %1145 = vmatpush1.bf16.msra.mxu0 0
    %1146 = vmatprep.subr.bf16.mxu0 0
    %1147 = vmatpush1.bf16.msra.mxu0 0
    %1148 = vmatprep.subr.bf16.mxu0 0
    %1149 = vmatpush1.bf16.msra.mxu0 0
    %1150 = vmatprep.subr.bf16.mxu0 0
    %1151 = vmatpush1.bf16.msra.mxu0 0
    %1152 = vmatprep.subr.bf16.mxu0 0
    %1153 = vmatpush1.bf16.msra.mxu0 0
    %1154 = vmatprep.subr.bf16.mxu0 0
    %1155 = vmatpush1.bf16.msra.mxu0 0
    %1156 = vmatprep.subr.bf16.mxu0 0
    %1157 = vmatpush1.bf16.msra.mxu0 0
    %1158 = vmatprep.subr.bf16.mxu0 0
    %1159 = vmatpush1.bf16.msra.mxu0 0
    %1160 = vmatprep.mubr.bf16.mxu0 0
    %1161 = vmatmul.mubr.bf16.gmra.mrb[0].mxu0 %v1123
    %v1162 = vpop.f32.mrb[0].mxu0
    %v1163 = vadd.f32 0.0, %v1162
    %v1164 = vpop.f32.mrb[0].mxu0
    %v1165 = vpop.f32.mrb[0].mxu0
    %v1166 = vpop.f32.mrb[0].mxu0
    %1167 = vdwg.mxu0
    %1169 = vrot.lane.b32.xlu0 %v943, 8
    %v1170 = vpop.permute.xlu0 %1169
    %1173 = vrot.lane.b32.xlu0 %v1053, 16
    %v1174 = vpop.permute.xlu0 %1173
    %1177 = vrot.lane.b32.xlu0 %v1163, 24
    %v1178 = vpop.permute.xlu0 %1177
    %v1180 = vsel %vm273, %v833, %v1170
    %v1181 = vsel %vm724, %v1180, %v1174
    %v1182 = vsel %vm726, %v1181, %v1178
    %v1183 = vpack.c.bf16 %v1182, %v727
    %v1184 = vlaneseq
    %v1185 = vshrl.u32 %v1184, 7
    %v1186 = vsub.s32 6, %v1185
    %v1187 = vrot.slane %v153, %v1186
    %v1192 = vunpack.c.l.b16 %v156
    %v1193 = vunpack.c.l.b16 %v157
    %v1194 = vunpack.c.l.b16 %v158
    %v1195 = vunpack.c.l.b16 %v159
    %v1196 = vpack.c.b16 %v1193, %v1192
    %v1197 = vpack.c.b16 %v1195, %v1194
    %v1201 = vsel %vm164, %v1183, 0
    %1203 = vmatprep.subr.bf16.mxu0 0
    %1204 = vmatpush1.bf16.msra.mxu0 %v1196
    %1205 = vmatprep.subr.bf16.mxu0 0
    %1206 = vmatpush1.bf16.msra.mxu0 %v1197
    %1207 = vmatprep.subr.bf16.mxu0 0
    %1208 = vmatpush1.bf16.msra.mxu0 0
    %1209 = vmatprep.subr.bf16.mxu0 0
    %1210 = vmatpush1.bf16.msra.mxu0 0
    %1211 = vmatprep.subr.bf16.mxu0 0
    %1212 = vmatpush1.bf16.msra.mxu0 0
    %1213 = vmatprep.subr.bf16.mxu0 0
    %1214 = vmatpush1.bf16.msra.mxu0 0
    %1215 = vmatprep.subr.bf16.mxu0 0
    %1216 = vmatpush1.bf16.msra.mxu0 0
    %1217 = vmatprep.subr.bf16.mxu0 0
    %1218 = vmatpush1.bf16.msra.mxu0 0
    %1219 = vmatprep.subr.bf16.mxu0 0
    %1220 = vmatpush1.bf16.msra.mxu0 0
    %1221 = vmatprep.subr.bf16.mxu0 0
    %1222 = vmatpush1.bf16.msra.mxu0 0
    %1223 = vmatprep.subr.bf16.mxu0 0
    %1224 = vmatpush1.bf16.msra.mxu0 0
    %1225 = vmatprep.subr.bf16.mxu0 0
    %1226 = vmatpush1.bf16.msra.mxu0 0
    %1227 = vmatprep.subr.bf16.mxu0 0
    %1228 = vmatpush1.bf16.msra.mxu0 0
    %1229 = vmatprep.subr.bf16.mxu0 0
    %1230 = vmatpush1.bf16.msra.mxu0 0
    %1231 = vmatprep.subr.bf16.mxu0 0
    %1232 = vmatpush1.bf16.msra.mxu0 0
    %1233 = vmatprep.subr.bf16.mxu0 0
    %1234 = vmatpush1.bf16.msra.mxu0 0
    %1235 = vmatprep.mubr.bf16.mxu0 0
    %1236 = vmatmul.mubr.bf16.gmra.mrb[0].mxu0 %v1201
    %v1237 = vpop.f32.mrb[0].mxu0
    %v1238 = vadd.f32 %v1187, %v1237
    %v1239 = vpop.f32.mrb[0].mxu0
    %v1240 = vpop.f32.mrb[0].mxu0
    %v1241 = vadd.f32 %v1187, %v1240
    %v1242 = vpop.f32.mrb[0].mxu0
    %1243 = vdwg.mxu0
    %v1244 = vadd.f32 %v145, %v1238
    %v1245 = vadd.f32 %v146, %v1241
    %v1246 = vsel %vm164, %v1244, 0.0
    %1247 = vadd.xlane.f32.xlu0 %v1246
    %v1248 = vpop.xlane.xlu0 %1247
    %v1249 = vsel %vm164, %v1245, 0.0
    %1250 = vadd.xlane.f32.xlu0 %v1249
    %v1251 = vpop.xlane.xlu0 %1250
    %v1252 = vmul.f32 %v1248, %v171
    %v1253 = vmul.f32 %v1251, %v171
    %v1254 = vsub.f32 %v1244, %v1252
    %v1255 = vsub.f32 %v1245, %v1253
    %v1256 = vmul.f32 %v1254, %v1254
    %v1257 = vmul.f32 %v1255, %v1255
    %v1258 = vsel %vm164, %v1256, 0.0
    %1259 = vadd.xlane.f32.xlu0 %v1258
    %v1260 = vpop.xlane.xlu0 %1259
    %v1261 = vsel %vm164, %v1257, 0.0
    %1262 = vadd.xlane.f32.xlu0 %v1261
    %v1263 = vpop.xlane.xlu0 %1262
    %v1264 = vmul.f32 %v1260, %v171
    %v1265 = vmul.f32 %v1263, %v171
    %v1266 = vadd.f32 %v1264, 1e-05
    %v1267 = vadd.f32 %v1265, 1e-05
    %v1268 = vrsqrt.pop %v1266
    %v1269 = vrsqrt.pop %v1267
    %v1270 = vmul.f32 %v1254, %v1268
    %v1271 = vmul.f32 %v1255, %v1269
    %v1272 = vlaneseq
    %v1273 = vshrl.u32 %v1272, 7
    %v1274 = vsub.s32 2, %v1273
    %v1275 = vrot.slane %v153, %v1274
    %v1276 = vmul.f32 %v1270, %v1275
    %v1277 = vmul.f32 %v1271, %v1275
    %v1278 = vlaneseq
    %v1279 = vshrl.u32 %v1278, 7
    %v1280 = vsub.s32 3, %v1279
    %v1281 = vrot.slane %v153, %v1280
    %v1282 = vadd.f32 %v1276, %v1281
    %v1283 = vadd.f32 %v1277, %v1281
    %v1284 = vpack.c.bf16 %v1283, %v1282
    %v1285 = vld [vmem:[#allocation10] sm:$0xf]
    %v1286 = vld [vmem:[#allocation10 + $0x4] sm:$0xf]
    %v1287 = vld [vmem:[#allocation10 + $0x8] sm:$0xf]
    %v1288 = vld [vmem:[#allocation10 + $0xc] sm:$0xf]
    %v1289 = vlaneseq
    %v1290 = vshrl.u32 %v1289, 7
    %v1291 = vsub.s32 1, %v1290
    %v1292 = vrot.slane %v155, %v1291
    %v1297 = vunpack.c.l.b16 %v1285
    %v1298 = vunpack.c.l.b16 %v1286
    %v1299 = vunpack.c.l.b16 %v1287
    %v1300 = vunpack.c.l.b16 %v1288
    %v1301 = vpack.c.b16 %v1298, %v1297
    %v1302 = vpack.c.b16 %v1300, %v1299
    %v1306 = vsel %vm164, %v1284, 0
    %1308 = vmatprep.subr.bf16.mxu0 0
    %1309 = vmatpush1.bf16.msra.mxu0 %v1301
    %1310 = vmatprep.subr.bf16.mxu0 0
    %1311 = vmatpush1.bf16.msra.mxu0 %v1302
    %1312 = vmatprep.subr.bf16.mxu0 0
    %1313 = vmatpush1.bf16.msra.mxu0 0
    %1314 = vmatprep.subr.bf16.mxu0 0
    %1315 = vmatpush1.bf16.msra.mxu0 0
    %1316 = vmatprep.subr.bf16.mxu0 0
    %1317 = vmatpush1.bf16.msra.mxu0 0
    %1318 = vmatprep.subr.bf16.mxu0 0
    %1319 = vmatpush1.bf16.msra.mxu0 0
    %1320 = vmatprep.subr.bf16.mxu0 0
    %1321 = vmatpush1.bf16.msra.mxu0 0
    %1322 = vmatprep.subr.bf16.mxu0 0
    %1323 = vmatpush1.bf16.msra.mxu0 0
    %1324 = vmatprep.subr.bf16.mxu0 0
    %1325 = vmatpush1.bf16.msra.mxu0 0
    %1326 = vmatprep.subr.bf16.mxu0 0
    %1327 = vmatpush1.bf16.msra.mxu0 0
    %1328 = vmatprep.subr.bf16.mxu0 0
    %1329 = vmatpush1.bf16.msra.mxu0 0
    %1330 = vmatprep.subr.bf16.mxu0 0
    %1331 = vmatpush1.bf16.msra.mxu0 0
    %1332 = vmatprep.subr.bf16.mxu0 0
    %1333 = vmatpush1.bf16.msra.mxu0 0
    %1334 = vmatprep.subr.bf16.mxu0 0
    %1335 = vmatpush1.bf16.msra.mxu0 0
    %1336 = vmatprep.subr.bf16.mxu0 0
    %1337 = vmatpush1.bf16.msra.mxu0 0
    %1338 = vmatprep.subr.bf16.mxu0 0
    %1339 = vmatpush1.bf16.msra.mxu0 0
    %1340 = vmatprep.mubr.bf16.mxu0 0
    %1341 = vmatmul.mubr.bf16.gmra.mrb[0].mxu0 %v1306
    %v1342 = vpop.f32.mrb[0].mxu0
    %v1343 = vadd.f32 %v1292, %v1342
    %v1344 = vpop.f32.mrb[0].mxu0
    %v1345 = vpop.f32.mrb[0].mxu0
    %v1346 = vadd.f32 %v1292, %v1345
    %v1347 = vpop.f32.mrb[0].mxu0
    %1348 = vdwg.mxu0
    %v1349 = vld [vmem:[#allocation11] sm:$0xf]
    %v1350 = vld [vmem:[#allocation11 + $0x4] sm:$0xf]
    %v1351 = vld [vmem:[#allocation11 + $0x8] sm:$0xf]
    %v1352 = vld [vmem:[#allocation11 + $0xc] sm:$0xf]
    %v1357 = vunpack.c.l.b16 %v1349
    %v1358 = vunpack.c.l.b16 %v1350
    %v1359 = vunpack.c.l.b16 %v1351
    %v1360 = vunpack.c.l.b16 %v1352
    %v1361 = vpack.c.b16 %v1358, %v1357
    %v1362 = vpack.c.b16 %v1360, %v1359
    %1366 = vrot.lane.b32.xlu0 %v1292, 96
    %v1367 = vpop.permute.xlu0 %1366
    %v1370 = vsel %vm164, %v151, 0
    %v1373 = vsel %vm164, %v152, 0
    %1375 = vmatprep.subr.bf16.mxu0 0
    %1376 = vmatpush1.bf16.msra.mxu0 %v1361
    %1377 = vmatprep.subr.bf16.mxu0 0
    %1378 = vmatpush1.bf16.msra.mxu0 %v1362
    %1379 = vmatprep.subr.bf16.mxu0 0
    %1380 = vmatpush1.bf16.msra.mxu0 0
    %1381 = vmatprep.subr.bf16.mxu0 0
    %1382 = vmatpush1.bf16.msra.mxu0 0
    %1383 = vmatprep.subr.bf16.mxu0 0
    %1384 = vmatpush1.bf16.msra.mxu0 0
    %1385 = vmatprep.subr.bf16.mxu0 0
    %1386 = vmatpush1.bf16.msra.mxu0 0
    %1387 = vmatprep.subr.bf16.mxu0 0
    %1388 = vmatpush1.bf16.msra.mxu0 0
    %1389 = vmatprep.subr.bf16.mxu0 0
    %1390 = vmatpush1.bf16.msra.mxu0 0
    %1391 = vmatprep.subr.bf16.mxu0 0
    %1392 = vmatpush1.bf16.msra.mxu0 0
    %1393 = vmatprep.subr.bf16.mxu0 0
    %1394 = vmatpush1.bf16.msra.mxu0 0
    %1395 = vmatprep.subr.bf16.mxu0 0
    %1396 = vmatpush1.bf16.msra.mxu0 0
    %1397 = vmatprep.subr.bf16.mxu0 0
    %1398 = vmatpush1.bf16.msra.mxu0 0
    %1399 = vmatprep.subr.bf16.mxu0 0
    %1400 = vmatpush1.bf16.msra.mxu0 0
    %1401 = vmatprep.subr.bf16.mxu0 0
    %1402 = vmatpush1.bf16.msra.mxu0 0
    %1403 = vmatprep.subr.bf16.mxu0 0
    %1404 = vmatpush1.bf16.msra.mxu0 0
    %1405 = vmatprep.subr.bf16.mxu0 0
    %1406 = vmatpush1.bf16.msra.mxu0 0
    %1407 = vmatprep.mubr.bf16.mxu0 0
    %1408 = vmatmul.mubr.bf16.gmra.mrb[0].mxu0 %v1370
    %v1409 = vpop.f32.mrb[0].mxu0
    %v1410 = vadd.f32 %v1367, %v1409
    %v1411 = vpop.f32.mrb[0].mxu0
    %v1412 = vpop.f32.mrb[0].mxu0
    %v1413 = vadd.f32 %v1367, %v1412
    %v1414 = vpop.f32.mrb[0].mxu0
    %1415 = vmatprep.mubr.bf16.mxu0 0
    %1416 = vmatmul.mubr.bf16.gmra.mrb[0].mxu0 %v1373
    %v1417 = vpop.f32.mrb[0].mxu0
    %v1418 = vadd.f32 %v1367, %v1417
    %v1419 = vpop.f32.mrb[0].mxu0
    %v1420 = vpop.f32.mrb[0].mxu0
    %v1421 = vadd.f32 %v1367, %v1420
    %v1422 = vpop.f32.mrb[0].mxu0
    %1423 = vdwg.mxu0
    %v1424 = vpack.c.bf16 %v1343, %v1343
    %v1425 = vpack.c.bf16 %v1413, %v1410
    %v1427 = vsel %vm273, %v1424, 0
    %v1430 = vsel %vm273, %v1425, 0
    %1432 = vmatprep.subr.bf16.mxu0 0
    %1433 = vmatpush1.bf16.xpose.msra.mxu0 %v1430
    %1434 = vmatprep.subr.bf16.mxu0 0
    %1435 = vmatpush1.bf16.xpose.msra.mxu0 0
    %1436 = vmatprep.subr.bf16.mxu0 0
    %1437 = vmatpush1.bf16.xpose.msra.mxu0 0
    %1438 = vmatprep.subr.bf16.mxu0 0
    %1439 = vmatpush1.bf16.xpose.msra.mxu0 0
    %1440 = vmatprep.subr.bf16.mxu0 0
    %1441 = vmatpush1.bf16.xpose.msra.mxu0 0
    %1442 = vmatprep.subr.bf16.mxu0 0
    %1443 = vmatpush1.bf16.xpose.msra.mxu0 0
    %1444 = vmatprep.subr.bf16.mxu0 0
    %1445 = vmatpush1.bf16.xpose.msra.mxu0 0
    %1446 = vmatprep.subr.bf16.mxu0 0
    %1447 = vmatpush1.bf16.xpose.msra.mxu0 0
    %1448 = vmatprep.subr.bf16.mxu0 0
    %1449 = vmatpush1.bf16.xpose.msra.mxu0 0
    %1450 = vmatprep.subr.bf16.mxu0 0
    %1451 = vmatpush1.bf16.xpose.msra.mxu0 0
    %1452 = vmatprep.subr.bf16.mxu0 0
    %1453 = vmatpush1.bf16.xpose.msra.mxu0 0
    %1454 = vmatprep.subr.bf16.mxu0 0
    %1455 = vmatpush1.bf16.xpose.msra.mxu0 0
    %1456 = vmatprep.subr.bf16.mxu0 0
    %1457 = vmatpush1.bf16.xpose.msra.mxu0 0
    %1458 = vmatprep.subr.bf16.mxu0 0
    %1459 = vmatpush1.bf16.xpose.msra.mxu0 0
    %1460 = vmatprep.subr.bf16.mxu0 0
    %1461 = vmatpush1.bf16.xpose.msra.mxu0 0
    %1462 = vmatprep.subr.bf16.mxu0 0
    %1463 = vmatpush1.bf16.xpose.msra.mxu0 0
    %1464 = vmatprep.mubr.bf16.mxu0 0
    %1465 = vmatmul.mubr.bf16.gmra.mrb[0].mxu0 %v1427
    %v1466 = vpop.f32.mrb[0].mxu0
    %v1467 = vadd.f32 0.0, %v1466
    %v1468 = vpop.f32.mrb[0].mxu0
    %v1469 = vpop.f32.mrb[0].mxu0
    %v1470 = vpop.f32.mrb[0].mxu0
    %1471 = vdwg.mxu0
    %v1472 = vsel %vm724, %v1467, -inf
    %1473 = vmax.xlane.f32.xlu0 %v1472
    %v1474 = vpop.xlane.xlu0 %1473
    %v1475 = vsub.f32 %v1467, %v1474
    %v1476 = vmul.f32 %v1475, 1.442695
    %v1477 = vpow.pop %v1476
    %v1478 = vsel %vm724, %v1477, 0.0
    %1479 = vadd.xlane.f32.xlu0 %v1478
    %v1480 = vpop.xlane.xlu0 %1479
    %v1481 = vrcp.pop %v1480
    %v1482 = vmul.f32 %v1477, %v1481
    %v1483 = vpack.c.bf16 %v1482, %v1482
    %1485 = vrot.lane.b32.xlu0 %v1425, 96
    %v1486 = vpop.permute.xlu0 %1485
    %v1489 = vsel %vm724, %v1483, 0
    %1491 = vmatprep.subr.bf16.mxu0 0
    %1492 = vmatpush1.bf16.msra.mxu0 %v1486
    %1493 = vmatprep.subr.bf16.mxu0 0
    %1494 = vmatpush1.bf16.msra.mxu0 0
    %1495 = vmatprep.subr.bf16.mxu0 0
    %1496 = vmatpush1.bf16.msra.mxu0 0
    %1497 = vmatprep.subr.bf16.mxu0 0
    %1498 = vmatpush1.bf16.msra.mxu0 0
    %1499 = vmatprep.subr.bf16.mxu0 0
    %1500 = vmatpush1.bf16.msra.mxu0 0
    %1501 = vmatprep.subr.bf16.mxu0 0
    %1502 = vmatpush1.bf16.msra.mxu0 0
    %1503 = vmatprep.subr.bf16.mxu0 0
    %1504 = vmatpush1.bf16.msra.mxu0 0
    %1505 = vmatprep.subr.bf16.mxu0 0
    %1506 = vmatpush1.bf16.msra.mxu0 0
    %1507 = vmatprep.subr.bf16.mxu0 0
    %1508 = vmatpush1.bf16.msra.mxu0 0
    %1509 = vmatprep.subr.bf16.mxu0 0
    %1510 = vmatpush1.bf16.msra.mxu0 0
    %1511 = vmatprep.subr.bf16.mxu0 0
    %1512 = vmatpush1.bf16.msra.mxu0 0
    %1513 = vmatprep.subr.bf16.mxu0 0
    %1514 = vmatpush1.bf16.msra.mxu0 0
    %1515 = vmatprep.subr.bf16.mxu0 0
    %1516 = vmatpush1.bf16.msra.mxu0 0
    %1517 = vmatprep.subr.bf16.mxu0 0
    %1518 = vmatpush1.bf16.msra.mxu0 0
    %1519 = vmatprep.subr.bf16.mxu0 0
    %1520 = vmatpush1.bf16.msra.mxu0 0
    %1521 = vmatprep.subr.bf16.mxu0 0
    %1522 = vmatpush1.bf16.msra.mxu0 0
    %1523 = vmatprep.mubr.bf16.mxu0 0
    %1524 = vmatmul.mubr.bf16.gmra.mrb[0].mxu0 %v1489
    %v1525 = vpop.f32.mrb[0].mxu0
    %v1526 = vadd.f32 0.0, %v1525
    %v1527 = vpop.f32.mrb[0].mxu0
    %v1528 = vpop.f32.mrb[0].mxu0
    %v1529 = vpop.f32.mrb[0].mxu0
    %1530 = vdwg.mxu0
    %1532 = vrot.lane.b32.xlu0 %v1424, 120
    %v1533 = vpop.permute.xlu0 %1532
    %1534 = vrot.lane.b32.xlu0 %v1425, 120
    %v1535 = vpop.permute.xlu0 %1534
    %v1537 = vsel %vm273, %v1533, 0
    %v1540 = vsel %vm273, %v1535, 0
    %1542 = vmatprep.subr.bf16.mxu0 0
    %1543 = vmatpush1.bf16.xpose.msra.mxu0 %v1540
    %1544 = vmatprep.subr.bf16.mxu0 0
    %1545 = vmatpush1.bf16.xpose.msra.mxu0 0
    %1546 = vmatprep.subr.bf16.mxu0 0
    %1547 = vmatpush1.bf16.xpose.msra.mxu0 0
    %1548 = vmatprep.subr.bf16.mxu0 0
    %1549 = vmatpush1.bf16.xpose.msra.mxu0 0
    %1550 = vmatprep.subr.bf16.mxu0 0
    %1551 = vmatpush1.bf16.xpose.msra.mxu0 0
    %1552 = vmatprep.subr.bf16.mxu0 0
    %1553 = vmatpush1.bf16.xpose.msra.mxu0 0
    %1554 = vmatprep.subr.bf16.mxu0 0
    %1555 = vmatpush1.bf16.xpose.msra.mxu0 0
    %1556 = vmatprep.subr.bf16.mxu0 0
    %1557 = vmatpush1.bf16.xpose.msra.mxu0 0
    %1558 = vmatprep.subr.bf16.mxu0 0
    %1559 = vmatpush1.bf16.xpose.msra.mxu0 0
    %1560 = vmatprep.subr.bf16.mxu0 0
    %1561 = vmatpush1.bf16.xpose.msra.mxu0 0
    %1562 = vmatprep.subr.bf16.mxu0 0
    %1563 = vmatpush1.bf16.xpose.msra.mxu0 0
    %1564 = vmatprep.subr.bf16.mxu0 0
    %1565 = vmatpush1.bf16.xpose.msra.mxu0 0
    %1566 = vmatprep.subr.bf16.mxu0 0
    %1567 = vmatpush1.bf16.xpose.msra.mxu0 0
    %1568 = vmatprep.subr.bf16.mxu0 0
    %1569 = vmatpush1.bf16.xpose.msra.mxu0 0
    %1570 = vmatprep.subr.bf16.mxu0 0
    %1571 = vmatpush1.bf16.xpose.msra.mxu0 0
    %1572 = vmatprep.subr.bf16.mxu0 0
    %1573 = vmatpush1.bf16.xpose.msra.mxu0 0
    %1574 = vmatprep.mubr.bf16.mxu0 0
    %1575 = vmatmul.mubr.bf16.gmra.mrb[0].mxu0 %v1537
    %v1576 = vpop.f32.mrb[0].mxu0
    %v1577 = vadd.f32 0.0, %v1576
    %v1578 = vpop.f32.mrb[0].mxu0
    %v1579 = vpop.f32.mrb[0].mxu0
    %v1580 = vpop.f32.mrb[0].mxu0
    %1581 = vdwg.mxu0
    %v1582 = vsel %vm724, %v1577, -inf
    %1583 = vmax.xlane.f32.xlu0 %v1582
    %v1584 = vpop.xlane.xlu0 %1583
    %v1585 = vsub.f32 %v1577, %v1584
    %v1586 = vmul.f32 %v1585, 1.442695
    %v1587 = vpow.pop %v1586
    %v1588 = vsel %vm724, %v1587, 0.0
    %1589 = vadd.xlane.f32.xlu0 %v1588
    %v1590 = vpop.xlane.xlu0 %1589
    %v1591 = vrcp.pop %v1590
    %v1592 = vmul.f32 %v1587, %v1591
    %v1593 = vpack.c.bf16 %v1592, %v1592
    %1594 = vrot.lane.b32.xlu0 %v1425, 88
    %v1595 = vpop.permute.xlu0 %1594
    %v1598 = vsel %vm724, %v1593, 0
    %1600 = vmatprep.subr.bf16.mxu0 0
    %1601 = vmatpush1.bf16.msra.mxu0 %v1595
    %1602 = vmatprep.subr.bf16.mxu0 0
    %1603 = vmatpush1.bf16.msra.mxu0 0
    %1604 = vmatprep.subr.bf16.mxu0 0
    %1605 = vmatpush1.bf16.msra.mxu0 0
    %1606 = vmatprep.subr.bf16.mxu0 0
    %1607 = vmatpush1.bf16.msra.mxu0 0
    %1608 = vmatprep.subr.bf16.mxu0 0
    %1609 = vmatpush1.bf16.msra.mxu0 0
    %1610 = vmatprep.subr.bf16.mxu0 0
    %1611 = vmatpush1.bf16.msra.mxu0 0
    %1612 = vmatprep.subr.bf16.mxu0 0
    %1613 = vmatpush1.bf16.msra.mxu0 0
    %1614 = vmatprep.subr.bf16.mxu0 0
    %1615 = vmatpush1.bf16.msra.mxu0 0
    %1616 = vmatprep.subr.bf16.mxu0 0
    %1617 = vmatpush1.bf16.msra.mxu0 0
    %1618 = vmatprep.subr.bf16.mxu0 0
    %1619 = vmatpush1.bf16.msra.mxu0 0
    %1620 = vmatprep.subr.bf16.mxu0 0
    %1621 = vmatpush1.bf16.msra.mxu0 0
    %1622 = vmatprep.subr.bf16.mxu0 0
    %1623 = vmatpush1.bf16.msra.mxu0 0
    %1624 = vmatprep.subr.bf16.mxu0 0
    %1625 = vmatpush1.bf16.msra.mxu0 0
    %1626 = vmatprep.subr.bf16.mxu0 0
    %1627 = vmatpush1.bf16.msra.mxu0 0
    %1628 = vmatprep.subr.bf16.mxu0 0
    %1629 = vmatpush1.bf16.msra.mxu0 0
    %1630 = vmatprep.subr.bf16.mxu0 0
    %1631 = vmatpush1.bf16.msra.mxu0 0
    %1632 = vmatprep.mubr.bf16.mxu0 0
    %1633 = vmatmul.mubr.bf16.gmra.mrb[0].mxu0 %v1598
    %v1634 = vpop.f32.mrb[0].mxu0
    %v1635 = vadd.f32 0.0, %v1634
    %v1636 = vpop.f32.mrb[0].mxu0
    %v1637 = vpop.f32.mrb[0].mxu0
    %v1638 = vpop.f32.mrb[0].mxu0
    %1639 = vdwg.mxu0
    %1640 = vrot.lane.b32.xlu0 %v1424, 112
    %v1641 = vpop.permute.xlu0 %1640
    %1642 = vrot.lane.b32.xlu0 %v1425, 112
    %v1643 = vpop.permute.xlu0 %1642
    %v1645 = vsel %vm273, %v1641, 0
    %v1648 = vsel %vm273, %v1643, 0
    %1650 = vmatprep.subr.bf16.mxu0 0
    %1651 = vmatpush1.bf16.xpose.msra.mxu0 %v1648
    %1652 = vmatprep.subr.bf16.mxu0 0
    %1653 = vmatpush1.bf16.xpose.msra.mxu0 0
    %1654 = vmatprep.subr.bf16.mxu0 0
    %1655 = vmatpush1.bf16.xpose.msra.mxu0 0
    %1656 = vmatprep.subr.bf16.mxu0 0
    %1657 = vmatpush1.bf16.xpose.msra.mxu0 0
    %1658 = vmatprep.subr.bf16.mxu0 0
    %1659 = vmatpush1.bf16.xpose.msra.mxu0 0
    %1660 = vmatprep.subr.bf16.mxu0 0
    %1661 = vmatpush1.bf16.xpose.msra.mxu0 0
    %1662 = vmatprep.subr.bf16.mxu0 0
    %1663 = vmatpush1.bf16.xpose.msra.mxu0 0
    %1664 = vmatprep.subr.bf16.mxu0 0
    %1665 = vmatpush1.bf16.xpose.msra.mxu0 0
    %1666 = vmatprep.subr.bf16.mxu0 0
    %1667 = vmatpush1.bf16.xpose.msra.mxu0 0
    %1668 = vmatprep.subr.bf16.mxu0 0
    %1669 = vmatpush1.bf16.xpose.msra.mxu0 0
    %1670 = vmatprep.subr.bf16.mxu0 0
    %1671 = vmatpush1.bf16.xpose.msra.mxu0 0
    %1672 = vmatprep.subr.bf16.mxu0 0
    %1673 = vmatpush1.bf16.xpose.msra.mxu0 0
    %1674 = vmatprep.subr.bf16.mxu0 0
    %1675 = vmatpush1.bf16.xpose.msra.mxu0 0
    %1676 = vmatprep.subr.bf16.mxu0 0
    %1677 = vmatpush1.bf16.xpose.msra.mxu0 0
    %1678 = vmatprep.subr.bf16.mxu0 0
    %1679 = vmatpush1.bf16.xpose.msra.mxu0 0
    %1680 = vmatprep.subr.bf16.mxu0 0
    %1681 = vmatpush1.bf16.xpose.msra.mxu0 0
    %1682 = vmatprep.mubr.bf16.mxu0 0
    %1683 = vmatmul.mubr.bf16.gmra.mrb[0].mxu0 %v1645
    %v1684 = vpop.f32.mrb[0].mxu0
    %v1685 = vadd.f32 0.0, %v1684
    %v1686 = vpop.f32.mrb[0].mxu0
    %v1687 = vpop.f32.mrb[0].mxu0
    %v1688 = vpop.f32.mrb[0].mxu0
    %1689 = vdwg.mxu0
    %v1690 = vsel %vm724, %v1685, -inf
    %1691 = vmax.xlane.f32.xlu0 %v1690
    %v1692 = vpop.xlane.xlu0 %1691
    %v1693 = vsub.f32 %v1685, %v1692
    %v1694 = vmul.f32 %v1693, 1.442695
    %v1695 = vpow.pop %v1694
    %v1696 = vsel %vm724, %v1695, 0.0
    %1697 = vadd.xlane.f32.xlu0 %v1696
    %v1698 = vpop.xlane.xlu0 %1697
    %v1699 = vrcp.pop %v1698
    %v1700 = vmul.f32 %v1695, %v1699
    %v1701 = vpack.c.bf16 %v1700, %v1700
    %1702 = vrot.lane.b32.xlu0 %v1425, 80
    %v1703 = vpop.permute.xlu0 %1702
    %v1706 = vsel %vm724, %v1701, 0
    %1708 = vmatprep.subr.bf16.mxu0 0
    %1709 = vmatpush1.bf16.msra.mxu0 %v1703
    %1710 = vmatprep.subr.bf16.mxu0 0
    %1711 = vmatpush1.bf16.msra.mxu0 0
    %1712 = vmatprep.subr.bf16.mxu0 0
    %1713 = vmatpush1.bf16.msra.mxu0 0
    %1714 = vmatprep.subr.bf16.mxu0 0
    %1715 = vmatpush1.bf16.msra.mxu0 0
    %1716 = vmatprep.subr.bf16.mxu0 0
    %1717 = vmatpush1.bf16.msra.mxu0 0
    %1718 = vmatprep.subr.bf16.mxu0 0
    %1719 = vmatpush1.bf16.msra.mxu0 0
    %1720 = vmatprep.subr.bf16.mxu0 0
    %1721 = vmatpush1.bf16.msra.mxu0 0
    %1722 = vmatprep.subr.bf16.mxu0 0
    %1723 = vmatpush1.bf16.msra.mxu0 0
    %1724 = vmatprep.subr.bf16.mxu0 0
    %1725 = vmatpush1.bf16.msra.mxu0 0
    %1726 = vmatprep.subr.bf16.mxu0 0
    %1727 = vmatpush1.bf16.msra.mxu0 0
    %1728 = vmatprep.subr.bf16.mxu0 0
    %1729 = vmatpush1.bf16.msra.mxu0 0
    %1730 = vmatprep.subr.bf16.mxu0 0
    %1731 = vmatpush1.bf16.msra.mxu0 0
    %1732 = vmatprep.subr.bf16.mxu0 0
    %1733 = vmatpush1.bf16.msra.mxu0 0
    %1734 = vmatprep.subr.bf16.mxu0 0
    %1735 = vmatpush1.bf16.msra.mxu0 0
    %1736 = vmatprep.subr.bf16.mxu0 0
    %1737 = vmatpush1.bf16.msra.mxu0 0
    %1738 = vmatprep.subr.bf16.mxu0 0
    %1739 = vmatpush1.bf16.msra.mxu0 0
    %1740 = vmatprep.mubr.bf16.mxu0 0
    %1741 = vmatmul.mubr.bf16.gmra.mrb[0].mxu0 %v1706
    %v1742 = vpop.f32.mrb[0].mxu0
    %v1743 = vadd.f32 0.0, %v1742
    %v1744 = vpop.f32.mrb[0].mxu0
    %v1745 = vpop.f32.mrb[0].mxu0
    %v1746 = vpop.f32.mrb[0].mxu0
    %1747 = vdwg.mxu0
    %1748 = vrot.lane.b32.xlu0 %v1424, 104
    %v1749 = vpop.permute.xlu0 %1748
    %1750 = vrot.lane.b32.xlu0 %v1425, 104
    %v1751 = vpop.permute.xlu0 %1750
    %v1753 = vsel %vm273, %v1749, 0
    %v1756 = vsel %vm273, %v1751, 0
    %1758 = vmatprep.subr.bf16.mxu0 0
    %1759 = vmatpush1.bf16.xpose.msra.mxu0 %v1756
    %1760 = vmatprep.subr.bf16.mxu0 0
    %1761 = vmatpush1.bf16.xpose.msra.mxu0 0
    %1762 = vmatprep.subr.bf16.mxu0 0
    %1763 = vmatpush1.bf16.xpose.msra.mxu0 0
    %1764 = vmatprep.subr.bf16.mxu0 0
    %1765 = vmatpush1.bf16.xpose.msra.mxu0 0
    %1766 = vmatprep.subr.bf16.mxu0 0
    %1767 = vmatpush1.bf16.xpose.msra.mxu0 0
    %1768 = vmatprep.subr.bf16.mxu0 0
    %1769 = vmatpush1.bf16.xpose.msra.mxu0 0
    %1770 = vmatprep.subr.bf16.mxu0 0
    %1771 = vmatpush1.bf16.xpose.msra.mxu0 0
    %1772 = vmatprep.subr.bf16.mxu0 0
    %1773 = vmatpush1.bf16.xpose.msra.mxu0 0
    %1774 = vmatprep.subr.bf16.mxu0 0
    %1775 = vmatpush1.bf16.xpose.msra.mxu0 0
    %1776 = vmatprep.subr.bf16.mxu0 0
    %1777 = vmatpush1.bf16.xpose.msra.mxu0 0
    %1778 = vmatprep.subr.bf16.mxu0 0
    %1779 = vmatpush1.bf16.xpose.msra.mxu0 0
    %1780 = vmatprep.subr.bf16.mxu0 0
    %1781 = vmatpush1.bf16.xpose.msra.mxu0 0
    %1782 = vmatprep.subr.bf16.mxu0 0
    %1783 = vmatpush1.bf16.xpose.msra.mxu0 0
    %1784 = vmatprep.subr.bf16.mxu0 0
    %1785 = vmatpush1.bf16.xpose.msra.mxu0 0
    %1786 = vmatprep.subr.bf16.mxu0 0
    %1787 = vmatpush1.bf16.xpose.msra.mxu0 0
    %1788 = vmatprep.subr.bf16.mxu0 0
    %1789 = vmatpush1.bf16.xpose.msra.mxu0 0
    %1790 = vmatprep.mubr.bf16.mxu0 0
    %1791 = vmatmul.mubr.bf16.gmra.mrb[0].mxu0 %v1753
    %v1792 = vpop.f32.mrb[0].mxu0
    %v1793 = vadd.f32 0.0, %v1792
    %v1794 = vpop.f32.mrb[0].mxu0
    %v1795 = vpop.f32.mrb[0].mxu0
    %v1796 = vpop.f32.mrb[0].mxu0
    %1797 = vdwg.mxu0
    %v1798 = vsel %vm724, %v1793, -inf
    %1799 = vmax.xlane.f32.xlu0 %v1798
    %v1800 = vpop.xlane.xlu0 %1799
    %v1801 = vsub.f32 %v1793, %v1800
    %v1802 = vmul.f32 %v1801, 1.442695
    %v1803 = vpow.pop %v1802
    %v1804 = vsel %vm724, %v1803, 0.0
    %1805 = vadd.xlane.f32.xlu0 %v1804
    %v1806 = vpop.xlane.xlu0 %1805
    %v1807 = vrcp.pop %v1806
    %v1808 = vmul.f32 %v1803, %v1807
    %v1809 = vpack.c.bf16 %v1808, %v1808
    %1810 = vrot.lane.b32.xlu0 %v1425, 72
    %v1811 = vpop.permute.xlu0 %1810
    %v1814 = vsel %vm724, %v1809, 0
    %1816 = vmatprep.subr.bf16.mxu0 0
    %1817 = vmatpush1.bf16.msra.mxu0 %v1811
    %1818 = vmatprep.subr.bf16.mxu0 0
    %1819 = vmatpush1.bf16.msra.mxu0 0
    %1820 = vmatprep.subr.bf16.mxu0 0
    %1821 = vmatpush1.bf16.msra.mxu0 0
    %1822 = vmatprep.subr.bf16.mxu0 0
    %1823 = vmatpush1.bf16.msra.mxu0 0
    %1824 = vmatprep.subr.bf16.mxu0 0
    %1825 = vmatpush1.bf16.msra.mxu0 0
    %1826 = vmatprep.subr.bf16.mxu0 0
    %1827 = vmatpush1.bf16.msra.mxu0 0
    %1828 = vmatprep.subr.bf16.mxu0 0
    %1829 = vmatpush1.bf16.msra.mxu0 0
    %1830 = vmatprep.subr.bf16.mxu0 0
    %1831 = vmatpush1.bf16.msra.mxu0 0
    %1832 = vmatprep.subr.bf16.mxu0 0
    %1833 = vmatpush1.bf16.msra.mxu0 0
    %1834 = vmatprep.subr.bf16.mxu0 0
    %1835 = vmatpush1.bf16.msra.mxu0 0
    %1836 = vmatprep.subr.bf16.mxu0 0
    %1837 = vmatpush1.bf16.msra.mxu0 0
    %1838 = vmatprep.subr.bf16.mxu0 0
    %1839 = vmatpush1.bf16.msra.mxu0 0
    %1840 = vmatprep.subr.bf16.mxu0 0
    %1841 = vmatpush1.bf16.msra.mxu0 0
    %1842 = vmatprep.subr.bf16.mxu0 0
    %1843 = vmatpush1.bf16.msra.mxu0 0
    %1844 = vmatprep.subr.bf16.mxu0 0
    %1845 = vmatpush1.bf16.msra.mxu0 0
    %1846 = vmatprep.subr.bf16.mxu0 0
    %1847 = vmatpush1.bf16.msra.mxu0 0
    %1848 = vmatprep.mubr.bf16.mxu0 0
    %1849 = vmatmul.mubr.bf16.gmra.mrb[0].mxu0 %v1814
    %v1850 = vpop.f32.mrb[0].mxu0
    %v1851 = vadd.f32 0.0, %v1850
    %v1852 = vpop.f32.mrb[0].mxu0
    %v1853 = vpop.f32.mrb[0].mxu0
    %v1854 = vpop.f32.mrb[0].mxu0
    %1855 = vdwg.mxu0
    %1857 = vrot.lane.b32.xlu0 %v1635, 8
    %v1858 = vpop.permute.xlu0 %1857
    %1861 = vrot.lane.b32.xlu0 %v1743, 16
    %v1862 = vpop.permute.xlu0 %1861
    %1865 = vrot.lane.b32.xlu0 %v1851, 24
    %v1866 = vpop.permute.xlu0 %1865
    %v1868 = vsel %vm273, %v1526, %v1858
    %v1869 = vsel %vm724, %v1868, %v1862
    %v1870 = vsel %vm726, %v1869, %v1866
    %1872 = vrot.lane.b32.xlu0 %v1592, 16
    %v1873 = vpop.permute.xlu0 %1872
    %1876 = vrot.lane.b32.xlu0 %v1700, 32
    %v1877 = vpop.permute.xlu0 %1876
    %1880 = vrot.lane.b32.xlu0 %v1808, 48
    %v1881 = vpop.permute.xlu0 %1880
    %v1883 = vsel %vm724, %v1482, %v1873
    %v1884 = vsel %vm164, %v1883, %v1877
    %vm1885 = vcmask 392192
    %v1886 = vsel %vm1885, %v1884, %v1881
    %v1887 = vpack.c.bf16 %v1346, %v1346
    %v1888 = vpack.c.bf16 %v1421, %v1418
    %v1890 = vsel %vm273, %v1887, 0
    %v1893 = vsel %vm273, %v1888, 0
    %1895 = vmatprep.subr.bf16.mxu0 0
    %1896 = vmatpush1.bf16.xpose.msra.mxu0 %v1893
    %1897 = vmatprep.subr.bf16.mxu0 0
    %1898 = vmatpush1.bf16.xpose.msra.mxu0 0
    %1899 = vmatprep.subr.bf16.mxu0 0
    %1900 = vmatpush1.bf16.xpose.msra.mxu0 0
    %1901 = vmatprep.subr.bf16.mxu0 0
    %1902 = vmatpush1.bf16.xpose.msra.mxu0 0
    %1903 = vmatprep.subr.bf16.mxu0 0
    %1904 = vmatpush1.bf16.xpose.msra.mxu0 0
    %1905 = vmatprep.subr.bf16.mxu0 0
    %1906 = vmatpush1.bf16.xpose.msra.mxu0 0
    %1907 = vmatprep.subr.bf16.mxu0 0
    %1908 = vmatpush1.bf16.xpose.msra.mxu0 0
    %1909 = vmatprep.subr.bf16.mxu0 0
    %1910 = vmatpush1.bf16.xpose.msra.mxu0 0
    %1911 = vmatprep.subr.bf16.mxu0 0
    %1912 = vmatpush1.bf16.xpose.msra.mxu0 0
    %1913 = vmatprep.subr.bf16.mxu0 0
    %1914 = vmatpush1.bf16.xpose.msra.mxu0 0
    %1915 = vmatprep.subr.bf16.mxu0 0
    %1916 = vmatpush1.bf16.xpose.msra.mxu0 0
    %1917 = vmatprep.subr.bf16.mxu0 0
    %1918 = vmatpush1.bf16.xpose.msra.mxu0 0
    %1919 = vmatprep.subr.bf16.mxu0 0
    %1920 = vmatpush1.bf16.xpose.msra.mxu0 0
    %1921 = vmatprep.subr.bf16.mxu0 0
    %1922 = vmatpush1.bf16.xpose.msra.mxu0 0
    %1923 = vmatprep.subr.bf16.mxu0 0
    %1924 = vmatpush1.bf16.xpose.msra.mxu0 0
    %1925 = vmatprep.subr.bf16.mxu0 0
    %1926 = vmatpush1.bf16.xpose.msra.mxu0 0
    %1927 = vmatprep.mubr.bf16.mxu0 0
    %1928 = vmatmul.mubr.bf16.gmra.mrb[0].mxu0 %v1890
    %v1929 = vpop.f32.mrb[0].mxu0
    %v1930 = vadd.f32 0.0, %v1929
    %v1931 = vpop.f32.mrb[0].mxu0
    %v1932 = vpop.f32.mrb[0].mxu0
    %v1933 = vpop.f32.mrb[0].mxu0
    %1934 = vdwg.mxu0
    %v1935 = vsel %vm724, %v1930, -inf
    %1936 = vmax.xlane.f32.xlu0 %v1935
    %v1937 = vpop.xlane.xlu0 %1936
    %v1938 = vsub.f32 %v1930, %v1937
    %v1939 = vmul.f32 %v1938, 1.442695
    %v1940 = vpow.pop %v1939
    %v1941 = vsel %vm724, %v1940, 0.0
    %1942 = vadd.xlane.f32.xlu0 %v1941
    %v1943 = vpop.xlane.xlu0 %1942
    %v1944 = vrcp.pop %v1943
    %v1945 = vmul.f32 %v1940, %v1944
    %v1946 = vpack.c.bf16 %v1945, %v1945
    %1948 = vrot.lane.b32.xlu0 %v1888, 96
    %v1949 = vpop.permute.xlu0 %1948
    %v1952 = vsel %vm724, %v1946, 0
    %1954 = vmatprep.subr.bf16.mxu0 0
    %1955 = vmatpush1.bf16.msra.mxu0 %v1949
    %1956 = vmatprep.subr.bf16.mxu0 0
    %1957 = vmatpush1.bf16.msra.mxu0 0
    %1958 = vmatprep.subr.bf16.mxu0 0
    %1959 = vmatpush1.bf16.msra.mxu0 0
    %1960 = vmatprep.subr.bf16.mxu0 0
    %1961 = vmatpush1.bf16.msra.mxu0 0
    %1962 = vmatprep.subr.bf16.mxu0 0
    %1963 = vmatpush1.bf16.msra.mxu0 0
    %1964 = vmatprep.subr.bf16.mxu0 0
    %1965 = vmatpush1.bf16.msra.mxu0 0
    %1966 = vmatprep.subr.bf16.mxu0 0
    %1967 = vmatpush1.bf16.msra.mxu0 0
    %1968 = vmatprep.subr.bf16.mxu0 0
    %1969 = vmatpush1.bf16.msra.mxu0 0
    %1970 = vmatprep.subr.bf16.mxu0 0
    %1971 = vmatpush1.bf16.msra.mxu0 0
    %1972 = vmatprep.subr.bf16.mxu0 0
    %1973 = vmatpush1.bf16.msra.mxu0 0
    %1974 = vmatprep.subr.bf16.mxu0 0
    %1975 = vmatpush1.bf16.msra.mxu0 0
    %1976 = vmatprep.subr.bf16.mxu0 0
    %1977 = vmatpush1.bf16.msra.mxu0 0
    %1978 = vmatprep.subr.bf16.mxu0 0
    %1979 = vmatpush1.bf16.msra.mxu0 0
    %1980 = vmatprep.subr.bf16.mxu0 0
    %1981 = vmatpush1.bf16.msra.mxu0 0
    %1982 = vmatprep.subr.bf16.mxu0 0
    %1983 = vmatpush1.bf16.msra.mxu0 0
    %1984 = vmatprep.subr.bf16.mxu0 0
    %1985 = vmatpush1.bf16.msra.mxu0 0
    %1986 = vmatprep.mubr.bf16.mxu0 0
    %1987 = vmatmul.mubr.bf16.gmra.mrb[0].mxu0 %v1952
    %v1988 = vpop.f32.mrb[0].mxu0
    %v1989 = vadd.f32 0.0, %v1988
    %v1990 = vpop.f32.mrb[0].mxu0
    %v1991 = vpop.f32.mrb[0].mxu0
    %v1992 = vpop.f32.mrb[0].mxu0
    %1993 = vdwg.mxu0
    %1995 = vrot.lane.b32.xlu0 %v1887, 120
    %v1996 = vpop.permute.xlu0 %1995
    %1997 = vrot.lane.b32.xlu0 %v1888, 120
    %v1998 = vpop.permute.xlu0 %1997
    %v2000 = vsel %vm273, %v1996, 0
    %v2003 = vsel %vm273, %v1998, 0
    %2005 = vmatprep.subr.bf16.mxu0 0
    %2006 = vmatpush1.bf16.xpose.msra.mxu0 %v2003
    %2007 = vmatprep.subr.bf16.mxu0 0
    %2008 = vmatpush1.bf16.xpose.msra.mxu0 0
    %2009 = vmatprep.subr.bf16.mxu0 0
    %2010 = vmatpush1.bf16.xpose.msra.mxu0 0
    %2011 = vmatprep.subr.bf16.mxu0 0
    %2012 = vmatpush1.bf16.xpose.msra.mxu0 0
    %2013 = vmatprep.subr.bf16.mxu0 0
    %2014 = vmatpush1.bf16.xpose.msra.mxu0 0
    %2015 = vmatprep.subr.bf16.mxu0 0
    %2016 = vmatpush1.bf16.xpose.msra.mxu0 0
    %2017 = vmatprep.subr.bf16.mxu0 0
    %2018 = vmatpush1.bf16.xpose.msra.mxu0 0
    %2019 = vmatprep.subr.bf16.mxu0 0
    %2020 = vmatpush1.bf16.xpose.msra.mxu0 0
    %2021 = vmatprep.subr.bf16.mxu0 0
    %2022 = vmatpush1.bf16.xpose.msra.mxu0 0
    %2023 = vmatprep.subr.bf16.mxu0 0
    %2024 = vmatpush1.bf16.xpose.msra.mxu0 0
    %2025 = vmatprep.subr.bf16.mxu0 0
    %2026 = vmatpush1.bf16.xpose.msra.mxu0 0
    %2027 = vmatprep.subr.bf16.mxu0 0
    %2028 = vmatpush1.bf16.xpose.msra.mxu0 0
    %2029 = vmatprep.subr.bf16.mxu0 0
    %2030 = vmatpush1.bf16.xpose.msra.mxu0 0
    %2031 = vmatprep.subr.bf16.mxu0 0
    %2032 = vmatpush1.bf16.xpose.msra.mxu0 0
    %2033 = vmatprep.subr.bf16.mxu0 0
    %2034 = vmatpush1.bf16.xpose.msra.mxu0 0
    %2035 = vmatprep.subr.bf16.mxu0 0
    %2036 = vmatpush1.bf16.xpose.msra.mxu0 0
    %2037 = vmatprep.mubr.bf16.mxu0 0
    %2038 = vmatmul.mubr.bf16.gmra.mrb[0].mxu0 %v2000
    %v2039 = vpop.f32.mrb[0].mxu0
    %v2040 = vadd.f32 0.0, %v2039
    %v2041 = vpop.f32.mrb[0].mxu0
    %v2042 = vpop.f32.mrb[0].mxu0
    %v2043 = vpop.f32.mrb[0].mxu0
    %2044 = vdwg.mxu0
    %v2045 = vsel %vm724, %v2040, -inf
    %2046 = vmax.xlane.f32.xlu0 %v2045
    %v2047 = vpop.xlane.xlu0 %2046
    %v2048 = vsub.f32 %v2040, %v2047
    %v2049 = vmul.f32 %v2048, 1.442695
    %v2050 = vpow.pop %v2049
    %v2051 = vsel %vm724, %v2050, 0.0
    %2052 = vadd.xlane.f32.xlu0 %v2051
    %v2053 = vpop.xlane.xlu0 %2052
    %v2054 = vrcp.pop %v2053
    %v2055 = vmul.f32 %v2050, %v2054
    %v2056 = vpack.c.bf16 %v2055, %v2055
    %2057 = vrot.lane.b32.xlu0 %v1888, 88
    %v2058 = vpop.permute.xlu0 %2057
    %v2061 = vsel %vm724, %v2056, 0
    %2063 = vmatprep.subr.bf16.mxu0 0
    %2064 = vmatpush1.bf16.msra.mxu0 %v2058
    %2065 = vmatprep.subr.bf16.mxu0 0
    %2066 = vmatpush1.bf16.msra.mxu0 0
    %2067 = vmatprep.subr.bf16.mxu0 0
    %2068 = vmatpush1.bf16.msra.mxu0 0
    %2069 = vmatprep.subr.bf16.mxu0 0
    %2070 = vmatpush1.bf16.msra.mxu0 0
    %2071 = vmatprep.subr.bf16.mxu0 0
    %2072 = vmatpush1.bf16.msra.mxu0 0
    %2073 = vmatprep.subr.bf16.mxu0 0
    %2074 = vmatpush1.bf16.msra.mxu0 0
    %2075 = vmatprep.subr.bf16.mxu0 0
    %2076 = vmatpush1.bf16.msra.mxu0 0
    %2077 = vmatprep.subr.bf16.mxu0 0
    %2078 = vmatpush1.bf16.msra.mxu0 0
    %2079 = vmatprep.subr.bf16.mxu0 0
    %2080 = vmatpush1.bf16.msra.mxu0 0
    %2081 = vmatprep.subr.bf16.mxu0 0
    %2082 = vmatpush1.bf16.msra.mxu0 0
    %2083 = vmatprep.subr.bf16.mxu0 0
    %2084 = vmatpush1.bf16.msra.mxu0 0
    %2085 = vmatprep.subr.bf16.mxu0 0
    %2086 = vmatpush1.bf16.msra.mxu0 0
    %2087 = vmatprep.subr.bf16.mxu0 0
    %2088 = vmatpush1.bf16.msra.mxu0 0
    %2089 = vmatprep.subr.bf16.mxu0 0
    %2090 = vmatpush1.bf16.msra.mxu0 0
    %2091 = vmatprep.subr.bf16.mxu0 0
    %2092 = vmatpush1.bf16.msra.mxu0 0
    %2093 = vmatprep.subr.bf16.mxu0 0
    %2094 = vmatpush1.bf16.msra.mxu0 0
    %2095 = vmatprep.mubr.bf16.mxu0 0
    %2096 = vmatmul.mubr.bf16.gmra.mrb[0].mxu0 %v2061
    %v2097 = vpop.f32.mrb[0].mxu0
    %v2098 = vadd.f32 0.0, %v2097
    %v2099 = vpop.f32.mrb[0].mxu0
    %v2100 = vpop.f32.mrb[0].mxu0
    %v2101 = vpop.f32.mrb[0].mxu0
    %2102 = vdwg.mxu0
    %2103 = vrot.lane.b32.xlu0 %v1887, 112
    %v2104 = vpop.permute.xlu0 %2103
    %2105 = vrot.lane.b32.xlu0 %v1888, 112
    %v2106 = vpop.permute.xlu0 %2105
    %v2108 = vsel %vm273, %v2104, 0
    %v2111 = vsel %vm273, %v2106, 0
    %2113 = vmatprep.subr.bf16.mxu0 0
    %2114 = vmatpush1.bf16.xpose.msra.mxu0 %v2111
    %2115 = vmatprep.subr.bf16.mxu0 0
    %2116 = vmatpush1.bf16.xpose.msra.mxu0 0
    %2117 = vmatprep.subr.bf16.mxu0 0
    %2118 = vmatpush1.bf16.xpose.msra.mxu0 0
    %2119 = vmatprep.subr.bf16.mxu0 0
    %2120 = vmatpush1.bf16.xpose.msra.mxu0 0
    %2121 = vmatprep.subr.bf16.mxu0 0
    %2122 = vmatpush1.bf16.xpose.msra.mxu0 0
    %2123 = vmatprep.subr.bf16.mxu0 0
    %2124 = vmatpush1.bf16.xpose.msra.mxu0 0
    %2125 = vmatprep.subr.bf16.mxu0 0
    %2126 = vmatpush1.bf16.xpose.msra.mxu0 0
    %2127 = vmatprep.subr.bf16.mxu0 0
    %2128 = vmatpush1.bf16.xpose.msra.mxu0 0
    %2129 = vmatprep.subr.bf16.mxu0 0
    %2130 = vmatpush1.bf16.xpose.msra.mxu0 0
    %2131 = vmatprep.subr.bf16.mxu0 0
    %2132 = vmatpush1.bf16.xpose.msra.mxu0 0
    %2133 = vmatprep.subr.bf16.mxu0 0
    %2134 = vmatpush1.bf16.xpose.msra.mxu0 0
    %2135 = vmatprep.subr.bf16.mxu0 0
    %2136 = vmatpush1.bf16.xpose.msra.mxu0 0
    %2137 = vmatprep.subr.bf16.mxu0 0
    %2138 = vmatpush1.bf16.xpose.msra.mxu0 0
    %2139 = vmatprep.subr.bf16.mxu0 0
    %2140 = vmatpush1.bf16.xpose.msra.mxu0 0
    %2141 = vmatprep.subr.bf16.mxu0 0
    %2142 = vmatpush1.bf16.xpose.msra.mxu0 0
    %2143 = vmatprep.subr.bf16.mxu0 0
    %2144 = vmatpush1.bf16.xpose.msra.mxu0 0
    %2145 = vmatprep.mubr.bf16.mxu0 0
    %2146 = vmatmul.mubr.bf16.gmra.mrb[0].mxu0 %v2108
    %v2147 = vpop.f32.mrb[0].mxu0
    %v2148 = vadd.f32 0.0, %v2147
    %v2149 = vpop.f32.mrb[0].mxu0
    %v2150 = vpop.f32.mrb[0].mxu0
    %v2151 = vpop.f32.mrb[0].mxu0
    %2152 = vdwg.mxu0
    %v2153 = vsel %vm724, %v2148, -inf
    %2154 = vmax.xlane.f32.xlu0 %v2153
    %v2155 = vpop.xlane.xlu0 %2154
    %v2156 = vsub.f32 %v2148, %v2155
    %v2157 = vmul.f32 %v2156, 1.442695
    %v2158 = vpow.pop %v2157
    %v2159 = vsel %vm724, %v2158, 0.0
    %2160 = vadd.xlane.f32.xlu0 %v2159
    %v2161 = vpop.xlane.xlu0 %2160
    %v2162 = vrcp.pop %v2161
    %v2163 = vmul.f32 %v2158, %v2162
    %v2164 = vpack.c.bf16 %v2163, %v2163
    %2165 = vrot.lane.b32.xlu0 %v1888, 80
    %v2166 = vpop.permute.xlu0 %2165
    %v2169 = vsel %vm724, %v2164, 0
    %2171 = vmatprep.subr.bf16.mxu0 0
    %2172 = vmatpush1.bf16.msra.mxu0 %v2166
    %2173 = vmatprep.subr.bf16.mxu0 0
    %2174 = vmatpush1.bf16.msra.mxu0 0
    %2175 = vmatprep.subr.bf16.mxu0 0
    %2176 = vmatpush1.bf16.msra.mxu0 0
    %2177 = vmatprep.subr.bf16.mxu0 0
    %2178 = vmatpush1.bf16.msra.mxu0 0
    %2179 = vmatprep.subr.bf16.mxu0 0
    %2180 = vmatpush1.bf16.msra.mxu0 0
    %2181 = vmatprep.subr.bf16.mxu0 0
    %2182 = vmatpush1.bf16.msra.mxu0 0
    %2183 = vmatprep.subr.bf16.mxu0 0
    %2184 = vmatpush1.bf16.msra.mxu0 0
    %2185 = vmatprep.subr.bf16.mxu0 0
    %2186 = vmatpush1.bf16.msra.mxu0 0
    %2187 = vmatprep.subr.bf16.mxu0 0
    %2188 = vmatpush1.bf16.msra.mxu0 0
    %2189 = vmatprep.subr.bf16.mxu0 0
    %2190 = vmatpush1.bf16.msra.mxu0 0
    %2191 = vmatprep.subr.bf16.mxu0 0
    %2192 = vmatpush1.bf16.msra.mxu0 0
    %2193 = vmatprep.subr.bf16.mxu0 0
    %2194 = vmatpush1.bf16.msra.mxu0 0
    %2195 = vmatprep.subr.bf16.mxu0 0
    %2196 = vmatpush1.bf16.msra.mxu0 0
    %2197 = vmatprep.subr.bf16.mxu0 0
    %2198 = vmatpush1.bf16.msra.mxu0 0
    %2199 = vmatprep.subr.bf16.mxu0 0
    %2200 = vmatpush1.bf16.msra.mxu0 0
    %2201 = vmatprep.subr.bf16.mxu0 0
    %2202 = vmatpush1.bf16.msra.mxu0 0
    %2203 = vmatprep.mubr.bf16.mxu0 0
    %2204 = vmatmul.mubr.bf16.gmra.mrb[0].mxu0 %v2169
    %v2205 = vpop.f32.mrb[0].mxu0
    %v2206 = vadd.f32 0.0, %v2205
    %v2207 = vpop.f32.mrb[0].mxu0
    %v2208 = vpop.f32.mrb[0].mxu0
    %v2209 = vpop.f32.mrb[0].mxu0
    %2210 = vdwg.mxu0
    %2211 = vrot.lane.b32.xlu0 %v1887, 104
    %v2212 = vpop.permute.xlu0 %2211
    %2213 = vrot.lane.b32.xlu0 %v1888, 104
    %v2214 = vpop.permute.xlu0 %2213
    %v2216 = vsel %vm273, %v2212, 0
    %v2219 = vsel %vm273, %v2214, 0
    %2221 = vmatprep.subr.bf16.mxu0 0
    %2222 = vmatpush1.bf16.xpose.msra.mxu0 %v2219
    %2223 = vmatprep.subr.bf16.mxu0 0
    %2224 = vmatpush1.bf16.xpose.msra.mxu0 0
    %2225 = vmatprep.subr.bf16.mxu0 0
    %2226 = vmatpush1.bf16.xpose.msra.mxu0 0
    %2227 = vmatprep.subr.bf16.mxu0 0
    %2228 = vmatpush1.bf16.xpose.msra.mxu0 0
    %2229 = vmatprep.subr.bf16.mxu0 0
    %2230 = vmatpush1.bf16.xpose.msra.mxu0 0
    %2231 = vmatprep.subr.bf16.mxu0 0
    %2232 = vmatpush1.bf16.xpose.msra.mxu0 0
    %2233 = vmatprep.subr.bf16.mxu0 0
    %2234 = vmatpush1.bf16.xpose.msra.mxu0 0
    %2235 = vmatprep.subr.bf16.mxu0 0
    %2236 = vmatpush1.bf16.xpose.msra.mxu0 0
    %2237 = vmatprep.subr.bf16.mxu0 0
    %2238 = vmatpush1.bf16.xpose.msra.mxu0 0
    %2239 = vmatprep.subr.bf16.mxu0 0
    %2240 = vmatpush1.bf16.xpose.msra.mxu0 0
    %2241 = vmatprep.subr.bf16.mxu0 0
    %2242 = vmatpush1.bf16.xpose.msra.mxu0 0
    %2243 = vmatprep.subr.bf16.mxu0 0
    %2244 = vmatpush1.bf16.xpose.msra.mxu0 0
    %2245 = vmatprep.subr.bf16.mxu0 0
    %2246 = vmatpush1.bf16.xpose.msra.mxu0 0
    %2247 = vmatprep.subr.bf16.mxu0 0
    %2248 = vmatpush1.bf16.xpose.msra.mxu0 0
    %2249 = vmatprep.subr.bf16.mxu0 0
    %2250 = vmatpush1.bf16.xpose.msra.mxu0 0
    %2251 = vmatprep.subr.bf16.mxu0 0
    %2252 = vmatpush1.bf16.xpose.msra.mxu0 0
    %2253 = vmatprep.mubr.bf16.mxu0 0
    %2254 = vmatmul.mubr.bf16.gmra.mrb[0].mxu0 %v2216
    %v2255 = vpop.f32.mrb[0].mxu0
    %v2256 = vadd.f32 0.0, %v2255
    %v2257 = vpop.f32.mrb[0].mxu0
    %v2258 = vpop.f32.mrb[0].mxu0
    %v2259 = vpop.f32.mrb[0].mxu0
    %2260 = vdwg.mxu0
    %v2261 = vsel %vm724, %v2256, -inf
    %2262 = vmax.xlane.f32.xlu0 %v2261
    %v2263 = vpop.xlane.xlu0 %2262
    %v2264 = vsub.f32 %v2256, %v2263
    %v2265 = vmul.f32 %v2264, 1.442695
    %v2266 = vpow.pop %v2265
    %v2267 = vsel %vm724, %v2266, 0.0
    %2268 = vadd.xlane.f32.xlu0 %v2267
    %v2269 = vpop.xlane.xlu0 %2268
    %v2270 = vrcp.pop %v2269
    %v2271 = vmul.f32 %v2266, %v2270
    %v2272 = vpack.c.bf16 %v2271, %v2271
    %2273 = vrot.lane.b32.xlu0 %v1888, 72
    %v2274 = vpop.permute.xlu0 %2273
    %v2277 = vsel %vm724, %v2272, 0
    %2279 = vmatprep.subr.bf16.mxu0 0
    %2280 = vmatpush1.bf16.msra.mxu0 %v2274
    %2281 = vmatprep.subr.bf16.mxu0 0
    %2282 = vmatpush1.bf16.msra.mxu0 0
    %2283 = vmatprep.subr.bf16.mxu0 0
    %2284 = vmatpush1.bf16.msra.mxu0 0
    %2285 = vmatprep.subr.bf16.mxu0 0
    %2286 = vmatpush1.bf16.msra.mxu0 0
    %2287 = vmatprep.subr.bf16.mxu0 0
    %2288 = vmatpush1.bf16.msra.mxu0 0
    %2289 = vmatprep.subr.bf16.mxu0 0
    %2290 = vmatpush1.bf16.msra.mxu0 0
    %2291 = vmatprep.subr.bf16.mxu0 0
    %2292 = vmatpush1.bf16.msra.mxu0 0
    %2293 = vmatprep.subr.bf16.mxu0 0
    %2294 = vmatpush1.bf16.msra.mxu0 0
    %2295 = vmatprep.subr.bf16.mxu0 0
    %2296 = vmatpush1.bf16.msra.mxu0 0
    %2297 = vmatprep.subr.bf16.mxu0 0
    %2298 = vmatpush1.bf16.msra.mxu0 0
    %2299 = vmatprep.subr.bf16.mxu0 0
    %2300 = vmatpush1.bf16.msra.mxu0 0
    %2301 = vmatprep.subr.bf16.mxu0 0
    %2302 = vmatpush1.bf16.msra.mxu0 0
    %2303 = vmatprep.subr.bf16.mxu0 0
    %2304 = vmatpush1.bf16.msra.mxu0 0
    %2305 = vmatprep.subr.bf16.mxu0 0
    %2306 = vmatpush1.bf16.msra.mxu0 0
    %2307 = vmatprep.subr.bf16.mxu0 0
    %2308 = vmatpush1.bf16.msra.mxu0 0
    %2309 = vmatprep.subr.bf16.mxu0 0
    %2310 = vmatpush1.bf16.msra.mxu0 0
    %2311 = vmatprep.mubr.bf16.mxu0 0
    %2312 = vmatmul.mubr.bf16.gmra.mrb[0].mxu0 %v2277
    %v2313 = vpop.f32.mrb[0].mxu0
    %v2314 = vadd.f32 0.0, %v2313
    %v2315 = vpop.f32.mrb[0].mxu0
    %v2316 = vpop.f32.mrb[0].mxu0
    %v2317 = vpop.f32.mrb[0].mxu0
    %2318 = vdwg.mxu0
    %2320 = vrot.lane.b32.xlu0 %v2098, 8
    %v2321 = vpop.permute.xlu0 %2320
    %2324 = vrot.lane.b32.xlu0 %v2206, 16
    %v2325 = vpop.permute.xlu0 %2324
    %2328 = vrot.lane.b32.xlu0 %v2314, 24
    %v2329 = vpop.permute.xlu0 %2328
    %v2331 = vsel %vm273, %v1989, %v2321
    %v2332 = vsel %vm724, %v2331, %v2325
    %v2333 = vsel %vm726, %v2332, %v2329
    %2335 = vrot.lane.b32.xlu0 %v2055, 16
    %v2336 = vpop.permute.xlu0 %2335
    %2339 = vrot.lane.b32.xlu0 %v2163, 32
    %v2340 = vpop.permute.xlu0 %2339
    %2343 = vrot.lane.b32.xlu0 %v2271, 48
    %v2344 = vpop.permute.xlu0 %2343
    %v2346 = vsel %vm724, %v1945, %v2336
    %v2347 = vsel %vm164, %v2346, %v2340
    %v2348 = vsel %vm1885, %v2347, %v2344
    %v2349 = vpack.c.bf16 %v2333, %v1870
    %v2350 = vlaneseq
    %v2351 = vshrl.u32 %v2350, 7
    %v2352 = vsub.s32 7, %v2351
    %v2353 = vrot.slane %v153, %v2352
    %v2358 = vunpack.c.l.b16 %v160
    %v2359 = vunpack.c.l.b16 %v161
    %v2360 = vunpack.c.l.b16 %v162
    %v2361 = vunpack.c.l.b16 %v163
    %v2362 = vpack.c.b16 %v2359, %v2358
    %v2363 = vpack.c.b16 %v2361, %v2360
    %v2367 = vsel %vm164, %v2349, 0
    %2369 = vmatprep.subr.bf16.mxu0 0
    %2370 = vmatpush1.bf16.msra.mxu0 %v2362
    %2371 = vmatprep.subr.bf16.mxu0 0
    %2372 = vmatpush1.bf16.msra.mxu0 %v2363
    %2373 = vmatprep.subr.bf16.mxu0 0
    %2374 = vmatpush1.bf16.msra.mxu0 0
    %2375 = vmatprep.subr.bf16.mxu0 0
    %2376 = vmatpush1.bf16.msra.mxu0 0
    %2377 = vmatprep.subr.bf16.mxu0 0
    %2378 = vmatpush1.bf16.msra.mxu0 0
    %2379 = vmatprep.subr.bf16.mxu0 0
    %2380 = vmatpush1.bf16.msra.mxu0 0
    %2381 = vmatprep.subr.bf16.mxu0 0
    %2382 = vmatpush1.bf16.msra.mxu0 0
    %2383 = vmatprep.subr.bf16.mxu0 0
    %2384 = vmatpush1.bf16.msra.mxu0 0
    %2385 = vmatprep.subr.bf16.mxu0 0
    %2386 = vmatpush1.bf16.msra.mxu0 0
    %2387 = vmatprep.subr.bf16.mxu0 0
    %2388 = vmatpush1.bf16.msra.mxu0 0
    %2389 = vmatprep.subr.bf16.mxu0 0
    %2390 = vmatpush1.bf16.msra.mxu0 0
    %2391 = vmatprep.subr.bf16.mxu0 0
    %2392 = vmatpush1.bf16.msra.mxu0 0
    %2393 = vmatprep.subr.bf16.mxu0 0
    %2394 = vmatpush1.bf16.msra.mxu0 0
    %2395 = vmatprep.subr.bf16.mxu0 0
    %2396 = vmatpush1.bf16.msra.mxu0 0
    %2397 = vmatprep.subr.bf16.mxu0 0
    %2398 = vmatpush1.bf16.msra.mxu0 0
    %2399 = vmatprep.subr.bf16.mxu0 0
    %2400 = vmatpush1.bf16.msra.mxu0 0
    %2401 = vmatprep.mubr.bf16.mxu0 0
    %2402 = vmatmul.mubr.bf16.gmra.mrb[0].mxu0 %v2367
    %v2403 = vpop.f32.mrb[0].mxu0
    %v2404 = vadd.f32 %v2353, %v2403
    %v2405 = vpop.f32.mrb[0].mxu0
    %v2406 = vpop.f32.mrb[0].mxu0
    %v2407 = vadd.f32 %v2353, %v2406
    %v2408 = vpop.f32.mrb[0].mxu0
    %2409 = vdwg.mxu0
    %v2410 = vadd.f32 %v1244, %v2404
    %v2411 = vadd.f32 %v1245, %v2407
    %v2412 = vsel %vm164, %v2410, 0.0
    %2413 = vadd.xlane.f32.xlu0 %v2412
    %v2414 = vpop.xlane.xlu0 %2413
    %v2415 = vsel %vm164, %v2411, 0.0
    %2416 = vadd.xlane.f32.xlu0 %v2415
    %v2417 = vpop.xlane.xlu0 %2416
    %v2418 = vmul.f32 %v2414, %v171
    %v2419 = vmul.f32 %v2417, %v171
    %v2420 = vsub.f32 %v2410, %v2418
    %v2421 = vsub.f32 %v2411, %v2419
    %v2422 = vmul.f32 %v2420, %v2420
    %v2423 = vmul.f32 %v2421, %v2421
    %v2424 = vsel %vm164, %v2422, 0.0
    %2425 = vadd.xlane.f32.xlu0 %v2424
    %v2426 = vpop.xlane.xlu0 %2425
    %v2427 = vsel %vm164, %v2423, 0.0
    %2428 = vadd.xlane.f32.xlu0 %v2427
    %v2429 = vpop.xlane.xlu0 %2428
    %v2430 = vmul.f32 %v2426, %v171
    %v2431 = vmul.f32 %v2429, %v171
    %v2432 = vadd.f32 %v2430, 1e-05
    %v2433 = vadd.f32 %v2431, 1e-05
    %v2434 = vrsqrt.pop %v2432
    %v2435 = vrsqrt.pop %v2433
    %v2436 = vmul.f32 %v2420, %v2434
    %v2437 = vmul.f32 %v2421, %v2435
    %v2438 = vlaneseq
    %v2439 = vshrl.u32 %v2438, 7
    %v2440 = vsub.s32 4, %v2439
    %v2441 = vrot.slane %v153, %v2440
    %v2442 = vmul.f32 %v2436, %v2441
    %v2443 = vmul.f32 %v2437, %v2441
    %v2444 = vlaneseq
    %v2445 = vshrl.u32 %v2444, 7
    %v2446 = vsub.s32 5, %v2445
    %v2447 = vrot.slane %v153, %v2446
    %v2448 = vadd.f32 %v2442, %v2447
    %v2449 = vadd.f32 %v2443, %v2447
    %v2450 = vpack.c.bf16 %v2449, %v2448
    %v2451 = vld [vmem:[#allocation13] sm:$0xf]
    %v2452 = vld [vmem:[#allocation13 + $0x4] sm:$0xf]
    %v2453 = vld [vmem:[#allocation13 + $0x8] sm:$0xf]
    %v2454 = vld [vmem:[#allocation13 + $0xc] sm:$0xf]
    %v2455 = vld [vmem:[%s5] sm:$0x1]
    %v2457 = vlaneseq
    %v2458 = vshrl.u32 %v2457, 7
    %v2459 = vsub.s32 0, %v2458
    %v2460 = vrot.slane %v2455, %v2459
    %v2466 = vunpack.c.l.b16 %v2451
    %v2467 = vunpack.c.l.b16 %v2452
    %v2468 = vunpack.c.l.b16 %v2453
    %v2469 = vunpack.c.l.b16 %v2454
    %v2470 = vpack.c.b16 %v2467, %v2466
    %v2471 = vpack.c.b16 %v2469, %v2468
    %v2475 = vsel %vm164, %v2450, 0
    %2477 = vmatprep.subr.bf16.mxu0 0
    %2478 = vmatpush1.bf16.msra.mxu0 %v2470
    %2479 = vmatprep.subr.bf16.mxu0 0
    %2480 = vmatpush1.bf16.msra.mxu0 %v2471
    %2481 = vmatprep.subr.bf16.mxu0 0
    %2482 = vmatpush1.bf16.msra.mxu0 0
    %2483 = vmatprep.subr.bf16.mxu0 0
    %2484 = vmatpush1.bf16.msra.mxu0 0
    %2485 = vmatprep.subr.bf16.mxu0 0
    %2486 = vmatpush1.bf16.msra.mxu0 0
    %2487 = vmatprep.subr.bf16.mxu0 0
    %2488 = vmatpush1.bf16.msra.mxu0 0
    %2489 = vmatprep.subr.bf16.mxu0 0
    %2490 = vmatpush1.bf16.msra.mxu0 0
    %2491 = vmatprep.subr.bf16.mxu0 0
    %2492 = vmatpush1.bf16.msra.mxu0 0
    %2493 = vmatprep.subr.bf16.mxu0 0
    %2494 = vmatpush1.bf16.msra.mxu0 0
    %2495 = vmatprep.subr.bf16.mxu0 0
    %2496 = vmatpush1.bf16.msra.mxu0 0
    %2497 = vmatprep.subr.bf16.mxu0 0
    %2498 = vmatpush1.bf16.msra.mxu0 0
    %2499 = vmatprep.subr.bf16.mxu0 0
    %2500 = vmatpush1.bf16.msra.mxu0 0
    %2501 = vmatprep.subr.bf16.mxu0 0
    %2502 = vmatpush1.bf16.msra.mxu0 0
    %2503 = vmatprep.subr.bf16.mxu0 0
    %2504 = vmatpush1.bf16.msra.mxu0 0
    %2505 = vmatprep.subr.bf16.mxu0 0
    %2506 = vmatpush1.bf16.msra.mxu0 0
    %2507 = vmatprep.subr.bf16.mxu0 0
    %2508 = vmatpush1.bf16.msra.mxu0 0
    %2509 = vmatprep.mubr.bf16.mxu0 0
    %2510 = vmatmul.mubr.bf16.gmra.mrb[0].mxu0 %v2475
    %v2511 = vpop.f32.mrb[0].mxu0
    %v2512 = vadd.f32 %v2460, %v2511
    %v2513 = vpop.f32.mrb[0].mxu0
    %v2514 = vpop.f32.mrb[0].mxu0
    %v2515 = vadd.f32 %v2460, %v2514
    %v2516 = vpop.f32.mrb[0].mxu0
    %2517 = vdwg.mxu0
    %v2518 = vmax.f32 %v2512, 0.0
    %v2519 = vmax.f32 %v2515, 0.0
    %v2520 = vpack.c.bf16 %v2519, %v2518
    %v2521 = vld [vmem:[%s11] sm:$0xf]
    %v2522 = vld [vmem:[%s11 + $0x4] sm:$0xf]
    %v2523 = vld [vmem:[%s11 + $0x8] sm:$0xf]
    %v2524 = vld [vmem:[%s11 + $0xc] sm:$0xf]
    %v2525 = vld [vmem:[%s11 + $0x10] sm:$0xf]
    %v2526 = vld [vmem:[%s11 + $0x14] sm:$0xf]
    %v2527 = vld [vmem:[%s11 + $0x18] sm:$0xf]
    %v2528 = vld [vmem:[%s11 + $0x1c] sm:$0xf]
    %v2529 = vlaneseq
    %v2530 = vshrl.u32 %v2529, 7
    %v2531 = vsub.s32 0, %v2530
    %v2532 = vrot.slane %v154, %v2531
    %v2541 = vunpack.c.l.b16 %v2521
    %v2542 = vunpack.c.l.b16 %v2522
    %v2543 = vunpack.c.l.b16 %v2523
    %v2544 = vunpack.c.l.b16 %v2524
    %v2545 = vunpack.c.l.b16 %v2525
    %v2546 = vunpack.c.l.b16 %v2526
    %v2547 = vunpack.c.l.b16 %v2527
    %v2548 = vunpack.c.l.b16 %v2528
    %v2549 = vpack.c.b16 %v2542, %v2541
    %v2550 = vpack.c.b16 %v2544, %v2543
    %v2551 = vpack.c.b16 %v2546, %v2545
    %v2552 = vpack.c.b16 %v2548, %v2547
    %vm2557 = vcmask 523264
    %v2559 = vsel %vm2557, %v2520, 0
    %2561 = vmatprep.subr.bf16.mxu0 0
    %2562 = vmatpush1.bf16.msra.mxu0 %v2549
    %2563 = vmatprep.subr.bf16.mxu0 0
    %2564 = vmatpush1.bf16.msra.mxu0 %v2550
    %2565 = vmatprep.subr.bf16.mxu0 0
    %2566 = vmatpush1.bf16.msra.mxu0 %v2551
    %2567 = vmatprep.subr.bf16.mxu0 0
    %2568 = vmatpush1.bf16.msra.mxu0 %v2552
    %2569 = vmatprep.subr.bf16.mxu0 0
    %2570 = vmatpush1.bf16.msra.mxu0 0
    %2571 = vmatprep.subr.bf16.mxu0 0
    %2572 = vmatpush1.bf16.msra.mxu0 0
    %2573 = vmatprep.subr.bf16.mxu0 0
    %2574 = vmatpush1.bf16.msra.mxu0 0
    %2575 = vmatprep.subr.bf16.mxu0 0
    %2576 = vmatpush1.bf16.msra.mxu0 0
    %2577 = vmatprep.subr.bf16.mxu0 0
    %2578 = vmatpush1.bf16.msra.mxu0 0
    %2579 = vmatprep.subr.bf16.mxu0 0
    %2580 = vmatpush1.bf16.msra.mxu0 0
    %2581 = vmatprep.subr.bf16.mxu0 0
    %2582 = vmatpush1.bf16.msra.mxu0 0
    %2583 = vmatprep.subr.bf16.mxu0 0
    %2584 = vmatpush1.bf16.msra.mxu0 0
    %2585 = vmatprep.subr.bf16.mxu0 0
    %2586 = vmatpush1.bf16.msra.mxu0 0
    %2587 = vmatprep.subr.bf16.mxu0 0
    %2588 = vmatpush1.bf16.msra.mxu0 0
    %2589 = vmatprep.subr.bf16.mxu0 0
    %2590 = vmatpush1.bf16.msra.mxu0 0
    %2591 = vmatprep.subr.bf16.mxu0 0
    %2592 = vmatpush1.bf16.msra.mxu0 0
    %2593 = vmatprep.mubr.bf16.mxu0 0
    %2594 = vmatmul.mubr.bf16.gmra.mrb[0].mxu0 %v2559
    %v2595 = vpop.f32.mrb[0].mxu0
    %v2596 = vadd.f32 %v2532, %v2595
    %v2597 = vpop.f32.mrb[0].mxu0
    %v2598 = vpop.f32.mrb[0].mxu0
    %v2599 = vadd.f32 %v2532, %v2598
    %v2600 = vpop.f32.mrb[0].mxu0
    %2601 = vdwg.mxu0
    %v2602 = vadd.f32 %v2410, %v2596
    %v2603 = vadd.f32 %v2411, %v2599
    %s2604 = scalar_lea.vmem %s3, 16
    %v2605 = vld [vmem:[%s2604] sm:$0xff]
    %v2606 = vld [vmem:[%s2604 + $0x8] sm:$0xff]
    %s2607 = scalar_lea.vmem %s4, 2
    %v2608 = vld [vmem:[%s2607] sm:$0x3]
    %s2609 = scalar_lea.vmem %s9, 32
    %v2610 = vld [vmem:[%s2609] sm:$0xf]
    %v2611 = vld [vmem:[%s2609 + $0x4] sm:$0xf]
    %v2612 = vld [vmem:[%s2609 + $0x8] sm:$0xf]
    %v2613 = vld [vmem:[%s2609 + $0xc] sm:$0xf]
    %v2614 = vld [vmem:[%s2609 + $0x10] sm:$0xf]
    %v2615 = vld [vmem:[%s2609 + $0x14] sm:$0xf]
    %v2616 = vld [vmem:[%s2609 + $0x18] sm:$0xf]
    %v2617 = vld [vmem:[%s2609 + $0x1c] sm:$0xf]
    %v2618 = vsel %vm164, %v2602, 0.0
    %2619 = vadd.xlane.f32.xlu0 %v2618
    %v2620 = vpop.xlane.xlu0 %2619
    %v2621 = vsel %vm164, %v2603, 0.0
    %2622 = vadd.xlane.f32.xlu0 %v2621
    %v2623 = vpop.xlane.xlu0 %2622
    %v2624 = vmul.f32 %v2620, %v171
    %v2625 = vmul.f32 %v2623, %v171
    %v2626 = vsub.f32 %v2602, %v2624
    %v2627 = vsub.f32 %v2603, %v2625
    %v2628 = vmul.f32 %v2626, %v2626
    %v2629 = vmul.f32 %v2627, %v2627
    %v2630 = vsel %vm164, %v2628, 0.0
    %2631 = vadd.xlane.f32.xlu0 %v2630
    %v2632 = vpop.xlane.xlu0 %2631
    %v2633 = vsel %vm164, %v2629, 0.0
    %2634 = vadd.xlane.f32.xlu0 %v2633
    %v2635 = vpop.xlane.xlu0 %2634
    %v2636 = vmul.f32 %v2632, %v171
    %v2637 = vmul.f32 %v2635, %v171
    %v2638 = vadd.f32 %v2636, 1e-05
    %v2639 = vadd.f32 %v2637, 1e-05
    %v2640 = vrsqrt.pop %v2638
    %v2641 = vrsqrt.pop %v2639
    %v2642 = vmul.f32 %v2626, %v2640
    %v2643 = vmul.f32 %v2627, %v2641
    %v2644 = vlaneseq
    %v2645 = vshrl.u32 %v2644, 7
    %v2646 = vsub.s32 0, %v2645
    %v2647 = vrot.slane %v2605, %v2646
    %v2648 = vmul.f32 %v2642, %v2647
    %v2649 = vmul.f32 %v2643, %v2647
    %v2650 = vlaneseq
    %v2651 = vshrl.u32 %v2650, 7
    %v2652 = vsub.s32 1, %v2651
    %v2653 = vrot.slane %v2605, %v2652
    %v2654 = vadd.f32 %v2648, %v2653
    %v2655 = vadd.f32 %v2649, %v2653
    %v2656 = vpack.c.bf16 %v2655, %v2654
    %s2657 = scalar_lea.vmem [#allocation8], 16
    %v2658 = vld [vmem:[%s2657] sm:$0xf]
    %v2659 = vld [vmem:[%s2657 + $0x4] sm:$0xf]
    %v2660 = vld [vmem:[%s2657 + $0x8] sm:$0xf]
    %v2661 = vld [vmem:[%s2657 + $0xc] sm:$0xf]
    %v2662 = vlaneseq
    %v2663 = vshrl.u32 %v2662, 7
    %v2664 = vsub.s32 0, %v2663
    %v2665 = vrot.slane %v2608, %v2664
    %v2670 = vunpack.c.l.b16 %v2658
    %v2671 = vunpack.c.l.b16 %v2659
    %v2672 = vunpack.c.l.b16 %v2660
    %v2673 = vunpack.c.l.b16 %v2661
    %v2674 = vpack.c.b16 %v2671, %v2670
    %v2675 = vpack.c.b16 %v2673, %v2672
    %v2679 = vsel %vm164, %v2656, 0
    %2681 = vmatprep.subr.bf16.mxu0 0
    %2682 = vmatpush1.bf16.msra.mxu0 %v2674
    %2683 = vmatprep.subr.bf16.mxu0 0
    %2684 = vmatpush1.bf16.msra.mxu0 %v2675
    %2685 = vmatprep.subr.bf16.mxu0 0
    %2686 = vmatpush1.bf16.msra.mxu0 0
    %2687 = vmatprep.subr.bf16.mxu0 0
    %2688 = vmatpush1.bf16.msra.mxu0 0
    %2689 = vmatprep.subr.bf16.mxu0 0
    %2690 = vmatpush1.bf16.msra.mxu0 0
    %2691 = vmatprep.subr.bf16.mxu0 0
    %2692 = vmatpush1.bf16.msra.mxu0 0
    %2693 = vmatprep.subr.bf16.mxu0 0
    %2694 = vmatpush1.bf16.msra.mxu0 0
    %2695 = vmatprep.subr.bf16.mxu0 0
    %2696 = vmatpush1.bf16.msra.mxu0 0
    %2697 = vmatprep.subr.bf16.mxu0 0
    %2698 = vmatpush1.bf16.msra.mxu0 0
    %2699 = vmatprep.subr.bf16.mxu0 0
    %2700 = vmatpush1.bf16.msra.mxu0 0
    %2701 = vmatprep.subr.bf16.mxu0 0
    %2702 = vmatpush1.bf16.msra.mxu0 0
    %2703 = vmatprep.subr.bf16.mxu0 0
    %2704 = vmatpush1.bf16.msra.mxu0 0
    %2705 = vmatprep.subr.bf16.mxu0 0
    %2706 = vmatpush1.bf16.msra.mxu0 0
    %2707 = vmatprep.subr.bf16.mxu0 0
    %2708 = vmatpush1.bf16.msra.mxu0 0
    %2709 = vmatprep.subr.bf16.mxu0 0
    %2710 = vmatpush1.bf16.msra.mxu0 0
    %2711 = vmatprep.subr.bf16.mxu0 0
    %2712 = vmatpush1.bf16.msra.mxu0 0
    %2713 = vmatprep.mubr.bf16.mxu0 0
    %2714 = vmatmul.mubr.bf16.gmra.mrb[0].mxu0 %v2679
    %v2715 = vpop.f32.mrb[0].mxu0
    %v2716 = vadd.f32 %v2665, %v2715
    %v2717 = vpop.f32.mrb[0].mxu0
    %v2718 = vpop.f32.mrb[0].mxu0
    %v2719 = vadd.f32 %v2665, %v2718
    %v2720 = vpop.f32.mrb[0].mxu0
    %2721 = vdwg.mxu0
    %v2722 = vpack.c.bf16 %v2716, %v2716
    %2724 = vrot.lane.b32.xlu0 %v2722, 96
    %v2725 = vpop.permute.xlu0 %2724
    %v2727 = vsel %vm273, %v2722, 0
    %v2730 = vsel %vm273, %v2725, 0
    %2732 = vmatprep.subr.bf16.mxu0 0
    %2733 = vmatpush1.bf16.xpose.msra.mxu0 %v2730
    %2734 = vmatprep.subr.bf16.mxu0 0
    %2735 = vmatpush1.bf16.xpose.msra.mxu0 0
    %2736 = vmatprep.subr.bf16.mxu0 0
    %2737 = vmatpush1.bf16.xpose.msra.mxu0 0
    %2738 = vmatprep.subr.bf16.mxu0 0
    %2739 = vmatpush1.bf16.xpose.msra.mxu0 0
    %2740 = vmatprep.subr.bf16.mxu0 0
    %2741 = vmatpush1.bf16.xpose.msra.mxu0 0
    %2742 = vmatprep.subr.bf16.mxu0 0
    %2743 = vmatpush1.bf16.xpose.msra.mxu0 0
    %2744 = vmatprep.subr.bf16.mxu0 0
    %2745 = vmatpush1.bf16.xpose.msra.mxu0 0
    %2746 = vmatprep.subr.bf16.mxu0 0
    %2747 = vmatpush1.bf16.xpose.msra.mxu0 0
    %2748 = vmatprep.subr.bf16.mxu0 0
    %2749 = vmatpush1.bf16.xpose.msra.mxu0 0
    %2750 = vmatprep.subr.bf16.mxu0 0
    %2751 = vmatpush1.bf16.xpose.msra.mxu0 0
    %2752 = vmatprep.subr.bf16.mxu0 0
    %2753 = vmatpush1.bf16.xpose.msra.mxu0 0
    %2754 = vmatprep.subr.bf16.mxu0 0
    %2755 = vmatpush1.bf16.xpose.msra.mxu0 0
    %2756 = vmatprep.subr.bf16.mxu0 0
    %2757 = vmatpush1.bf16.xpose.msra.mxu0 0
    %2758 = vmatprep.subr.bf16.mxu0 0
    %2759 = vmatpush1.bf16.xpose.msra.mxu0 0
    %2760 = vmatprep.subr.bf16.mxu0 0
    %2761 = vmatpush1.bf16.xpose.msra.mxu0 0
    %2762 = vmatprep.subr.bf16.mxu0 0
    %2763 = vmatpush1.bf16.xpose.msra.mxu0 0
    %2764 = vmatprep.mubr.bf16.mxu0 0
    %2765 = vmatmul.mubr.bf16.gmra.mrb[0].mxu0 %v2727
    %v2766 = vpop.f32.mrb[0].mxu0
    %v2767 = vadd.f32 0.0, %v2766
    %v2768 = vpop.f32.mrb[0].mxu0
    %v2769 = vpop.f32.mrb[0].mxu0
    %v2770 = vpop.f32.mrb[0].mxu0
    %2771 = vdwg.mxu0
    %v2772 = vsel %vm273, %v2767, -inf
    %2773 = vmax.xlane.f32.xlu0 %v2772
    %v2774 = vpop.xlane.xlu0 %2773
    %v2775 = vsub.f32 %v2767, %v2774
    %v2776 = vmul.f32 %v2775, 1.442695
    %v2777 = vpow.pop %v2776
    %v2778 = vsel %vm273, %v2777, 0.0
    %2779 = vadd.xlane.f32.xlu0 %v2778
    %v2780 = vpop.xlane.xlu0 %2779
    %v2781 = vrcp.pop %v2780
    %v2782 = vmul.f32 %v2777, %v2781
    %v2783 = vpack.c.bf16 %v2782, %v2782
    %2784 = vrot.lane.b32.xlu0 %v2722, 64
    %v2785 = vpop.permute.xlu0 %2784
    %v2787 = vsel %vm273, %v2783, 0
    %v2790 = vsel %vm337, %v2785, 0
    %2792 = vmatprep.subr.bf16.mxu0 0
    %2793 = vmatpush1.bf16.msra.mxu0 %v2790
    %2794 = vmatprep.subr.bf16.mxu0 0
    %2795 = vmatpush1.bf16.msra.mxu0 0
    %2796 = vmatprep.subr.bf16.mxu0 0
    %2797 = vmatpush1.bf16.msra.mxu0 0
    %2798 = vmatprep.subr.bf16.mxu0 0
    %2799 = vmatpush1.bf16.msra.mxu0 0
    %2800 = vmatprep.subr.bf16.mxu0 0
    %2801 = vmatpush1.bf16.msra.mxu0 0
    %2802 = vmatprep.subr.bf16.mxu0 0
    %2803 = vmatpush1.bf16.msra.mxu0 0
    %2804 = vmatprep.subr.bf16.mxu0 0
    %2805 = vmatpush1.bf16.msra.mxu0 0
    %2806 = vmatprep.subr.bf16.mxu0 0
    %2807 = vmatpush1.bf16.msra.mxu0 0
    %2808 = vmatprep.subr.bf16.mxu0 0
    %2809 = vmatpush1.bf16.msra.mxu0 0
    %2810 = vmatprep.subr.bf16.mxu0 0
    %2811 = vmatpush1.bf16.msra.mxu0 0
    %2812 = vmatprep.subr.bf16.mxu0 0
    %2813 = vmatpush1.bf16.msra.mxu0 0
    %2814 = vmatprep.subr.bf16.mxu0 0
    %2815 = vmatpush1.bf16.msra.mxu0 0
    %2816 = vmatprep.subr.bf16.mxu0 0
    %2817 = vmatpush1.bf16.msra.mxu0 0
    %2818 = vmatprep.subr.bf16.mxu0 0
    %2819 = vmatpush1.bf16.msra.mxu0 0
    %2820 = vmatprep.subr.bf16.mxu0 0
    %2821 = vmatpush1.bf16.msra.mxu0 0
    %2822 = vmatprep.subr.bf16.mxu0 0
    %2823 = vmatpush1.bf16.msra.mxu0 0
    %2824 = vmatprep.mubr.bf16.mxu0 0
    %2825 = vmatmul.mubr.bf16.gmra.mrb[0].mxu0 %v2787
    %v2826 = vpop.f32.mrb[0].mxu0
    %v2827 = vadd.f32 0.0, %v2826
    %v2828 = vpop.f32.mrb[0].mxu0
    %v2829 = vpop.f32.mrb[0].mxu0
    %v2830 = vpop.f32.mrb[0].mxu0
    %2831 = vdwg.mxu0
    %2832 = vrot.lane.b32.xlu0 %v2722, 120
    %v2833 = vpop.permute.xlu0 %2832
    %2834 = vrot.lane.b32.xlu0 %v2722, 88
    %v2835 = vpop.permute.xlu0 %2834
    %v2837 = vsel %vm273, %v2833, 0
    %v2840 = vsel %vm273, %v2835, 0
    %2842 = vmatprep.subr.bf16.mxu0 0
    %2843 = vmatpush1.bf16.xpose.msra.mxu0 %v2840
    %2844 = vmatprep.subr.bf16.mxu0 0
    %2845 = vmatpush1.bf16.xpose.msra.mxu0 0
    %2846 = vmatprep.subr.bf16.mxu0 0
    %2847 = vmatpush1.bf16.xpose.msra.mxu0 0
    %2848 = vmatprep.subr.bf16.mxu0 0
    %2849 = vmatpush1.bf16.xpose.msra.mxu0 0
    %2850 = vmatprep.subr.bf16.mxu0 0
    %2851 = vmatpush1.bf16.xpose.msra.mxu0 0
    %2852 = vmatprep.subr.bf16.mxu0 0
    %2853 = vmatpush1.bf16.xpose.msra.mxu0 0
    %2854 = vmatprep.subr.bf16.mxu0 0
    %2855 = vmatpush1.bf16.xpose.msra.mxu0 0
    %2856 = vmatprep.subr.bf16.mxu0 0
    %2857 = vmatpush1.bf16.xpose.msra.mxu0 0
    %2858 = vmatprep.subr.bf16.mxu0 0
    %2859 = vmatpush1.bf16.xpose.msra.mxu0 0
    %2860 = vmatprep.subr.bf16.mxu0 0
    %2861 = vmatpush1.bf16.xpose.msra.mxu0 0
    %2862 = vmatprep.subr.bf16.mxu0 0
    %2863 = vmatpush1.bf16.xpose.msra.mxu0 0
    %2864 = vmatprep.subr.bf16.mxu0 0
    %2865 = vmatpush1.bf16.xpose.msra.mxu0 0
    %2866 = vmatprep.subr.bf16.mxu0 0
    %2867 = vmatpush1.bf16.xpose.msra.mxu0 0
    %2868 = vmatprep.subr.bf16.mxu0 0
    %2869 = vmatpush1.bf16.xpose.msra.mxu0 0
    %2870 = vmatprep.subr.bf16.mxu0 0
    %2871 = vmatpush1.bf16.xpose.msra.mxu0 0
    %2872 = vmatprep.subr.bf16.mxu0 0
    %2873 = vmatpush1.bf16.xpose.msra.mxu0 0
    %2874 = vmatprep.mubr.bf16.mxu0 0
    %2875 = vmatmul.mubr.bf16.gmra.mrb[0].mxu0 %v2837
    %v2876 = vpop.f32.mrb[0].mxu0
    %v2877 = vadd.f32 0.0, %v2876
    %v2878 = vpop.f32.mrb[0].mxu0
    %v2879 = vpop.f32.mrb[0].mxu0
    %v2880 = vpop.f32.mrb[0].mxu0
    %2881 = vdwg.mxu0
    %v2882 = vsel %vm273, %v2877, -inf
    %2883 = vmax.xlane.f32.xlu0 %v2882
    %v2884 = vpop.xlane.xlu0 %2883
    %v2885 = vsub.f32 %v2877, %v2884
    %v2886 = vmul.f32 %v2885, 1.442695
    %v2887 = vpow.pop %v2886
    %v2888 = vsel %vm273, %v2887, 0.0
    %2889 = vadd.xlane.f32.xlu0 %v2888
    %v2890 = vpop.xlane.xlu0 %2889
    %v2891 = vrcp.pop %v2890
    %v2892 = vmul.f32 %v2887, %v2891
    %v2893 = vpack.c.bf16 %v2892, %v2892
    %2894 = vrot.lane.b32.xlu0 %v2722, 56
    %v2895 = vpop.permute.xlu0 %2894
    %v2897 = vsel %vm273, %v2893, 0
    %v2900 = vsel %vm337, %v2895, 0
    %2902 = vmatprep.subr.bf16.mxu0 0
    %2903 = vmatpush1.bf16.msra.mxu0 %v2900
    %2904 = vmatprep.subr.bf16.mxu0 0
    %2905 = vmatpush1.bf16.msra.mxu0 0
    %2906 = vmatprep.subr.bf16.mxu0 0
    %2907 = vmatpush1.bf16.msra.mxu0 0
    %2908 = vmatprep.subr.bf16.mxu0 0
    %2909 = vmatpush1.bf16.msra.mxu0 0
    %2910 = vmatprep.subr.bf16.mxu0 0
    %2911 = vmatpush1.bf16.msra.mxu0 0
    %2912 = vmatprep.subr.bf16.mxu0 0
    %2913 = vmatpush1.bf16.msra.mxu0 0
    %2914 = vmatprep.subr.bf16.mxu0 0
    %2915 = vmatpush1.bf16.msra.mxu0 0
    %2916 = vmatprep.subr.bf16.mxu0 0
    %2917 = vmatpush1.bf16.msra.mxu0 0
    %2918 = vmatprep.subr.bf16.mxu0 0
    %2919 = vmatpush1.bf16.msra.mxu0 0
    %2920 = vmatprep.subr.bf16.mxu0 0
    %2921 = vmatpush1.bf16.msra.mxu0 0
    %2922 = vmatprep.subr.bf16.mxu0 0
    %2923 = vmatpush1.bf16.msra.mxu0 0
    %2924 = vmatprep.subr.bf16.mxu0 0
    %2925 = vmatpush1.bf16.msra.mxu0 0
    %2926 = vmatprep.subr.bf16.mxu0 0
    %2927 = vmatpush1.bf16.msra.mxu0 0
    %2928 = vmatprep.subr.bf16.mxu0 0
    %2929 = vmatpush1.bf16.msra.mxu0 0
    %2930 = vmatprep.subr.bf16.mxu0 0
    %2931 = vmatpush1.bf16.msra.mxu0 0
    %2932 = vmatprep.subr.bf16.mxu0 0
    %2933 = vmatpush1.bf16.msra.mxu0 0
    %2934 = vmatprep.mubr.bf16.mxu0 0
    %2935 = vmatmul.mubr.bf16.gmra.mrb[0].mxu0 %v2897
    %v2936 = vpop.f32.mrb[0].mxu0
    %v2937 = vadd.f32 0.0, %v2936
    %v2938 = vpop.f32.mrb[0].mxu0
    %v2939 = vpop.f32.mrb[0].mxu0
    %v2940 = vpop.f32.mrb[0].mxu0
    %2941 = vdwg.mxu0
    %2942 = vrot.lane.b32.xlu0 %v2722, 112
    %v2943 = vpop.permute.xlu0 %2942
    %2944 = vrot.lane.b32.xlu0 %v2722, 80
    %v2945 = vpop.permute.xlu0 %2944
    %v2947 = vsel %vm273, %v2943, 0
    %v2950 = vsel %vm273, %v2945, 0
    %2952 = vmatprep.subr.bf16.mxu0 0
    %2953 = vmatpush1.bf16.xpose.msra.mxu0 %v2950
    %2954 = vmatprep.subr.bf16.mxu0 0
    %2955 = vmatpush1.bf16.xpose.msra.mxu0 0
    %2956 = vmatprep.subr.bf16.mxu0 0
    %2957 = vmatpush1.bf16.xpose.msra.mxu0 0
    %2958 = vmatprep.subr.bf16.mxu0 0
    %2959 = vmatpush1.bf16.xpose.msra.mxu0 0
    %2960 = vmatprep.subr.bf16.mxu0 0
    %2961 = vmatpush1.bf16.xpose.msra.mxu0 0
    %2962 = vmatprep.subr.bf16.mxu0 0
    %2963 = vmatpush1.bf16.xpose.msra.mxu0 0
    %2964 = vmatprep.subr.bf16.mxu0 0
    %2965 = vmatpush1.bf16.xpose.msra.mxu0 0
    %2966 = vmatprep.subr.bf16.mxu0 0
    %2967 = vmatpush1.bf16.xpose.msra.mxu0 0
    %2968 = vmatprep.subr.bf16.mxu0 0
    %2969 = vmatpush1.bf16.xpose.msra.mxu0 0
    %2970 = vmatprep.subr.bf16.mxu0 0
    %2971 = vmatpush1.bf16.xpose.msra.mxu0 0
    %2972 = vmatprep.subr.bf16.mxu0 0
    %2973 = vmatpush1.bf16.xpose.msra.mxu0 0
    %2974 = vmatprep.subr.bf16.mxu0 0
    %2975 = vmatpush1.bf16.xpose.msra.mxu0 0
    %2976 = vmatprep.subr.bf16.mxu0 0
    %2977 = vmatpush1.bf16.xpose.msra.mxu0 0
    %2978 = vmatprep.subr.bf16.mxu0 0
    %2979 = vmatpush1.bf16.xpose.msra.mxu0 0
    %2980 = vmatprep.subr.bf16.mxu0 0
    %2981 = vmatpush1.bf16.xpose.msra.mxu0 0
    %2982 = vmatprep.subr.bf16.mxu0 0
    %2983 = vmatpush1.bf16.xpose.msra.mxu0 0
    %2984 = vmatprep.mubr.bf16.mxu0 0
    %2985 = vmatmul.mubr.bf16.gmra.mrb[0].mxu0 %v2947
    %v2986 = vpop.f32.mrb[0].mxu0
    %v2987 = vadd.f32 0.0, %v2986
    %v2988 = vpop.f32.mrb[0].mxu0
    %v2989 = vpop.f32.mrb[0].mxu0
    %v2990 = vpop.f32.mrb[0].mxu0
    %2991 = vdwg.mxu0
    %v2992 = vsel %vm273, %v2987, -inf
    %2993 = vmax.xlane.f32.xlu0 %v2992
    %v2994 = vpop.xlane.xlu0 %2993
    %v2995 = vsub.f32 %v2987, %v2994
    %v2996 = vmul.f32 %v2995, 1.442695
    %v2997 = vpow.pop %v2996
    %v2998 = vsel %vm273, %v2997, 0.0
    %2999 = vadd.xlane.f32.xlu0 %v2998
    %v3000 = vpop.xlane.xlu0 %2999
    %v3001 = vrcp.pop %v3000
    %v3002 = vmul.f32 %v2997, %v3001
    %v3003 = vpack.c.bf16 %v3002, %v3002
    %3004 = vrot.lane.b32.xlu0 %v2722, 48
    %v3005 = vpop.permute.xlu0 %3004
    %v3007 = vsel %vm273, %v3003, 0
    %v3010 = vsel %vm337, %v3005, 0
    %3012 = vmatprep.subr.bf16.mxu0 0
    %3013 = vmatpush1.bf16.msra.mxu0 %v3010
    %3014 = vmatprep.subr.bf16.mxu0 0
    %3015 = vmatpush1.bf16.msra.mxu0 0
    %3016 = vmatprep.subr.bf16.mxu0 0
    %3017 = vmatpush1.bf16.msra.mxu0 0
    %3018 = vmatprep.subr.bf16.mxu0 0
    %3019 = vmatpush1.bf16.msra.mxu0 0
    %3020 = vmatprep.subr.bf16.mxu0 0
    %3021 = vmatpush1.bf16.msra.mxu0 0
    %3022 = vmatprep.subr.bf16.mxu0 0
    %3023 = vmatpush1.bf16.msra.mxu0 0
    %3024 = vmatprep.subr.bf16.mxu0 0
    %3025 = vmatpush1.bf16.msra.mxu0 0
    %3026 = vmatprep.subr.bf16.mxu0 0
    %3027 = vmatpush1.bf16.msra.mxu0 0
    %3028 = vmatprep.subr.bf16.mxu0 0
    %3029 = vmatpush1.bf16.msra.mxu0 0
    %3030 = vmatprep.subr.bf16.mxu0 0
    %3031 = vmatpush1.bf16.msra.mxu0 0
    %3032 = vmatprep.subr.bf16.mxu0 0
    %3033 = vmatpush1.bf16.msra.mxu0 0
    %3034 = vmatprep.subr.bf16.mxu0 0
    %3035 = vmatpush1.bf16.msra.mxu0 0
    %3036 = vmatprep.subr.bf16.mxu0 0
    %3037 = vmatpush1.bf16.msra.mxu0 0
    %3038 = vmatprep.subr.bf16.mxu0 0
    %3039 = vmatpush1.bf16.msra.mxu0 0
    %3040 = vmatprep.subr.bf16.mxu0 0
    %3041 = vmatpush1.bf16.msra.mxu0 0
    %3042 = vmatprep.subr.bf16.mxu0 0
    %3043 = vmatpush1.bf16.msra.mxu0 0
    %3044 = vmatprep.mubr.bf16.mxu0 0
    %3045 = vmatmul.mubr.bf16.gmra.mrb[0].mxu0 %v3007
    %v3046 = vpop.f32.mrb[0].mxu0
    %v3047 = vadd.f32 0.0, %v3046
    %v3048 = vpop.f32.mrb[0].mxu0
    %v3049 = vpop.f32.mrb[0].mxu0
    %v3050 = vpop.f32.mrb[0].mxu0
    %3051 = vdwg.mxu0
    %3052 = vrot.lane.b32.xlu0 %v2722, 104
    %v3053 = vpop.permute.xlu0 %3052
    %3054 = vrot.lane.b32.xlu0 %v2722, 72
    %v3055 = vpop.permute.xlu0 %3054
    %v3057 = vsel %vm273, %v3053, 0
    %v3060 = vsel %vm273, %v3055, 0
    %3062 = vmatprep.subr.bf16.mxu0 0
    %3063 = vmatpush1.bf16.xpose.msra.mxu0 %v3060
    %3064 = vmatprep.subr.bf16.mxu0 0
    %3065 = vmatpush1.bf16.xpose.msra.mxu0 0
    %3066 = vmatprep.subr.bf16.mxu0 0
    %3067 = vmatpush1.bf16.xpose.msra.mxu0 0
    %3068 = vmatprep.subr.bf16.mxu0 0
    %3069 = vmatpush1.bf16.xpose.msra.mxu0 0
    %3070 = vmatprep.subr.bf16.mxu0 0
    %3071 = vmatpush1.bf16.xpose.msra.mxu0 0
    %3072 = vmatprep.subr.bf16.mxu0 0
    %3073 = vmatpush1.bf16.xpose.msra.mxu0 0
    %3074 = vmatprep.subr.bf16.mxu0 0
    %3075 = vmatpush1.bf16.xpose.msra.mxu0 0
    %3076 = vmatprep.subr.bf16.mxu0 0
    %3077 = vmatpush1.bf16.xpose.msra.mxu0 0
    %3078 = vmatprep.subr.bf16.mxu0 0
    %3079 = vmatpush1.bf16.xpose.msra.mxu0 0
    %3080 = vmatprep.subr.bf16.mxu0 0
    %3081 = vmatpush1.bf16.xpose.msra.mxu0 0
    %3082 = vmatprep.subr.bf16.mxu0 0
    %3083 = vmatpush1.bf16.xpose.msra.mxu0 0
    %3084 = vmatprep.subr.bf16.mxu0 0
    %3085 = vmatpush1.bf16.xpose.msra.mxu0 0
    %3086 = vmatprep.subr.bf16.mxu0 0
    %3087 = vmatpush1.bf16.xpose.msra.mxu0 0
    %3088 = vmatprep.subr.bf16.mxu0 0
    %3089 = vmatpush1.bf16.xpose.msra.mxu0 0
    %3090 = vmatprep.subr.bf16.mxu0 0
    %3091 = vmatpush1.bf16.xpose.msra.mxu0 0
    %3092 = vmatprep.subr.bf16.mxu0 0
    %3093 = vmatpush1.bf16.xpose.msra.mxu0 0
    %3094 = vmatprep.mubr.bf16.mxu0 0
    %3095 = vmatmul.mubr.bf16.gmra.mrb[0].mxu0 %v3057
    %v3096 = vpop.f32.mrb[0].mxu0
    %v3097 = vadd.f32 0.0, %v3096
    %v3098 = vpop.f32.mrb[0].mxu0
    %v3099 = vpop.f32.mrb[0].mxu0
    %v3100 = vpop.f32.mrb[0].mxu0
    %3101 = vdwg.mxu0
    %v3102 = vsel %vm273, %v3097, -inf
    %3103 = vmax.xlane.f32.xlu0 %v3102
    %v3104 = vpop.xlane.xlu0 %3103
    %v3105 = vsub.f32 %v3097, %v3104
    %v3106 = vmul.f32 %v3105, 1.442695
    %v3107 = vpow.pop %v3106
    %v3108 = vsel %vm273, %v3107, 0.0
    %3109 = vadd.xlane.f32.xlu0 %v3108
    %v3110 = vpop.xlane.xlu0 %3109
    %v3111 = vrcp.pop %v3110
    %v3112 = vmul.f32 %v3107, %v3111
    %v3113 = vpack.c.bf16 %v3112, %v3112
    %3114 = vrot.lane.b32.xlu0 %v2722, 40
    %v3115 = vpop.permute.xlu0 %3114
    %v3117 = vsel %vm273, %v3113, 0
    %v3120 = vsel %vm337, %v3115, 0
    %3122 = vmatprep.subr.bf16.mxu0 0
    %3123 = vmatpush1.bf16.msra.mxu0 %v3120
    %3124 = vmatprep.subr.bf16.mxu0 0
    %3125 = vmatpush1.bf16.msra.mxu0 0
    %3126 = vmatprep.subr.bf16.mxu0 0
    %3127 = vmatpush1.bf16.msra.mxu0 0
    %3128 = vmatprep.subr.bf16.mxu0 0
    %3129 = vmatpush1.bf16.msra.mxu0 0
    %3130 = vmatprep.subr.bf16.mxu0 0
    %3131 = vmatpush1.bf16.msra.mxu0 0
    %3132 = vmatprep.subr.bf16.mxu0 0
    %3133 = vmatpush1.bf16.msra.mxu0 0
    %3134 = vmatprep.subr.bf16.mxu0 0
    %3135 = vmatpush1.bf16.msra.mxu0 0
    %3136 = vmatprep.subr.bf16.mxu0 0
    %3137 = vmatpush1.bf16.msra.mxu0 0
    %3138 = vmatprep.subr.bf16.mxu0 0
    %3139 = vmatpush1.bf16.msra.mxu0 0
    %3140 = vmatprep.subr.bf16.mxu0 0
    %3141 = vmatpush1.bf16.msra.mxu0 0
    %3142 = vmatprep.subr.bf16.mxu0 0
    %3143 = vmatpush1.bf16.msra.mxu0 0
    %3144 = vmatprep.subr.bf16.mxu0 0
    %3145 = vmatpush1.bf16.msra.mxu0 0
    %3146 = vmatprep.subr.bf16.mxu0 0
    %3147 = vmatpush1.bf16.msra.mxu0 0
    %3148 = vmatprep.subr.bf16.mxu0 0
    %3149 = vmatpush1.bf16.msra.mxu0 0
    %3150 = vmatprep.subr.bf16.mxu0 0
    %3151 = vmatpush1.bf16.msra.mxu0 0
    %3152 = vmatprep.subr.bf16.mxu0 0
    %3153 = vmatpush1.bf16.msra.mxu0 0
    %3154 = vmatprep.mubr.bf16.mxu0 0
    %3155 = vmatmul.mubr.bf16.gmra.mrb[0].mxu0 %v3117
    %v3156 = vpop.f32.mrb[0].mxu0
    %v3157 = vadd.f32 0.0, %v3156
    %v3158 = vpop.f32.mrb[0].mxu0
    %v3159 = vpop.f32.mrb[0].mxu0
    %v3160 = vpop.f32.mrb[0].mxu0
    %3161 = vdwg.mxu0
    %3163 = vrot.lane.b32.xlu0 %v2937, 8
    %v3164 = vpop.permute.xlu0 %3163
    %3167 = vrot.lane.b32.xlu0 %v3047, 16
    %v3168 = vpop.permute.xlu0 %3167
    %3171 = vrot.lane.b32.xlu0 %v3157, 24
    %v3172 = vpop.permute.xlu0 %3171
    %v3174 = vsel %vm273, %v2827, %v3164
    %v3175 = vsel %vm724, %v3174, %v3168
    %v3176 = vsel %vm726, %v3175, %v3172
    %v3177 = vpack.c.bf16 %v2719, %v2719
    %3179 = vrot.lane.b32.xlu0 %v3177, 96
    %v3180 = vpop.permute.xlu0 %3179
    %v3182 = vsel %vm273, %v3177, 0
    %v3185 = vsel %vm273, %v3180, 0
    %3187 = vmatprep.subr.bf16.mxu0 0
    %3188 = vmatpush1.bf16.xpose.msra.mxu0 %v3185
    %3189 = vmatprep.subr.bf16.mxu0 0
    %3190 = vmatpush1.bf16.xpose.msra.mxu0 0
    %3191 = vmatprep.subr.bf16.mxu0 0
    %3192 = vmatpush1.bf16.xpose.msra.mxu0 0
    %3193 = vmatprep.subr.bf16.mxu0 0
    %3194 = vmatpush1.bf16.xpose.msra.mxu0 0
    %3195 = vmatprep.subr.bf16.mxu0 0
    %3196 = vmatpush1.bf16.xpose.msra.mxu0 0
    %3197 = vmatprep.subr.bf16.mxu0 0
    %3198 = vmatpush1.bf16.xpose.msra.mxu0 0
    %3199 = vmatprep.subr.bf16.mxu0 0
    %3200 = vmatpush1.bf16.xpose.msra.mxu0 0
    %3201 = vmatprep.subr.bf16.mxu0 0
    %3202 = vmatpush1.bf16.xpose.msra.mxu0 0
    %3203 = vmatprep.subr.bf16.mxu0 0
    %3204 = vmatpush1.bf16.xpose.msra.mxu0 0
    %3205 = vmatprep.subr.bf16.mxu0 0
    %3206 = vmatpush1.bf16.xpose.msra.mxu0 0
    %3207 = vmatprep.subr.bf16.mxu0 0
    %3208 = vmatpush1.bf16.xpose.msra.mxu0 0
    %3209 = vmatprep.subr.bf16.mxu0 0
    %3210 = vmatpush1.bf16.xpose.msra.mxu0 0
    %3211 = vmatprep.subr.bf16.mxu0 0
    %3212 = vmatpush1.bf16.xpose.msra.mxu0 0
    %3213 = vmatprep.subr.bf16.mxu0 0
    %3214 = vmatpush1.bf16.xpose.msra.mxu0 0
    %3215 = vmatprep.subr.bf16.mxu0 0
    %3216 = vmatpush1.bf16.xpose.msra.mxu0 0
    %3217 = vmatprep.subr.bf16.mxu0 0
    %3218 = vmatpush1.bf16.xpose.msra.mxu0 0
    %3219 = vmatprep.mubr.bf16.mxu0 0
    %3220 = vmatmul.mubr.bf16.gmra.mrb[0].mxu0 %v3182
    %v3221 = vpop.f32.mrb[0].mxu0
    %v3222 = vadd.f32 0.0, %v3221
    %v3223 = vpop.f32.mrb[0].mxu0
    %v3224 = vpop.f32.mrb[0].mxu0
    %v3225 = vpop.f32.mrb[0].mxu0
    %3226 = vdwg.mxu0
    %v3227 = vsel %vm273, %v3222, -inf
    %3228 = vmax.xlane.f32.xlu0 %v3227
    %v3229 = vpop.xlane.xlu0 %3228
    %v3230 = vsub.f32 %v3222, %v3229
    %v3231 = vmul.f32 %v3230, 1.442695
    %v3232 = vpow.pop %v3231
    %v3233 = vsel %vm273, %v3232, 0.0
    %3234 = vadd.xlane.f32.xlu0 %v3233
    %v3235 = vpop.xlane.xlu0 %3234
    %v3236 = vrcp.pop %v3235
    %v3237 = vmul.f32 %v3232, %v3236
    %v3238 = vpack.c.bf16 %v3237, %v3237
    %3239 = vrot.lane.b32.xlu0 %v3177, 64
    %v3240 = vpop.permute.xlu0 %3239
    %v3242 = vsel %vm273, %v3238, 0
    %v3245 = vsel %vm337, %v3240, 0
    %3247 = vmatprep.subr.bf16.mxu0 0
    %3248 = vmatpush1.bf16.msra.mxu0 %v3245
    %3249 = vmatprep.subr.bf16.mxu0 0
    %3250 = vmatpush1.bf16.msra.mxu0 0
    %3251 = vmatprep.subr.bf16.mxu0 0
    %3252 = vmatpush1.bf16.msra.mxu0 0
    %3253 = vmatprep.subr.bf16.mxu0 0
    %3254 = vmatpush1.bf16.msra.mxu0 0
    %3255 = vmatprep.subr.bf16.mxu0 0
    %3256 = vmatpush1.bf16.msra.mxu0 0
    %3257 = vmatprep.subr.bf16.mxu0 0
    %3258 = vmatpush1.bf16.msra.mxu0 0
    %3259 = vmatprep.subr.bf16.mxu0 0
    %3260 = vmatpush1.bf16.msra.mxu0 0
    %3261 = vmatprep.subr.bf16.mxu0 0
    %3262 = vmatpush1.bf16.msra.mxu0 0
    %3263 = vmatprep.subr.bf16.mxu0 0
    %3264 = vmatpush1.bf16.msra.mxu0 0
    %3265 = vmatprep.subr.bf16.mxu0 0
    %3266 = vmatpush1.bf16.msra.mxu0 0
    %3267 = vmatprep.subr.bf16.mxu0 0
    %3268 = vmatpush1.bf16.msra.mxu0 0
    %3269 = vmatprep.subr.bf16.mxu0 0
    %3270 = vmatpush1.bf16.msra.mxu0 0
    %3271 = vmatprep.subr.bf16.mxu0 0
    %3272 = vmatpush1.bf16.msra.mxu0 0
    %3273 = vmatprep.subr.bf16.mxu0 0
    %3274 = vmatpush1.bf16.msra.mxu0 0
    %3275 = vmatprep.subr.bf16.mxu0 0
    %3276 = vmatpush1.bf16.msra.mxu0 0
    %3277 = vmatprep.subr.bf16.mxu0 0
    %3278 = vmatpush1.bf16.msra.mxu0 0
    %3279 = vmatprep.mubr.bf16.mxu0 0
    %3280 = vmatmul.mubr.bf16.gmra.mrb[0].mxu0 %v3242
    %v3281 = vpop.f32.mrb[0].mxu0
    %v3282 = vadd.f32 0.0, %v3281
    %v3283 = vpop.f32.mrb[0].mxu0
    %v3284 = vpop.f32.mrb[0].mxu0
    %v3285 = vpop.f32.mrb[0].mxu0
    %3286 = vdwg.mxu0
    %3287 = vrot.lane.b32.xlu0 %v3177, 120
    %v3288 = vpop.permute.xlu0 %3287
    %3289 = vrot.lane.b32.xlu0 %v3177, 88
    %v3290 = vpop.permute.xlu0 %3289
    %v3292 = vsel %vm273, %v3288, 0
    %v3295 = vsel %vm273, %v3290, 0
    %3297 = vmatprep.subr.bf16.mxu0 0
    %3298 = vmatpush1.bf16.xpose.msra.mxu0 %v3295
    %3299 = vmatprep.subr.bf16.mxu0 0
    %3300 = vmatpush1.bf16.xpose.msra.mxu0 0
    %3301 = vmatprep.subr.bf16.mxu0 0
    %3302 = vmatpush1.bf16.xpose.msra.mxu0 0
    %3303 = vmatprep.subr.bf16.mxu0 0
    %3304 = vmatpush1.bf16.xpose.msra.mxu0 0
    %3305 = vmatprep.subr.bf16.mxu0 0
    %3306 = vmatpush1.bf16.xpose.msra.mxu0 0
    %3307 = vmatprep.subr.bf16.mxu0 0
    %3308 = vmatpush1.bf16.xpose.msra.mxu0 0
    %3309 = vmatprep.subr.bf16.mxu0 0
    %3310 = vmatpush1.bf16.xpose.msra.mxu0 0
    %3311 = vmatprep.subr.bf16.mxu0 0
    %3312 = vmatpush1.bf16.xpose.msra.mxu0 0
    %3313 = vmatprep.subr.bf16.mxu0 0
    %3314 = vmatpush1.bf16.xpose.msra.mxu0 0
    %3315 = vmatprep.subr.bf16.mxu0 0
    %3316 = vmatpush1.bf16.xpose.msra.mxu0 0
    %3317 = vmatprep.subr.bf16.mxu0 0
    %3318 = vmatpush1.bf16.xpose.msra.mxu0 0
    %3319 = vmatprep.subr.bf16.mxu0 0
    %3320 = vmatpush1.bf16.xpose.msra.mxu0 0
    %3321 = vmatprep.subr.bf16.mxu0 0
    %3322 = vmatpush1.bf16.xpose.msra.mxu0 0
    %3323 = vmatprep.subr.bf16.mxu0 0
    %3324 = vmatpush1.bf16.xpose.msra.mxu0 0
    %3325 = vmatprep.subr.bf16.mxu0 0
    %3326 = vmatpush1.bf16.xpose.msra.mxu0 0
    %3327 = vmatprep.subr.bf16.mxu0 0
    %3328 = vmatpush1.bf16.xpose.msra.mxu0 0
    %3329 = vmatprep.mubr.bf16.mxu0 0
    %3330 = vmatmul.mubr.bf16.gmra.mrb[0].mxu0 %v3292
    %v3331 = vpop.f32.mrb[0].mxu0
    %v3332 = vadd.f32 0.0, %v3331
    %v3333 = vpop.f32.mrb[0].mxu0
    %v3334 = vpop.f32.mrb[0].mxu0
    %v3335 = vpop.f32.mrb[0].mxu0
    %3336 = vdwg.mxu0
    %v3337 = vsel %vm273, %v3332, -inf
    %3338 = vmax.xlane.f32.xlu0 %v3337
    %v3339 = vpop.xlane.xlu0 %3338
    %v3340 = vsub.f32 %v3332, %v3339
    %v3341 = vmul.f32 %v3340, 1.442695
    %v3342 = vpow.pop %v3341
    %v3343 = vsel %vm273, %v3342, 0.0
    %3344 = vadd.xlane.f32.xlu0 %v3343
    %v3345 = vpop.xlane.xlu0 %3344
    %v3346 = vrcp.pop %v3345
    %v3347 = vmul.f32 %v3342, %v3346
    %v3348 = vpack.c.bf16 %v3347, %v3347
    %3349 = vrot.lane.b32.xlu0 %v3177, 56
    %v3350 = vpop.permute.xlu0 %3349
    %v3352 = vsel %vm273, %v3348, 0
    %v3355 = vsel %vm337, %v3350, 0
    %3357 = vmatprep.subr.bf16.mxu0 0
    %3358 = vmatpush1.bf16.msra.mxu0 %v3355
    %3359 = vmatprep.subr.bf16.mxu0 0
    %3360 = vmatpush1.bf16.msra.mxu0 0
    %3361 = vmatprep.subr.bf16.mxu0 0
    %3362 = vmatpush1.bf16.msra.mxu0 0
    %3363 = vmatprep.subr.bf16.mxu0 0
    %3364 = vmatpush1.bf16.msra.mxu0 0
    %3365 = vmatprep.subr.bf16.mxu0 0
    %3366 = vmatpush1.bf16.msra.mxu0 0
    %3367 = vmatprep.subr.bf16.mxu0 0
    %3368 = vmatpush1.bf16.msra.mxu0 0
    %3369 = vmatprep.subr.bf16.mxu0 0
    %3370 = vmatpush1.bf16.msra.mxu0 0
    %3371 = vmatprep.subr.bf16.mxu0 0
    %3372 = vmatpush1.bf16.msra.mxu0 0
    %3373 = vmatprep.subr.bf16.mxu0 0
    %3374 = vmatpush1.bf16.msra.mxu0 0
    %3375 = vmatprep.subr.bf16.mxu0 0
    %3376 = vmatpush1.bf16.msra.mxu0 0
    %3377 = vmatprep.subr.bf16.mxu0 0
    %3378 = vmatpush1.bf16.msra.mxu0 0
    %3379 = vmatprep.subr.bf16.mxu0 0
    %3380 = vmatpush1.bf16.msra.mxu0 0
    %3381 = vmatprep.subr.bf16.mxu0 0
    %3382 = vmatpush1.bf16.msra.mxu0 0
    %3383 = vmatprep.subr.bf16.mxu0 0
    %3384 = vmatpush1.bf16.msra.mxu0 0
    %3385 = vmatprep.subr.bf16.mxu0 0
    %3386 = vmatpush1.bf16.msra.mxu0 0
    %3387 = vmatprep.subr.bf16.mxu0 0
    %3388 = vmatpush1.bf16.msra.mxu0 0
    %3389 = vmatprep.mubr.bf16.mxu0 0
    %3390 = vmatmul.mubr.bf16.gmra.mrb[0].mxu0 %v3352
    %v3391 = vpop.f32.mrb[0].mxu0
    %v3392 = vadd.f32 0.0, %v3391
    %v3393 = vpop.f32.mrb[0].mxu0
    %v3394 = vpop.f32.mrb[0].mxu0
    %v3395 = vpop.f32.mrb[0].mxu0
    %3396 = vdwg.mxu0
    %3397 = vrot.lane.b32.xlu0 %v3177, 112
    %v3398 = vpop.permute.xlu0 %3397
    %3399 = vrot.lane.b32.xlu0 %v3177, 80
    %v3400 = vpop.permute.xlu0 %3399
    %v3402 = vsel %vm273, %v3398, 0
    %v3405 = vsel %vm273, %v3400, 0
    %3407 = vmatprep.subr.bf16.mxu0 0
    %3408 = vmatpush1.bf16.xpose.msra.mxu0 %v3405
    %3409 = vmatprep.subr.bf16.mxu0 0
    %3410 = vmatpush1.bf16.xpose.msra.mxu0 0
    %3411 = vmatprep.subr.bf16.mxu0 0
    %3412 = vmatpush1.bf16.xpose.msra.mxu0 0
    %3413 = vmatprep.subr.bf16.mxu0 0
    %3414 = vmatpush1.bf16.xpose.msra.mxu0 0
    %3415 = vmatprep.subr.bf16.mxu0 0
    %3416 = vmatpush1.bf16.xpose.msra.mxu0 0
    %3417 = vmatprep.subr.bf16.mxu0 0
    %3418 = vmatpush1.bf16.xpose.msra.mxu0 0
    %3419 = vmatprep.subr.bf16.mxu0 0
    %3420 = vmatpush1.bf16.xpose.msra.mxu0 0
    %3421 = vmatprep.subr.bf16.mxu0 0
    %3422 = vmatpush1.bf16.xpose.msra.mxu0 0
    %3423 = vmatprep.subr.bf16.mxu0 0
    %3424 = vmatpush1.bf16.xpose.msra.mxu0 0
    %3425 = vmatprep.subr.bf16.mxu0 0
    %3426 = vmatpush1.bf16.xpose.msra.mxu0 0
    %3427 = vmatprep.subr.bf16.mxu0 0
    %3428 = vmatpush1.bf16.xpose.msra.mxu0 0
    %3429 = vmatprep.subr.bf16.mxu0 0
    %3430 = vmatpush1.bf16.xpose.msra.mxu0 0
    %3431 = vmatprep.subr.bf16.mxu0 0
    %3432 = vmatpush1.bf16.xpose.msra.mxu0 0
    %3433 = vmatprep.subr.bf16.mxu0 0
    %3434 = vmatpush1.bf16.xpose.msra.mxu0 0
    %3435 = vmatprep.subr.bf16.mxu0 0
    %3436 = vmatpush1.bf16.xpose.msra.mxu0 0
    %3437 = vmatprep.subr.bf16.mxu0 0
    %3438 = vmatpush1.bf16.xpose.msra.mxu0 0
    %3439 = vmatprep.mubr.bf16.mxu0 0
    %3440 = vmatmul.mubr.bf16.gmra.mrb[0].mxu0 %v3402
    %v3441 = vpop.f32.mrb[0].mxu0
    %v3442 = vadd.f32 0.0, %v3441
    %v3443 = vpop.f32.mrb[0].mxu0
    %v3444 = vpop.f32.mrb[0].mxu0
    %v3445 = vpop.f32.mrb[0].mxu0
    %3446 = vdwg.mxu0
    %v3447 = vsel %vm273, %v3442, -inf
    %3448 = vmax.xlane.f32.xlu0 %v3447
    %v3449 = vpop.xlane.xlu0 %3448
    %v3450 = vsub.f32 %v3442, %v3449
    %v3451 = vmul.f32 %v3450, 1.442695
    %v3452 = vpow.pop %v3451
    %v3453 = vsel %vm273, %v3452, 0.0
    %3454 = vadd.xlane.f32.xlu0 %v3453
    %v3455 = vpop.xlane.xlu0 %3454
    %v3456 = vrcp.pop %v3455
    %v3457 = vmul.f32 %v3452, %v3456
    %v3458 = vpack.c.bf16 %v3457, %v3457
    %3459 = vrot.lane.b32.xlu0 %v3177, 48
    %v3460 = vpop.permute.xlu0 %3459
    %v3462 = vsel %vm273, %v3458, 0
    %v3465 = vsel %vm337, %v3460, 0
    %3467 = vmatprep.subr.bf16.mxu0 0
    %3468 = vmatpush1.bf16.msra.mxu0 %v3465
    %3469 = vmatprep.subr.bf16.mxu0 0
    %3470 = vmatpush1.bf16.msra.mxu0 0
    %3471 = vmatprep.subr.bf16.mxu0 0
    %3472 = vmatpush1.bf16.msra.mxu0 0
    %3473 = vmatprep.subr.bf16.mxu0 0
    %3474 = vmatpush1.bf16.msra.mxu0 0
    %3475 = vmatprep.subr.bf16.mxu0 0
    %3476 = vmatpush1.bf16.msra.mxu0 0
    %3477 = vmatprep.subr.bf16.mxu0 0
    %3478 = vmatpush1.bf16.msra.mxu0 0
    %3479 = vmatprep.subr.bf16.mxu0 0
    %3480 = vmatpush1.bf16.msra.mxu0 0
    %3481 = vmatprep.subr.bf16.mxu0 0
    %3482 = vmatpush1.bf16.msra.mxu0 0
    %3483 = vmatprep.subr.bf16.mxu0 0
    %3484 = vmatpush1.bf16.msra.mxu0 0
    %3485 = vmatprep.subr.bf16.mxu0 0
    %3486 = vmatpush1.bf16.msra.mxu0 0
    %3487 = vmatprep.subr.bf16.mxu0 0
    %3488 = vmatpush1.bf16.msra.mxu0 0
    %3489 = vmatprep.subr.bf16.mxu0 0
    %3490 = vmatpush1.bf16.msra.mxu0 0
    %3491 = vmatprep.subr.bf16.mxu0 0
    %3492 = vmatpush1.bf16.msra.mxu0 0
    %3493 = vmatprep.subr.bf16.mxu0 0
    %3494 = vmatpush1.bf16.msra.mxu0 0
    %3495 = vmatprep.subr.bf16.mxu0 0
    %3496 = vmatpush1.bf16.msra.mxu0 0
    %3497 = vmatprep.subr.bf16.mxu0 0
    %3498 = vmatpush1.bf16.msra.mxu0 0
    %3499 = vmatprep.mubr.bf16.mxu0 0
    %3500 = vmatmul.mubr.bf16.gmra.mrb[0].mxu0 %v3462
    %v3501 = vpop.f32.mrb[0].mxu0
    %v3502 = vadd.f32 0.0, %v3501
    %v3503 = vpop.f32.mrb[0].mxu0
    %v3504 = vpop.f32.mrb[0].mxu0
    %v3505 = vpop.f32.mrb[0].mxu0
    %3506 = vdwg.mxu0
    %3507 = vrot.lane.b32.xlu0 %v3177, 104
    %v3508 = vpop.permute.xlu0 %3507
    %3509 = vrot.lane.b32.xlu0 %v3177, 72
    %v3510 = vpop.permute.xlu0 %3509
    %v3512 = vsel %vm273, %v3508, 0
    %v3515 = vsel %vm273, %v3510, 0
    %3517 = vmatprep.subr.bf16.mxu0 0
    %3518 = vmatpush1.bf16.xpose.msra.mxu0 %v3515
    %3519 = vmatprep.subr.bf16.mxu0 0
    %3520 = vmatpush1.bf16.xpose.msra.mxu0 0
    %3521 = vmatprep.subr.bf16.mxu0 0
    %3522 = vmatpush1.bf16.xpose.msra.mxu0 0
    %3523 = vmatprep.subr.bf16.mxu0 0
    %3524 = vmatpush1.bf16.xpose.msra.mxu0 0
    %3525 = vmatprep.subr.bf16.mxu0 0
    %3526 = vmatpush1.bf16.xpose.msra.mxu0 0
    %3527 = vmatprep.subr.bf16.mxu0 0
    %3528 = vmatpush1.bf16.xpose.msra.mxu0 0
    %3529 = vmatprep.subr.bf16.mxu0 0
    %3530 = vmatpush1.bf16.xpose.msra.mxu0 0
    %3531 = vmatprep.subr.bf16.mxu0 0
    %3532 = vmatpush1.bf16.xpose.msra.mxu0 0
    %3533 = vmatprep.subr.bf16.mxu0 0
    %3534 = vmatpush1.bf16.xpose.msra.mxu0 0
    %3535 = vmatprep.subr.bf16.mxu0 0
    %3536 = vmatpush1.bf16.xpose.msra.mxu0 0
    %3537 = vmatprep.subr.bf16.mxu0 0
    %3538 = vmatpush1.bf16.xpose.msra.mxu0 0
    %3539 = vmatprep.subr.bf16.mxu0 0
    %3540 = vmatpush1.bf16.xpose.msra.mxu0 0
    %3541 = vmatprep.subr.bf16.mxu0 0
    %3542 = vmatpush1.bf16.xpose.msra.mxu0 0
    %3543 = vmatprep.subr.bf16.mxu0 0
    %3544 = vmatpush1.bf16.xpose.msra.mxu0 0
    %3545 = vmatprep.subr.bf16.mxu0 0
    %3546 = vmatpush1.bf16.xpose.msra.mxu0 0
    %3547 = vmatprep.subr.bf16.mxu0 0
    %3548 = vmatpush1.bf16.xpose.msra.mxu0 0
    %3549 = vmatprep.mubr.bf16.mxu0 0
    %3550 = vmatmul.mubr.bf16.gmra.mrb[0].mxu0 %v3512
    %v3551 = vpop.f32.mrb[0].mxu0
    %v3552 = vadd.f32 0.0, %v3551
    %v3553 = vpop.f32.mrb[0].mxu0
    %v3554 = vpop.f32.mrb[0].mxu0
    %v3555 = vpop.f32.mrb[0].mxu0
    %3556 = vdwg.mxu0
    %v3557 = vsel %vm273, %v3552, -inf
    %3558 = vmax.xlane.f32.xlu0 %v3557
    %v3559 = vpop.xlane.xlu0 %3558
    %v3560 = vsub.f32 %v3552, %v3559
    %v3561 = vmul.f32 %v3560, 1.442695
    %v3562 = vpow.pop %v3561
    %v3563 = vsel %vm273, %v3562, 0.0
    %3564 = vadd.xlane.f32.xlu0 %v3563
    %v3565 = vpop.xlane.xlu0 %3564
    %v3566 = vrcp.pop %v3565
    %v3567 = vmul.f32 %v3562, %v3566
    %v3568 = vpack.c.bf16 %v3567, %v3567
    %3569 = vrot.lane.b32.xlu0 %v3177, 40
    %v3570 = vpop.permute.xlu0 %3569
    %v3572 = vsel %vm273, %v3568, 0
    %v3575 = vsel %vm337, %v3570, 0
    %3577 = vmatprep.subr.bf16.mxu0 0
    %3578 = vmatpush1.bf16.msra.mxu0 %v3575
    %3579 = vmatprep.subr.bf16.mxu0 0
    %3580 = vmatpush1.bf16.msra.mxu0 0
    %3581 = vmatprep.subr.bf16.mxu0 0
    %3582 = vmatpush1.bf16.msra.mxu0 0
    %3583 = vmatprep.subr.bf16.mxu0 0
    %3584 = vmatpush1.bf16.msra.mxu0 0
    %3585 = vmatprep.subr.bf16.mxu0 0
    %3586 = vmatpush1.bf16.msra.mxu0 0
    %3587 = vmatprep.subr.bf16.mxu0 0
    %3588 = vmatpush1.bf16.msra.mxu0 0
    %3589 = vmatprep.subr.bf16.mxu0 0
    %3590 = vmatpush1.bf16.msra.mxu0 0
    %3591 = vmatprep.subr.bf16.mxu0 0
    %3592 = vmatpush1.bf16.msra.mxu0 0
    %3593 = vmatprep.subr.bf16.mxu0 0
    %3594 = vmatpush1.bf16.msra.mxu0 0
    %3595 = vmatprep.subr.bf16.mxu0 0
    %3596 = vmatpush1.bf16.msra.mxu0 0
    %3597 = vmatprep.subr.bf16.mxu0 0
    %3598 = vmatpush1.bf16.msra.mxu0 0
    %3599 = vmatprep.subr.bf16.mxu0 0
    %3600 = vmatpush1.bf16.msra.mxu0 0
    %3601 = vmatprep.subr.bf16.mxu0 0
    %3602 = vmatpush1.bf16.msra.mxu0 0
    %3603 = vmatprep.subr.bf16.mxu0 0
    %3604 = vmatpush1.bf16.msra.mxu0 0
    %3605 = vmatprep.subr.bf16.mxu0 0
    %3606 = vmatpush1.bf16.msra.mxu0 0
    %3607 = vmatprep.subr.bf16.mxu0 0
    %3608 = vmatpush1.bf16.msra.mxu0 0
    %3609 = vmatprep.mubr.bf16.mxu0 0
    %3610 = vmatmul.mubr.bf16.gmra.mrb[0].mxu0 %v3572
    %v3611 = vpop.f32.mrb[0].mxu0
    %v3612 = vadd.f32 0.0, %v3611
    %v3613 = vpop.f32.mrb[0].mxu0
    %v3614 = vpop.f32.mrb[0].mxu0
    %v3615 = vpop.f32.mrb[0].mxu0
    %3616 = vdwg.mxu0
    %3618 = vrot.lane.b32.xlu0 %v3392, 8
    %v3619 = vpop.permute.xlu0 %3618
    %3622 = vrot.lane.b32.xlu0 %v3502, 16
    %v3623 = vpop.permute.xlu0 %3622
    %3626 = vrot.lane.b32.xlu0 %v3612, 24
    %v3627 = vpop.permute.xlu0 %3626
    %v3629 = vsel %vm273, %v3282, %v3619
    %v3630 = vsel %vm724, %v3629, %v3623
    %v3631 = vsel %vm726, %v3630, %v3627
    %v3632 = vpack.c.bf16 %v3631, %v3176
    %v3633 = vlaneseq
    %v3634 = vshrl.u32 %v3633, 7
    %v3635 = vsub.s32 6, %v3634
    %v3636 = vrot.slane %v2605, %v3635
    %v3641 = vunpack.c.l.b16 %v2610
    %v3642 = vunpack.c.l.b16 %v2611
    %v3643 = vunpack.c.l.b16 %v2612
    %v3644 = vunpack.c.l.b16 %v2613
    %v3645 = vpack.c.b16 %v3642, %v3641
    %v3646 = vpack.c.b16 %v3644, %v3643
    %v3650 = vsel %vm164, %v3632, 0
    %3652 = vmatprep.subr.bf16.mxu0 0
    %3653 = vmatpush1.bf16.msra.mxu0 %v3645
    %3654 = vmatprep.subr.bf16.mxu0 0
    %3655 = vmatpush1.bf16.msra.mxu0 %v3646
    %3656 = vmatprep.subr.bf16.mxu0 0
    %3657 = vmatpush1.bf16.msra.mxu0 0
    %3658 = vmatprep.subr.bf16.mxu0 0
    %3659 = vmatpush1.bf16.msra.mxu0 0
    %3660 = vmatprep.subr.bf16.mxu0 0
    %3661 = vmatpush1.bf16.msra.mxu0 0
    %3662 = vmatprep.subr.bf16.mxu0 0
    %3663 = vmatpush1.bf16.msra.mxu0 0
    %3664 = vmatprep.subr.bf16.mxu0 0
    %3665 = vmatpush1.bf16.msra.mxu0 0
    %3666 = vmatprep.subr.bf16.mxu0 0
    %3667 = vmatpush1.bf16.msra.mxu0 0
    %3668 = vmatprep.subr.bf16.mxu0 0
    %3669 = vmatpush1.bf16.msra.mxu0 0
    %3670 = vmatprep.subr.bf16.mxu0 0
    %3671 = vmatpush1.bf16.msra.mxu0 0
    %3672 = vmatprep.subr.bf16.mxu0 0
    %3673 = vmatpush1.bf16.msra.mxu0 0
    %3674 = vmatprep.subr.bf16.mxu0 0
    %3675 = vmatpush1.bf16.msra.mxu0 0
    %3676 = vmatprep.subr.bf16.mxu0 0
    %3677 = vmatpush1.bf16.msra.mxu0 0
    %3678 = vmatprep.subr.bf16.mxu0 0
    %3679 = vmatpush1.bf16.msra.mxu0 0
    %3680 = vmatprep.subr.bf16.mxu0 0
    %3681 = vmatpush1.bf16.msra.mxu0 0
    %3682 = vmatprep.subr.bf16.mxu0 0
    %3683 = vmatpush1.bf16.msra.mxu0 0
    %3684 = vmatprep.mubr.bf16.mxu0 0
    %3685 = vmatmul.mubr.bf16.gmra.mrb[0].mxu0 %v3650
    %v3686 = vpop.f32.mrb[0].mxu0
    %v3687 = vadd.f32 %v3636, %v3686
    %v3688 = vpop.f32.mrb[0].mxu0
    %v3689 = vpop.f32.mrb[0].mxu0
    %v3690 = vadd.f32 %v3636, %v3689
    %v3691 = vpop.f32.mrb[0].mxu0
    %3692 = vdwg.mxu0
    %v3693 = vadd.f32 %v2602, %v3687
    %v3694 = vadd.f32 %v2603, %v3690
    %v3695 = vsel %vm164, %v3693, 0.0
    %3696 = vadd.xlane.f32.xlu0 %v3695
    %v3697 = vpop.xlane.xlu0 %3696
    %v3698 = vsel %vm164, %v3694, 0.0
    %3699 = vadd.xlane.f32.xlu0 %v3698
    %v3700 = vpop.xlane.xlu0 %3699
    %v3701 = vmul.f32 %v3697, %v171
    %v3702 = vmul.f32 %v3700, %v171
    %v3703 = vsub.f32 %v3693, %v3701
    %v3704 = vsub.f32 %v3694, %v3702
    %v3705 = vmul.f32 %v3703, %v3703
    %v3706 = vmul.f32 %v3704, %v3704
    %v3707 = vsel %vm164, %v3705, 0.0
    %3708 = vadd.xlane.f32.xlu0 %v3707
    %v3709 = vpop.xlane.xlu0 %3708
    %v3710 = vsel %vm164, %v3706, 0.0
    %3711 = vadd.xlane.f32.xlu0 %v3710
    %v3712 = vpop.xlane.xlu0 %3711
    %v3713 = vmul.f32 %v3709, %v171
    %v3714 = vmul.f32 %v3712, %v171
    %v3715 = vadd.f32 %v3713, 1e-05
    %v3716 = vadd.f32 %v3714, 1e-05
    %v3717 = vrsqrt.pop %v3715
    %v3718 = vrsqrt.pop %v3716
    %v3719 = vmul.f32 %v3703, %v3717
    %v3720 = vmul.f32 %v3704, %v3718
    %v3721 = vlaneseq
    %v3722 = vshrl.u32 %v3721, 7
    %v3723 = vsub.s32 2, %v3722
    %v3724 = vrot.slane %v2605, %v3723
    %v3725 = vmul.f32 %v3719, %v3724
    %v3726 = vmul.f32 %v3720, %v3724
    %v3727 = vlaneseq
    %v3728 = vshrl.u32 %v3727, 7
    %v3729 = vsub.s32 3, %v3728
    %v3730 = vrot.slane %v2605, %v3729
    %v3731 = vadd.f32 %v3725, %v3730
    %v3732 = vadd.f32 %v3726, %v3730
    %v3733 = vpack.c.bf16 %v3732, %v3731
    %s3734 = scalar_lea.vmem [#allocation10], 16
    %v3735 = vld [vmem:[%s3734] sm:$0xf]
    %v3736 = vld [vmem:[%s3734 + $0x4] sm:$0xf]
    %v3737 = vld [vmem:[%s3734 + $0x8] sm:$0xf]
    %v3738 = vld [vmem:[%s3734 + $0xc] sm:$0xf]
    %v3739 = vlaneseq
    %v3740 = vshrl.u32 %v3739, 7
    %v3741 = vsub.s32 1, %v3740
    %v3742 = vrot.slane %v2608, %v3741
    %v3747 = vunpack.c.l.b16 %v3735
    %v3748 = vunpack.c.l.b16 %v3736
    %v3749 = vunpack.c.l.b16 %v3737
    %v3750 = vunpack.c.l.b16 %v3738
    %v3751 = vpack.c.b16 %v3748, %v3747
    %v3752 = vpack.c.b16 %v3750, %v3749
    %v3756 = vsel %vm164, %v3733, 0
    %3758 = vmatprep.subr.bf16.mxu0 0
    %3759 = vmatpush1.bf16.msra.mxu0 %v3751
    %3760 = vmatprep.subr.bf16.mxu0 0
    %3761 = vmatpush1.bf16.msra.mxu0 %v3752
    %3762 = vmatprep.subr.bf16.mxu0 0
    %3763 = vmatpush1.bf16.msra.mxu0 0
    %3764 = vmatprep.subr.bf16.mxu0 0
    %3765 = vmatpush1.bf16.msra.mxu0 0
    %3766 = vmatprep.subr.bf16.mxu0 0
    %3767 = vmatpush1.bf16.msra.mxu0 0
    %3768 = vmatprep.subr.bf16.mxu0 0
    %3769 = vmatpush1.bf16.msra.mxu0 0
    %3770 = vmatprep.subr.bf16.mxu0 0
    %3771 = vmatpush1.bf16.msra.mxu0 0
    %3772 = vmatprep.subr.bf16.mxu0 0
    %3773 = vmatpush1.bf16.msra.mxu0 0
    %3774 = vmatprep.subr.bf16.mxu0 0
    %3775 = vmatpush1.bf16.msra.mxu0 0
    %3776 = vmatprep.subr.bf16.mxu0 0
    %3777 = vmatpush1.bf16.msra.mxu0 0
    %3778 = vmatprep.subr.bf16.mxu0 0
    %3779 = vmatpush1.bf16.msra.mxu0 0
    %3780 = vmatprep.subr.bf16.mxu0 0
    %3781 = vmatpush1.bf16.msra.mxu0 0
    %3782 = vmatprep.subr.bf16.mxu0 0
    %3783 = vmatpush1.bf16.msra.mxu0 0
    %3784 = vmatprep.subr.bf16.mxu0 0
    %3785 = vmatpush1.bf16.msra.mxu0 0
    %3786 = vmatprep.subr.bf16.mxu0 0
    %3787 = vmatpush1.bf16.msra.mxu0 0
    %3788 = vmatprep.subr.bf16.mxu0 0
    %3789 = vmatpush1.bf16.msra.mxu0 0
    %3790 = vmatprep.mubr.bf16.mxu0 0
    %3791 = vmatmul.mubr.bf16.gmra.mrb[0].mxu0 %v3756
    %v3792 = vpop.f32.mrb[0].mxu0
    %v3793 = vadd.f32 %v3742, %v3792
    %v3794 = vpop.f32.mrb[0].mxu0
    %v3795 = vpop.f32.mrb[0].mxu0
    %v3796 = vadd.f32 %v3742, %v3795
    %v3797 = vpop.f32.mrb[0].mxu0
    %3798 = vdwg.mxu0
    %s3799 = scalar_lea.vmem [#allocation11], 16
    %v3800 = vld [vmem:[%s3799] sm:$0xf]
    %v3801 = vld [vmem:[%s3799 + $0x4] sm:$0xf]
    %v3802 = vld [vmem:[%s3799 + $0x8] sm:$0xf]
    %v3803 = vld [vmem:[%s3799 + $0xc] sm:$0xf]
    %v3808 = vunpack.c.l.b16 %v3800
    %v3809 = vunpack.c.l.b16 %v3801
    %v3810 = vunpack.c.l.b16 %v3802
    %v3811 = vunpack.c.l.b16 %v3803
    %v3812 = vpack.c.b16 %v3809, %v3808
    %v3813 = vpack.c.b16 %v3811, %v3810
    %3817 = vrot.lane.b32.xlu0 %v3742, 96
    %v3818 = vpop.permute.xlu0 %3817
    %3820 = vmatprep.subr.bf16.mxu0 0
    %3821 = vmatpush1.bf16.msra.mxu0 %v3812
    %3822 = vmatprep.subr.bf16.mxu0 0
    %3823 = vmatpush1.bf16.msra.mxu0 %v3813
    %3824 = vmatprep.subr.bf16.mxu0 0
    %3825 = vmatpush1.bf16.msra.mxu0 0
    %3826 = vmatprep.subr.bf16.mxu0 0
    %3827 = vmatpush1.bf16.msra.mxu0 0
    %3828 = vmatprep.subr.bf16.mxu0 0
    %3829 = vmatpush1.bf16.msra.mxu0 0
    %3830 = vmatprep.subr.bf16.mxu0 0
    %3831 = vmatpush1.bf16.msra.mxu0 0
    %3832 = vmatprep.subr.bf16.mxu0 0
    %3833 = vmatpush1.bf16.msra.mxu0 0
    %3834 = vmatprep.subr.bf16.mxu0 0
    %3835 = vmatpush1.bf16.msra.mxu0 0
    %3836 = vmatprep.subr.bf16.mxu0 0
    %3837 = vmatpush1.bf16.msra.mxu0 0
    %3838 = vmatprep.subr.bf16.mxu0 0
    %3839 = vmatpush1.bf16.msra.mxu0 0
    %3840 = vmatprep.subr.bf16.mxu0 0
    %3841 = vmatpush1.bf16.msra.mxu0 0
    %3842 = vmatprep.subr.bf16.mxu0 0
    %3843 = vmatpush1.bf16.msra.mxu0 0
    %3844 = vmatprep.subr.bf16.mxu0 0
    %3845 = vmatpush1.bf16.msra.mxu0 0
    %3846 = vmatprep.subr.bf16.mxu0 0
    %3847 = vmatpush1.bf16.msra.mxu0 0
    %3848 = vmatprep.subr.bf16.mxu0 0
    %3849 = vmatpush1.bf16.msra.mxu0 0
    %3850 = vmatprep.subr.bf16.mxu0 0
    %3851 = vmatpush1.bf16.msra.mxu0 0
    %3852 = vmatprep.mubr.bf16.mxu0 0
    %3853 = vmatmul.mubr.bf16.gmra.mrb[0].mxu0 %v1370
    %v3854 = vpop.f32.mrb[0].mxu0
    %v3855 = vadd.f32 %v3818, %v3854
    %v3856 = vpop.f32.mrb[0].mxu0
    %v3857 = vpop.f32.mrb[0].mxu0
    %v3858 = vadd.f32 %v3818, %v3857
    %v3859 = vpop.f32.mrb[0].mxu0
    %3860 = vmatprep.mubr.bf16.mxu0 0
    %3861 = vmatmul.mubr.bf16.gmra.mrb[0].mxu0 %v1373
    %v3862 = vpop.f32.mrb[0].mxu0
    %v3863 = vadd.f32 %v3818, %v3862
    %v3864 = vpop.f32.mrb[0].mxu0
    %v3865 = vpop.f32.mrb[0].mxu0
    %v3866 = vadd.f32 %v3818, %v3865
    %v3867 = vpop.f32.mrb[0].mxu0
    %3868 = vdwg.mxu0
    %v3869 = vpack.c.bf16 %v3793, %v3793
    %v3870 = vpack.c.bf16 %v3858, %v3855
    %v3872 = vsel %vm273, %v3869, 0
    %v3875 = vsel %vm273, %v3870, 0
    %3877 = vmatprep.subr.bf16.mxu0 0
    %3878 = vmatpush1.bf16.xpose.msra.mxu0 %v3875
    %3879 = vmatprep.subr.bf16.mxu0 0
    %3880 = vmatpush1.bf16.xpose.msra.mxu0 0
    %3881 = vmatprep.subr.bf16.mxu0 0
    %3882 = vmatpush1.bf16.xpose.msra.mxu0 0
    %3883 = vmatprep.subr.bf16.mxu0 0
    %3884 = vmatpush1.bf16.xpose.msra.mxu0 0
    %3885 = vmatprep.subr.bf16.mxu0 0
    %3886 = vmatpush1.bf16.xpose.msra.mxu0 0
    %3887 = vmatprep.subr.bf16.mxu0 0
    %3888 = vmatpush1.bf16.xpose.msra.mxu0 0
    %3889 = vmatprep.subr.bf16.mxu0 0
    %3890 = vmatpush1.bf16.xpose.msra.mxu0 0
    %3891 = vmatprep.subr.bf16.mxu0 0
    %3892 = vmatpush1.bf16.xpose.msra.mxu0 0
    %3893 = vmatprep.subr.bf16.mxu0 0
    %3894 = vmatpush1.bf16.xpose.msra.mxu0 0
    %3895 = vmatprep.subr.bf16.mxu0 0
    %3896 = vmatpush1.bf16.xpose.msra.mxu0 0
    %3897 = vmatprep.subr.bf16.mxu0 0
    %3898 = vmatpush1.bf16.xpose.msra.mxu0 0
    %3899 = vmatprep.subr.bf16.mxu0 0
    %3900 = vmatpush1.bf16.xpose.msra.mxu0 0
    %3901 = vmatprep.subr.bf16.mxu0 0
    %3902 = vmatpush1.bf16.xpose.msra.mxu0 0
    %3903 = vmatprep.subr.bf16.mxu0 0
    %3904 = vmatpush1.bf16.xpose.msra.mxu0 0
    %3905 = vmatprep.subr.bf16.mxu0 0
    %3906 = vmatpush1.bf16.xpose.msra.mxu0 0
    %3907 = vmatprep.subr.bf16.mxu0 0
    %3908 = vmatpush1.bf16.xpose.msra.mxu0 0
    %3909 = vmatprep.mubr.bf16.mxu0 0
    %3910 = vmatmul.mubr.bf16.gmra.mrb[0].mxu0 %v3872
    %v3911 = vpop.f32.mrb[0].mxu0
    %v3912 = vadd.f32 0.0, %v3911
    %v3913 = vpop.f32.mrb[0].mxu0
    %v3914 = vpop.f32.mrb[0].mxu0
    %v3915 = vpop.f32.mrb[0].mxu0
    %3916 = vdwg.mxu0
    %v3917 = vsel %vm724, %v3912, -inf
    %3918 = vmax.xlane.f32.xlu0 %v3917
    %v3919 = vpop.xlane.xlu0 %3918
    %v3920 = vsub.f32 %v3912, %v3919
    %v3921 = vmul.f32 %v3920, 1.442695
    %v3922 = vpow.pop %v3921
    %v3923 = vsel %vm724, %v3922, 0.0
    %3924 = vadd.xlane.f32.xlu0 %v3923
    %v3925 = vpop.xlane.xlu0 %3924
    %v3926 = vrcp.pop %v3925
    %v3927 = vmul.f32 %v3922, %v3926
    %v3928 = vpack.c.bf16 %v3927, %v3927
    %3930 = vrot.lane.b32.xlu0 %v3870, 96
    %v3931 = vpop.permute.xlu0 %3930
    %v3934 = vsel %vm724, %v3928, 0
    %3936 = vmatprep.subr.bf16.mxu0 0
    %3937 = vmatpush1.bf16.msra.mxu0 %v3931
    %3938 = vmatprep.subr.bf16.mxu0 0
    %3939 = vmatpush1.bf16.msra.mxu0 0
    %3940 = vmatprep.subr.bf16.mxu0 0
    %3941 = vmatpush1.bf16.msra.mxu0 0
    %3942 = vmatprep.subr.bf16.mxu0 0
    %3943 = vmatpush1.bf16.msra.mxu0 0
    %3944 = vmatprep.subr.bf16.mxu0 0
    %3945 = vmatpush1.bf16.msra.mxu0 0
    %3946 = vmatprep.subr.bf16.mxu0 0
    %3947 = vmatpush1.bf16.msra.mxu0 0
    %3948 = vmatprep.subr.bf16.mxu0 0
    %3949 = vmatpush1.bf16.msra.mxu0 0
    %3950 = vmatprep.subr.bf16.mxu0 0
    %3951 = vmatpush1.bf16.msra.mxu0 0
    %3952 = vmatprep.subr.bf16.mxu0 0
    %3953 = vmatpush1.bf16.msra.mxu0 0
    %3954 = vmatprep.subr.bf16.mxu0 0
    %3955 = vmatpush1.bf16.msra.mxu0 0
    %3956 = vmatprep.subr.bf16.mxu0 0
    %3957 = vmatpush1.bf16.msra.mxu0 0
    %3958 = vmatprep.subr.bf16.mxu0 0
    %3959 = vmatpush1.bf16.msra.mxu0 0
    %3960 = vmatprep.subr.bf16.mxu0 0
    %3961 = vmatpush1.bf16.msra.mxu0 0
    %3962 = vmatprep.subr.bf16.mxu0 0
    %3963 = vmatpush1.bf16.msra.mxu0 0
    %3964 = vmatprep.subr.bf16.mxu0 0
    %3965 = vmatpush1.bf16.msra.mxu0 0
    %3966 = vmatprep.subr.bf16.mxu0 0
    %3967 = vmatpush1.bf16.msra.mxu0 0
    %3968 = vmatprep.mubr.bf16.mxu0 0
    %3969 = vmatmul.mubr.bf16.gmra.mrb[0].mxu0 %v3934
    %v3970 = vpop.f32.mrb[0].mxu0
    %v3971 = vadd.f32 0.0, %v3970
    %v3972 = vpop.f32.mrb[0].mxu0
    %v3973 = vpop.f32.mrb[0].mxu0
    %v3974 = vpop.f32.mrb[0].mxu0
    %3975 = vdwg.mxu0
    %3977 = vrot.lane.b32.xlu0 %v3869, 120
    %v3978 = vpop.permute.xlu0 %3977
    %3979 = vrot.lane.b32.xlu0 %v3870, 120
    %v3980 = vpop.permute.xlu0 %3979
    %v3982 = vsel %vm273, %v3978, 0
    %v3985 = vsel %vm273, %v3980, 0
    %3987 = vmatprep.subr.bf16.mxu0 0
    %3988 = vmatpush1.bf16.xpose.msra.mxu0 %v3985
    %3989 = vmatprep.subr.bf16.mxu0 0
    %3990 = vmatpush1.bf16.xpose.msra.mxu0 0
    %3991 = vmatprep.subr.bf16.mxu0 0
    %3992 = vmatpush1.bf16.xpose.msra.mxu0 0
    %3993 = vmatprep.subr.bf16.mxu0 0
    %3994 = vmatpush1.bf16.xpose.msra.mxu0 0
    %3995 = vmatprep.subr.bf16.mxu0 0
    %3996 = vmatpush1.bf16.xpose.msra.mxu0 0
    %3997 = vmatprep.subr.bf16.mxu0 0
    %3998 = vmatpush1.bf16.xpose.msra.mxu0 0
    %3999 = vmatprep.subr.bf16.mxu0 0
    %4000 = vmatpush1.bf16.xpose.msra.mxu0 0
    %4001 = vmatprep.subr.bf16.mxu0 0
    %4002 = vmatpush1.bf16.xpose.msra.mxu0 0
    %4003 = vmatprep.subr.bf16.mxu0 0
    %4004 = vmatpush1.bf16.xpose.msra.mxu0 0
    %4005 = vmatprep.subr.bf16.mxu0 0
    %4006 = vmatpush1.bf16.xpose.msra.mxu0 0
    %4007 = vmatprep.subr.bf16.mxu0 0
    %4008 = vmatpush1.bf16.xpose.msra.mxu0 0
    %4009 = vmatprep.subr.bf16.mxu0 0
    %4010 = vmatpush1.bf16.xpose.msra.mxu0 0
    %4011 = vmatprep.subr.bf16.mxu0 0
    %4012 = vmatpush1.bf16.xpose.msra.mxu0 0
    %4013 = vmatprep.subr.bf16.mxu0 0
    %4014 = vmatpush1.bf16.xpose.msra.mxu0 0
    %4015 = vmatprep.subr.bf16.mxu0 0
    %4016 = vmatpush1.bf16.xpose.msra.mxu0 0
    %4017 = vmatprep.subr.bf16.mxu0 0
    %4018 = vmatpush1.bf16.xpose.msra.mxu0 0
    %4019 = vmatprep.mubr.bf16.mxu0 0
    %4020 = vmatmul.mubr.bf16.gmra.mrb[0].mxu0 %v3982
    %v4021 = vpop.f32.mrb[0].mxu0
    %v4022 = vadd.f32 0.0, %v4021
    %v4023 = vpop.f32.mrb[0].mxu0
    %v4024 = vpop.f32.mrb[0].mxu0
    %v4025 = vpop.f32.mrb[0].mxu0
    %4026 = vdwg.mxu0
    %v4027 = vsel %vm724, %v4022, -inf
    %4028 = vmax.xlane.f32.xlu0 %v4027
    %v4029 = vpop.xlane.xlu0 %4028
    %v4030 = vsub.f32 %v4022, %v4029
    %v4031 = vmul.f32 %v4030, 1.442695
    %v4032 = vpow.pop %v4031
    %v4033 = vsel %vm724, %v4032, 0.0
    %4034 = vadd.xlane.f32.xlu0 %v4033
    %v4035 = vpop.xlane.xlu0 %4034
    %v4036 = vrcp.pop %v4035
    %v4037 = vmul.f32 %v4032, %v4036
    %v4038 = vpack.c.bf16 %v4037, %v4037
    %4039 = vrot.lane.b32.xlu0 %v3870, 88
    %v4040 = vpop.permute.xlu0 %4039
    %v4043 = vsel %vm724, %v4038, 0
    %4045 = vmatprep.subr.bf16.mxu0 0
    %4046 = vmatpush1.bf16.msra.mxu0 %v4040
    %4047 = vmatprep.subr.bf16.mxu0 0
    %4048 = vmatpush1.bf16.msra.mxu0 0
    %4049 = vmatprep.subr.bf16.mxu0 0
    %4050 = vmatpush1.bf16.msra.mxu0 0
    %4051 = vmatprep.subr.bf16.mxu0 0
    %4052 = vmatpush1.bf16.msra.mxu0 0
    %4053 = vmatprep.subr.bf16.mxu0 0
    %4054 = vmatpush1.bf16.msra.mxu0 0
    %4055 = vmatprep.subr.bf16.mxu0 0
    %4056 = vmatpush1.bf16.msra.mxu0 0
    %4057 = vmatprep.subr.bf16.mxu0 0
    %4058 = vmatpush1.bf16.msra.mxu0 0
    %4059 = vmatprep.subr.bf16.mxu0 0
    %4060 = vmatpush1.bf16.msra.mxu0 0
    %4061 = vmatprep.subr.bf16.mxu0 0
    %4062 = vmatpush1.bf16.msra.mxu0 0
    %4063 = vmatprep.subr.bf16.mxu0 0
    %4064 = vmatpush1.bf16.msra.mxu0 0
    %4065 = vmatprep.subr.bf16.mxu0 0
    %4066 = vmatpush1.bf16.msra.mxu0 0
    %4067 = vmatprep.subr.bf16.mxu0 0
    %4068 = vmatpush1.bf16.msra.mxu0 0
    %4069 = vmatprep.subr.bf16.mxu0 0
    %4070 = vmatpush1.bf16.msra.mxu0 0
    %4071 = vmatprep.subr.bf16.mxu0 0
    %4072 = vmatpush1.bf16.msra.mxu0 0
    %4073 = vmatprep.subr.bf16.mxu0 0
    %4074 = vmatpush1.bf16.msra.mxu0 0
    %4075 = vmatprep.subr.bf16.mxu0 0
    %4076 = vmatpush1.bf16.msra.mxu0 0
    %4077 = vmatprep.mubr.bf16.mxu0 0
    %4078 = vmatmul.mubr.bf16.gmra.mrb[0].mxu0 %v4043
    %v4079 = vpop.f32.mrb[0].mxu0
    %v4080 = vadd.f32 0.0, %v4079
    %v4081 = vpop.f32.mrb[0].mxu0
    %v4082 = vpop.f32.mrb[0].mxu0
    %v4083 = vpop.f32.mrb[0].mxu0
    %4084 = vdwg.mxu0
    %4085 = vrot.lane.b32.xlu0 %v3869, 112
    %v4086 = vpop.permute.xlu0 %4085
    %4087 = vrot.lane.b32.xlu0 %v3870, 112
    %v4088 = vpop.permute.xlu0 %4087
    %v4090 = vsel %vm273, %v4086, 0
    %v4093 = vsel %vm273, %v4088, 0
    %4095 = vmatprep.subr.bf16.mxu0 0
    %4096 = vmatpush1.bf16.xpose.msra.mxu0 %v4093
    %4097 = vmatprep.subr.bf16.mxu0 0
    %4098 = vmatpush1.bf16.xpose.msra.mxu0 0
    %4099 = vmatprep.subr.bf16.mxu0 0
    %4100 = vmatpush1.bf16.xpose.msra.mxu0 0
    %4101 = vmatprep.subr.bf16.mxu0 0
    %4102 = vmatpush1.bf16.xpose.msra.mxu0 0
    %4103 = vmatprep.subr.bf16.mxu0 0
    %4104 = vmatpush1.bf16.xpose.msra.mxu0 0
    %4105 = vmatprep.subr.bf16.mxu0 0
    %4106 = vmatpush1.bf16.xpose.msra.mxu0 0
    %4107 = vmatprep.subr.bf16.mxu0 0
    %4108 = vmatpush1.bf16.xpose.msra.mxu0 0
    %4109 = vmatprep.subr.bf16.mxu0 0
    %4110 = vmatpush1.bf16.xpose.msra.mxu0 0
    %4111 = vmatprep.subr.bf16.mxu0 0
    %4112 = vmatpush1.bf16.xpose.msra.mxu0 0
    %4113 = vmatprep.subr.bf16.mxu0 0
    %4114 = vmatpush1.bf16.xpose.msra.mxu0 0
    %4115 = vmatprep.subr.bf16.mxu0 0
    %4116 = vmatpush1.bf16.xpose.msra.mxu0 0
    %4117 = vmatprep.subr.bf16.mxu0 0
    %4118 = vmatpush1.bf16.xpose.msra.mxu0 0
    %4119 = vmatprep.subr.bf16.mxu0 0
    %4120 = vmatpush1.bf16.xpose.msra.mxu0 0
    %4121 = vmatprep.subr.bf16.mxu0 0
    %4122 = vmatpush1.bf16.xpose.msra.mxu0 0
    %4123 = vmatprep.subr.bf16.mxu0 0
    %4124 = vmatpush1.bf16.xpose.msra.mxu0 0
    %4125 = vmatprep.subr.bf16.mxu0 0
    %4126 = vmatpush1.bf16.xpose.msra.mxu0 0
    %4127 = vmatprep.mubr.bf16.mxu0 0
    %4128 = vmatmul.mubr.bf16.gmra.mrb[0].mxu0 %v4090
    %v4129 = vpop.f32.mrb[0].mxu0
    %v4130 = vadd.f32 0.0, %v4129
    %v4131 = vpop.f32.mrb[0].mxu0
    %v4132 = vpop.f32.mrb[0].mxu0
    %v4133 = vpop.f32.mrb[0].mxu0
    %4134 = vdwg.mxu0
    %v4135 = vsel %vm724, %v4130, -inf
    %4136 = vmax.xlane.f32.xlu0 %v4135
    %v4137 = vpop.xlane.xlu0 %4136
    %v4138 = vsub.f32 %v4130, %v4137
    %v4139 = vmul.f32 %v4138, 1.442695
    %v4140 = vpow.pop %v4139
    %v4141 = vsel %vm724, %v4140, 0.0
    %4142 = vadd.xlane.f32.xlu0 %v4141
    %v4143 = vpop.xlane.xlu0 %4142
    %v4144 = vrcp.pop %v4143
    %v4145 = vmul.f32 %v4140, %v4144
    %v4146 = vpack.c.bf16 %v4145, %v4145
    %4147 = vrot.lane.b32.xlu0 %v3870, 80
    %v4148 = vpop.permute.xlu0 %4147
    %v4151 = vsel %vm724, %v4146, 0
    %4153 = vmatprep.subr.bf16.mxu0 0
    %4154 = vmatpush1.bf16.msra.mxu0 %v4148
    %4155 = vmatprep.subr.bf16.mxu0 0
    %4156 = vmatpush1.bf16.msra.mxu0 0
    %4157 = vmatprep.subr.bf16.mxu0 0
    %4158 = vmatpush1.bf16.msra.mxu0 0
    %4159 = vmatprep.subr.bf16.mxu0 0
    %4160 = vmatpush1.bf16.msra.mxu0 0
    %4161 = vmatprep.subr.bf16.mxu0 0
    %4162 = vmatpush1.bf16.msra.mxu0 0
    %4163 = vmatprep.subr.bf16.mxu0 0
    %4164 = vmatpush1.bf16.msra.mxu0 0
    %4165 = vmatprep.subr.bf16.mxu0 0
    %4166 = vmatpush1.bf16.msra.mxu0 0
    %4167 = vmatprep.subr.bf16.mxu0 0
    %4168 = vmatpush1.bf16.msra.mxu0 0
    %4169 = vmatprep.subr.bf16.mxu0 0
    %4170 = vmatpush1.bf16.msra.mxu0 0
    %4171 = vmatprep.subr.bf16.mxu0 0
    %4172 = vmatpush1.bf16.msra.mxu0 0
    %4173 = vmatprep.subr.bf16.mxu0 0
    %4174 = vmatpush1.bf16.msra.mxu0 0
    %4175 = vmatprep.subr.bf16.mxu0 0
    %4176 = vmatpush1.bf16.msra.mxu0 0
    %4177 = vmatprep.subr.bf16.mxu0 0
    %4178 = vmatpush1.bf16.msra.mxu0 0
    %4179 = vmatprep.subr.bf16.mxu0 0
    %4180 = vmatpush1.bf16.msra.mxu0 0
    %4181 = vmatprep.subr.bf16.mxu0 0
    %4182 = vmatpush1.bf16.msra.mxu0 0
    %4183 = vmatprep.subr.bf16.mxu0 0
    %4184 = vmatpush1.bf16.msra.mxu0 0
    %4185 = vmatprep.mubr.bf16.mxu0 0
    %4186 = vmatmul.mubr.bf16.gmra.mrb[0].mxu0 %v4151
    %v4187 = vpop.f32.mrb[0].mxu0
    %v4188 = vadd.f32 0.0, %v4187
    %v4189 = vpop.f32.mrb[0].mxu0
    %v4190 = vpop.f32.mrb[0].mxu0
    %v4191 = vpop.f32.mrb[0].mxu0
    %4192 = vdwg.mxu0
    %4193 = vrot.lane.b32.xlu0 %v3869, 104
    %v4194 = vpop.permute.xlu0 %4193
    %4195 = vrot.lane.b32.xlu0 %v3870, 104
    %v4196 = vpop.permute.xlu0 %4195
    %v4198 = vsel %vm273, %v4194, 0
    %v4201 = vsel %vm273, %v4196, 0
    %4203 = vmatprep.subr.bf16.mxu0 0
    %4204 = vmatpush1.bf16.xpose.msra.mxu0 %v4201
    %4205 = vmatprep.subr.bf16.mxu0 0
    %4206 = vmatpush1.bf16.xpose.msra.mxu0 0
    %4207 = vmatprep.subr.bf16.mxu0 0
    %4208 = vmatpush1.bf16.xpose.msra.mxu0 0
    %4209 = vmatprep.subr.bf16.mxu0 0
    %4210 = vmatpush1.bf16.xpose.msra.mxu0 0
    %4211 = vmatprep.subr.bf16.mxu0 0
    %4212 = vmatpush1.bf16.xpose.msra.mxu0 0
    %4213 = vmatprep.subr.bf16.mxu0 0
    %4214 = vmatpush1.bf16.xpose.msra.mxu0 0
    %4215 = vmatprep.subr.bf16.mxu0 0
    %4216 = vmatpush1.bf16.xpose.msra.mxu0 0
    %4217 = vmatprep.subr.bf16.mxu0 0
    %4218 = vmatpush1.bf16.xpose.msra.mxu0 0
    %4219 = vmatprep.subr.bf16.mxu0 0
    %4220 = vmatpush1.bf16.xpose.msra.mxu0 0
    %4221 = vmatprep.subr.bf16.mxu0 0
    %4222 = vmatpush1.bf16.xpose.msra.mxu0 0
    %4223 = vmatprep.subr.bf16.mxu0 0
    %4224 = vmatpush1.bf16.xpose.msra.mxu0 0
    %4225 = vmatprep.subr.bf16.mxu0 0
    %4226 = vmatpush1.bf16.xpose.msra.mxu0 0
    %4227 = vmatprep.subr.bf16.mxu0 0
    %4228 = vmatpush1.bf16.xpose.msra.mxu0 0
    %4229 = vmatprep.subr.bf16.mxu0 0
    %4230 = vmatpush1.bf16.xpose.msra.mxu0 0
    %4231 = vmatprep.subr.bf16.mxu0 0
    %4232 = vmatpush1.bf16.xpose.msra.mxu0 0
    %4233 = vmatprep.subr.bf16.mxu0 0
    %4234 = vmatpush1.bf16.xpose.msra.mxu0 0
    %4235 = vmatprep.mubr.bf16.mxu0 0
    %4236 = vmatmul.mubr.bf16.gmra.mrb[0].mxu0 %v4198
    %v4237 = vpop.f32.mrb[0].mxu0
    %v4238 = vadd.f32 0.0, %v4237
    %v4239 = vpop.f32.mrb[0].mxu0
    %v4240 = vpop.f32.mrb[0].mxu0
    %v4241 = vpop.f32.mrb[0].mxu0
    %4242 = vdwg.mxu0
    %v4243 = vsel %vm724, %v4238, -inf
    %4244 = vmax.xlane.f32.xlu0 %v4243
    %v4245 = vpop.xlane.xlu0 %4244
    %v4246 = vsub.f32 %v4238, %v4245
    %v4247 = vmul.f32 %v4246, 1.442695
    %v4248 = vpow.pop %v4247
    %v4249 = vsel %vm724, %v4248, 0.0
    %4250 = vadd.xlane.f32.xlu0 %v4249
    %v4251 = vpop.xlane.xlu0 %4250
    %v4252 = vrcp.pop %v4251
    %v4253 = vmul.f32 %v4248, %v4252
    %v4254 = vpack.c.bf16 %v4253, %v4253
    %4255 = vrot.lane.b32.xlu0 %v3870, 72
    %v4256 = vpop.permute.xlu0 %4255
    %v4259 = vsel %vm724, %v4254, 0
    %4261 = vmatprep.subr.bf16.mxu0 0
    %4262 = vmatpush1.bf16.msra.mxu0 %v4256
    %4263 = vmatprep.subr.bf16.mxu0 0
    %4264 = vmatpush1.bf16.msra.mxu0 0
    %4265 = vmatprep.subr.bf16.mxu0 0
    %4266 = vmatpush1.bf16.msra.mxu0 0
    %4267 = vmatprep.subr.bf16.mxu0 0
    %4268 = vmatpush1.bf16.msra.mxu0 0
    %4269 = vmatprep.subr.bf16.mxu0 0
    %4270 = vmatpush1.bf16.msra.mxu0 0
    %4271 = vmatprep.subr.bf16.mxu0 0
    %4272 = vmatpush1.bf16.msra.mxu0 0
    %4273 = vmatprep.subr.bf16.mxu0 0
    %4274 = vmatpush1.bf16.msra.mxu0 0
    %4275 = vmatprep.subr.bf16.mxu0 0
    %4276 = vmatpush1.bf16.msra.mxu0 0
    %4277 = vmatprep.subr.bf16.mxu0 0
    %4278 = vmatpush1.bf16.msra.mxu0 0
    %4279 = vmatprep.subr.bf16.mxu0 0
    %4280 = vmatpush1.bf16.msra.mxu0 0
    %4281 = vmatprep.subr.bf16.mxu0 0
    %4282 = vmatpush1.bf16.msra.mxu0 0
    %4283 = vmatprep.subr.bf16.mxu0 0
    %4284 = vmatpush1.bf16.msra.mxu0 0
    %4285 = vmatprep.subr.bf16.mxu0 0
    %4286 = vmatpush1.bf16.msra.mxu0 0
    %4287 = vmatprep.subr.bf16.mxu0 0
    %4288 = vmatpush1.bf16.msra.mxu0 0
    %4289 = vmatprep.subr.bf16.mxu0 0
    %4290 = vmatpush1.bf16.msra.mxu0 0
    %4291 = vmatprep.subr.bf16.mxu0 0
    %4292 = vmatpush1.bf16.msra.mxu0 0
    %4293 = vmatprep.mubr.bf16.mxu0 0
    %4294 = vmatmul.mubr.bf16.gmra.mrb[0].mxu0 %v4259
    %v4295 = vpop.f32.mrb[0].mxu0
    %v4296 = vadd.f32 0.0, %v4295
    %v4297 = vpop.f32.mrb[0].mxu0
    %v4298 = vpop.f32.mrb[0].mxu0
    %v4299 = vpop.f32.mrb[0].mxu0
    %4300 = vdwg.mxu0
    %4302 = vrot.lane.b32.xlu0 %v4080, 8
    %v4303 = vpop.permute.xlu0 %4302
    %4306 = vrot.lane.b32.xlu0 %v4188, 16
    %v4307 = vpop.permute.xlu0 %4306
    %4310 = vrot.lane.b32.xlu0 %v4296, 24
    %v4311 = vpop.permute.xlu0 %4310
    %v4313 = vsel %vm273, %v3971, %v4303
    %v4314 = vsel %vm724, %v4313, %v4307
    %v4315 = vsel %vm726, %v4314, %v4311
    %4317 = vrot.lane.b32.xlu0 %v4037, 16
    %v4318 = vpop.permute.xlu0 %4317
    %4321 = vrot.lane.b32.xlu0 %v4145, 32
    %v4322 = vpop.permute.xlu0 %4321
    %4325 = vrot.lane.b32.xlu0 %v4253, 48
    %v4326 = vpop.permute.xlu0 %4325
    %v4328 = vsel %vm724, %v3927, %v4318
    %v4329 = vsel %vm164, %v4328, %v4322
    %v4330 = vsel %vm1885, %v4329, %v4326
    %v4331 = vpack.c.bf16 %v3796, %v3796
    %v4332 = vpack.c.bf16 %v3866, %v3863
    %v4334 = vsel %vm273, %v4331, 0
    %v4337 = vsel %vm273, %v4332, 0
    %4339 = vmatprep.subr.bf16.mxu0 0
    %4340 = vmatpush1.bf16.xpose.msra.mxu0 %v4337
    %4341 = vmatprep.subr.bf16.mxu0 0
    %4342 = vmatpush1.bf16.xpose.msra.mxu0 0
    %4343 = vmatprep.subr.bf16.mxu0 0
    %4344 = vmatpush1.bf16.xpose.msra.mxu0 0
    %4345 = vmatprep.subr.bf16.mxu0 0
    %4346 = vmatpush1.bf16.xpose.msra.mxu0 0
    %4347 = vmatprep.subr.bf16.mxu0 0
    %4348 = vmatpush1.bf16.xpose.msra.mxu0 0
    %4349 = vmatprep.subr.bf16.mxu0 0
    %4350 = vmatpush1.bf16.xpose.msra.mxu0 0
    %4351 = vmatprep.subr.bf16.mxu0 0
    %4352 = vmatpush1.bf16.xpose.msra.mxu0 0
    %4353 = vmatprep.subr.bf16.mxu0 0
    %4354 = vmatpush1.bf16.xpose.msra.mxu0 0
    %4355 = vmatprep.subr.bf16.mxu0 0
    %4356 = vmatpush1.bf16.xpose.msra.mxu0 0
    %4357 = vmatprep.subr.bf16.mxu0 0
    %4358 = vmatpush1.bf16.xpose.msra.mxu0 0
    %4359 = vmatprep.subr.bf16.mxu0 0
    %4360 = vmatpush1.bf16.xpose.msra.mxu0 0
    %4361 = vmatprep.subr.bf16.mxu0 0
    %4362 = vmatpush1.bf16.xpose.msra.mxu0 0
    %4363 = vmatprep.subr.bf16.mxu0 0
    %4364 = vmatpush1.bf16.xpose.msra.mxu0 0
    %4365 = vmatprep.subr.bf16.mxu0 0
    %4366 = vmatpush1.bf16.xpose.msra.mxu0 0
    %4367 = vmatprep.subr.bf16.mxu0 0
    %4368 = vmatpush1.bf16.xpose.msra.mxu0 0
    %4369 = vmatprep.subr.bf16.mxu0 0
    %4370 = vmatpush1.bf16.xpose.msra.mxu0 0
    %4371 = vmatprep.mubr.bf16.mxu0 0
    %4372 = vmatmul.mubr.bf16.gmra.mrb[0].mxu0 %v4334
    %v4373 = vpop.f32.mrb[0].mxu0
    %v4374 = vadd.f32 0.0, %v4373
    %v4375 = vpop.f32.mrb[0].mxu0
    %v4376 = vpop.f32.mrb[0].mxu0
    %v4377 = vpop.f32.mrb[0].mxu0
    %4378 = vdwg.mxu0
    %v4379 = vsel %vm724, %v4374, -inf
    %4380 = vmax.xlane.f32.xlu0 %v4379
    %v4381 = vpop.xlane.xlu0 %4380
    %v4382 = vsub.f32 %v4374, %v4381
    %v4383 = vmul.f32 %v4382, 1.442695
    %v4384 = vpow.pop %v4383
    %v4385 = vsel %vm724, %v4384, 0.0
    %4386 = vadd.xlane.f32.xlu0 %v4385
    %v4387 = vpop.xlane.xlu0 %4386
    %v4388 = vrcp.pop %v4387
    %v4389 = vmul.f32 %v4384, %v4388
    %v4390 = vpack.c.bf16 %v4389, %v4389
    %4392 = vrot.lane.b32.xlu0 %v4332, 96
    %v4393 = vpop.permute.xlu0 %4392
    %v4396 = vsel %vm724, %v4390, 0
    %4398 = vmatprep.subr.bf16.mxu0 0
    %4399 = vmatpush1.bf16.msra.mxu0 %v4393
    %4400 = vmatprep.subr.bf16.mxu0 0
    %4401 = vmatpush1.bf16.msra.mxu0 0
    %4402 = vmatprep.subr.bf16.mxu0 0
    %4403 = vmatpush1.bf16.msra.mxu0 0
    %4404 = vmatprep.subr.bf16.mxu0 0
    %4405 = vmatpush1.bf16.msra.mxu0 0
    %4406 = vmatprep.subr.bf16.mxu0 0
    %4407 = vmatpush1.bf16.msra.mxu0 0
    %4408 = vmatprep.subr.bf16.mxu0 0
    %4409 = vmatpush1.bf16.msra.mxu0 0
    %4410 = vmatprep.subr.bf16.mxu0 0
    %4411 = vmatpush1.bf16.msra.mxu0 0
    %4412 = vmatprep.subr.bf16.mxu0 0
    %4413 = vmatpush1.bf16.msra.mxu0 0
    %4414 = vmatprep.subr.bf16.mxu0 0
    %4415 = vmatpush1.bf16.msra.mxu0 0
    %4416 = vmatprep.subr.bf16.mxu0 0
    %4417 = vmatpush1.bf16.msra.mxu0 0
    %4418 = vmatprep.subr.bf16.mxu0 0
    %4419 = vmatpush1.bf16.msra.mxu0 0
    %4420 = vmatprep.subr.bf16.mxu0 0
    %4421 = vmatpush1.bf16.msra.mxu0 0
    %4422 = vmatprep.subr.bf16.mxu0 0
    %4423 = vmatpush1.bf16.msra.mxu0 0
    %4424 = vmatprep.subr.bf16.mxu0 0
    %4425 = vmatpush1.bf16.msra.mxu0 0
    %4426 = vmatprep.subr.bf16.mxu0 0
    %4427 = vmatpush1.bf16.msra.mxu0 0
    %4428 = vmatprep.subr.bf16.mxu0 0
    %4429 = vmatpush1.bf16.msra.mxu0 0
    %4430 = vmatprep.mubr.bf16.mxu0 0
    %4431 = vmatmul.mubr.bf16.gmra.mrb[0].mxu0 %v4396
    %v4432 = vpop.f32.mrb[0].mxu0
    %v4433 = vadd.f32 0.0, %v4432
    %v4434 = vpop.f32.mrb[0].mxu0
    %v4435 = vpop.f32.mrb[0].mxu0
    %v4436 = vpop.f32.mrb[0].mxu0
    %4437 = vdwg.mxu0
    %4439 = vrot.lane.b32.xlu0 %v4331, 120
    %v4440 = vpop.permute.xlu0 %4439
    %4441 = vrot.lane.b32.xlu0 %v4332, 120
    %v4442 = vpop.permute.xlu0 %4441
    %v4444 = vsel %vm273, %v4440, 0
    %v4447 = vsel %vm273, %v4442, 0
    %4449 = vmatprep.subr.bf16.mxu0 0
    %4450 = vmatpush1.bf16.xpose.msra.mxu0 %v4447
    %4451 = vmatprep.subr.bf16.mxu0 0
    %4452 = vmatpush1.bf16.xpose.msra.mxu0 0
    %4453 = vmatprep.subr.bf16.mxu0 0
    %4454 = vmatpush1.bf16.xpose.msra.mxu0 0
    %4455 = vmatprep.subr.bf16.mxu0 0
    %4456 = vmatpush1.bf16.xpose.msra.mxu0 0
    %4457 = vmatprep.subr.bf16.mxu0 0
    %4458 = vmatpush1.bf16.xpose.msra.mxu0 0
    %4459 = vmatprep.subr.bf16.mxu0 0
    %4460 = vmatpush1.bf16.xpose.msra.mxu0 0
    %4461 = vmatprep.subr.bf16.mxu0 0
    %4462 = vmatpush1.bf16.xpose.msra.mxu0 0
    %4463 = vmatprep.subr.bf16.mxu0 0
    %4464 = vmatpush1.bf16.xpose.msra.mxu0 0
    %4465 = vmatprep.subr.bf16.mxu0 0
    %4466 = vmatpush1.bf16.xpose.msra.mxu0 0
    %4467 = vmatprep.subr.bf16.mxu0 0
    %4468 = vmatpush1.bf16.xpose.msra.mxu0 0
    %4469 = vmatprep.subr.bf16.mxu0 0
    %4470 = vmatpush1.bf16.xpose.msra.mxu0 0
    %4471 = vmatprep.subr.bf16.mxu0 0
    %4472 = vmatpush1.bf16.xpose.msra.mxu0 0
    %4473 = vmatprep.subr.bf16.mxu0 0
    %4474 = vmatpush1.bf16.xpose.msra.mxu0 0
    %4475 = vmatprep.subr.bf16.mxu0 0
    %4476 = vmatpush1.bf16.xpose.msra.mxu0 0
    %4477 = vmatprep.subr.bf16.mxu0 0
    %4478 = vmatpush1.bf16.xpose.msra.mxu0 0
    %4479 = vmatprep.subr.bf16.mxu0 0
    %4480 = vmatpush1.bf16.xpose.msra.mxu0 0
    %4481 = vmatprep.mubr.bf16.mxu0 0
    %4482 = vmatmul.mubr.bf16.gmra.mrb[0].mxu0 %v4444
    %v4483 = vpop.f32.mrb[0].mxu0
    %v4484 = vadd.f32 0.0, %v4483
    %v4485 = vpop.f32.mrb[0].mxu0
    %v4486 = vpop.f32.mrb[0].mxu0
    %v4487 = vpop.f32.mrb[0].mxu0
    %4488 = vdwg.mxu0
    %v4489 = vsel %vm724, %v4484, -inf
    %4490 = vmax.xlane.f32.xlu0 %v4489
    %v4491 = vpop.xlane.xlu0 %4490
    %v4492 = vsub.f32 %v4484, %v4491
    %v4493 = vmul.f32 %v4492, 1.442695
    %v4494 = vpow.pop %v4493
    %v4495 = vsel %vm724, %v4494, 0.0
    %4496 = vadd.xlane.f32.xlu0 %v4495
    %v4497 = vpop.xlane.xlu0 %4496
    %v4498 = vrcp.pop %v4497
    %v4499 = vmul.f32 %v4494, %v4498
    %v4500 = vpack.c.bf16 %v4499, %v4499
    %4501 = vrot.lane.b32.xlu0 %v4332, 88
    %v4502 = vpop.permute.xlu0 %4501
    %v4505 = vsel %vm724, %v4500, 0
    %4507 = vmatprep.subr.bf16.mxu0 0
    %4508 = vmatpush1.bf16.msra.mxu0 %v4502
    %4509 = vmatprep.subr.bf16.mxu0 0
    %4510 = vmatpush1.bf16.msra.mxu0 0
    %4511 = vmatprep.subr.bf16.mxu0 0
    %4512 = vmatpush1.bf16.msra.mxu0 0
    %4513 = vmatprep.subr.bf16.mxu0 0
    %4514 = vmatpush1.bf16.msra.mxu0 0
    %4515 = vmatprep.subr.bf16.mxu0 0
    %4516 = vmatpush1.bf16.msra.mxu0 0
    %4517 = vmatprep.subr.bf16.mxu0 0
    %4518 = vmatpush1.bf16.msra.mxu0 0
    %4519 = vmatprep.subr.bf16.mxu0 0
    %4520 = vmatpush1.bf16.msra.mxu0 0
    %4521 = vmatprep.subr.bf16.mxu0 0
    %4522 = vmatpush1.bf16.msra.mxu0 0
    %4523 = vmatprep.subr.bf16.mxu0 0
    %4524 = vmatpush1.bf16.msra.mxu0 0
    %4525 = vmatprep.subr.bf16.mxu0 0
    %4526 = vmatpush1.bf16.msra.mxu0 0
    %4527 = vmatprep.subr.bf16.mxu0 0
    %4528 = vmatpush1.bf16.msra.mxu0 0
    %4529 = vmatprep.subr.bf16.mxu0 0
    %4530 = vmatpush1.bf16.msra.mxu0 0
    %4531 = vmatprep.subr.bf16.mxu0 0
    %4532 = vmatpush1.bf16.msra.mxu0 0
    %4533 = vmatprep.subr.bf16.mxu0 0
    %4534 = vmatpush1.bf16.msra.mxu0 0
    %4535 = vmatprep.subr.bf16.mxu0 0
    %4536 = vmatpush1.bf16.msra.mxu0 0
    %4537 = vmatprep.subr.bf16.mxu0 0
    %4538 = vmatpush1.bf16.msra.mxu0 0
    %4539 = vmatprep.mubr.bf16.mxu0 0
    %4540 = vmatmul.mubr.bf16.gmra.mrb[0].mxu0 %v4505
    %v4541 = vpop.f32.mrb[0].mxu0
    %v4542 = vadd.f32 0.0, %v4541
    %v4543 = vpop.f32.mrb[0].mxu0
    %v4544 = vpop.f32.mrb[0].mxu0
    %v4545 = vpop.f32.mrb[0].mxu0
    %4546 = vdwg.mxu0
    %4547 = vrot.lane.b32.xlu0 %v4331, 112
    %v4548 = vpop.permute.xlu0 %4547
    %4549 = vrot.lane.b32.xlu0 %v4332, 112
    %v4550 = vpop.permute.xlu0 %4549
    %v4552 = vsel %vm273, %v4548, 0
    %v4555 = vsel %vm273, %v4550, 0
    %4557 = vmatprep.subr.bf16.mxu0 0
    %4558 = vmatpush1.bf16.xpose.msra.mxu0 %v4555
    %4559 = vmatprep.subr.bf16.mxu0 0
    %4560 = vmatpush1.bf16.xpose.msra.mxu0 0
    %4561 = vmatprep.subr.bf16.mxu0 0
    %4562 = vmatpush1.bf16.xpose.msra.mxu0 0
    %4563 = vmatprep.subr.bf16.mxu0 0
    %4564 = vmatpush1.bf16.xpose.msra.mxu0 0
    %4565 = vmatprep.subr.bf16.mxu0 0
    %4566 = vmatpush1.bf16.xpose.msra.mxu0 0
    %4567 = vmatprep.subr.bf16.mxu0 0
    %4568 = vmatpush1.bf16.xpose.msra.mxu0 0
    %4569 = vmatprep.subr.bf16.mxu0 0
    %4570 = vmatpush1.bf16.xpose.msra.mxu0 0
    %4571 = vmatprep.subr.bf16.mxu0 0
    %4572 = vmatpush1.bf16.xpose.msra.mxu0 0
    %4573 = vmatprep.subr.bf16.mxu0 0
    %4574 = vmatpush1.bf16.xpose.msra.mxu0 0
    %4575 = vmatprep.subr.bf16.mxu0 0
    %4576 = vmatpush1.bf16.xpose.msra.mxu0 0
    %4577 = vmatprep.subr.bf16.mxu0 0
    %4578 = vmatpush1.bf16.xpose.msra.mxu0 0
    %4579 = vmatprep.subr.bf16.mxu0 0
    %4580 = vmatpush1.bf16.xpose.msra.mxu0 0
    %4581 = vmatprep.subr.bf16.mxu0 0
    %4582 = vmatpush1.bf16.xpose.msra.mxu0 0
    %4583 = vmatprep.subr.bf16.mxu0 0
    %4584 = vmatpush1.bf16.xpose.msra.mxu0 0
    %4585 = vmatprep.subr.bf16.mxu0 0
    %4586 = vmatpush1.bf16.xpose.msra.mxu0 0
    %4587 = vmatprep.subr.bf16.mxu0 0
    %4588 = vmatpush1.bf16.xpose.msra.mxu0 0
    %4589 = vmatprep.mubr.bf16.mxu0 0
    %4590 = vmatmul.mubr.bf16.gmra.mrb[0].mxu0 %v4552
    %v4591 = vpop.f32.mrb[0].mxu0
    %v4592 = vadd.f32 0.0, %v4591
    %v4593 = vpop.f32.mrb[0].mxu0
    %v4594 = vpop.f32.mrb[0].mxu0
    %v4595 = vpop.f32.mrb[0].mxu0
    %4596 = vdwg.mxu0
    %v4597 = vsel %vm724, %v4592, -inf
    %4598 = vmax.xlane.f32.xlu0 %v4597
    %v4599 = vpop.xlane.xlu0 %4598
    %v4600 = vsub.f32 %v4592, %v4599
    %v4601 = vmul.f32 %v4600, 1.442695
    %v4602 = vpow.pop %v4601
    %v4603 = vsel %vm724, %v4602, 0.0
    %4604 = vadd.xlane.f32.xlu0 %v4603
    %v4605 = vpop.xlane.xlu0 %4604
    %v4606 = vrcp.pop %v4605
    %v4607 = vmul.f32 %v4602, %v4606
    %v4608 = vpack.c.bf16 %v4607, %v4607
    %4609 = vrot.lane.b32.xlu0 %v4332, 80
    %v4610 = vpop.permute.xlu0 %4609
    %v4613 = vsel %vm724, %v4608, 0
    %4615 = vmatprep.subr.bf16.mxu0 0
    %4616 = vmatpush1.bf16.msra.mxu0 %v4610
    %4617 = vmatprep.subr.bf16.mxu0 0
    %4618 = vmatpush1.bf16.msra.mxu0 0
    %4619 = vmatprep.subr.bf16.mxu0 0
    %4620 = vmatpush1.bf16.msra.mxu0 0
    %4621 = vmatprep.subr.bf16.mxu0 0
    %4622 = vmatpush1.bf16.msra.mxu0 0
    %4623 = vmatprep.subr.bf16.mxu0 0
    %4624 = vmatpush1.bf16.msra.mxu0 0
    %4625 = vmatprep.subr.bf16.mxu0 0
    %4626 = vmatpush1.bf16.msra.mxu0 0
    %4627 = vmatprep.subr.bf16.mxu0 0
    %4628 = vmatpush1.bf16.msra.mxu0 0
    %4629 = vmatprep.subr.bf16.mxu0 0
    %4630 = vmatpush1.bf16.msra.mxu0 0
    %4631 = vmatprep.subr.bf16.mxu0 0
    %4632 = vmatpush1.bf16.msra.mxu0 0
    %4633 = vmatprep.subr.bf16.mxu0 0
    %4634 = vmatpush1.bf16.msra.mxu0 0
    %4635 = vmatprep.subr.bf16.mxu0 0
    %4636 = vmatpush1.bf16.msra.mxu0 0
    %4637 = vmatprep.subr.bf16.mxu0 0
    %4638 = vmatpush1.bf16.msra.mxu0 0
    %4639 = vmatprep.subr.bf16.mxu0 0
    %4640 = vmatpush1.bf16.msra.mxu0 0
    %4641 = vmatprep.subr.bf16.mxu0 0
    %4642 = vmatpush1.bf16.msra.mxu0 0
    %4643 = vmatprep.subr.bf16.mxu0 0
    %4644 = vmatpush1.bf16.msra.mxu0 0
    %4645 = vmatprep.subr.bf16.mxu0 0
    %4646 = vmatpush1.bf16.msra.mxu0 0
    %4647 = vmatprep.mubr.bf16.mxu0 0
    %4648 = vmatmul.mubr.bf16.gmra.mrb[0].mxu0 %v4613
    %v4649 = vpop.f32.mrb[0].mxu0
    %v4650 = vadd.f32 0.0, %v4649
    %v4651 = vpop.f32.mrb[0].mxu0
    %v4652 = vpop.f32.mrb[0].mxu0
    %v4653 = vpop.f32.mrb[0].mxu0
    %4654 = vdwg.mxu0
    %4655 = vrot.lane.b32.xlu0 %v4331, 104
    %v4656 = vpop.permute.xlu0 %4655
    %4657 = vrot.lane.b32.xlu0 %v4332, 104
    %v4658 = vpop.permute.xlu0 %4657
    %v4660 = vsel %vm273, %v4656, 0
    %v4663 = vsel %vm273, %v4658, 0
    %4665 = vmatprep.subr.bf16.mxu0 0
    %4666 = vmatpush1.bf16.xpose.msra.mxu0 %v4663
    %4667 = vmatprep.subr.bf16.mxu0 0
    %4668 = vmatpush1.bf16.xpose.msra.mxu0 0
    %4669 = vmatprep.subr.bf16.mxu0 0
    %4670 = vmatpush1.bf16.xpose.msra.mxu0 0
    %4671 = vmatprep.subr.bf16.mxu0 0
    %4672 = vmatpush1.bf16.xpose.msra.mxu0 0
    %4673 = vmatprep.subr.bf16.mxu0 0
    %4674 = vmatpush1.bf16.xpose.msra.mxu0 0
    %4675 = vmatprep.subr.bf16.mxu0 0
    %4676 = vmatpush1.bf16.xpose.msra.mxu0 0
    %4677 = vmatprep.subr.bf16.mxu0 0
    %4678 = vmatpush1.bf16.xpose.msra.mxu0 0
    %4679 = vmatprep.subr.bf16.mxu0 0
    %4680 = vmatpush1.bf16.xpose.msra.mxu0 0
    %4681 = vmatprep.subr.bf16.mxu0 0
    %4682 = vmatpush1.bf16.xpose.msra.mxu0 0
    %4683 = vmatprep.subr.bf16.mxu0 0
    %4684 = vmatpush1.bf16.xpose.msra.mxu0 0
    %4685 = vmatprep.subr.bf16.mxu0 0
    %4686 = vmatpush1.bf16.xpose.msra.mxu0 0
    %4687 = vmatprep.subr.bf16.mxu0 0
    %4688 = vmatpush1.bf16.xpose.msra.mxu0 0
    %4689 = vmatprep.subr.bf16.mxu0 0
    %4690 = vmatpush1.bf16.xpose.msra.mxu0 0
    %4691 = vmatprep.subr.bf16.mxu0 0
    %4692 = vmatpush1.bf16.xpose.msra.mxu0 0
    %4693 = vmatprep.subr.bf16.mxu0 0
    %4694 = vmatpush1.bf16.xpose.msra.mxu0 0
    %4695 = vmatprep.subr.bf16.mxu0 0
    %4696 = vmatpush1.bf16.xpose.msra.mxu0 0
    %4697 = vmatprep.mubr.bf16.mxu0 0
    %4698 = vmatmul.mubr.bf16.gmra.mrb[0].mxu0 %v4660
    %v4699 = vpop.f32.mrb[0].mxu0
    %v4700 = vadd.f32 0.0, %v4699
    %v4701 = vpop.f32.mrb[0].mxu0
    %v4702 = vpop.f32.mrb[0].mxu0
    %v4703 = vpop.f32.mrb[0].mxu0
    %4704 = vdwg.mxu0
    %v4705 = vsel %vm724, %v4700, -inf
    %4706 = vmax.xlane.f32.xlu0 %v4705
    %v4707 = vpop.xlane.xlu0 %4706
    %v4708 = vsub.f32 %v4700, %v4707
    %v4709 = vmul.f32 %v4708, 1.442695
    %v4710 = vpow.pop %v4709
    %v4711 = vsel %vm724, %v4710, 0.0
    %4712 = vadd.xlane.f32.xlu0 %v4711
    %v4713 = vpop.xlane.xlu0 %4712
    %v4714 = vrcp.pop %v4713
    %v4715 = vmul.f32 %v4710, %v4714
    %v4716 = vpack.c.bf16 %v4715, %v4715
    %4717 = vrot.lane.b32.xlu0 %v4332, 72
    %v4718 = vpop.permute.xlu0 %4717
    %v4721 = vsel %vm724, %v4716, 0
    %4723 = vmatprep.subr.bf16.mxu0 0
    %4724 = vmatpush1.bf16.msra.mxu0 %v4718
    %4725 = vmatprep.subr.bf16.mxu0 0
    %4726 = vmatpush1.bf16.msra.mxu0 0
    %4727 = vmatprep.subr.bf16.mxu0 0
    %4728 = vmatpush1.bf16.msra.mxu0 0
    %4729 = vmatprep.subr.bf16.mxu0 0
    %4730 = vmatpush1.bf16.msra.mxu0 0
    %4731 = vmatprep.subr.bf16.mxu0 0
    %4732 = vmatpush1.bf16.msra.mxu0 0
    %4733 = vmatprep.subr.bf16.mxu0 0
    %4734 = vmatpush1.bf16.msra.mxu0 0
    %4735 = vmatprep.subr.bf16.mxu0 0
    %4736 = vmatpush1.bf16.msra.mxu0 0
    %4737 = vmatprep.subr.bf16.mxu0 0
    %4738 = vmatpush1.bf16.msra.mxu0 0
    %4739 = vmatprep.subr.bf16.mxu0 0
    %4740 = vmatpush1.bf16.msra.mxu0 0
    %4741 = vmatprep.subr.bf16.mxu0 0
    %4742 = vmatpush1.bf16.msra.mxu0 0
    %4743 = vmatprep.subr.bf16.mxu0 0
    %4744 = vmatpush1.bf16.msra.mxu0 0
    %4745 = vmatprep.subr.bf16.mxu0 0
    %4746 = vmatpush1.bf16.msra.mxu0 0
    %4747 = vmatprep.subr.bf16.mxu0 0
    %4748 = vmatpush1.bf16.msra.mxu0 0
    %4749 = vmatprep.subr.bf16.mxu0 0
    %4750 = vmatpush1.bf16.msra.mxu0 0
    %4751 = vmatprep.subr.bf16.mxu0 0
    %4752 = vmatpush1.bf16.msra.mxu0 0
    %4753 = vmatprep.subr.bf16.mxu0 0
    %4754 = vmatpush1.bf16.msra.mxu0 0
    %4755 = vmatprep.mubr.bf16.mxu0 0
    %4756 = vmatmul.mubr.bf16.gmra.mrb[0].mxu0 %v4721
    %v4757 = vpop.f32.mrb[0].mxu0
    %v4758 = vadd.f32 0.0, %v4757
    %v4759 = vpop.f32.mrb[0].mxu0
    %v4760 = vpop.f32.mrb[0].mxu0
    %v4761 = vpop.f32.mrb[0].mxu0
    %4762 = vdwg.mxu0
    %4764 = vrot.lane.b32.xlu0 %v4542, 8
    %v4765 = vpop.permute.xlu0 %4764
    %4768 = vrot.lane.b32.xlu0 %v4650, 16
    %v4769 = vpop.permute.xlu0 %4768
    %4772 = vrot.lane.b32.xlu0 %v4758, 24
    %v4773 = vpop.permute.xlu0 %4772
    %v4775 = vsel %vm273, %v4433, %v4765
    %v4776 = vsel %vm724, %v4775, %v4769
    %v4777 = vsel %vm726, %v4776, %v4773
    %4779 = vrot.lane.b32.xlu0 %v4499, 16
    %v4780 = vpop.permute.xlu0 %4779
    %4783 = vrot.lane.b32.xlu0 %v4607, 32
    %v4784 = vpop.permute.xlu0 %4783
    %4787 = vrot.lane.b32.xlu0 %v4715, 48
    %v4788 = vpop.permute.xlu0 %4787
    %v4790 = vsel %vm724, %v4389, %v4780
    %v4791 = vsel %vm164, %v4790, %v4784
    %v4792 = vsel %vm1885, %v4791, %v4788
    %v4793 = vpack.c.bf16 %v4777, %v4315
    %v4794 = vlaneseq
    %v4795 = vshrl.u32 %v4794, 7
    %v4796 = vsub.s32 7, %v4795
    %v4797 = vrot.slane %v2605, %v4796
    %v4802 = vunpack.c.l.b16 %v2614
    %v4803 = vunpack.c.l.b16 %v2615
    %v4804 = vunpack.c.l.b16 %v2616
    %v4805 = vunpack.c.l.b16 %v2617
    %v4806 = vpack.c.b16 %v4803, %v4802
    %v4807 = vpack.c.b16 %v4805, %v4804
    %v4811 = vsel %vm164, %v4793, 0
    %4813 = vmatprep.subr.bf16.mxu0 0
    %4814 = vmatpush1.bf16.msra.mxu0 %v4806
    %4815 = vmatprep.subr.bf16.mxu0 0
    %4816 = vmatpush1.bf16.msra.mxu0 %v4807
    %4817 = vmatprep.subr.bf16.mxu0 0
    %4818 = vmatpush1.bf16.msra.mxu0 0
    %4819 = vmatprep.subr.bf16.mxu0 0
    %4820 = vmatpush1.bf16.msra.mxu0 0
    %4821 = vmatprep.subr.bf16.mxu0 0
    %4822 = vmatpush1.bf16.msra.mxu0 0
    %4823 = vmatprep.subr.bf16.mxu0 0
    %4824 = vmatpush1.bf16.msra.mxu0 0
    %4825 = vmatprep.subr.bf16.mxu0 0
    %4826 = vmatpush1.bf16.msra.mxu0 0
    %4827 = vmatprep.subr.bf16.mxu0 0
    %4828 = vmatpush1.bf16.msra.mxu0 0
    %4829 = vmatprep.subr.bf16.mxu0 0
    %4830 = vmatpush1.bf16.msra.mxu0 0
    %4831 = vmatprep.subr.bf16.mxu0 0
    %4832 = vmatpush1.bf16.msra.mxu0 0
    %4833 = vmatprep.subr.bf16.mxu0 0
    %4834 = vmatpush1.bf16.msra.mxu0 0
    %4835 = vmatprep.subr.bf16.mxu0 0
    %4836 = vmatpush1.bf16.msra.mxu0 0
    %4837 = vmatprep.subr.bf16.mxu0 0
    %4838 = vmatpush1.bf16.msra.mxu0 0
    %4839 = vmatprep.subr.bf16.mxu0 0
    %4840 = vmatpush1.bf16.msra.mxu0 0
    %4841 = vmatprep.subr.bf16.mxu0 0
    %4842 = vmatpush1.bf16.msra.mxu0 0
    %4843 = vmatprep.subr.bf16.mxu0 0
    %4844 = vmatpush1.bf16.msra.mxu0 0
    %4845 = vmatprep.mubr.bf16.mxu0 0
    %4846 = vmatmul.mubr.bf16.gmra.mrb[0].mxu0 %v4811
    %v4847 = vpop.f32.mrb[0].mxu0
    %v4848 = vadd.f32 %v4797, %v4847
    %v4849 = vpop.f32.mrb[0].mxu0
    %v4850 = vpop.f32.mrb[0].mxu0
    %v4851 = vadd.f32 %v4797, %v4850
    %v4852 = vpop.f32.mrb[0].mxu0
    %4853 = vdwg.mxu0
    %v4854 = vadd.f32 %v3693, %v4848
    %v4855 = vadd.f32 %v3694, %v4851
    %v4856 = vsel %vm164, %v4854, 0.0
    %4857 = vadd.xlane.f32.xlu0 %v4856
    %v4858 = vpop.xlane.xlu0 %4857
    %v4859 = vsel %vm164, %v4855, 0.0
    %4860 = vadd.xlane.f32.xlu0 %v4859
    %v4861 = vpop.xlane.xlu0 %4860
    %v4862 = vmul.f32 %v4858, %v171
    %v4863 = vmul.f32 %v4861, %v171
    %v4864 = vsub.f32 %v4854, %v4862
    %v4865 = vsub.f32 %v4855, %v4863
    %v4866 = vmul.f32 %v4864, %v4864
    %v4867 = vmul.f32 %v4865, %v4865
    %v4868 = vsel %vm164, %v4866, 0.0
    %4869 = vadd.xlane.f32.xlu0 %v4868
    %v4870 = vpop.xlane.xlu0 %4869
    %v4871 = vsel %vm164, %v4867, 0.0
    %4872 = vadd.xlane.f32.xlu0 %v4871
    %v4873 = vpop.xlane.xlu0 %4872
    %v4874 = vmul.f32 %v4870, %v171
    %v4875 = vmul.f32 %v4873, %v171
    %v4876 = vadd.f32 %v4874, 1e-05
    %v4877 = vadd.f32 %v4875, 1e-05
    %v4878 = vrsqrt.pop %v4876
    %v4879 = vrsqrt.pop %v4877
    %v4880 = vmul.f32 %v4864, %v4878
    %v4881 = vmul.f32 %v4865, %v4879
    %v4882 = vlaneseq
    %v4883 = vshrl.u32 %v4882, 7
    %v4884 = vsub.s32 4, %v4883
    %v4885 = vrot.slane %v2605, %v4884
    %v4886 = vmul.f32 %v4880, %v4885
    %v4887 = vmul.f32 %v4881, %v4885
    %v4888 = vlaneseq
    %v4889 = vshrl.u32 %v4888, 7
    %v4890 = vsub.s32 5, %v4889
    %v4891 = vrot.slane %v2605, %v4890
    %v4892 = vadd.f32 %v4886, %v4891
    %v4893 = vadd.f32 %v4887, %v4891
    %v4894 = vpack.c.bf16 %v4893, %v4892
    %s4895 = scalar_lea.vmem [#allocation13], 16
    %v4896 = vld [vmem:[%s4895] sm:$0xf]
    %v4897 = vld [vmem:[%s4895 + $0x4] sm:$0xf]
    %v4898 = vld [vmem:[%s4895 + $0x8] sm:$0xf]
    %v4899 = vld [vmem:[%s4895 + $0xc] sm:$0xf]
    %s4900 = scalar_lea.vmem %s5, 1
    %v4901 = vld [vmem:[%s4900] sm:$0x1]
    %v4903 = vlaneseq
    %v4904 = vshrl.u32 %v4903, 7
    %v4905 = vsub.s32 0, %v4904
    %v4906 = vrot.slane %v4901, %v4905
    %v4912 = vunpack.c.l.b16 %v4896
    %v4913 = vunpack.c.l.b16 %v4897
    %v4914 = vunpack.c.l.b16 %v4898
    %v4915 = vunpack.c.l.b16 %v4899
    %v4916 = vpack.c.b16 %v4913, %v4912
    %v4917 = vpack.c.b16 %v4915, %v4914
    %v4921 = vsel %vm164, %v4894, 0
    %4923 = vmatprep.subr.bf16.mxu0 0
    %4924 = vmatpush1.bf16.msra.mxu0 %v4916
    %4925 = vmatprep.subr.bf16.mxu0 0
    %4926 = vmatpush1.bf16.msra.mxu0 %v4917
    %4927 = vmatprep.subr.bf16.mxu0 0
    %4928 = vmatpush1.bf16.msra.mxu0 0
    %4929 = vmatprep.subr.bf16.mxu0 0
    %4930 = vmatpush1.bf16.msra.mxu0 0
    %4931 = vmatprep.subr.bf16.mxu0 0
    %4932 = vmatpush1.bf16.msra.mxu0 0
    %4933 = vmatprep.subr.bf16.mxu0 0
    %4934 = vmatpush1.bf16.msra.mxu0 0
    %4935 = vmatprep.subr.bf16.mxu0 0
    %4936 = vmatpush1.bf16.msra.mxu0 0
    %4937 = vmatprep.subr.bf16.mxu0 0
    %4938 = vmatpush1.bf16.msra.mxu0 0
    %4939 = vmatprep.subr.bf16.mxu0 0
    %4940 = vmatpush1.bf16.msra.mxu0 0
    %4941 = vmatprep.subr.bf16.mxu0 0
    %4942 = vmatpush1.bf16.msra.mxu0 0
    %4943 = vmatprep.subr.bf16.mxu0 0
    %4944 = vmatpush1.bf16.msra.mxu0 0
    %4945 = vmatprep.subr.bf16.mxu0 0
    %4946 = vmatpush1.bf16.msra.mxu0 0
    %4947 = vmatprep.subr.bf16.mxu0 0
    %4948 = vmatpush1.bf16.msra.mxu0 0
    %4949 = vmatprep.subr.bf16.mxu0 0
    %4950 = vmatpush1.bf16.msra.mxu0 0
    %4951 = vmatprep.subr.bf16.mxu0 0
    %4952 = vmatpush1.bf16.msra.mxu0 0
    %4953 = vmatprep.subr.bf16.mxu0 0
    %4954 = vmatpush1.bf16.msra.mxu0 0
    %4955 = vmatprep.mubr.bf16.mxu0 0
    %4956 = vmatmul.mubr.bf16.gmra.mrb[0].mxu0 %v4921
    %v4957 = vpop.f32.mrb[0].mxu0
    %v4958 = vadd.f32 %v4906, %v4957
    %v4959 = vpop.f32.mrb[0].mxu0
    %v4960 = vpop.f32.mrb[0].mxu0
    %v4961 = vadd.f32 %v4906, %v4960
    %v4962 = vpop.f32.mrb[0].mxu0
    %4963 = vdwg.mxu0
    %v4964 = vmax.f32 %v4958, 0.0
    %v4965 = vmax.f32 %v4961, 0.0
    %v4966 = vpack.c.bf16 %v4965, %v4964
    %s4967 = scalar_lea.vmem %s11, 32
    %v4968 = vld [vmem:[%s4967] sm:$0xf]
    %v4969 = vld [vmem:[%s4967 + $0x4] sm:$0xf]
    %v4970 = vld [vmem:[%s4967 + $0x8] sm:$0xf]
    %v4971 = vld [vmem:[%s4967 + $0xc] sm:$0xf]
    %v4972 = vld [vmem:[%s4967 + $0x10] sm:$0xf]
    %v4973 = vld [vmem:[%s4967 + $0x14] sm:$0xf]
    %v4974 = vld [vmem:[%s4967 + $0x18] sm:$0xf]
    %v4975 = vld [vmem:[%s4967 + $0x1c] sm:$0xf]
    %v4976 = vlaneseq
    %v4977 = vshrl.u32 %v4976, 7
    %v4978 = vsub.s32 0, %v4977
    %v4979 = vrot.slane %v2606, %v4978
    %v4988 = vunpack.c.l.b16 %v4968
    %v4989 = vunpack.c.l.b16 %v4969
    %v4990 = vunpack.c.l.b16 %v4970
    %v4991 = vunpack.c.l.b16 %v4971
    %v4992 = vunpack.c.l.b16 %v4972
    %v4993 = vunpack.c.l.b16 %v4973
    %v4994 = vunpack.c.l.b16 %v4974
    %v4995 = vunpack.c.l.b16 %v4975
    %v4996 = vpack.c.b16 %v4989, %v4988
    %v4997 = vpack.c.b16 %v4991, %v4990
    %v4998 = vpack.c.b16 %v4993, %v4992
    %v4999 = vpack.c.b16 %v4995, %v4994
    %v5005 = vsel %vm2557, %v4966, 0
    %5007 = vmatprep.subr.bf16.mxu0 0
    %5008 = vmatpush1.bf16.msra.mxu0 %v4996
    %5009 = vmatprep.subr.bf16.mxu0 0
    %5010 = vmatpush1.bf16.msra.mxu0 %v4997
    %5011 = vmatprep.subr.bf16.mxu0 0
    %5012 = vmatpush1.bf16.msra.mxu0 %v4998
    %5013 = vmatprep.subr.bf16.mxu0 0
    %5014 = vmatpush1.bf16.msra.mxu0 %v4999
    %5015 = vmatprep.subr.bf16.mxu0 0
    %5016 = vmatpush1.bf16.msra.mxu0 0
    %5017 = vmatprep.subr.bf16.mxu0 0
    %5018 = vmatpush1.bf16.msra.mxu0 0
    %5019 = vmatprep.subr.bf16.mxu0 0
    %5020 = vmatpush1.bf16.msra.mxu0 0
    %5021 = vmatprep.subr.bf16.mxu0 0
    %5022 = vmatpush1.bf16.msra.mxu0 0
    %5023 = vmatprep.subr.bf16.mxu0 0
    %5024 = vmatpush1.bf16.msra.mxu0 0
    %5025 = vmatprep.subr.bf16.mxu0 0
    %5026 = vmatpush1.bf16.msra.mxu0 0
    %5027 = vmatprep.subr.bf16.mxu0 0
    %5028 = vmatpush1.bf16.msra.mxu0 0
    %5029 = vmatprep.subr.bf16.mxu0 0
    %5030 = vmatpush1.bf16.msra.mxu0 0
    %5031 = vmatprep.subr.bf16.mxu0 0
    %5032 = vmatpush1.bf16.msra.mxu0 0
    %5033 = vmatprep.subr.bf16.mxu0 0
    %5034 = vmatpush1.bf16.msra.mxu0 0
    %5035 = vmatprep.subr.bf16.mxu0 0
    %5036 = vmatpush1.bf16.msra.mxu0 0
    %5037 = vmatprep.subr.bf16.mxu0 0
    %5038 = vmatpush1.bf16.msra.mxu0 0
    %5039 = vmatprep.mubr.bf16.mxu0 0
    %5040 = vmatmul.mubr.bf16.gmra.mrb[0].mxu0 %v5005
    %v5041 = vpop.f32.mrb[0].mxu0
    %v5042 = vadd.f32 %v4979, %v5041
    %v5043 = vpop.f32.mrb[0].mxu0
    %v5044 = vpop.f32.mrb[0].mxu0
    %v5045 = vadd.f32 %v4979, %v5044
    %v5046 = vpop.f32.mrb[0].mxu0
    %5047 = vdwg.mxu0
    %v5048 = vadd.f32 %v4854, %v5042
    %v5049 = vadd.f32 %v4855, %v5045
    %s5050 = scalar_lea.vmem %s3, 32
    %v5051 = vld [vmem:[%s5050] sm:$0xff]
    %v5052 = vsel %vm164, %v5048, 0.0
    %5053 = vadd.xlane.f32.xlu0 %v5052
    %v5054 = vpop.xlane.xlu0 %5053
    %v5055 = vsel %vm164, %v5049, 0.0
    %5056 = vadd.xlane.f32.xlu0 %v5055
    %v5057 = vpop.xlane.xlu0 %5056
    %v5058 = vmul.f32 %v5054, %v171
    %v5059 = vmul.f32 %v5057, %v171
    %v5060 = vsub.f32 %v5048, %v5058
    %v5061 = vsub.f32 %v5049, %v5059
    %v5062 = vmul.f32 %v5060, %v5060
    %v5063 = vmul.f32 %v5061, %v5061
    %v5064 = vsel %vm164, %v5062, 0.0
    %5065 = vadd.xlane.f32.xlu0 %v5064
    %v5066 = vpop.xlane.xlu0 %5065
    %v5067 = vsel %vm164, %v5063, 0.0
    %5068 = vadd.xlane.f32.xlu0 %v5067
    %v5069 = vpop.xlane.xlu0 %5068
    %v5070 = vmul.f32 %v5066, %v171
    %v5071 = vmul.f32 %v5069, %v171
    %v5072 = vadd.f32 %v5070, 1e-05
    %v5073 = vadd.f32 %v5071, 1e-05
    %v5074 = vrsqrt.pop %v5072
    %v5075 = vrsqrt.pop %v5073
    %v5076 = vmul.f32 %v5060, %v5074
    %v5077 = vmul.f32 %v5061, %v5075
    %v5078 = vlaneseq
    %v5079 = vshrl.u32 %v5078, 7
    %v5080 = vsub.s32 0, %v5079
    %v5081 = vrot.slane %v5051, %v5080
    %v5082 = vmul.f32 %v5076, %v5081
    %v5083 = vmul.f32 %v5077, %v5081
    %v5084 = vlaneseq
    %v5085 = vshrl.u32 %v5084, 7
    %v5086 = vsub.s32 1, %v5085
    %v5087 = vrot.slane %v5051, %v5086
    %v5088 = vadd.f32 %v5082, %v5087
    %v5089 = vadd.f32 %v5083, %v5087
    %5090 = vst.msk [vmem:[#allocation14] sm:$0xff] %vm164, %v5088
    %5091 = vst.msk [vmem:[#allocation14 + $0x8] sm:$0xff] %vm164, %v5089
    %5093 = vrot.lane.b32.xlu0 %v4330, 64
    %v5094 = vpop.permute.xlu0 %5093
    %v5096 = vsel %vm2557, %v1886, %v5094
    %5098 = vrot.lane.b32.xlu0 %v4792, 64
    %v5099 = vpop.permute.xlu0 %5098
    %v5101 = vsel %vm2557, %v2348, %v5099
    %5102 = vst [vmem:[#allocation15] sm:$0xff] %v5096
    %5103 = vst [vmem:[#allocation15 + $0x8] sm:$0xff] %v5101
    // Predicated region
    $region78: #{tpu_custom_call.1} parent=1 // pred_check
      _
    $region79: #{tpu_custom_call.1} parent=1 // pred_check_branch
      %5105 = sbr.rel (0) target = $region81
    $region80: #{tpu_custom_call.1} parent=1 // pred_region
      %s5107 = ssub.s32 256, 256
      %5108 = vsyncadd [#allocation4], %s5107
      %s5109 = sshll.u32 [#allocation14], 4
      %s5110 = int_to_ptr.vmem [resolvable:$true] %s5109
      %5115 = dma.vmem_to_hbm [thread:$0]  %s5110, 256, %s12, [#allocation4], 128, 128, 8
    $region81: #{tpu_custom_call.1} parent=1 // pred_fallthru
      _
    // Predicated region
    $region82: #{tpu_custom_call.1} parent=1 // pred_check
      _
    $region83: #{tpu_custom_call.1} parent=1 // pred_check_branch
      %5117 = sbr.rel (0) target = $region85
    $region84: #{tpu_custom_call.1} parent=1 // pred_region
      %s5119 = ssub.s32 256, 256
      %5120 = vsyncadd [#allocation16], %s5119
      %s5121 = sshll.u32 [#allocation15], 4
      %s5122 = int_to_ptr.vmem [resolvable:$true] %s5121
      %5127 = dma.vmem_to_hbm [thread:$0]  %s5122, 256, %s13, [#allocation16], 128, 128, 8
    $region85: #{tpu_custom_call.1} parent=1 // pred_fallthru
      _
    // Predicated region
    $region86: #{tpu_custom_call.1} parent=1 // pred_check
      _
    $region87: #{tpu_custom_call.1} parent=1 // pred_check_branch
      %5129 = sbr.rel (0) target = $region89
    $region88: #{tpu_custom_call.1} parent=1 // pred_region
      %5130 = dma.done [#allocation4], 256
    $region89: #{tpu_custom_call.1} parent=1 // pred_fallthru
      _
    // Predicated region
    $region90: #{tpu_custom_call.1} parent=1 // pred_check
      _
    $region91: #{tpu_custom_call.1} parent=1 // pred_check_branch
      %5132 = sbr.rel (0) target = $region93
    $region92: #{tpu_custom_call.1} parent=1 // pred_region
      %5133 = dma.done [#allocation16], 256
    $region93: #{tpu_custom_call.1} parent=1 // pred_fallthru
      _
    %5134 = vsyncpa [#allocation3], 1
    %5135 = vsyncpa [#allocation6], 1
    %5136 = vsyncpa [#allocation9], 1
    %5137 = vsyncpa [#allocation12], 1
    %5138 = vsyncpa [#allocation4], 1
    %5139 = vsyncpa [#allocation16], 1

</llo_original>
